<compile_context>
chip_gen: v7x
topology: tpu7x:2x2x1
jax: 0.10.0
libtpu: 0.0.40
codegen_flags: <defaults>
</compile_context>

<pallas_src>
import math

import jax
import jax.numpy as jnp
from jax import lax
from jax.experimental import pallas as pl
from jax.experimental.pallas import tpu as pltpu

LEAKY_SLOPE = 0.2
INV_SQRT2 = 1.0 / math.sqrt(2.0)
LANES = 128
SUBLANES = 8


def _leaky_relu(x):
    return jnp.where(x > 0, x, LEAKY_SLOPE * x)


def _round_up(v, m):
    return (v + m - 1) // m * m


def _make_resblk_kernel(H, W, Wp, Cip, Cop, rs, learned_sc):
    """Kernel for one batch element.

    Flat-slab layouts (rows flattened as h*Wp + column):
      x slab / pad1 : interior value (h, w) at flat row (h+1)*Wp + (w+2)
      pad2          : interior value (h, w) at flat row (h+1)*Wp + (w+1)
      output        : value (h, w) at flat row  h*Wp + w   (cols >= W garbage)
    With these offsets every 3x3 tap of a strip is a contiguous slice of the
    slab starting at (r0+ky)*Wp + kx, so each conv is 9 big MXU matmuls/strip.
    """
    Hx = H + 3
    n_flat = Hx * Wp

    strips = []
    s = 0
    while s < H:
        strips.append((s, min(rs, H - s)))
        s += rs

    def kernel(x_ref, w1_ref, b1_ref, w2_ref, b2_ref, *rest):
        if learned_sc:
            wsc_ref, o_ref, pad1, pad2 = rest
        else:
            o_ref, pad1, pad2 = rest

        f32 = jnp.float32
        bf16 = jnp.bfloat16

        # Stage 0: pad1 = LeakyReLU(x). x is already zero-padded by the
        # wrapper and LeakyReLU(0) == 0, so pad1's halos come out zero for
        # free (no slab zeroing). Chunked to bound f32 temporaries.
        step = rs * Wp
        off = 0
        while off < n_flat:
            c = min(step, n_flat - off)
            pad1[off:off + c, :] = _leaky_relu(x_ref[off:off + c, :])
            off += c

        # pad2 halo row-blocks (top row 0, bottom rows H+1..H+2). Re-zeroed
        # every grid step: scratch persists and the batch axis may be sharded
        # across TensorCores, so "zero on first step" would be unsafe.
        pad2[0:Wp, :] = jnp.zeros((Wp, Cip), pad2.dtype)
        pad2[(H + 1) * Wp:(H + 3) * Wp, :] = jnp.zeros((2 * Wp, Cip), pad2.dtype)

        b1 = b1_ref[...].astype(f32)   # (1, Cip)   hoisted out of the loops
        b2 = b2_ref[...].astype(f32)   # (1, Cop)

        # Interior-column mask (strip starts are multiples of Wp -> one mask
        # built once covers every strip as a prefix).
        col = lax.broadcasted_iota(jnp.int32, (rs * Wp, 1), 0) % Wp
        col_ok = (col >= 1) & (col <= W)

        # Stage 1: conv1 (3x3, Cin->Cin) + LeakyReLU -> pad2 interior.
        for r0, rss in strips:
            m = rss * Wp
            acc = None
            for ky in range(3):
                for kx in range(3):
                    start = (r0 + ky) * Wp + kx
                    a = pad1[start:start + m, :].astype(bf16)
                    d = jnp.dot(a, w1_ref[ky * 3 + kx],
                                preferred_element_type=f32)
                    acc = d if acc is None else acc + d
            z = _leaky_relu(acc + b1)
            z = jnp.where(col_ok[:m], z, 0.0)        # zero pad2's column halos
            dst = (r0 + 1) * Wp
            pad2[dst:dst + m, :] = z.astype(pad2.dtype)

        # Stage 2: conv2 (3x3, Cin->Cout) + shortcut + 1/sqrt(2) -> output
        # (wide layout; garbage columns are sliced off by the wrapper).
        for r0, rss in strips:
            m = rss * Wp
            acc = None
            for ky in range(3):
                for kx in range(3):
                    start = (r0 + ky) * Wp + kx
                    a = pad2[start:start + m, :].astype(bf16)
                    d = jnp.dot(a, w2_ref[ky * 3 + kx],
                                preferred_element_type=f32)
                    acc = d if acc is None else acc + d
            res = acc + b2
            xs = x_ref[r0 * Wp + Wp + 2:r0 * Wp + Wp + 2 + m, :]
            if learned_sc:
                sc = jnp.dot(xs.astype(bf16), wsc_ref[...],
                             preferred_element_type=f32)
            else:
                sc = xs.astype(f32)                  # Cin == Cout
            out = (sc + res) * INV_SQRT2
            o_ref[r0 * Wp:r0 * Wp + m, :] = out.astype(o_ref.dtype)

    return kernel


@jax.jit
def resblk_forward(x_nchw, conv1_w, conv1_b, conv2_w, conv2_b, conv1x1_w=None):
    """ResBlk.forward (actv=LeakyReLU(0.2), normalize=False, downsample='none').

    PyTorch layouts: x (B, Cin, H, W); conv weights (Cout, Cin, kH, kW).
    """
    # TODO(synk): normalize=True (InstanceNorm2d) and downsample='timepreserve'
    # / 'half' branches are not implemented; this covers the module defaults.
    # TODO(synk): in a real pipeline keep activations NHWC across layers
    # instead of transposing NCHW<->NHWC around every block.
    B, Cin, H, W = x_nchw.shape
    Cout = conv2_w.shape[0]
    learned_sc = Cin != Cout
    if learned_sc and conv1x1_w is None:
        raise ValueError("dim_in != dim_out requires conv1x1 weights")

    Cip = _round_up(Cin, LANES)         # lane-dense channel widths
    Cop = _round_up(Cout, LANES)
    Wp = _round_up(W + 3, SUBLANES)     # padded row width (sublane aligned)
    Hx = H + 3                          # padded slab rows

    # Per-tap (9, Cin, Cout) weight layout (k = ky*3 + kx), zero-padded to
    # lane-dense widths, bf16 (MXU-native).
    w1k = jnp.transpose(conv1_w, (2, 3, 1, 0)).reshape(9, Cin, Cin)
    w1k = jnp.pad(w1k, ((0, 0), (0, Cip - Cin), (0, Cip - Cin))).astype(jnp.bfloat16)
    w2k = jnp.transpose(conv2_w, (2, 3, 1, 0)).reshape(9, Cin, Cout)
    w2k = jnp.pad(w2k, ((0, 0), (0, Cip - Cin), (0, Cop - Cout))).astype(jnp.bfloat16)
    b1p = jnp.pad(conv1_b.astype(jnp.float32), (0, Cip - Cin)).reshape(1, Cip)
    b2p = jnp.pad(conv2_b.astype(jnp.float32), (0, Cop - Cout)).reshape(1, Cop)

    # x: NCHW -> NHWC (channels on lanes) -> zero-padded slab with the
    # interior at (row h+1, col w+2), flattened to (Hx*Wp, Cip), f32.
    x_nhwc = jnp.transpose(x_nchw, (0, 2, 3, 1))
    xp = jnp.pad(x_nhwc, ((0, 0), (1, Hx - H - 1), (2, Wp - W - 2), (0, Cip - Cin)))
    xp = xp.astype(jnp.float32).reshape(B, Hx * Wp, Cip)

    rs = min(H, max(1, 512 // Wp))      # output rows per strip (matmul M = rs*Wp)
    kernel = _make_resblk_kernel(H, W, Wp, Cip, Cop, rs, learned_sc)

    in_specs = [
        pl.BlockSpec((None, Hx * Wp, Cip), lambda b: (b, 0, 0)),   # x slab (per image)
        pl.BlockSpec((9, Cip, Cip), lambda b: (0, 0, 0)),          # conv1 w (resident)
        pl.BlockSpec((1, Cip), lambda b: (0, 0)),                  # conv1 bias
        pl.BlockSpec((9, Cip, Cop), lambda b: (0, 0, 0)),          # conv2 w (resident)
        pl.BlockSpec((1, Cop), lambda b: (0, 0)),                  # conv2 bias
    ]
    args = [xp, w1k, b1p, w2k, b2p]
    if learned_sc:
        wsck = jnp.transpose(conv1x1_w[:, :, 0, 0], (1, 0))        # (Cin, Cout)
        wsck = jnp.pad(wsck, ((0, Cip - Cin), (0, Cop - Cout))).astype(jnp.bfloat16)
        in_specs.append(pl.BlockSpec((Cip, Cop), lambda b: (0, 0)))
        args.append(wsck)

    out_dtype = x_nchw.dtype
    out_isz = jnp.dtype(out_dtype).itemsize
    block_bytes = (Hx * Wp * Cip * 4 + H * Wp * Cop * out_isz
                   + 9 * Cip * Cip * 2 + 9 * Cip * Cop * 2 + Cip * Cop * 2
                   + 4 * (Cip + Cop))
    est = 2 * block_bytes + 2 * Hx * Wp * Cip * 4 + 6 * rs * Wp * max(Cip, Cop) * 4
    vmem_limit = int(min(110 * 2 ** 20, max(32 * 2 ** 20, 2 * est)))

    out_flat = pl.pallas_call(
        kernel,
        out_shape=jax.ShapeDtypeStruct((B, H * Wp, Cop), out_dtype),
        grid_spec=pltpu.PrefetchScalarGridSpec(
            num_scalar_prefetch=0,
            grid=(B,),
            in_specs=in_specs,
            out_specs=pl.BlockSpec((None, H * Wp, Cop), lambda b: (b, 0, 0)),
            scratch_shapes=[
                pltpu.VMEM((Hx * Wp, Cip), jnp.float32),   # pad1: LeakyReLU(x)
                pltpu.VMEM((Hx * Wp, Cip), jnp.float32),   # pad2: LeakyReLU(conv1)
            ],
        ),
        compiler_params=pltpu.CompilerParams(
            dimension_semantics=("parallel",),   # batch steps independent -> v7x megacore
            vmem_limit_bytes=vmem_limit,
        ),
    )(*args)

    # Drop wide-layout garbage columns and lane padding; back to NCHW.
    out = out_flat.reshape(B, H, Wp, Cop)[:, :, :W, :Cout]
    return jnp.transpose(out, (0, 3, 1, 2))


# ----------------------------- helpers / reference -----------------------------

def _spectral_normalize(w, n_iters=10):
    """Power-iteration spectral normalization W / sigma_max (torch spectral_norm style)."""
    o = w.shape[0]
    mat = w.reshape(o, -1).astype(jnp.float32)
    u = jnp.ones((o,), jnp.float32) / jnp.sqrt(jnp.float32(o))

    def body(_, u):
        v = mat.T @ u
        v = v / (jnp.linalg.norm(v) + 1e-12)
        u = mat @ v
        u = u / (jnp.linalg.norm(u) + 1e-12)
        return u

    u = lax.fori_loop(0, n_iters, body, u)
    v = mat.T @ u
    v = v / (jnp.linalg.norm(v) + 1e-12)
    sigma = u @ (mat @ v)
    return (w / sigma).astype(w.dtype)


def _resblk_reference(x, conv1_w, conv1_b, conv2_w, conv2_b, conv1x1_w=None):
    """Pure-JAX reference (lax.conv) of ResBlk.forward, NCHW, f32."""
    def conv(v, w, b=None):
        out = lax.conv_general_dilated(v, w, window_strides=(1, 1), padding="SAME",
                                       dimension_numbers=("NCHW", "OIHW", "NCHW"))
        return out if b is None else out + b[None, :, None, None]

    res = _leaky_relu(x)
    res = conv(res, conv1_w, conv1_b)
    res = _leaky_relu(res)
    res = conv(res, conv2_w, conv2_b)
    learned_sc = conv1_w.shape[1] != conv2_w.shape[0]
    sc = conv(x, conv1x1_w) if learned_sc else x
    return (sc + res) * INV_SQRT2


if __name__ == "__main__":
    key = jax.random.PRNGKey(0)
    B, Cin, H, W = 2, 4, 16, 16
    Cout = 8
    ks = jax.random.split(key, 8)

    x = jax.random.normal(ks[0], (B, Cin, H, W), jnp.float32)

    conv1_w = _spectral_normalize(0.3 * jax.random.normal(ks[1], (Cin, Cin, 3, 3), jnp.float32))
    conv1_b = 0.1 * jax.random.normal(ks[2], (Cin,), jnp.float32)
    conv2_w = _spectral_normalize(0.3 * jax.random.normal(ks[3], (Cout, Cin, 3, 3), jnp.float32))
    conv2_b = 0.1 * jax.random.normal(ks[4], (Cout,), jnp.float32)
    conv1x1_w = _spectral_normalize(0.3 * jax.random.normal(ks[5], (Cout, Cin, 1, 1), jnp.float32))

    # Tolerances are loose because matmul operands are rounded to bf16 in the
    # kernel (f32 accumulation); the reference is pure f32.
    ATOL = RTOL = 5e-2

    # Learned-shortcut configuration (dim_in != dim_out).
    out = jax.block_until_ready(resblk_forward(x, conv1_w, conv1_b, conv2_w, conv2_b, conv1x1_w))
    ref = _resblk_reference(x, conv1_w, conv1_b, conv2_w, conv2_b, conv1x1_w)
    assert out.shape == (B, Cout, H, W)
    err = float(jnp.max(jnp.abs(out - ref)))
    assert jnp.allclose(out, ref, atol=ATOL, rtol=RTOL), f"learned-sc max abs err {err}"

    # Identity-shortcut configuration (dim_in == dim_out).
    conv2b_w = _spectral_normalize(0.3 * jax.random.normal(ks[6], (Cin, Cin, 3, 3), jnp.float32))
    conv2b_b = 0.1 * jax.random.normal(ks[7], (Cin,), jnp.float32)
    out2 = jax.block_until_ready(resblk_forward(x, conv1_w, conv1_b, conv2b_w, conv2b_b))
    ref2 = _resblk_reference(x, conv1_w, conv1_b, conv2b_w, conv2b_b)
    assert out2.shape == (B, Cin, H, W)
    err2 = float(jnp.max(jnp.abs(out2 - ref2)))
    assert jnp.allclose(out2, ref2, atol=ATOL, rtol=RTOL), f"identity-sc max abs err {err2}"

    print("KERNEL_OK")
</pallas_src>

<mosaic_0001>
module attributes {stable_mosaic.version = 11 : i64} {
  func.func @kernel(%arg0: i32, %arg1: memref<1x456x128xf32, #tpu.memory_space<vmem>>, %arg2: memref<9x128x128xbf16, #tpu.memory_space<vmem>>, %arg3: memref<1x128xf32, #tpu.memory_space<vmem>>, %arg4: memref<9x128x128xbf16, #tpu.memory_space<vmem>>, %arg5: memref<1x128xf32, #tpu.memory_space<vmem>>, %arg6: memref<128x128xbf16, #tpu.memory_space<vmem>>, %arg7: memref<1x384x128xf32, #tpu.memory_space<vmem>>, %arg8: memref<456x128xf32, #tpu.memory_space<vmem>>, %arg9: memref<456x128xf32, #tpu.memory_space<vmem>>) attributes {dimension_semantics = [#tpu.dimension_semantics<parallel>], iteration_bounds = array<i64: 2>, scalar_prefetch = 0 : i64, scratch_operands = 2 : i64, tpu.core_type = #tpu.core_type<tc>, window_params = [{transform_indices = @transform_0, window_bounds = array<i64: 1, 456, 128>}, {pipeline_mode = #tpu.pipeline_mode<synchronous>, transform_indices = @transform_1, window_bounds = array<i64: 9, 128, 128>}, {pipeline_mode = #tpu.pipeline_mode<synchronous>, transform_indices = @transform_2, window_bounds = array<i64: 1, 128>}, {pipeline_mode = #tpu.pipeline_mode<synchronous>, transform_indices = @transform_3, window_bounds = array<i64: 9, 128, 128>}, {pipeline_mode = #tpu.pipeline_mode<synchronous>, transform_indices = @transform_4, window_bounds = array<i64: 1, 128>}, {pipeline_mode = #tpu.pipeline_mode<synchronous>, transform_indices = @transform_5, window_bounds = array<i64: 128, 128>}, {transform_indices = @transform_6, window_bounds = array<i64: 1, 384, 128>}]} {
    %c0 = arith.constant 0 : index
    %c0_0 = arith.constant 0 : index
    %c0_1 = arith.constant 0 : index
    %0 = vector.load %arg1[%c0, %c0_0, %c0_1] : memref<1x456x128xf32, #tpu.memory_space<vmem>>, vector<1x384x128xf32>
    %1 = vector.shape_cast %0 : vector<1x384x128xf32> to vector<384x128xf32>
    %cst = arith.constant 0.000000e+00 : f32
    %2 = vector.broadcast %cst : f32 to vector<384x128xf32>
    %3 = arith.cmpf ogt, %1, %2 : vector<384x128xf32>
    %cst_2 = arith.constant 2.000000e-01 : f32
    %4 = vector.broadcast %cst_2 : f32 to vector<384x128xf32>
    %5 = arith.mulf %4, %1 : vector<384x128xf32>
    %6 = arith.select %3, %1, %5 : vector<384x128xi1>, vector<384x128xf32>
    %c0_3 = arith.constant 0 : index
    %c0_4 = arith.constant 0 : index
    %7 = vector.load %arg8[%c0_3, %c0_4] : memref<456x128xf32, #tpu.memory_space<vmem>>, vector<384x128xf32>
    tpu.vector_store %arg8[%c0_3, %c0_4], %6 {strides = array<i32>} : memref<456x128xf32, #tpu.memory_space<vmem>>, vector<384x128xf32>,
    %c0_5 = arith.constant 0 : index
    %c384 = arith.constant 384 : index
    %c0_6 = arith.constant 0 : index
    %8 = vector.load %arg1[%c0_5, %c384, %c0_6] : memref<1x456x128xf32, #tpu.memory_space<vmem>>, vector<1x72x128xf32>
    %9 = vector.shape_cast %8 : vector<1x72x128xf32> to vector<72x128xf32>
    %cst_7 = arith.constant 0.000000e+00 : f32
    %10 = vector.broadcast %cst_7 : f32 to vector<72x128xf32>
    %11 = arith.cmpf ogt, %9, %10 : vector<72x128xf32>
    %cst_8 = arith.constant 2.000000e-01 : f32
    %12 = vector.broadcast %cst_8 : f32 to vector<72x128xf32>
    %13 = arith.mulf %12, %9 : vector<72x128xf32>
    %14 = arith.select %11, %9, %13 : vector<72x128xi1>, vector<72x128xf32>
    %c384_9 = arith.constant 384 : index
    %c0_10 = arith.constant 0 : index
    %15 = vector.load %arg8[%c384_9, %c0_10] : memref<456x128xf32, #tpu.memory_space<vmem>>, vector<72x128xf32>
    tpu.vector_store %arg8[%c384_9, %c0_10], %14 {strides = array<i32>} : memref<456x128xf32, #tpu.memory_space<vmem>>, vector<72x128xf32>,
    %cst_11 = arith.constant 0.000000e+00 : f32
    %16 = vector.broadcast %cst_11 : f32 to vector<24x128xf32>
    %c0_12 = arith.constant 0 : index
    %c0_13 = arith.constant 0 : index
    %17 = vector.load %arg9[%c0_12, %c0_13] : memref<456x128xf32, #tpu.memory_space<vmem>>, vector<24x128xf32>
    tpu.vector_store %arg9[%c0_12, %c0_13], %16 {strides = array<i32>} : memref<456x128xf32, #tpu.memory_space<vmem>>, vector<24x128xf32>,
    %cst_14 = arith.constant 0.000000e+00 : f32
    %18 = vector.broadcast %cst_14 : f32 to vector<48x128xf32>
    %c408 = arith.constant 408 : index
    %c0_15 = arith.constant 0 : index
    %19 = vector.load %arg9[%c408, %c0_15] : memref<456x128xf32, #tpu.memory_space<vmem>>, vector<48x128xf32>
    tpu.vector_store %arg9[%c408, %c0_15], %18 {strides = array<i32>} : memref<456x128xf32, #tpu.memory_space<vmem>>, vector<48x128xf32>,
    %c0_16 = arith.constant 0 : index
    %c0_17 = arith.constant 0 : index
    %20 = vector.load %arg3[%c0_16, %c0_17] : memref<1x128xf32, #tpu.memory_space<vmem>>, vector<1x128xf32>
    %c0_18 = arith.constant 0 : index
    %c0_19 = arith.constant 0 : index
    %21 = vector.load %arg5[%c0_18, %c0_19] : memref<1x128xf32, #tpu.memory_space<vmem>>, vector<1x128xf32>
    %22 = tpu.iota {dimensions = array<i32: 0>} : vector<384x1xi32>
    %c24_i32 = arith.constant 24 : i32
    %c0_i32 = arith.constant 0 : i32
    %23 = arith.cmpi eq, %c24_i32, %c0_i32 : i32
    %c1_i32 = arith.constant 1 : i32
    %24 = arith.select %23, %c1_i32, %c24_i32 : i32
    %25 = vector.broadcast %24 : i32 to vector<384x1xi32>
    %26 = arith.remsi %22, %25 : vector<384x1xi32>
    %c0_i32_20 = arith.constant 0 : i32
    %27 = vector.broadcast %c0_i32_20 : i32 to vector<384x1xi32>
    %28 = arith.cmpi ne, %26, %27 : vector<384x1xi32>
    %c0_i32_21 = arith.constant 0 : i32
    %29 = vector.broadcast %c0_i32_21 : i32 to vector<384x1xi32>
    %30 = arith.cmpi slt, %26, %29 : vector<384x1xi32>
    %c0_i32_22 = arith.constant 0 : i32
    %31 = arith.cmpi slt, %24, %c0_i32_22 : i32
    %32 = vector.broadcast %31 : i1 to vector<384x1xi1>
    %33 = vector.broadcast %32 : vector<384x1xi1> to vector<384x1xi1>
    %34 = arith.xori %30, %33 : vector<384x1xi1>
    %35 = arith.andi %34, %28 : vector<384x1xi1>
    %36 = vector.broadcast %24 : i32 to vector<384x1xi32>
    %37 = arith.addi %26, %36 : vector<384x1xi32>
    %38 = arith.select %35, %37, %26 : vector<384x1xi1>, vector<384x1xi32>
    %c1_i32_23 = arith.constant 1 : i32
    %39 = vector.broadcast %c1_i32_23 : i32 to vector<384x1xi32>
    %40 = arith.cmpi sge, %38, %39 : vector<384x1xi32>
    %c16_i32 = arith.constant 16 : i32
    %41 = vector.broadcast %c16_i32 : i32 to vector<384x1xi32>
    %42 = arith.cmpi sle, %38, %41 : vector<384x1xi32>
    %43 = arith.andi %40, %42 : vector<384x1xi1>
    %c0_24 = arith.constant 0 : index
    %c0_25 = arith.constant 0 : index
    %44 = vector.load %arg8[%c0_24, %c0_25] : memref<456x128xf32, #tpu.memory_space<vmem>>, vector<384x128xf32>
    %45 = arith.truncf %44 : vector<384x128xf32> to vector<384x128xbf16>
    %c0_26 = arith.constant 0 : index
    %c0_27 = arith.constant 0 : index
    %c0_28 = arith.constant 0 : index
    %46 = vector.load %arg2[%c0_26, %c0_27, %c0_28] : memref<9x128x128xbf16, #tpu.memory_space<vmem>>, vector<1x128x128xbf16>
    %47 = vector.shape_cast %46 : vector<1x128x128xbf16> to vector<128x128xbf16>
    %cst_29 = arith.constant dense<0.000000e+00> : vector<384x128xf32>
    %48 = tpu.matmul %45, %47, %cst_29 {dimension_numbers = #tpu.dot_dimension_numbers<[1], [0], [0], [1], [0, 0, 1, 1], [], []>} : vector<384x128xbf16>, vector<128x128xbf16>, vector<384x128xf32> -> vector<384x128xf32>
    %c1 = arith.constant 1 : index
    %c0_30 = arith.constant 0 : index
    %49 = vector.load %arg8[%c1, %c0_30] : memref<456x128xf32, #tpu.memory_space<vmem>>, vector<384x128xf32>
    %50 = arith.truncf %49 : vector<384x128xf32> to vector<384x128xbf16>
    %c1_31 = arith.constant 1 : index
    %c0_32 = arith.constant 0 : index
    %c0_33 = arith.constant 0 : index
    %51 = vector.load %arg2[%c1_31, %c0_32, %c0_33] : memref<9x128x128xbf16, #tpu.memory_space<vmem>>, vector<1x128x128xbf16>
    %52 = vector.shape_cast %51 : vector<1x128x128xbf16> to vector<128x128xbf16>
    %cst_34 = arith.constant dense<0.000000e+00> : vector<384x128xf32>
    %53 = tpu.matmul %50, %52, %cst_34 {dimension_numbers = #tpu.dot_dimension_numbers<[1], [0], [0], [1], [0, 0, 1, 1], [], []>} : vector<384x128xbf16>, vector<128x128xbf16>, vector<384x128xf32> -> vector<384x128xf32>
    %54 = arith.addf %48, %53 : vector<384x128xf32>
    %c2 = arith.constant 2 : index
    %c0_35 = arith.constant 0 : index
    %55 = vector.load %arg8[%c2, %c0_35] : memref<456x128xf32, #tpu.memory_space<vmem>>, vector<384x128xf32>
    %56 = arith.truncf %55 : vector<384x128xf32> to vector<384x128xbf16>
    %c2_36 = arith.constant 2 : index
    %c0_37 = arith.constant 0 : index
    %c0_38 = arith.constant 0 : index
    %57 = vector.load %arg2[%c2_36, %c0_37, %c0_38] : memref<9x128x128xbf16, #tpu.memory_space<vmem>>, vector<1x128x128xbf16>
    %58 = vector.shape_cast %57 : vector<1x128x128xbf16> to vector<128x128xbf16>
    %cst_39 = arith.constant dense<0.000000e+00> : vector<384x128xf32>
    %59 = tpu.matmul %56, %58, %cst_39 {dimension_numbers = #tpu.dot_dimension_numbers<[1], [0], [0], [1], [0, 0, 1, 1], [], []>} : vector<384x128xbf16>, vector<128x128xbf16>, vector<384x128xf32> -> vector<384x128xf32>
    %60 = arith.addf %54, %59 : vector<384x128xf32>
    %c24 = arith.constant 24 : index
    %c0_40 = arith.constant 0 : index
    %61 = vector.load %arg8[%c24, %c0_40] : memref<456x128xf32, #tpu.memory_space<vmem>>, vector<384x128xf32>
    %62 = arith.truncf %61 : vector<384x128xf32> to vector<384x128xbf16>
    %c3 = arith.constant 3 : index
    %c0_41 = arith.constant 0 : index
    %c0_42 = arith.constant 0 : index
    %63 = vector.load %arg2[%c3, %c0_41, %c0_42] : memref<9x128x128xbf16, #tpu.memory_space<vmem>>, vector<1x128x128xbf16>
    %64 = vector.shape_cast %63 : vector<1x128x128xbf16> to vector<128x128xbf16>
    %cst_43 = arith.constant dense<0.000000e+00> : vector<384x128xf32>
    %65 = tpu.matmul %62, %64, %cst_43 {dimension_numbers = #tpu.dot_dimension_numbers<[1], [0], [0], [1], [0, 0, 1, 1], [], []>} : vector<384x128xbf16>, vector<128x128xbf16>, vector<384x128xf32> -> vector<384x128xf32>
    %66 = arith.addf %60, %65 : vector<384x128xf32>
    %c25 = arith.constant 25 : index
    %c0_44 = arith.constant 0 : index
    %67 = vector.load %arg8[%c25, %c0_44] : memref<456x128xf32, #tpu.memory_space<vmem>>, vector<384x128xf32>
    %68 = arith.truncf %67 : vector<384x128xf32> to vector<384x128xbf16>
    %c4 = arith.constant 4 : index
    %c0_45 = arith.constant 0 : index
    %c0_46 = arith.constant 0 : index
    %69 = vector.load %arg2[%c4, %c0_45, %c0_46] : memref<9x128x128xbf16, #tpu.memory_space<vmem>>, vector<1x128x128xbf16>
    %70 = vector.shape_cast %69 : vector<1x128x128xbf16> to vector<128x128xbf16>
    %cst_47 = arith.constant dense<0.000000e+00> : vector<384x128xf32>
    %71 = tpu.matmul %68, %70, %cst_47 {dimension_numbers = #tpu.dot_dimension_numbers<[1], [0], [0], [1], [0, 0, 1, 1], [], []>} : vector<384x128xbf16>, vector<128x128xbf16>, vector<384x128xf32> -> vector<384x128xf32>
    %72 = arith.addf %66, %71 : vector<384x128xf32>
    %c26 = arith.constant 26 : index
    %c0_48 = arith.constant 0 : index
    %73 = vector.load %arg8[%c26, %c0_48] : memref<456x128xf32, #tpu.memory_space<vmem>>, vector<384x128xf32>
    %74 = arith.truncf %73 : vector<384x128xf32> to vector<384x128xbf16>
    %c5 = arith.constant 5 : index
    %c0_49 = arith.constant 0 : index
    %c0_50 = arith.constant 0 : index
    %75 = vector.load %arg2[%c5, %c0_49, %c0_50] : memref<9x128x128xbf16, #tpu.memory_space<vmem>>, vector<1x128x128xbf16>
    %76 = vector.shape_cast %75 : vector<1x128x128xbf16> to vector<128x128xbf16>
    %cst_51 = arith.constant dense<0.000000e+00> : vector<384x128xf32>
    %77 = tpu.matmul %74, %76, %cst_51 {dimension_numbers = #tpu.dot_dimension_numbers<[1], [0], [0], [1], [0, 0, 1, 1], [], []>} : vector<384x128xbf16>, vector<128x128xbf16>, vector<384x128xf32> -> vector<384x128xf32>
    %78 = arith.addf %72, %77 : vector<384x128xf32>
    %c48 = arith.constant 48 : index
    %c0_52 = arith.constant 0 : index
    %79 = vector.load %arg8[%c48, %c0_52] : memref<456x128xf32, #tpu.memory_space<vmem>>, vector<384x128xf32>
    %80 = arith.truncf %79 : vector<384x128xf32> to vector<384x128xbf16>
    %c6 = arith.constant 6 : index
    %c0_53 = arith.constant 0 : index
    %c0_54 = arith.constant 0 : index
    %81 = vector.load %arg2[%c6, %c0_53, %c0_54] : memref<9x128x128xbf16, #tpu.memory_space<vmem>>, vector<1x128x128xbf16>
    %82 = vector.shape_cast %81 : vector<1x128x128xbf16> to vector<128x128xbf16>
    %cst_55 = arith.constant dense<0.000000e+00> : vector<384x128xf32>
    %83 = tpu.matmul %80, %82, %cst_55 {dimension_numbers = #tpu.dot_dimension_numbers<[1], [0], [0], [1], [0, 0, 1, 1], [], []>} : vector<384x128xbf16>, vector<128x128xbf16>, vector<384x128xf32> -> vector<384x128xf32>
    %84 = arith.addf %78, %83 : vector<384x128xf32>
    %c49 = arith.constant 49 : index
    %c0_56 = arith.constant 0 : index
    %85 = vector.load %arg8[%c49, %c0_56] : memref<456x128xf32, #tpu.memory_space<vmem>>, vector<384x128xf32>
    %86 = arith.truncf %85 : vector<384x128xf32> to vector<384x128xbf16>
    %c7 = arith.constant 7 : index
    %c0_57 = arith.constant 0 : index
    %c0_58 = arith.constant 0 : index
    %87 = vector.load %arg2[%c7, %c0_57, %c0_58] : memref<9x128x128xbf16, #tpu.memory_space<vmem>>, vector<1x128x128xbf16>
    %88 = vector.shape_cast %87 : vector<1x128x128xbf16> to vector<128x128xbf16>
    %cst_59 = arith.constant dense<0.000000e+00> : vector<384x128xf32>
    %89 = tpu.matmul %86, %88, %cst_59 {dimension_numbers = #tpu.dot_dimension_numbers<[1], [0], [0], [1], [0, 0, 1, 1], [], []>} : vector<384x128xbf16>, vector<128x128xbf16>, vector<384x128xf32> -> vector<384x128xf32>
    %90 = arith.addf %84, %89 : vector<384x128xf32>
    %c50 = arith.constant 50 : index
    %c0_60 = arith.constant 0 : index
    %91 = vector.load %arg8[%c50, %c0_60] : memref<456x128xf32, #tpu.memory_space<vmem>>, vector<384x128xf32>
    %92 = arith.truncf %91 : vector<384x128xf32> to vector<384x128xbf16>
    %c8 = arith.constant 8 : index
    %c0_61 = arith.constant 0 : index
    %c0_62 = arith.constant 0 : index
    %93 = vector.load %arg2[%c8, %c0_61, %c0_62] : memref<9x128x128xbf16, #tpu.memory_space<vmem>>, vector<1x128x128xbf16>
    %94 = vector.shape_cast %93 : vector<1x128x128xbf16> to vector<128x128xbf16>
    %cst_63 = arith.constant dense<0.000000e+00> : vector<384x128xf32>
    %95 = tpu.matmul %92, %94, %cst_63 {dimension_numbers = #tpu.dot_dimension_numbers<[1], [0], [0], [1], [0, 0, 1, 1], [], []>} : vector<384x128xbf16>, vector<128x128xbf16>, vector<384x128xf32> -> vector<384x128xf32>
    %96 = arith.addf %90, %95 : vector<384x128xf32>
    %97 = vector.broadcast %20 : vector<1x128xf32> to vector<384x128xf32>
    %98 = arith.addf %96, %97 : vector<384x128xf32>
    %cst_64 = arith.constant 0.000000e+00 : f32
    %99 = vector.broadcast %cst_64 : f32 to vector<384x128xf32>
    %100 = arith.cmpf ogt, %98, %99 : vector<384x128xf32>
    %cst_65 = arith.constant 2.000000e-01 : f32
    %101 = vector.broadcast %cst_65 : f32 to vector<384x128xf32>
    %102 = arith.mulf %101, %98 : vector<384x128xf32>
    %103 = arith.select %100, %98, %102 : vector<384x128xi1>, vector<384x128xf32>
    %cst_66 = arith.constant 0.000000e+00 : f32
    %104 = vector.shape_cast %43 : vector<384x1xi1> to vector<384x1xi1>
    %105 = vector.broadcast %104 : vector<384x1xi1> to vector<384x128xi1>
    %106 = vector.broadcast %cst_66 : f32 to vector<384x128xf32>
    %107 = arith.select %105, %103, %106 : vector<384x128xi1>, vector<384x128xf32>
    %c24_67 = arith.constant 24 : index
    %c0_68 = arith.constant 0 : index
    %108 = vector.load %arg9[%c24_67, %c0_68] : memref<456x128xf32, #tpu.memory_space<vmem>>, vector<384x128xf32>
    tpu.vector_store %arg9[%c24_67, %c0_68], %107 {strides = array<i32>} : memref<456x128xf32, #tpu.memory_space<vmem>>, vector<384x128xf32>,
    %c0_69 = arith.constant 0 : index
    %c0_70 = arith.constant 0 : index
    %109 = vector.load %arg9[%c0_69, %c0_70] : memref<456x128xf32, #tpu.memory_space<vmem>>, vector<384x128xf32>
    %110 = arith.truncf %109 : vector<384x128xf32> to vector<384x128xbf16>
    %c0_71 = arith.constant 0 : index
    %c0_72 = arith.constant 0 : index
    %c0_73 = arith.constant 0 : index
    %111 = vector.load %arg4[%c0_71, %c0_72, %c0_73] : memref<9x128x128xbf16, #tpu.memory_space<vmem>>, vector<1x128x128xbf16>
    %112 = vector.shape_cast %111 : vector<1x128x128xbf16> to vector<128x128xbf16>
    %cst_74 = arith.constant dense<0.000000e+00> : vector<384x128xf32>
    %113 = tpu.matmul %110, %112, %cst_74 {dimension_numbers = #tpu.dot_dimension_numbers<[1], [0], [0], [1], [0, 0, 1, 1], [], []>} : vector<384x128xbf16>, vector<128x128xbf16>, vector<384x128xf32> -> vector<384x128xf32>
    %c1_75 = arith.constant 1 : index
    %c0_76 = arith.constant 0 : index
    %114 = vector.load %arg9[%c1_75, %c0_76] : memref<456x128xf32, #tpu.memory_space<vmem>>, vector<384x128xf32>
    %115 = arith.truncf %114 : vector<384x128xf32> to vector<384x128xbf16>
    %c1_77 = arith.constant 1 : index
    %c0_78 = arith.constant 0 : index
    %c0_79 = arith.constant 0 : index
    %116 = vector.load %arg4[%c1_77, %c0_78, %c0_79] : memref<9x128x128xbf16, #tpu.memory_space<vmem>>, vector<1x128x128xbf16>
    %117 = vector.shape_cast %116 : vector<1x128x128xbf16> to vector<128x128xbf16>
    %cst_80 = arith.constant dense<0.000000e+00> : vector<384x128xf32>
    %118 = tpu.matmul %115, %117, %cst_80 {dimension_numbers = #tpu.dot_dimension_numbers<[1], [0], [0], [1], [0, 0, 1, 1], [], []>} : vector<384x128xbf16>, vector<128x128xbf16>, vector<384x128xf32> -> vector<384x128xf32>
    %119 = arith.addf %113, %118 : vector<384x128xf32>
    %c2_81 = arith.constant 2 : index
    %c0_82 = arith.constant 0 : index
    %120 = vector.load %arg9[%c2_81, %c0_82] : memref<456x128xf32, #tpu.memory_space<vmem>>, vector<384x128xf32>
    %121 = arith.truncf %120 : vector<384x128xf32> to vector<384x128xbf16>
    %c2_83 = arith.constant 2 : index
    %c0_84 = arith.constant 0 : index
    %c0_85 = arith.constant 0 : index
    %122 = vector.load %arg4[%c2_83, %c0_84, %c0_85] : memref<9x128x128xbf16, #tpu.memory_space<vmem>>, vector<1x128x128xbf16>
    %123 = vector.shape_cast %122 : vector<1x128x128xbf16> to vector<128x128xbf16>
    %cst_86 = arith.constant dense<0.000000e+00> : vector<384x128xf32>
    %124 = tpu.matmul %121, %123, %cst_86 {dimension_numbers = #tpu.dot_dimension_numbers<[1], [0], [0], [1], [0, 0, 1, 1], [], []>} : vector<384x128xbf16>, vector<128x128xbf16>, vector<384x128xf32> -> vector<384x128xf32>
    %125 = arith.addf %119, %124 : vector<384x128xf32>
    %c24_87 = arith.constant 24 : index
    %c0_88 = arith.constant 0 : index
    %126 = vector.load %arg9[%c24_87, %c0_88] : memref<456x128xf32, #tpu.memory_space<vmem>>, vector<384x128xf32>
    %127 = arith.truncf %126 : vector<384x128xf32> to vector<384x128xbf16>
    %c3_89 = arith.constant 3 : index
    %c0_90 = arith.constant 0 : index
    %c0_91 = arith.constant 0 : index
    %128 = vector.load %arg4[%c3_89, %c0_90, %c0_91] : memref<9x128x128xbf16, #tpu.memory_space<vmem>>, vector<1x128x128xbf16>
    %129 = vector.shape_cast %128 : vector<1x128x128xbf16> to vector<128x128xbf16>
    %cst_92 = arith.constant dense<0.000000e+00> : vector<384x128xf32>
    %130 = tpu.matmul %127, %129, %cst_92 {dimension_numbers = #tpu.dot_dimension_numbers<[1], [0], [0], [1], [0, 0, 1, 1], [], []>} : vector<384x128xbf16>, vector<128x128xbf16>, vector<384x128xf32> -> vector<384x128xf32>
    %131 = arith.addf %125, %130 : vector<384x128xf32>
    %c25_93 = arith.constant 25 : index
    %c0_94 = arith.constant 0 : index
    %132 = vector.load %arg9[%c25_93, %c0_94] : memref<456x128xf32, #tpu.memory_space<vmem>>, vector<384x128xf32>
    %133 = arith.truncf %132 : vector<384x128xf32> to vector<384x128xbf16>
    %c4_95 = arith.constant 4 : index
    %c0_96 = arith.constant 0 : index
    %c0_97 = arith.constant 0 : index
    %134 = vector.load %arg4[%c4_95, %c0_96, %c0_97] : memref<9x128x128xbf16, #tpu.memory_space<vmem>>, vector<1x128x128xbf16>
    %135 = vector.shape_cast %134 : vector<1x128x128xbf16> to vector<128x128xbf16>
    %cst_98 = arith.constant dense<0.000000e+00> : vector<384x128xf32>
    %136 = tpu.matmul %133, %135, %cst_98 {dimension_numbers = #tpu.dot_dimension_numbers<[1], [0], [0], [1], [0, 0, 1, 1], [], []>} : vector<384x128xbf16>, vector<128x128xbf16>, vector<384x128xf32> -> vector<384x128xf32>
    %137 = arith.addf %131, %136 : vector<384x128xf32>
    %c26_99 = arith.constant 26 : index
    %c0_100 = arith.constant 0 : index
    %138 = vector.load %arg9[%c26_99, %c0_100] : memref<456x128xf32, #tpu.memory_space<vmem>>, vector<384x128xf32>
    %139 = arith.truncf %138 : vector<384x128xf32> to vector<384x128xbf16>
    %c5_101 = arith.constant 5 : index
    %c0_102 = arith.constant 0 : index
    %c0_103 = arith.constant 0 : index
    %140 = vector.load %arg4[%c5_101, %c0_102, %c0_103] : memref<9x128x128xbf16, #tpu.memory_space<vmem>>, vector<1x128x128xbf16>
    %141 = vector.shape_cast %140 : vector<1x128x128xbf16> to vector<128x128xbf16>
    %cst_104 = arith.constant dense<0.000000e+00> : vector<384x128xf32>
    %142 = tpu.matmul %139, %141, %cst_104 {dimension_numbers = #tpu.dot_dimension_numbers<[1], [0], [0], [1], [0, 0, 1, 1], [], []>} : vector<384x128xbf16>, vector<128x128xbf16>, vector<384x128xf32> -> vector<384x128xf32>
    %143 = arith.addf %137, %142 : vector<384x128xf32>
    %c48_105 = arith.constant 48 : index
    %c0_106 = arith.constant 0 : index
    %144 = vector.load %arg9[%c48_105, %c0_106] : memref<456x128xf32, #tpu.memory_space<vmem>>, vector<384x128xf32>
    %145 = arith.truncf %144 : vector<384x128xf32> to vector<384x128xbf16>
    %c6_107 = arith.constant 6 : index
    %c0_108 = arith.constant 0 : index
    %c0_109 = arith.constant 0 : index
    %146 = vector.load %arg4[%c6_107, %c0_108, %c0_109] : memref<9x128x128xbf16, #tpu.memory_space<vmem>>, vector<1x128x128xbf16>
    %147 = vector.shape_cast %146 : vector<1x128x128xbf16> to vector<128x128xbf16>
    %cst_110 = arith.constant dense<0.000000e+00> : vector<384x128xf32>
    %148 = tpu.matmul %145, %147, %cst_110 {dimension_numbers = #tpu.dot_dimension_numbers<[1], [0], [0], [1], [0, 0, 1, 1], [], []>} : vector<384x128xbf16>, vector<128x128xbf16>, vector<384x128xf32> -> vector<384x128xf32>
    %149 = arith.addf %143, %148 : vector<384x128xf32>
    %c49_111 = arith.constant 49 : index
    %c0_112 = arith.constant 0 : index
    %150 = vector.load %arg9[%c49_111, %c0_112] : memref<456x128xf32, #tpu.memory_space<vmem>>, vector<384x128xf32>
    %151 = arith.truncf %150 : vector<384x128xf32> to vector<384x128xbf16>
    %c7_113 = arith.constant 7 : index
    %c0_114 = arith.constant 0 : index
    %c0_115 = arith.constant 0 : index
    %152 = vector.load %arg4[%c7_113, %c0_114, %c0_115] : memref<9x128x128xbf16, #tpu.memory_space<vmem>>, vector<1x128x128xbf16>
    %153 = vector.shape_cast %152 : vector<1x128x128xbf16> to vector<128x128xbf16>
    %cst_116 = arith.constant dense<0.000000e+00> : vector<384x128xf32>
    %154 = tpu.matmul %151, %153, %cst_116 {dimension_numbers = #tpu.dot_dimension_numbers<[1], [0], [0], [1], [0, 0, 1, 1], [], []>} : vector<384x128xbf16>, vector<128x128xbf16>, vector<384x128xf32> -> vector<384x128xf32>
    %155 = arith.addf %149, %154 : vector<384x128xf32>
    %c50_117 = arith.constant 50 : index
    %c0_118 = arith.constant 0 : index
    %156 = vector.load %arg9[%c50_117, %c0_118] : memref<456x128xf32, #tpu.memory_space<vmem>>, vector<384x128xf32>
    %157 = arith.truncf %156 : vector<384x128xf32> to vector<384x128xbf16>
    %c8_119 = arith.constant 8 : index
    %c0_120 = arith.constant 0 : index
    %c0_121 = arith.constant 0 : index
    %158 = vector.load %arg4[%c8_119, %c0_120, %c0_121] : memref<9x128x128xbf16, #tpu.memory_space<vmem>>, vector<1x128x128xbf16>
    %159 = vector.shape_cast %158 : vector<1x128x128xbf16> to vector<128x128xbf16>
    %cst_122 = arith.constant dense<0.000000e+00> : vector<384x128xf32>
    %160 = tpu.matmul %157, %159, %cst_122 {dimension_numbers = #tpu.dot_dimension_numbers<[1], [0], [0], [1], [0, 0, 1, 1], [], []>} : vector<384x128xbf16>, vector<128x128xbf16>, vector<384x128xf32> -> vector<384x128xf32>
    %161 = arith.addf %155, %160 : vector<384x128xf32>
    %162 = vector.broadcast %21 : vector<1x128xf32> to vector<384x128xf32>
    %163 = arith.addf %161, %162 : vector<384x128xf32>
    %c0_123 = arith.constant 0 : index
    %c26_124 = arith.constant 26 : index
    %c0_125 = arith.constant 0 : index
    %164 = vector.load %arg1[%c0_123, %c26_124, %c0_125] : memref<1x456x128xf32, #tpu.memory_space<vmem>>, vector<1x384x128xf32>
    %165 = vector.shape_cast %164 : vector<1x384x128xf32> to vector<384x128xf32>
    %166 = arith.truncf %165 : vector<384x128xf32> to vector<384x128xbf16>
    %c0_126 = arith.constant 0 : index
    %c0_127 = arith.constant 0 : index
    %167 = vector.load %arg6[%c0_126, %c0_127] : memref<128x128xbf16, #tpu.memory_space<vmem>>, vector<128x128xbf16>
    %cst_128 = arith.constant dense<0.000000e+00> : vector<384x128xf32>
    %168 = tpu.matmul %166, %167, %cst_128 {dimension_numbers = #tpu.dot_dimension_numbers<[1], [0], [0], [1], [0, 0, 1, 1], [], []>} : vector<384x128xbf16>, vector<128x128xbf16>, vector<384x128xf32> -> vector<384x128xf32>
    %169 = arith.addf %168, %163 : vector<384x128xf32>
    %cst_129 = arith.constant 0.707106769 : f32
    %170 = vector.broadcast %cst_129 : f32 to vector<384x128xf32>
    %171 = arith.mulf %169, %170 : vector<384x128xf32>
    %c0_130 = arith.constant 0 : index
    %c0_131 = arith.constant 0 : index
    %c0_132 = arith.constant 0 : index
    %172 = vector.load %arg7[%c0_130, %c0_131, %c0_132] : memref<1x384x128xf32, #tpu.memory_space<vmem>>, vector<1x384x128xf32>
    %173 = vector.shape_cast %172 : vector<1x384x128xf32> to vector<384x128xf32>
    %174 = vector.shape_cast %171 : vector<384x128xf32> to vector<1x384x128xf32>
    tpu.vector_store %arg7[%c0_130, %c0_131, %c0_132], %174 {strides = array<i32>} : memref<1x384x128xf32, #tpu.memory_space<vmem>>, vector<1x384x128xf32>,
    return
  }
  func.func @transform_0(%arg0: i32) -> (i32, i32, i32) {
    %c0_i32 = arith.constant 0 : i32
    %c0_i32_0 = arith.constant 0 : i32
    %c0_i32_1 = arith.constant 0 : i32
    return %arg0, %c0_i32, %c0_i32_0 : i32, i32, i32
  }
  func.func @transform_1(%arg0: i32) -> (i32, i32, i32) {
    %c0_i32 = arith.constant 0 : i32
    %c0_i32_0 = arith.constant 0 : i32
    %c0_i32_1 = arith.constant 0 : i32
    %c0_i32_2 = arith.constant 0 : i32
    return %c0_i32, %c0_i32_0, %c0_i32_1 : i32, i32, i32
  }
  func.func @transform_2(%arg0: i32) -> (i32, i32) {
    %c0_i32 = arith.constant 0 : i32
    %c0_i32_0 = arith.constant 0 : i32
    %c0_i32_1 = arith.constant 0 : i32
    return %c0_i32, %c0_i32_0 : i32, i32
  }
  func.func @transform_3(%arg0: i32) -> (i32, i32, i32) {
    %c0_i32 = arith.constant 0 : i32
    %c0_i32_0 = arith.constant 0 : i32
    %c0_i32_1 = arith.constant 0 : i32
    %c0_i32_2 = arith.constant 0 : i32
    return %c0_i32, %c0_i32_0, %c0_i32_1 : i32, i32, i32
  }
  func.func @transform_4(%arg0: i32) -> (i32, i32) {
    %c0_i32 = arith.constant 0 : i32
    %c0_i32_0 = arith.constant 0 : i32
    %c0_i32_1 = arith.constant 0 : i32
    return %c0_i32, %c0_i32_0 : i32, i32
  }
  func.func @transform_5(%arg0: i32) -> (i32, i32) {
    %c0_i32 = arith.constant 0 : i32
    %c0_i32_0 = arith.constant 0 : i32
    %c0_i32_1 = arith.constant 0 : i32
    return %c0_i32, %c0_i32_0 : i32, i32
  }
  func.func @transform_6(%arg0: i32) -> (i32, i32, i32) {
    %c0_i32 = arith.constant 0 : i32
    %c0_i32_0 = arith.constant 0 : i32
    %c0_i32_1 = arith.constant 0 : i32
    return %arg0, %c0_i32, %c0_i32_0 : i32, i32, i32
  }
}

</mosaic_0001>

<llo_original>
// kernel: resblk_forward.1
$region0: #{resblk_forward.1}
  #allocation0 [shape = 'u32[]', space=smem, size = 0x4, offset = 0x4, fixed_abs, tag = 'smem constant byte address 0x4 - core index']
  #allocation1 [shape = 'u32[144,128]{1,0:T(1,128)}', space=vmem, size = 0x12000, scoped, tag = 'internal scratch']
  #allocation2 [shape = 'f32[456,128]{1,0:T(8,128)}', space=vmem, size = 0x39000, scoped, tag = 'scratch operand']
  #allocation3 [shape = 'f32[456,128]{1,0:T(8,128)}', space=vmem, size = 0x39000, scoped, tag = 'scratch operand']
  %s0 = inlined_call_operand.vmem [shape: f32[2,456,128], index: 0, kind: input, shape index: {}]
  %s1 = inlined_call_operand.vmem [shape: bf16[9,128,128], index: 1, kind: input, shape index: {}]
  %s2 = inlined_call_operand.vmem [shape: f32[1,128], index: 2, kind: input, shape index: {}]
  %s3 = inlined_call_operand.vmem [shape: bf16[9,128,128], index: 3, kind: input, shape index: {}]
  %s4 = inlined_call_operand.vmem [shape: f32[1,128], index: 4, kind: input, shape index: {}]
  %s5 = inlined_call_operand.vmem [shape: bf16[128,128], index: 5, kind: input, shape index: {}]
  %s6 = inlined_call_operand.vmem [shape: f32[2,384,128], index: 6, kind: output, shape index: {}]
  %s7 = sld [smem:[#allocation0]]
  $region57: #{resblk_forward.1} parent=0
    _
  %s9 = ssub.s32 1, %s7
  %s10 = scalar_select 0, %s9, %s7
  loop: start=0, step=1, limit=4
  $region2: #{resblk_forward.1} parent=0 // loop_pre_header
    _
  $region3: #{resblk_forward.1} parent=0 // loop_header
    %s12 = sphi 0, %s16
    %p13 = scmp.ge.s32.totalorder %s12, 4
    %s22 = sphi 0, %s24
    %s25 = sphi 0, %s22
    %s26 = sphi 0, %s25
    %s42 = sphi 0, %s26
    %s46 = sphi 0, %s46
    %s48 = sphi 0, %s46
    %s49 = sphi 0, %s48
    %s63 = sphi 0, %s49
    %s67 = sphi 0, %s67
    %s69 = sphi 0, %s67
    %s70 = sphi 0, %s69
    %s84 = sphi 0, %s70
    %s88 = sphi 0, %s88
    %s90 = sphi 0, %s88
    %s91 = sphi 0, %s90
    %s105 = sphi 0, %s91
    %s109 = sphi 0, %s109
    %s111 = sphi 0, %s109
    %s112 = sphi 0, %s111
    %s126 = sphi 0, %s112
    %s130 = sphi 0, %s130
    %s132 = sphi 0, %s130
    %s133 = sphi 0, %s132
    %s147 = sphi 0, %s133
    %s153 = sphi 0, %s155
    %s156 = sphi 0, %s153
    %s157 = sphi 0, %s156
    %s173 = sphi 0, %s157
  $region4: #{resblk_forward.1} parent=0 // loop_header_branch
    %15 = sbr.rel (%p13) target = $region8
  $region5: #{resblk_forward.1} parent=0 // loop_body
    %s17 = ssub.s32 %s12, 1
    %s18 = ssub.s32 %s12, 2
    %s19 = sadd.s32 %s12, 1
    %s20 = ssub.s32 %s12, %s19
    %p21 = scmp.eq.s32.totalorder %s20, 0
    %s23 = sadd.s32 %s22, 1
    %s24 = scalar_select %p21, %s22, %s23
    %p27 = pneg %p21
    %p28 = scmp.eq.s32.totalorder %s12, 1
    %p29 = por %p27, %p28
    %p30 = scmp.ne.s32.totalorder %s22, %s25
    %p31 = scmp.eq.s32.totalorder %s12, 0
    %p32 = por %p30, %p31
    %p33 = scmp.ne.s32.totalorder %s22, %s25
    %p34 = scmp.eq.s32.totalorder %s17, 1
    %p35 = por %p33, %p34
    %p36 = scmp.ne.s32.totalorder %s25, %s26
    %p37 = scmp.eq.s32.totalorder %s17, 0
    %p38 = por %p36, %p37
    %p39 = scmp.ne.s32.totalorder %s25, %s26
    %p40 = scmp.eq.s32.totalorder %s18, 1
    %p41 = por %p39, %p40
    %p43 = scmp.ne.s32.totalorder %s26, %s42
    %p44 = scmp.eq.s32.totalorder %s18, 0
    %p45 = por %p43, %p44
    %s47 = sadd.s32 %s46, 1
    %p50 = scmp.eq.s32.totalorder %s12, 1
    %p51 = scmp.ne.s32.totalorder %s46, %s48
    %p52 = scmp.eq.s32.totalorder %s12, 0
    %p53 = por %p51, %p52
    %p54 = scmp.ne.s32.totalorder %s46, %s48
    %p55 = scmp.eq.s32.totalorder %s17, 1
    %p56 = por %p54, %p55
    %p57 = scmp.ne.s32.totalorder %s48, %s49
    %p58 = scmp.eq.s32.totalorder %s17, 0
    %p59 = por %p57, %p58
    %p60 = scmp.ne.s32.totalorder %s48, %s49
    %p61 = scmp.eq.s32.totalorder %s18, 1
    %p62 = por %p60, %p61
    %p64 = scmp.ne.s32.totalorder %s49, %s63
    %p65 = scmp.eq.s32.totalorder %s18, 0
    %p66 = por %p64, %p65
    %s68 = sadd.s32 %s67, 1
    %p71 = scmp.eq.s32.totalorder %s12, 1
    %p72 = scmp.ne.s32.totalorder %s67, %s69
    %p73 = scmp.eq.s32.totalorder %s12, 0
    %p74 = por %p72, %p73
    %p75 = scmp.ne.s32.totalorder %s67, %s69
    %p76 = scmp.eq.s32.totalorder %s17, 1
    %p77 = por %p75, %p76
    %p78 = scmp.ne.s32.totalorder %s69, %s70
    %p79 = scmp.eq.s32.totalorder %s17, 0
    %p80 = por %p78, %p79
    %p81 = scmp.ne.s32.totalorder %s69, %s70
    %p82 = scmp.eq.s32.totalorder %s18, 1
    %p83 = por %p81, %p82
    %p85 = scmp.ne.s32.totalorder %s70, %s84
    %p86 = scmp.eq.s32.totalorder %s18, 0
    %p87 = por %p85, %p86
    %s89 = sadd.s32 %s88, 1
    %p92 = scmp.eq.s32.totalorder %s12, 1
    %p93 = scmp.ne.s32.totalorder %s88, %s90
    %p94 = scmp.eq.s32.totalorder %s12, 0
    %p95 = por %p93, %p94
    %p96 = scmp.ne.s32.totalorder %s88, %s90
    %p97 = scmp.eq.s32.totalorder %s17, 1
    %p98 = por %p96, %p97
    %p99 = scmp.ne.s32.totalorder %s90, %s91
    %p100 = scmp.eq.s32.totalorder %s17, 0
    %p101 = por %p99, %p100
    %p102 = scmp.ne.s32.totalorder %s90, %s91
    %p103 = scmp.eq.s32.totalorder %s18, 1
    %p104 = por %p102, %p103
    %p106 = scmp.ne.s32.totalorder %s91, %s105
    %p107 = scmp.eq.s32.totalorder %s18, 0
    %p108 = por %p106, %p107
    %s110 = sadd.s32 %s109, 1
    %p113 = scmp.eq.s32.totalorder %s12, 1
    %p114 = scmp.ne.s32.totalorder %s109, %s111
    %p115 = scmp.eq.s32.totalorder %s12, 0
    %p116 = por %p114, %p115
    %p117 = scmp.ne.s32.totalorder %s109, %s111
    %p118 = scmp.eq.s32.totalorder %s17, 1
    %p119 = por %p117, %p118
    %p120 = scmp.ne.s32.totalorder %s111, %s112
    %p121 = scmp.eq.s32.totalorder %s17, 0
    %p122 = por %p120, %p121
    %p123 = scmp.ne.s32.totalorder %s111, %s112
    %p124 = scmp.eq.s32.totalorder %s18, 1
    %p125 = por %p123, %p124
    %p127 = scmp.ne.s32.totalorder %s112, %s126
    %p128 = scmp.eq.s32.totalorder %s18, 0
    %p129 = por %p127, %p128
    %s131 = sadd.s32 %s130, 1
    %p134 = scmp.eq.s32.totalorder %s12, 1
    %p135 = scmp.ne.s32.totalorder %s130, %s132
    %p136 = scmp.eq.s32.totalorder %s12, 0
    %p137 = por %p135, %p136
    %p138 = scmp.ne.s32.totalorder %s130, %s132
    %p139 = scmp.eq.s32.totalorder %s17, 1
    %p140 = por %p138, %p139
    %p141 = scmp.ne.s32.totalorder %s132, %s133
    %p142 = scmp.eq.s32.totalorder %s17, 0
    %p143 = por %p141, %p142
    %p144 = scmp.ne.s32.totalorder %s132, %s133
    %p145 = scmp.eq.s32.totalorder %s18, 1
    %p146 = por %p144, %p145
    %p148 = scmp.ne.s32.totalorder %s133, %s147
    %p149 = scmp.eq.s32.totalorder %s18, 0
    %p150 = por %p148, %p149
    %s151 = ssub.s32 %s12, %s19
    %p152 = scmp.eq.s32.totalorder %s151, 0
    %s154 = sadd.s32 %s153, 1
    %s155 = scalar_select %p152, %s153, %s154
    %p158 = pneg %p152
    %p159 = scmp.eq.s32.totalorder %s12, 1
    %p160 = por %p158, %p159
    %p161 = scmp.ne.s32.totalorder %s153, %s156
    %p162 = scmp.eq.s32.totalorder %s12, 0
    %p163 = por %p161, %p162
    %p164 = scmp.ne.s32.totalorder %s153, %s156
    %p165 = scmp.eq.s32.totalorder %s17, 1
    %p166 = por %p164, %p165
    %p167 = scmp.ne.s32.totalorder %s156, %s157
    %p168 = scmp.eq.s32.totalorder %s17, 0
    %p169 = por %p167, %p168
    %p170 = scmp.ne.s32.totalorder %s156, %s157
    %p171 = scmp.eq.s32.totalorder %s18, 1
    %p172 = por %p170, %p171
    %p174 = scmp.ne.s32.totalorder %s157, %s173
    %p175 = scmp.eq.s32.totalorder %s18, 0
    %p176 = por %p174, %p175
    %p177 = scmp.le.s32.totalorder 1, %s12
    %p178 = scmp.lt.s32.totalorder %s12, 3
    %p179 = pnand %p177, %p178
    %p180 = pneg %p179
    // Predicated region
    $region9: #{resblk_forward.1} parent=5 // pred_check
      _
    $region10: #{resblk_forward.1} parent=5 // pred_check_branch
      %182 = sbr.rel (%p179) target = $region12
    $region11: #{resblk_forward.1} parent=5 // pred_region
      %s183 = ssub.s32 %s12, 1
      // Predicated region
      $region13: #{resblk_forward.1} parent=11 // pred_check
        %p184 = pneg %p59
      $region14: #{resblk_forward.1} parent=11 // pred_check_branch
        %186 = sbr.rel (%p184) target = $region16
      $region15: #{resblk_forward.1} parent=11 // pred_region
        _
      $region16: #{resblk_forward.1} parent=11 // pred_fallthru
        _
      // Predicated region
      $region17: #{resblk_forward.1} parent=11 // pred_check
        %p187 = pneg %p80
      $region18: #{resblk_forward.1} parent=11 // pred_check_branch
        %189 = sbr.rel (%p187) target = $region20
      $region19: #{resblk_forward.1} parent=11 // pred_region
        _
      $region20: #{resblk_forward.1} parent=11 // pred_fallthru
        _
      // Predicated region
      $region21: #{resblk_forward.1} parent=11 // pred_check
        %p190 = pneg %p101
      $region22: #{resblk_forward.1} parent=11 // pred_check_branch
        %192 = sbr.rel (%p190) target = $region24
      $region23: #{resblk_forward.1} parent=11 // pred_region
        _
      $region24: #{resblk_forward.1} parent=11 // pred_fallthru
        _
      // Predicated region
      $region25: #{resblk_forward.1} parent=11 // pred_check
        %p193 = pneg %p122
      $region26: #{resblk_forward.1} parent=11 // pred_check_branch
        %195 = sbr.rel (%p193) target = $region28
      $region27: #{resblk_forward.1} parent=11 // pred_region
        _
      $region28: #{resblk_forward.1} parent=11 // pred_fallthru
        _
      // Predicated region
      $region29: #{resblk_forward.1} parent=11 // pred_check
        %p196 = pneg %p143
      $region30: #{resblk_forward.1} parent=11 // pred_check_branch
        %198 = sbr.rel (%p196) target = $region32
      $region31: #{resblk_forward.1} parent=11 // pred_region
        _
      $region32: #{resblk_forward.1} parent=11 // pred_fallthru
        _
    $region12: #{resblk_forward.1} parent=5 // pred_fallthru
      _
    %p199 = scmp.lt.s32.totalorder %s12, 2
    // Predicated region
    $region33: #{resblk_forward.1} parent=5 // pred_check
      %p200 = pneg %p199
    $region34: #{resblk_forward.1} parent=5 // pred_check_branch
      %202 = sbr.rel (%p200) target = $region36
    $region35: #{resblk_forward.1} parent=5 // pred_region
      // Predicated region
      $region37: #{resblk_forward.1} parent=35 // pred_check
        %p203 = pneg %p32
      $region38: #{resblk_forward.1} parent=35 // pred_check_branch
        %205 = sbr.rel (%p203) target = $region40
      $region39: #{resblk_forward.1} parent=35 // pred_region
        %p206 = scmp.lt.s32.totalorder %s12, 1
        %s207 = scalar_select %p206, %s12, 1
        %s208 = smul.addr %s207, 57
        %s209 = smul.addr %s208, 8
        %s210 = scalar_lea.vmem %s0, %s209
      $region40: #{resblk_forward.1} parent=35 // pred_fallthru
        _
    $region36: #{resblk_forward.1} parent=5 // pred_fallthru
      _
    %p211 = scmp.le.s32.totalorder 1, %s12
    %p212 = scmp.lt.s32.totalorder %s12, 3
    %p213 = pnand %p211, %p212
    %p214 = pneg %p213
    // Predicated region
    $region41: #{resblk_forward.1} parent=5 // pred_check
      _
    $region42: #{resblk_forward.1} parent=5 // pred_check_branch
      %216 = sbr.rel (%p213) target = $region44
    $region43: #{resblk_forward.1} parent=5 // pred_region
      %s217 = ssub.s32 %s12, 1
      %p218 = scmp.lt.s32.totalorder %s17, 1
      %s219 = scalar_select %p218, %s17, 1
      %s220 = smul.addr %s219, 57
      %s221 = smul.addr %s220, 8
      %s222 = scalar_lea.vmem %s0, %s221
      %p223 = pneg %p38
      %p224 = pneg %p35
      %p225 = pneg %p59
      %p226 = pneg %p56
      %p227 = pneg %p80
      %p228 = pneg %p77
      %p229 = pneg %p101
      %p230 = pneg %p98
      %p231 = pneg %p122
      %p232 = pneg %p119
      %p233 = pneg %p143
      %p234 = pneg %p140
      %p235 = pneg %p169
      %p236 = pneg %p166
      %p237 = scmp.lt.s32.totalorder %s17, 1
      %s238 = scalar_select %p237, %s17, 1
      %s239 = smul.addr %s238, 48
      %s240 = smul.addr %s239, 8
      %s241 = scalar_lea.vmem %s6, %s240
      %p242 = scmp.lt.s32.totalorder %s17, 1
      %s243 = scalar_select %p242, %s17, 1
      %s244 = smul.addr %s243, 57
      %s245 = smul.addr %s244, 8
      %s246 = scalar_lea.vmem %s0, %s245
      %p247 = scmp.lt.s32.totalorder %s17, 1
      %s248 = scalar_select %p247, %s17, 1
      %s249 = smul.addr %s248, 48
      %s250 = smul.addr %s249, 8
      %s251 = scalar_lea.vmem %s6, %s250
      %v253 = vld [vmem:[%s246] sm:$0xff]
      %v254 = vld [vmem:[%s246 + $0x8] sm:$0xff]
      %v255 = vld [vmem:[%s246 + $0x10] sm:$0xff]
      %v256 = vld [vmem:[%s246 + $0x18] sm:$0xff]
      %v257 = vld [vmem:[%s246 + $0x20] sm:$0xff]
      %v258 = vld [vmem:[%s246 + $0x28] sm:$0xff]
      %v259 = vld [vmem:[%s246 + $0x30] sm:$0xff]
      %v260 = vld [vmem:[%s246 + $0x38] sm:$0xff]
      %v261 = vld [vmem:[%s246 + $0x40] sm:$0xff]
      %v262 = vld [vmem:[%s246 + $0x48] sm:$0xff]
      %v263 = vld [vmem:[%s246 + $0x50] sm:$0xff]
      %v264 = vld [vmem:[%s246 + $0x58] sm:$0xff]
      %v265 = vld [vmem:[%s246 + $0x60] sm:$0xff]
      %v266 = vld [vmem:[%s246 + $0x68] sm:$0xff]
      %v267 = vld [vmem:[%s246 + $0x70] sm:$0xff]
      %v268 = vld [vmem:[%s246 + $0x78] sm:$0xff]
      %v269 = vld [vmem:[%s246 + $0x80] sm:$0xff]
      %v270 = vld [vmem:[%s246 + $0x88] sm:$0xff]
      %v271 = vld [vmem:[%s246 + $0x90] sm:$0xff]
      %v272 = vld [vmem:[%s246 + $0x98] sm:$0xff]
      %v273 = vld [vmem:[%s246 + $0xa0] sm:$0xff]
      %v274 = vld [vmem:[%s246 + $0xa8] sm:$0xff]
      %v275 = vld [vmem:[%s246 + $0xb0] sm:$0xff]
      %v276 = vld [vmem:[%s246 + $0xb8] sm:$0xff]
      %v277 = vld [vmem:[%s246 + $0xc0] sm:$0xff]
      %v278 = vld [vmem:[%s246 + $0xc8] sm:$0xff]
      %v279 = vld [vmem:[%s246 + $0xd0] sm:$0xff]
      %v280 = vld [vmem:[%s246 + $0xd8] sm:$0xff]
      %v281 = vld [vmem:[%s246 + $0xe0] sm:$0xff]
      %v282 = vld [vmem:[%s246 + $0xe8] sm:$0xff]
      %v283 = vld [vmem:[%s246 + $0xf0] sm:$0xff]
      %v284 = vld [vmem:[%s246 + $0xf8] sm:$0xff]
      %v285 = vld [vmem:[%s246 + $0x100] sm:$0xff]
      %v286 = vld [vmem:[%s246 + $0x108] sm:$0xff]
      %v287 = vld [vmem:[%s246 + $0x110] sm:$0xff]
      %v288 = vld [vmem:[%s246 + $0x118] sm:$0xff]
      %v289 = vld [vmem:[%s246 + $0x120] sm:$0xff]
      %v290 = vld [vmem:[%s246 + $0x128] sm:$0xff]
      %v291 = vld [vmem:[%s246 + $0x130] sm:$0xff]
      %v292 = vld [vmem:[%s246 + $0x138] sm:$0xff]
      %v293 = vld [vmem:[%s246 + $0x140] sm:$0xff]
      %v294 = vld [vmem:[%s246 + $0x148] sm:$0xff]
      %v295 = vld [vmem:[%s246 + $0x150] sm:$0xff]
      %v296 = vld [vmem:[%s246 + $0x158] sm:$0xff]
      %v297 = vld [vmem:[%s246 + $0x160] sm:$0xff]
      %v298 = vld [vmem:[%s246 + $0x168] sm:$0xff]
      %v299 = vld [vmem:[%s246 + $0x170] sm:$0xff]
      %v300 = vld [vmem:[%s246 + $0x178] sm:$0xff]
      %vm301 = vcmp.gt.f32.partialorder %v253, 0.0
      %vm302 = vcmp.gt.f32.partialorder %v254, 0.0
      %vm303 = vcmp.gt.f32.partialorder %v255, 0.0
      %vm304 = vcmp.gt.f32.partialorder %v256, 0.0
      %vm305 = vcmp.gt.f32.partialorder %v257, 0.0
      %vm306 = vcmp.gt.f32.partialorder %v258, 0.0
      %vm307 = vcmp.gt.f32.partialorder %v259, 0.0
      %vm308 = vcmp.gt.f32.partialorder %v260, 0.0
      %vm309 = vcmp.gt.f32.partialorder %v261, 0.0
      %vm310 = vcmp.gt.f32.partialorder %v262, 0.0
      %vm311 = vcmp.gt.f32.partialorder %v263, 0.0
      %vm312 = vcmp.gt.f32.partialorder %v264, 0.0
      %vm313 = vcmp.gt.f32.partialorder %v265, 0.0
      %vm314 = vcmp.gt.f32.partialorder %v266, 0.0
      %vm315 = vcmp.gt.f32.partialorder %v267, 0.0
      %vm316 = vcmp.gt.f32.partialorder %v268, 0.0
      %vm317 = vcmp.gt.f32.partialorder %v269, 0.0
      %vm318 = vcmp.gt.f32.partialorder %v270, 0.0
      %vm319 = vcmp.gt.f32.partialorder %v271, 0.0
      %vm320 = vcmp.gt.f32.partialorder %v272, 0.0
      %vm321 = vcmp.gt.f32.partialorder %v273, 0.0
      %vm322 = vcmp.gt.f32.partialorder %v274, 0.0
      %vm323 = vcmp.gt.f32.partialorder %v275, 0.0
      %vm324 = vcmp.gt.f32.partialorder %v276, 0.0
      %vm325 = vcmp.gt.f32.partialorder %v277, 0.0
      %vm326 = vcmp.gt.f32.partialorder %v278, 0.0
      %vm327 = vcmp.gt.f32.partialorder %v279, 0.0
      %vm328 = vcmp.gt.f32.partialorder %v280, 0.0
      %vm329 = vcmp.gt.f32.partialorder %v281, 0.0
      %vm330 = vcmp.gt.f32.partialorder %v282, 0.0
      %vm331 = vcmp.gt.f32.partialorder %v283, 0.0
      %vm332 = vcmp.gt.f32.partialorder %v284, 0.0
      %vm333 = vcmp.gt.f32.partialorder %v285, 0.0
      %vm334 = vcmp.gt.f32.partialorder %v286, 0.0
      %vm335 = vcmp.gt.f32.partialorder %v287, 0.0
      %vm336 = vcmp.gt.f32.partialorder %v288, 0.0
      %vm337 = vcmp.gt.f32.partialorder %v289, 0.0
      %vm338 = vcmp.gt.f32.partialorder %v290, 0.0
      %vm339 = vcmp.gt.f32.partialorder %v291, 0.0
      %vm340 = vcmp.gt.f32.partialorder %v292, 0.0
      %vm341 = vcmp.gt.f32.partialorder %v293, 0.0
      %vm342 = vcmp.gt.f32.partialorder %v294, 0.0
      %vm343 = vcmp.gt.f32.partialorder %v295, 0.0
      %vm344 = vcmp.gt.f32.partialorder %v296, 0.0
      %vm345 = vcmp.gt.f32.partialorder %v297, 0.0
      %vm346 = vcmp.gt.f32.partialorder %v298, 0.0
      %vm347 = vcmp.gt.f32.partialorder %v299, 0.0
      %vm348 = vcmp.gt.f32.partialorder %v300, 0.0
      %v349 = vmul.f32 %v253, 0.2
      %v350 = vmul.f32 %v254, 0.2
      %v351 = vmul.f32 %v255, 0.2
      %v352 = vmul.f32 %v256, 0.2
      %v353 = vmul.f32 %v257, 0.2
      %v354 = vmul.f32 %v258, 0.2
      %v355 = vmul.f32 %v259, 0.2
      %v356 = vmul.f32 %v260, 0.2
      %v357 = vmul.f32 %v261, 0.2
      %v358 = vmul.f32 %v262, 0.2
      %v359 = vmul.f32 %v263, 0.2
      %v360 = vmul.f32 %v264, 0.2
      %v361 = vmul.f32 %v265, 0.2
      %v362 = vmul.f32 %v266, 0.2
      %v363 = vmul.f32 %v267, 0.2
      %v364 = vmul.f32 %v268, 0.2
      %v365 = vmul.f32 %v269, 0.2
      %v366 = vmul.f32 %v270, 0.2
      %v367 = vmul.f32 %v271, 0.2
      %v368 = vmul.f32 %v272, 0.2
      %v369 = vmul.f32 %v273, 0.2
      %v370 = vmul.f32 %v274, 0.2
      %v371 = vmul.f32 %v275, 0.2
      %v372 = vmul.f32 %v276, 0.2
      %v373 = vmul.f32 %v277, 0.2
      %v374 = vmul.f32 %v278, 0.2
      %v375 = vmul.f32 %v279, 0.2
      %v376 = vmul.f32 %v280, 0.2
      %v377 = vmul.f32 %v281, 0.2
      %v378 = vmul.f32 %v282, 0.2
      %v379 = vmul.f32 %v283, 0.2
      %v380 = vmul.f32 %v284, 0.2
      %v381 = vmul.f32 %v285, 0.2
      %v382 = vmul.f32 %v286, 0.2
      %v383 = vmul.f32 %v287, 0.2
      %v384 = vmul.f32 %v288, 0.2
      %v385 = vmul.f32 %v289, 0.2
      %v386 = vmul.f32 %v290, 0.2
      %v387 = vmul.f32 %v291, 0.2
      %v388 = vmul.f32 %v292, 0.2
      %v389 = vmul.f32 %v293, 0.2
      %v390 = vmul.f32 %v294, 0.2
      %v391 = vmul.f32 %v295, 0.2
      %v392 = vmul.f32 %v296, 0.2
      %v393 = vmul.f32 %v297, 0.2
      %v394 = vmul.f32 %v298, 0.2
      %v395 = vmul.f32 %v299, 0.2
      %v396 = vmul.f32 %v300, 0.2
      %v397 = vsel %vm301, %v253, %v349
      %v398 = vsel %vm302, %v254, %v350
      %v399 = vsel %vm303, %v255, %v351
      %v400 = vsel %vm304, %v256, %v352
      %v401 = vsel %vm305, %v257, %v353
      %v402 = vsel %vm306, %v258, %v354
      %v403 = vsel %vm307, %v259, %v355
      %v404 = vsel %vm308, %v260, %v356
      %v405 = vsel %vm309, %v261, %v357
      %v406 = vsel %vm310, %v262, %v358
      %v407 = vsel %vm311, %v263, %v359
      %v408 = vsel %vm312, %v264, %v360
      %v409 = vsel %vm313, %v265, %v361
      %v410 = vsel %vm314, %v266, %v362
      %v411 = vsel %vm315, %v267, %v363
      %v412 = vsel %vm316, %v268, %v364
      %v413 = vsel %vm317, %v269, %v365
      %v414 = vsel %vm318, %v270, %v366
      %v415 = vsel %vm319, %v271, %v367
      %v416 = vsel %vm320, %v272, %v368
      %v417 = vsel %vm321, %v273, %v369
      %v418 = vsel %vm322, %v274, %v370
      %v419 = vsel %vm323, %v275, %v371
      %v420 = vsel %vm324, %v276, %v372
      %v421 = vsel %vm325, %v277, %v373
      %v422 = vsel %vm326, %v278, %v374
      %v423 = vsel %vm327, %v279, %v375
      %v424 = vsel %vm328, %v280, %v376
      %v425 = vsel %vm329, %v281, %v377
      %v426 = vsel %vm330, %v282, %v378
      %v427 = vsel %vm331, %v283, %v379
      %v428 = vsel %vm332, %v284, %v380
      %v429 = vsel %vm333, %v285, %v381
      %v430 = vsel %vm334, %v286, %v382
      %v431 = vsel %vm335, %v287, %v383
      %v432 = vsel %vm336, %v288, %v384
      %v433 = vsel %vm337, %v289, %v385
      %v434 = vsel %vm338, %v290, %v386
      %v435 = vsel %vm339, %v291, %v387
      %v436 = vsel %vm340, %v292, %v388
      %v437 = vsel %vm341, %v293, %v389
      %v438 = vsel %vm342, %v294, %v390
      %v439 = vsel %vm343, %v295, %v391
      %v440 = vsel %vm344, %v296, %v392
      %v441 = vsel %vm345, %v297, %v393
      %v442 = vsel %vm346, %v298, %v394
      %v443 = vsel %vm347, %v299, %v395
      %v444 = vsel %vm348, %v300, %v396
      %445 = vst [vmem:[#allocation2] sm:$0xff] %v397
      %446 = vst [vmem:[#allocation2 + $0x8] sm:$0xff] %v398
      %447 = vst [vmem:[#allocation2 + $0x10] sm:$0xff] %v399
      %448 = vst [vmem:[#allocation2 + $0x18] sm:$0xff] %v400
      %449 = vst [vmem:[#allocation2 + $0x20] sm:$0xff] %v401
      %450 = vst [vmem:[#allocation2 + $0x28] sm:$0xff] %v402
      %451 = vst [vmem:[#allocation2 + $0x30] sm:$0xff] %v403
      %452 = vst [vmem:[#allocation2 + $0x38] sm:$0xff] %v404
      %453 = vst [vmem:[#allocation2 + $0x40] sm:$0xff] %v405
      %454 = vst [vmem:[#allocation2 + $0x48] sm:$0xff] %v406
      %455 = vst [vmem:[#allocation2 + $0x50] sm:$0xff] %v407
      %456 = vst [vmem:[#allocation2 + $0x58] sm:$0xff] %v408
      %457 = vst [vmem:[#allocation2 + $0x60] sm:$0xff] %v409
      %458 = vst [vmem:[#allocation2 + $0x68] sm:$0xff] %v410
      %459 = vst [vmem:[#allocation2 + $0x70] sm:$0xff] %v411
      %460 = vst [vmem:[#allocation2 + $0x78] sm:$0xff] %v412
      %461 = vst [vmem:[#allocation2 + $0x80] sm:$0xff] %v413
      %462 = vst [vmem:[#allocation2 + $0x88] sm:$0xff] %v414
      %463 = vst [vmem:[#allocation2 + $0x90] sm:$0xff] %v415
      %464 = vst [vmem:[#allocation2 + $0x98] sm:$0xff] %v416
      %465 = vst [vmem:[#allocation2 + $0xa0] sm:$0xff] %v417
      %466 = vst [vmem:[#allocation2 + $0xa8] sm:$0xff] %v418
      %467 = vst [vmem:[#allocation2 + $0xb0] sm:$0xff] %v419
      %468 = vst [vmem:[#allocation2 + $0xb8] sm:$0xff] %v420
      %469 = vst [vmem:[#allocation2 + $0xc0] sm:$0xff] %v421
      %470 = vst [vmem:[#allocation2 + $0xc8] sm:$0xff] %v422
      %471 = vst [vmem:[#allocation2 + $0xd0] sm:$0xff] %v423
      %472 = vst [vmem:[#allocation2 + $0xd8] sm:$0xff] %v424
      %473 = vst [vmem:[#allocation2 + $0xe0] sm:$0xff] %v425
      %474 = vst [vmem:[#allocation2 + $0xe8] sm:$0xff] %v426
      %475 = vst [vmem:[#allocation2 + $0xf0] sm:$0xff] %v427
      %476 = vst [vmem:[#allocation2 + $0xf8] sm:$0xff] %v428
      %477 = vst [vmem:[#allocation2 + $0x100] sm:$0xff] %v429
      %478 = vst [vmem:[#allocation2 + $0x108] sm:$0xff] %v430
      %479 = vst [vmem:[#allocation2 + $0x110] sm:$0xff] %v431
      %480 = vst [vmem:[#allocation2 + $0x118] sm:$0xff] %v432
      %481 = vst [vmem:[#allocation2 + $0x120] sm:$0xff] %v433
      %482 = vst [vmem:[#allocation2 + $0x128] sm:$0xff] %v434
      %483 = vst [vmem:[#allocation2 + $0x130] sm:$0xff] %v435
      %484 = vst [vmem:[#allocation2 + $0x138] sm:$0xff] %v436
      %485 = vst [vmem:[#allocation2 + $0x140] sm:$0xff] %v437
      %486 = vst [vmem:[#allocation2 + $0x148] sm:$0xff] %v438
      %487 = vst [vmem:[#allocation2 + $0x150] sm:$0xff] %v439
      %488 = vst [vmem:[#allocation2 + $0x158] sm:$0xff] %v440
      %489 = vst [vmem:[#allocation2 + $0x160] sm:$0xff] %v441
      %490 = vst [vmem:[#allocation2 + $0x168] sm:$0xff] %v442
      %491 = vst [vmem:[#allocation2 + $0x170] sm:$0xff] %v443
      %492 = vst [vmem:[#allocation2 + $0x178] sm:$0xff] %v444
      %v493 = vld [vmem:[%s246 + $0x180] sm:$0xff]
      %v494 = vld [vmem:[%s246 + $0x188] sm:$0xff]
      %v495 = vld [vmem:[%s246 + $0x190] sm:$0xff]
      %v496 = vld [vmem:[%s246 + $0x198] sm:$0xff]
      %v497 = vld [vmem:[%s246 + $0x1a0] sm:$0xff]
      %v498 = vld [vmem:[%s246 + $0x1a8] sm:$0xff]
      %v499 = vld [vmem:[%s246 + $0x1b0] sm:$0xff]
      %v500 = vld [vmem:[%s246 + $0x1b8] sm:$0xff]
      %v501 = vld [vmem:[%s246 + $0x1c0] sm:$0xff]
      %vm502 = vcmp.gt.f32.partialorder %v493, 0.0
      %vm503 = vcmp.gt.f32.partialorder %v494, 0.0
      %vm504 = vcmp.gt.f32.partialorder %v495, 0.0
      %vm505 = vcmp.gt.f32.partialorder %v496, 0.0
      %vm506 = vcmp.gt.f32.partialorder %v497, 0.0
      %vm507 = vcmp.gt.f32.partialorder %v498, 0.0
      %vm508 = vcmp.gt.f32.partialorder %v499, 0.0
      %vm509 = vcmp.gt.f32.partialorder %v500, 0.0
      %vm510 = vcmp.gt.f32.partialorder %v501, 0.0
      %v511 = vmul.f32 %v493, 0.2
      %v512 = vmul.f32 %v494, 0.2
      %v513 = vmul.f32 %v495, 0.2
      %v514 = vmul.f32 %v496, 0.2
      %v515 = vmul.f32 %v497, 0.2
      %v516 = vmul.f32 %v498, 0.2
      %v517 = vmul.f32 %v499, 0.2
      %v518 = vmul.f32 %v500, 0.2
      %v519 = vmul.f32 %v501, 0.2
      %v520 = vsel %vm502, %v493, %v511
      %v521 = vsel %vm503, %v494, %v512
      %v522 = vsel %vm504, %v495, %v513
      %v523 = vsel %vm505, %v496, %v514
      %v524 = vsel %vm506, %v497, %v515
      %v525 = vsel %vm507, %v498, %v516
      %v526 = vsel %vm508, %v499, %v517
      %v527 = vsel %vm509, %v500, %v518
      %v528 = vsel %vm510, %v501, %v519
      %529 = vst [vmem:[#allocation2 + $0x180] sm:$0xff] %v520
      %530 = vst [vmem:[#allocation2 + $0x188] sm:$0xff] %v521
      %531 = vst [vmem:[#allocation2 + $0x190] sm:$0xff] %v522
      %532 = vst [vmem:[#allocation2 + $0x198] sm:$0xff] %v523
      %533 = vst [vmem:[#allocation2 + $0x1a0] sm:$0xff] %v524
      %534 = vst [vmem:[#allocation2 + $0x1a8] sm:$0xff] %v525
      %535 = vst [vmem:[#allocation2 + $0x1b0] sm:$0xff] %v526
      %536 = vst [vmem:[#allocation2 + $0x1b8] sm:$0xff] %v527
      %537 = vst [vmem:[#allocation2 + $0x1c0] sm:$0xff] %v528
      %538 = vst [vmem:[#allocation3] sm:$0xff] 0.0
      %539 = vst [vmem:[#allocation3 + $0x8] sm:$0xff] 0.0
      %540 = vst [vmem:[#allocation3 + $0x10] sm:$0xff] 0.0
      %541 = vst [vmem:[#allocation3 + $0x198] sm:$0xff] 0.0
      %542 = vst [vmem:[#allocation3 + $0x1a0] sm:$0xff] 0.0
      %543 = vst [vmem:[#allocation3 + $0x1a8] sm:$0xff] 0.0
      %544 = vst [vmem:[#allocation3 + $0x1b0] sm:$0xff] 0.0
      %545 = vst [vmem:[#allocation3 + $0x1b8] sm:$0xff] 0.0
      %546 = vst [vmem:[#allocation3 + $0x1c0] sm:$0xff] 0.0
      %v547 = vld [vmem:[%s2] sm:$0x1]
      %v548 = vld [vmem:[%s4] sm:$0x1]
      %v549 = vlaneseq
      %v550 = vshrl.u32 %v549, 7
      %v551 = vadd.s32 %v550, 8
      %v552 = vadd.s32 %v550, 16
      %v553 = vadd.s32 %v550, 24
      %v554 = vadd.s32 %v550, 32
      %v555 = vadd.s32 %v550, 40
      %v556 = vadd.s32 %v550, 48
      %v557 = vadd.s32 %v550, 56
      %v558 = vadd.s32 %v550, 64
      %v559 = vadd.s32 %v550, 72
      %v560 = vadd.s32 %v550, 80
      %v561 = vadd.s32 %v550, 88
      %v562 = vadd.s32 %v550, 96
      %v563 = vadd.s32 %v550, 104
      %v564 = vadd.s32 %v550, 112
      %v565 = vadd.s32 %v550, 120
      %v566 = vadd.s32 %v550, 128
      %v567 = vadd.s32 %v550, 136
      %v568 = vadd.s32 %v550, 144
      %v569 = vadd.s32 %v550, 152
      %v570 = vadd.s32 %v550, 160
      %v571 = vadd.s32 %v550, 168
      %v572 = vadd.s32 %v550, 176
      %v573 = vadd.s32 %v550, 184
      %v574 = vadd.s32 %v550, 192
      %v575 = vadd.s32 %v550, 200
      %v576 = vadd.s32 %v550, 208
      %v577 = vadd.s32 %v550, 216
      %v578 = vadd.s32 %v550, 224
      %v579 = vadd.s32 %v550, 232
      %v580 = vadd.s32 %v550, 240
      %v581 = vadd.s32 %v550, 248
      %v582 = vadd.s32 %v550, 256
      %v583 = vadd.s32 %v550, 264
      %v584 = vadd.s32 %v550, 272
      %v585 = vadd.s32 %v550, 280
      %v586 = vadd.s32 %v550, 288
      %v587 = vadd.s32 %v550, 296
      %v588 = vadd.s32 %v550, 304
      %v589 = vadd.s32 %v550, 312
      %v590 = vadd.s32 %v550, 320
      %v591 = vadd.s32 %v550, 328
      %v592 = vadd.s32 %v550, 336
      %v593 = vadd.s32 %v550, 344
      %v594 = vadd.s32 %v550, 352
      %v595 = vadd.s32 %v550, 360
      %v596 = vadd.s32 %v550, 368
      %v597 = vadd.s32 %v550, 376
      %vm598 = vcmp.lt.s32.totalorder %v550, 0
      %v599 = vsub.s32 0, %v550
      %v600 = vsel %vm598, %v599, %v550
      %v601 = vmul.u32.u64.compose %v600, 2863311531
      %v602 = vextract.low.u32 %v601
      %v603 = vextract.high.u32 %v601
      %v604 = vshrl.u32 %v603, 4
      %v605 = vmul.u32 %v604, 24
      %v606 = vsub.s32 %v600, %v605
      %v607 = vsub.s32 0, %v606
      %v608 = vsel %vm598, %v607, %v606
      %vm609 = vcmp.lt.s32.totalorder %v551, 0
      %v610 = vsub.s32 0, %v551
      %v611 = vsel %vm609, %v610, %v551
      %v612 = vmul.u32.u64.compose %v611, 2863311531
      %v613 = vextract.low.u32 %v612
      %v614 = vextract.high.u32 %v612
      %v615 = vshrl.u32 %v614, 4
      %v616 = vmul.u32 %v615, 24
      %v617 = vsub.s32 %v611, %v616
      %v618 = vsub.s32 0, %v617
      %v619 = vsel %vm609, %v618, %v617
      %vm620 = vcmp.lt.s32.totalorder %v552, 0
      %v621 = vsub.s32 0, %v552
      %v622 = vsel %vm620, %v621, %v552
      %v623 = vmul.u32.u64.compose %v622, 2863311531
      %v624 = vextract.low.u32 %v623
      %v625 = vextract.high.u32 %v623
      %v626 = vshrl.u32 %v625, 4
      %v627 = vmul.u32 %v626, 24
      %v628 = vsub.s32 %v622, %v627
      %v629 = vsub.s32 0, %v628
      %v630 = vsel %vm620, %v629, %v628
      %vm631 = vcmp.lt.s32.totalorder %v553, 0
      %v632 = vsub.s32 0, %v553
      %v633 = vsel %vm631, %v632, %v553
      %v634 = vmul.u32.u64.compose %v633, 2863311531
      %v635 = vextract.low.u32 %v634
      %v636 = vextract.high.u32 %v634
      %v637 = vshrl.u32 %v636, 4
      %v638 = vmul.u32 %v637, 24
      %v639 = vsub.s32 %v633, %v638
      %v640 = vsub.s32 0, %v639
      %v641 = vsel %vm631, %v640, %v639
      %vm642 = vcmp.lt.s32.totalorder %v554, 0
      %v643 = vsub.s32 0, %v554
      %v644 = vsel %vm642, %v643, %v554
      %v645 = vmul.u32.u64.compose %v644, 2863311531
      %v646 = vextract.low.u32 %v645
      %v647 = vextract.high.u32 %v645
      %v648 = vshrl.u32 %v647, 4
      %v649 = vmul.u32 %v648, 24
      %v650 = vsub.s32 %v644, %v649
      %v651 = vsub.s32 0, %v650
      %v652 = vsel %vm642, %v651, %v650
      %vm653 = vcmp.lt.s32.totalorder %v555, 0
      %v654 = vsub.s32 0, %v555
      %v655 = vsel %vm653, %v654, %v555
      %v656 = vmul.u32.u64.compose %v655, 2863311531
      %v657 = vextract.low.u32 %v656
      %v658 = vextract.high.u32 %v656
      %v659 = vshrl.u32 %v658, 4
      %v660 = vmul.u32 %v659, 24
      %v661 = vsub.s32 %v655, %v660
      %v662 = vsub.s32 0, %v661
      %v663 = vsel %vm653, %v662, %v661
      %vm664 = vcmp.lt.s32.totalorder %v556, 0
      %v665 = vsub.s32 0, %v556
      %v666 = vsel %vm664, %v665, %v556
      %v667 = vmul.u32.u64.compose %v666, 2863311531
      %v668 = vextract.low.u32 %v667
      %v669 = vextract.high.u32 %v667
      %v670 = vshrl.u32 %v669, 4
      %v671 = vmul.u32 %v670, 24
      %v672 = vsub.s32 %v666, %v671
      %v673 = vsub.s32 0, %v672
      %v674 = vsel %vm664, %v673, %v672
      %vm675 = vcmp.lt.s32.totalorder %v557, 0
      %v676 = vsub.s32 0, %v557
      %v677 = vsel %vm675, %v676, %v557
      %v678 = vmul.u32.u64.compose %v677, 2863311531
      %v679 = vextract.low.u32 %v678
      %v680 = vextract.high.u32 %v678
      %v681 = vshrl.u32 %v680, 4
      %v682 = vmul.u32 %v681, 24
      %v683 = vsub.s32 %v677, %v682
      %v684 = vsub.s32 0, %v683
      %v685 = vsel %vm675, %v684, %v683
      %vm686 = vcmp.lt.s32.totalorder %v558, 0
      %v687 = vsub.s32 0, %v558
      %v688 = vsel %vm686, %v687, %v558
      %v689 = vmul.u32.u64.compose %v688, 2863311531
      %v690 = vextract.low.u32 %v689
      %v691 = vextract.high.u32 %v689
      %v692 = vshrl.u32 %v691, 4
      %v693 = vmul.u32 %v692, 24
      %v694 = vsub.s32 %v688, %v693
      %v695 = vsub.s32 0, %v694
      %v696 = vsel %vm686, %v695, %v694
      %vm697 = vcmp.lt.s32.totalorder %v559, 0
      %v698 = vsub.s32 0, %v559
      %v699 = vsel %vm697, %v698, %v559
      %v700 = vmul.u32.u64.compose %v699, 2863311531
      %v701 = vextract.low.u32 %v700
      %v702 = vextract.high.u32 %v700
      %v703 = vshrl.u32 %v702, 4
      %v704 = vmul.u32 %v703, 24
      %v705 = vsub.s32 %v699, %v704
      %v706 = vsub.s32 0, %v705
      %v707 = vsel %vm697, %v706, %v705
      %vm708 = vcmp.lt.s32.totalorder %v560, 0
      %v709 = vsub.s32 0, %v560
      %v710 = vsel %vm708, %v709, %v560
      %v711 = vmul.u32.u64.compose %v710, 2863311531
      %v712 = vextract.low.u32 %v711
      %v713 = vextract.high.u32 %v711
      %v714 = vshrl.u32 %v713, 4
      %v715 = vmul.u32 %v714, 24
      %v716 = vsub.s32 %v710, %v715
      %v717 = vsub.s32 0, %v716
      %v718 = vsel %vm708, %v717, %v716
      %vm719 = vcmp.lt.s32.totalorder %v561, 0
      %v720 = vsub.s32 0, %v561
      %v721 = vsel %vm719, %v720, %v561
      %v722 = vmul.u32.u64.compose %v721, 2863311531
      %v723 = vextract.low.u32 %v722
      %v724 = vextract.high.u32 %v722
      %v725 = vshrl.u32 %v724, 4
      %v726 = vmul.u32 %v725, 24
      %v727 = vsub.s32 %v721, %v726
      %v728 = vsub.s32 0, %v727
      %v729 = vsel %vm719, %v728, %v727
      %vm730 = vcmp.lt.s32.totalorder %v562, 0
      %v731 = vsub.s32 0, %v562
      %v732 = vsel %vm730, %v731, %v562
      %v733 = vmul.u32.u64.compose %v732, 2863311531
      %v734 = vextract.low.u32 %v733
      %v735 = vextract.high.u32 %v733
      %v736 = vshrl.u32 %v735, 4
      %v737 = vmul.u32 %v736, 24
      %v738 = vsub.s32 %v732, %v737
      %v739 = vsub.s32 0, %v738
      %v740 = vsel %vm730, %v739, %v738
      %vm741 = vcmp.lt.s32.totalorder %v563, 0
      %v742 = vsub.s32 0, %v563
      %v743 = vsel %vm741, %v742, %v563
      %v744 = vmul.u32.u64.compose %v743, 2863311531
      %v745 = vextract.low.u32 %v744
      %v746 = vextract.high.u32 %v744
      %v747 = vshrl.u32 %v746, 4
      %v748 = vmul.u32 %v747, 24
      %v749 = vsub.s32 %v743, %v748
      %v750 = vsub.s32 0, %v749
      %v751 = vsel %vm741, %v750, %v749
      %vm752 = vcmp.lt.s32.totalorder %v564, 0
      %v753 = vsub.s32 0, %v564
      %v754 = vsel %vm752, %v753, %v564
      %v755 = vmul.u32.u64.compose %v754, 2863311531
      %v756 = vextract.low.u32 %v755
      %v757 = vextract.high.u32 %v755
      %v758 = vshrl.u32 %v757, 4
      %v759 = vmul.u32 %v758, 24
      %v760 = vsub.s32 %v754, %v759
      %v761 = vsub.s32 0, %v760
      %v762 = vsel %vm752, %v761, %v760
      %vm763 = vcmp.lt.s32.totalorder %v565, 0
      %v764 = vsub.s32 0, %v565
      %v765 = vsel %vm763, %v764, %v565
      %v766 = vmul.u32.u64.compose %v765, 2863311531
      %v767 = vextract.low.u32 %v766
      %v768 = vextract.high.u32 %v766
      %v769 = vshrl.u32 %v768, 4
      %v770 = vmul.u32 %v769, 24
      %v771 = vsub.s32 %v765, %v770
      %v772 = vsub.s32 0, %v771
      %v773 = vsel %vm763, %v772, %v771
      %vm774 = vcmp.lt.s32.totalorder %v566, 0
      %v775 = vsub.s32 0, %v566
      %v776 = vsel %vm774, %v775, %v566
      %v777 = vmul.u32.u64.compose %v776, 2863311531
      %v778 = vextract.low.u32 %v777
      %v779 = vextract.high.u32 %v777
      %v780 = vshrl.u32 %v779, 4
      %v781 = vmul.u32 %v780, 24
      %v782 = vsub.s32 %v776, %v781
      %v783 = vsub.s32 0, %v782
      %v784 = vsel %vm774, %v783, %v782
      %vm785 = vcmp.lt.s32.totalorder %v567, 0
      %v786 = vsub.s32 0, %v567
      %v787 = vsel %vm785, %v786, %v567
      %v788 = vmul.u32.u64.compose %v787, 2863311531
      %v789 = vextract.low.u32 %v788
      %v790 = vextract.high.u32 %v788
      %v791 = vshrl.u32 %v790, 4
      %v792 = vmul.u32 %v791, 24
      %v793 = vsub.s32 %v787, %v792
      %v794 = vsub.s32 0, %v793
      %v795 = vsel %vm785, %v794, %v793
      %vm796 = vcmp.lt.s32.totalorder %v568, 0
      %v797 = vsub.s32 0, %v568
      %v798 = vsel %vm796, %v797, %v568
      %v799 = vmul.u32.u64.compose %v798, 2863311531
      %v800 = vextract.low.u32 %v799
      %v801 = vextract.high.u32 %v799
      %v802 = vshrl.u32 %v801, 4
      %v803 = vmul.u32 %v802, 24
      %v804 = vsub.s32 %v798, %v803
      %v805 = vsub.s32 0, %v804
      %v806 = vsel %vm796, %v805, %v804
      %vm807 = vcmp.lt.s32.totalorder %v569, 0
      %v808 = vsub.s32 0, %v569
      %v809 = vsel %vm807, %v808, %v569
      %v810 = vmul.u32.u64.compose %v809, 2863311531
      %v811 = vextract.low.u32 %v810
      %v812 = vextract.high.u32 %v810
      %v813 = vshrl.u32 %v812, 4
      %v814 = vmul.u32 %v813, 24
      %v815 = vsub.s32 %v809, %v814
      %v816 = vsub.s32 0, %v815
      %v817 = vsel %vm807, %v816, %v815
      %vm818 = vcmp.lt.s32.totalorder %v570, 0
      %v819 = vsub.s32 0, %v570
      %v820 = vsel %vm818, %v819, %v570
      %v821 = vmul.u32.u64.compose %v820, 2863311531
      %v822 = vextract.low.u32 %v821
      %v823 = vextract.high.u32 %v821
      %v824 = vshrl.u32 %v823, 4
      %v825 = vmul.u32 %v824, 24
      %v826 = vsub.s32 %v820, %v825
      %v827 = vsub.s32 0, %v826
      %v828 = vsel %vm818, %v827, %v826
      %vm829 = vcmp.lt.s32.totalorder %v571, 0
      %v830 = vsub.s32 0, %v571
      %v831 = vsel %vm829, %v830, %v571
      %v832 = vmul.u32.u64.compose %v831, 2863311531
      %v833 = vextract.low.u32 %v832
      %v834 = vextract.high.u32 %v832
      %v835 = vshrl.u32 %v834, 4
      %v836 = vmul.u32 %v835, 24
      %v837 = vsub.s32 %v831, %v836
      %v838 = vsub.s32 0, %v837
      %v839 = vsel %vm829, %v838, %v837
      %vm840 = vcmp.lt.s32.totalorder %v572, 0
      %v841 = vsub.s32 0, %v572
      %v842 = vsel %vm840, %v841, %v572
      %v843 = vmul.u32.u64.compose %v842, 2863311531
      %v844 = vextract.low.u32 %v843
      %v845 = vextract.high.u32 %v843
      %v846 = vshrl.u32 %v845, 4
      %v847 = vmul.u32 %v846, 24
      %v848 = vsub.s32 %v842, %v847
      %v849 = vsub.s32 0, %v848
      %v850 = vsel %vm840, %v849, %v848
      %vm851 = vcmp.lt.s32.totalorder %v573, 0
      %v852 = vsub.s32 0, %v573
      %v853 = vsel %vm851, %v852, %v573
      %v854 = vmul.u32.u64.compose %v853, 2863311531
      %v855 = vextract.low.u32 %v854
      %v856 = vextract.high.u32 %v854
      %v857 = vshrl.u32 %v856, 4
      %v858 = vmul.u32 %v857, 24
      %v859 = vsub.s32 %v853, %v858
      %v860 = vsub.s32 0, %v859
      %v861 = vsel %vm851, %v860, %v859
      %vm862 = vcmp.lt.s32.totalorder %v574, 0
      %v863 = vsub.s32 0, %v574
      %v864 = vsel %vm862, %v863, %v574
      %v865 = vmul.u32.u64.compose %v864, 2863311531
      %v866 = vextract.low.u32 %v865
      %v867 = vextract.high.u32 %v865
      %v868 = vshrl.u32 %v867, 4
      %v869 = vmul.u32 %v868, 24
      %v870 = vsub.s32 %v864, %v869
      %v871 = vsub.s32 0, %v870
      %v872 = vsel %vm862, %v871, %v870
      %vm873 = vcmp.lt.s32.totalorder %v575, 0
      %v874 = vsub.s32 0, %v575
      %v875 = vsel %vm873, %v874, %v575
      %v876 = vmul.u32.u64.compose %v875, 2863311531
      %v877 = vextract.low.u32 %v876
      %v878 = vextract.high.u32 %v876
      %v879 = vshrl.u32 %v878, 4
      %v880 = vmul.u32 %v879, 24
      %v881 = vsub.s32 %v875, %v880
      %v882 = vsub.s32 0, %v881
      %v883 = vsel %vm873, %v882, %v881
      %vm884 = vcmp.lt.s32.totalorder %v576, 0
      %v885 = vsub.s32 0, %v576
      %v886 = vsel %vm884, %v885, %v576
      %v887 = vmul.u32.u64.compose %v886, 2863311531
      %v888 = vextract.low.u32 %v887
      %v889 = vextract.high.u32 %v887
      %v890 = vshrl.u32 %v889, 4
      %v891 = vmul.u32 %v890, 24
      %v892 = vsub.s32 %v886, %v891
      %v893 = vsub.s32 0, %v892
      %v894 = vsel %vm884, %v893, %v892
      %vm895 = vcmp.lt.s32.totalorder %v577, 0
      %v896 = vsub.s32 0, %v577
      %v897 = vsel %vm895, %v896, %v577
      %v898 = vmul.u32.u64.compose %v897, 2863311531
      %v899 = vextract.low.u32 %v898
      %v900 = vextract.high.u32 %v898
      %v901 = vshrl.u32 %v900, 4
      %v902 = vmul.u32 %v901, 24
      %v903 = vsub.s32 %v897, %v902
      %v904 = vsub.s32 0, %v903
      %v905 = vsel %vm895, %v904, %v903
      %vm906 = vcmp.lt.s32.totalorder %v578, 0
      %v907 = vsub.s32 0, %v578
      %v908 = vsel %vm906, %v907, %v578
      %v909 = vmul.u32.u64.compose %v908, 2863311531
      %v910 = vextract.low.u32 %v909
      %v911 = vextract.high.u32 %v909
      %v912 = vshrl.u32 %v911, 4
      %v913 = vmul.u32 %v912, 24
      %v914 = vsub.s32 %v908, %v913
      %v915 = vsub.s32 0, %v914
      %v916 = vsel %vm906, %v915, %v914
      %vm917 = vcmp.lt.s32.totalorder %v579, 0
      %v918 = vsub.s32 0, %v579
      %v919 = vsel %vm917, %v918, %v579
      %v920 = vmul.u32.u64.compose %v919, 2863311531
      %v921 = vextract.low.u32 %v920
      %v922 = vextract.high.u32 %v920
      %v923 = vshrl.u32 %v922, 4
      %v924 = vmul.u32 %v923, 24
      %v925 = vsub.s32 %v919, %v924
      %v926 = vsub.s32 0, %v925
      %v927 = vsel %vm917, %v926, %v925
      %vm928 = vcmp.lt.s32.totalorder %v580, 0
      %v929 = vsub.s32 0, %v580
      %v930 = vsel %vm928, %v929, %v580
      %v931 = vmul.u32.u64.compose %v930, 2863311531
      %v932 = vextract.low.u32 %v931
      %v933 = vextract.high.u32 %v931
      %v934 = vshrl.u32 %v933, 4
      %v935 = vmul.u32 %v934, 24
      %v936 = vsub.s32 %v930, %v935
      %v937 = vsub.s32 0, %v936
      %v938 = vsel %vm928, %v937, %v936
      %vm939 = vcmp.lt.s32.totalorder %v581, 0
      %v940 = vsub.s32 0, %v581
      %v941 = vsel %vm939, %v940, %v581
      %v942 = vmul.u32.u64.compose %v941, 2863311531
      %v943 = vextract.low.u32 %v942
      %v944 = vextract.high.u32 %v942
      %v945 = vshrl.u32 %v944, 4
      %v946 = vmul.u32 %v945, 24
      %v947 = vsub.s32 %v941, %v946
      %v948 = vsub.s32 0, %v947
      %v949 = vsel %vm939, %v948, %v947
      %vm950 = vcmp.lt.s32.totalorder %v582, 0
      %v951 = vsub.s32 0, %v582
      %v952 = vsel %vm950, %v951, %v582
      %v953 = vmul.u32.u64.compose %v952, 2863311531
      %v954 = vextract.low.u32 %v953
      %v955 = vextract.high.u32 %v953
      %v956 = vshrl.u32 %v955, 4
      %v957 = vmul.u32 %v956, 24
      %v958 = vsub.s32 %v952, %v957
      %v959 = vsub.s32 0, %v958
      %v960 = vsel %vm950, %v959, %v958
      %vm961 = vcmp.lt.s32.totalorder %v583, 0
      %v962 = vsub.s32 0, %v583
      %v963 = vsel %vm961, %v962, %v583
      %v964 = vmul.u32.u64.compose %v963, 2863311531
      %v965 = vextract.low.u32 %v964
      %v966 = vextract.high.u32 %v964
      %v967 = vshrl.u32 %v966, 4
      %v968 = vmul.u32 %v967, 24
      %v969 = vsub.s32 %v963, %v968
      %v970 = vsub.s32 0, %v969
      %v971 = vsel %vm961, %v970, %v969
      %vm972 = vcmp.lt.s32.totalorder %v584, 0
      %v973 = vsub.s32 0, %v584
      %v974 = vsel %vm972, %v973, %v584
      %v975 = vmul.u32.u64.compose %v974, 2863311531
      %v976 = vextract.low.u32 %v975
      %v977 = vextract.high.u32 %v975
      %v978 = vshrl.u32 %v977, 4
      %v979 = vmul.u32 %v978, 24
      %v980 = vsub.s32 %v974, %v979
      %v981 = vsub.s32 0, %v980
      %v982 = vsel %vm972, %v981, %v980
      %vm983 = vcmp.lt.s32.totalorder %v585, 0
      %v984 = vsub.s32 0, %v585
      %v985 = vsel %vm983, %v984, %v585
      %v986 = vmul.u32.u64.compose %v985, 2863311531
      %v987 = vextract.low.u32 %v986
      %v988 = vextract.high.u32 %v986
      %v989 = vshrl.u32 %v988, 4
      %v990 = vmul.u32 %v989, 24
      %v991 = vsub.s32 %v985, %v990
      %v992 = vsub.s32 0, %v991
      %v993 = vsel %vm983, %v992, %v991
      %vm994 = vcmp.lt.s32.totalorder %v586, 0
      %v995 = vsub.s32 0, %v586
      %v996 = vsel %vm994, %v995, %v586
      %v997 = vmul.u32.u64.compose %v996, 2863311531
      %v998 = vextract.low.u32 %v997
      %v999 = vextract.high.u32 %v997
      %v1000 = vshrl.u32 %v999, 4
      %v1001 = vmul.u32 %v1000, 24
      %v1002 = vsub.s32 %v996, %v1001
      %v1003 = vsub.s32 0, %v1002
      %v1004 = vsel %vm994, %v1003, %v1002
      %vm1005 = vcmp.lt.s32.totalorder %v587, 0
      %v1006 = vsub.s32 0, %v587
      %v1007 = vsel %vm1005, %v1006, %v587
      %v1008 = vmul.u32.u64.compose %v1007, 2863311531
      %v1009 = vextract.low.u32 %v1008
      %v1010 = vextract.high.u32 %v1008
      %v1011 = vshrl.u32 %v1010, 4
      %v1012 = vmul.u32 %v1011, 24
      %v1013 = vsub.s32 %v1007, %v1012
      %v1014 = vsub.s32 0, %v1013
      %v1015 = vsel %vm1005, %v1014, %v1013
      %vm1016 = vcmp.lt.s32.totalorder %v588, 0
      %v1017 = vsub.s32 0, %v588
      %v1018 = vsel %vm1016, %v1017, %v588
      %v1019 = vmul.u32.u64.compose %v1018, 2863311531
      %v1020 = vextract.low.u32 %v1019
      %v1021 = vextract.high.u32 %v1019
      %v1022 = vshrl.u32 %v1021, 4
      %v1023 = vmul.u32 %v1022, 24
      %v1024 = vsub.s32 %v1018, %v1023
      %v1025 = vsub.s32 0, %v1024
      %v1026 = vsel %vm1016, %v1025, %v1024
      %vm1027 = vcmp.lt.s32.totalorder %v589, 0
      %v1028 = vsub.s32 0, %v589
      %v1029 = vsel %vm1027, %v1028, %v589
      %v1030 = vmul.u32.u64.compose %v1029, 2863311531
      %v1031 = vextract.low.u32 %v1030
      %v1032 = vextract.high.u32 %v1030
      %v1033 = vshrl.u32 %v1032, 4
      %v1034 = vmul.u32 %v1033, 24
      %v1035 = vsub.s32 %v1029, %v1034
      %v1036 = vsub.s32 0, %v1035
      %v1037 = vsel %vm1027, %v1036, %v1035
      %vm1038 = vcmp.lt.s32.totalorder %v590, 0
      %v1039 = vsub.s32 0, %v590
      %v1040 = vsel %vm1038, %v1039, %v590
      %v1041 = vmul.u32.u64.compose %v1040, 2863311531
      %v1042 = vextract.low.u32 %v1041
      %v1043 = vextract.high.u32 %v1041
      %v1044 = vshrl.u32 %v1043, 4
      %v1045 = vmul.u32 %v1044, 24
      %v1046 = vsub.s32 %v1040, %v1045
      %v1047 = vsub.s32 0, %v1046
      %v1048 = vsel %vm1038, %v1047, %v1046
      %vm1049 = vcmp.lt.s32.totalorder %v591, 0
      %v1050 = vsub.s32 0, %v591
      %v1051 = vsel %vm1049, %v1050, %v591
      %v1052 = vmul.u32.u64.compose %v1051, 2863311531
      %v1053 = vextract.low.u32 %v1052
      %v1054 = vextract.high.u32 %v1052
      %v1055 = vshrl.u32 %v1054, 4
      %v1056 = vmul.u32 %v1055, 24
      %v1057 = vsub.s32 %v1051, %v1056
      %v1058 = vsub.s32 0, %v1057
      %v1059 = vsel %vm1049, %v1058, %v1057
      %vm1060 = vcmp.lt.s32.totalorder %v592, 0
      %v1061 = vsub.s32 0, %v592
      %v1062 = vsel %vm1060, %v1061, %v592
      %v1063 = vmul.u32.u64.compose %v1062, 2863311531
      %v1064 = vextract.low.u32 %v1063
      %v1065 = vextract.high.u32 %v1063
      %v1066 = vshrl.u32 %v1065, 4
      %v1067 = vmul.u32 %v1066, 24
      %v1068 = vsub.s32 %v1062, %v1067
      %v1069 = vsub.s32 0, %v1068
      %v1070 = vsel %vm1060, %v1069, %v1068
      %vm1071 = vcmp.lt.s32.totalorder %v593, 0
      %v1072 = vsub.s32 0, %v593
      %v1073 = vsel %vm1071, %v1072, %v593
      %v1074 = vmul.u32.u64.compose %v1073, 2863311531
      %v1075 = vextract.low.u32 %v1074
      %v1076 = vextract.high.u32 %v1074
      %v1077 = vshrl.u32 %v1076, 4
      %v1078 = vmul.u32 %v1077, 24
      %v1079 = vsub.s32 %v1073, %v1078
      %v1080 = vsub.s32 0, %v1079
      %v1081 = vsel %vm1071, %v1080, %v1079
      %vm1082 = vcmp.lt.s32.totalorder %v594, 0
      %v1083 = vsub.s32 0, %v594
      %v1084 = vsel %vm1082, %v1083, %v594
      %v1085 = vmul.u32.u64.compose %v1084, 2863311531
      %v1086 = vextract.low.u32 %v1085
      %v1087 = vextract.high.u32 %v1085
      %v1088 = vshrl.u32 %v1087, 4
      %v1089 = vmul.u32 %v1088, 24
      %v1090 = vsub.s32 %v1084, %v1089
      %v1091 = vsub.s32 0, %v1090
      %v1092 = vsel %vm1082, %v1091, %v1090
      %vm1093 = vcmp.lt.s32.totalorder %v595, 0
      %v1094 = vsub.s32 0, %v595
      %v1095 = vsel %vm1093, %v1094, %v595
      %v1096 = vmul.u32.u64.compose %v1095, 2863311531
      %v1097 = vextract.low.u32 %v1096
      %v1098 = vextract.high.u32 %v1096
      %v1099 = vshrl.u32 %v1098, 4
      %v1100 = vmul.u32 %v1099, 24
      %v1101 = vsub.s32 %v1095, %v1100
      %v1102 = vsub.s32 0, %v1101
      %v1103 = vsel %vm1093, %v1102, %v1101
      %vm1104 = vcmp.lt.s32.totalorder %v596, 0
      %v1105 = vsub.s32 0, %v596
      %v1106 = vsel %vm1104, %v1105, %v596
      %v1107 = vmul.u32.u64.compose %v1106, 2863311531
      %v1108 = vextract.low.u32 %v1107
      %v1109 = vextract.high.u32 %v1107
      %v1110 = vshrl.u32 %v1109, 4
      %v1111 = vmul.u32 %v1110, 24
      %v1112 = vsub.s32 %v1106, %v1111
      %v1113 = vsub.s32 0, %v1112
      %v1114 = vsel %vm1104, %v1113, %v1112
      %vm1115 = vcmp.lt.s32.totalorder %v597, 0
      %v1116 = vsub.s32 0, %v597
      %v1117 = vsel %vm1115, %v1116, %v597
      %v1118 = vmul.u32.u64.compose %v1117, 2863311531
      %v1119 = vextract.low.u32 %v1118
      %v1120 = vextract.high.u32 %v1118
      %v1121 = vshrl.u32 %v1120, 4
      %v1122 = vmul.u32 %v1121, 24
      %v1123 = vsub.s32 %v1117, %v1122
      %v1124 = vsub.s32 0, %v1123
      %v1125 = vsel %vm1115, %v1124, %v1123
      %vm1126 = vcmp.ne.s32.totalorder %v608, 0
      %vm1127 = vcmp.ne.s32.totalorder %v619, 0
      %vm1128 = vcmp.ne.s32.totalorder %v630, 0
      %vm1129 = vcmp.ne.s32.totalorder %v641, 0
      %vm1130 = vcmp.ne.s32.totalorder %v652, 0
      %vm1131 = vcmp.ne.s32.totalorder %v663, 0
      %vm1132 = vcmp.ne.s32.totalorder %v674, 0
      %vm1133 = vcmp.ne.s32.totalorder %v685, 0
      %vm1134 = vcmp.ne.s32.totalorder %v696, 0
      %vm1135 = vcmp.ne.s32.totalorder %v707, 0
      %vm1136 = vcmp.ne.s32.totalorder %v718, 0
      %vm1137 = vcmp.ne.s32.totalorder %v729, 0
      %vm1138 = vcmp.ne.s32.totalorder %v740, 0
      %vm1139 = vcmp.ne.s32.totalorder %v751, 0
      %vm1140 = vcmp.ne.s32.totalorder %v762, 0
      %vm1141 = vcmp.ne.s32.totalorder %v773, 0
      %vm1142 = vcmp.ne.s32.totalorder %v784, 0
      %vm1143 = vcmp.ne.s32.totalorder %v795, 0
      %vm1144 = vcmp.ne.s32.totalorder %v806, 0
      %vm1145 = vcmp.ne.s32.totalorder %v817, 0
      %vm1146 = vcmp.ne.s32.totalorder %v828, 0
      %vm1147 = vcmp.ne.s32.totalorder %v839, 0
      %vm1148 = vcmp.ne.s32.totalorder %v850, 0
      %vm1149 = vcmp.ne.s32.totalorder %v861, 0
      %vm1150 = vcmp.ne.s32.totalorder %v872, 0
      %vm1151 = vcmp.ne.s32.totalorder %v883, 0
      %vm1152 = vcmp.ne.s32.totalorder %v894, 0
      %vm1153 = vcmp.ne.s32.totalorder %v905, 0
      %vm1154 = vcmp.ne.s32.totalorder %v916, 0
      %vm1155 = vcmp.ne.s32.totalorder %v927, 0
      %vm1156 = vcmp.ne.s32.totalorder %v938, 0
      %vm1157 = vcmp.ne.s32.totalorder %v949, 0
      %vm1158 = vcmp.ne.s32.totalorder %v960, 0
      %vm1159 = vcmp.ne.s32.totalorder %v971, 0
      %vm1160 = vcmp.ne.s32.totalorder %v982, 0
      %vm1161 = vcmp.ne.s32.totalorder %v993, 0
      %vm1162 = vcmp.ne.s32.totalorder %v1004, 0
      %vm1163 = vcmp.ne.s32.totalorder %v1015, 0
      %vm1164 = vcmp.ne.s32.totalorder %v1026, 0
      %vm1165 = vcmp.ne.s32.totalorder %v1037, 0
      %vm1166 = vcmp.ne.s32.totalorder %v1048, 0
      %vm1167 = vcmp.ne.s32.totalorder %v1059, 0
      %vm1168 = vcmp.ne.s32.totalorder %v1070, 0
      %vm1169 = vcmp.ne.s32.totalorder %v1081, 0
      %vm1170 = vcmp.ne.s32.totalorder %v1092, 0
      %vm1171 = vcmp.ne.s32.totalorder %v1103, 0
      %vm1172 = vcmp.ne.s32.totalorder %v1114, 0
      %vm1173 = vcmp.ne.s32.totalorder %v1125, 0
      %vm1174 = vcmp.lt.s32.totalorder %v608, 0
      %vm1175 = vcmp.lt.s32.totalorder %v619, 0
      %vm1176 = vcmp.lt.s32.totalorder %v630, 0
      %vm1177 = vcmp.lt.s32.totalorder %v641, 0
      %vm1178 = vcmp.lt.s32.totalorder %v652, 0
      %vm1179 = vcmp.lt.s32.totalorder %v663, 0
      %vm1180 = vcmp.lt.s32.totalorder %v674, 0
      %vm1181 = vcmp.lt.s32.totalorder %v685, 0
      %vm1182 = vcmp.lt.s32.totalorder %v696, 0
      %vm1183 = vcmp.lt.s32.totalorder %v707, 0
      %vm1184 = vcmp.lt.s32.totalorder %v718, 0
      %vm1185 = vcmp.lt.s32.totalorder %v729, 0
      %vm1186 = vcmp.lt.s32.totalorder %v740, 0
      %vm1187 = vcmp.lt.s32.totalorder %v751, 0
      %vm1188 = vcmp.lt.s32.totalorder %v762, 0
      %vm1189 = vcmp.lt.s32.totalorder %v773, 0
      %vm1190 = vcmp.lt.s32.totalorder %v784, 0
      %vm1191 = vcmp.lt.s32.totalorder %v795, 0
      %vm1192 = vcmp.lt.s32.totalorder %v806, 0
      %vm1193 = vcmp.lt.s32.totalorder %v817, 0
      %vm1194 = vcmp.lt.s32.totalorder %v828, 0
      %vm1195 = vcmp.lt.s32.totalorder %v839, 0
      %vm1196 = vcmp.lt.s32.totalorder %v850, 0
      %vm1197 = vcmp.lt.s32.totalorder %v861, 0
      %vm1198 = vcmp.lt.s32.totalorder %v872, 0
      %vm1199 = vcmp.lt.s32.totalorder %v883, 0
      %vm1200 = vcmp.lt.s32.totalorder %v894, 0
      %vm1201 = vcmp.lt.s32.totalorder %v905, 0
      %vm1202 = vcmp.lt.s32.totalorder %v916, 0
      %vm1203 = vcmp.lt.s32.totalorder %v927, 0
      %vm1204 = vcmp.lt.s32.totalorder %v938, 0
      %vm1205 = vcmp.lt.s32.totalorder %v949, 0
      %vm1206 = vcmp.lt.s32.totalorder %v960, 0
      %vm1207 = vcmp.lt.s32.totalorder %v971, 0
      %vm1208 = vcmp.lt.s32.totalorder %v982, 0
      %vm1209 = vcmp.lt.s32.totalorder %v993, 0
      %vm1210 = vcmp.lt.s32.totalorder %v1004, 0
      %vm1211 = vcmp.lt.s32.totalorder %v1015, 0
      %vm1212 = vcmp.lt.s32.totalorder %v1026, 0
      %vm1213 = vcmp.lt.s32.totalorder %v1037, 0
      %vm1214 = vcmp.lt.s32.totalorder %v1048, 0
      %vm1215 = vcmp.lt.s32.totalorder %v1059, 0
      %vm1216 = vcmp.lt.s32.totalorder %v1070, 0
      %vm1217 = vcmp.lt.s32.totalorder %v1081, 0
      %vm1218 = vcmp.lt.s32.totalorder %v1092, 0
      %vm1219 = vcmp.lt.s32.totalorder %v1103, 0
      %vm1220 = vcmp.lt.s32.totalorder %v1114, 0
      %vm1221 = vcmp.lt.s32.totalorder %v1125, 0
      %vm1222 = vmand %vm1174, %vm1126
      %vm1223 = vmand %vm1175, %vm1127
      %vm1224 = vmand %vm1176, %vm1128
      %vm1225 = vmand %vm1177, %vm1129
      %vm1226 = vmand %vm1178, %vm1130
      %vm1227 = vmand %vm1179, %vm1131
      %vm1228 = vmand %vm1180, %vm1132
      %vm1229 = vmand %vm1181, %vm1133
      %vm1230 = vmand %vm1182, %vm1134
      %vm1231 = vmand %vm1183, %vm1135
      %vm1232 = vmand %vm1184, %vm1136
      %vm1233 = vmand %vm1185, %vm1137
      %vm1234 = vmand %vm1186, %vm1138
      %vm1235 = vmand %vm1187, %vm1139
      %vm1236 = vmand %vm1188, %vm1140
      %vm1237 = vmand %vm1189, %vm1141
      %vm1238 = vmand %vm1190, %vm1142
      %vm1239 = vmand %vm1191, %vm1143
      %vm1240 = vmand %vm1192, %vm1144
      %vm1241 = vmand %vm1193, %vm1145
      %vm1242 = vmand %vm1194, %vm1146
      %vm1243 = vmand %vm1195, %vm1147
      %vm1244 = vmand %vm1196, %vm1148
      %vm1245 = vmand %vm1197, %vm1149
      %vm1246 = vmand %vm1198, %vm1150
      %vm1247 = vmand %vm1199, %vm1151
      %vm1248 = vmand %vm1200, %vm1152
      %vm1249 = vmand %vm1201, %vm1153
      %vm1250 = vmand %vm1202, %vm1154
      %vm1251 = vmand %vm1203, %vm1155
      %vm1252 = vmand %vm1204, %vm1156
      %vm1253 = vmand %vm1205, %vm1157
      %vm1254 = vmand %vm1206, %vm1158
      %vm1255 = vmand %vm1207, %vm1159
      %vm1256 = vmand %vm1208, %vm1160
      %vm1257 = vmand %vm1209, %vm1161
      %vm1258 = vmand %vm1210, %vm1162
      %vm1259 = vmand %vm1211, %vm1163
      %vm1260 = vmand %vm1212, %vm1164
      %vm1261 = vmand %vm1213, %vm1165
      %vm1262 = vmand %vm1214, %vm1166
      %vm1263 = vmand %vm1215, %vm1167
      %vm1264 = vmand %vm1216, %vm1168
      %vm1265 = vmand %vm1217, %vm1169
      %vm1266 = vmand %vm1218, %vm1170
      %vm1267 = vmand %vm1219, %vm1171
      %vm1268 = vmand %vm1220, %vm1172
      %vm1269 = vmand %vm1221, %vm1173
      %v1270 = vadd.s32 %v608, 24
      %v1271 = vadd.s32 %v619, 24
      %v1272 = vadd.s32 %v630, 24
      %v1273 = vadd.s32 %v641, 24
      %v1274 = vadd.s32 %v652, 24
      %v1275 = vadd.s32 %v663, 24
      %v1276 = vadd.s32 %v674, 24
      %v1277 = vadd.s32 %v685, 24
      %v1278 = vadd.s32 %v696, 24
      %v1279 = vadd.s32 %v707, 24
      %v1280 = vadd.s32 %v718, 24
      %v1281 = vadd.s32 %v729, 24
      %v1282 = vadd.s32 %v740, 24
      %v1283 = vadd.s32 %v751, 24
      %v1284 = vadd.s32 %v762, 24
      %v1285 = vadd.s32 %v773, 24
      %v1286 = vadd.s32 %v784, 24
      %v1287 = vadd.s32 %v795, 24
      %v1288 = vadd.s32 %v806, 24
      %v1289 = vadd.s32 %v817, 24
      %v1290 = vadd.s32 %v828, 24
      %v1291 = vadd.s32 %v839, 24
      %v1292 = vadd.s32 %v850, 24
      %v1293 = vadd.s32 %v861, 24
      %v1294 = vadd.s32 %v872, 24
      %v1295 = vadd.s32 %v883, 24
      %v1296 = vadd.s32 %v894, 24
      %v1297 = vadd.s32 %v905, 24
      %v1298 = vadd.s32 %v916, 24
      %v1299 = vadd.s32 %v927, 24
      %v1300 = vadd.s32 %v938, 24
      %v1301 = vadd.s32 %v949, 24
      %v1302 = vadd.s32 %v960, 24
      %v1303 = vadd.s32 %v971, 24
      %v1304 = vadd.s32 %v982, 24
      %v1305 = vadd.s32 %v993, 24
      %v1306 = vadd.s32 %v1004, 24
      %v1307 = vadd.s32 %v1015, 24
      %v1308 = vadd.s32 %v1026, 24
      %v1309 = vadd.s32 %v1037, 24
      %v1310 = vadd.s32 %v1048, 24
      %v1311 = vadd.s32 %v1059, 24
      %v1312 = vadd.s32 %v1070, 24
      %v1313 = vadd.s32 %v1081, 24
      %v1314 = vadd.s32 %v1092, 24
      %v1315 = vadd.s32 %v1103, 24
      %v1316 = vadd.s32 %v1114, 24
      %v1317 = vadd.s32 %v1125, 24
      %v1318 = vsel %vm1222, %v1270, %v608
      %v1319 = vsel %vm1223, %v1271, %v619
      %v1320 = vsel %vm1224, %v1272, %v630
      %v1321 = vsel %vm1225, %v1273, %v641
      %v1322 = vsel %vm1226, %v1274, %v652
      %v1323 = vsel %vm1227, %v1275, %v663
      %v1324 = vsel %vm1228, %v1276, %v674
      %v1325 = vsel %vm1229, %v1277, %v685
      %v1326 = vsel %vm1230, %v1278, %v696
      %v1327 = vsel %vm1231, %v1279, %v707
      %v1328 = vsel %vm1232, %v1280, %v718
      %v1329 = vsel %vm1233, %v1281, %v729
      %v1330 = vsel %vm1234, %v1282, %v740
      %v1331 = vsel %vm1235, %v1283, %v751
      %v1332 = vsel %vm1236, %v1284, %v762
      %v1333 = vsel %vm1237, %v1285, %v773
      %v1334 = vsel %vm1238, %v1286, %v784
      %v1335 = vsel %vm1239, %v1287, %v795
      %v1336 = vsel %vm1240, %v1288, %v806
      %v1337 = vsel %vm1241, %v1289, %v817
      %v1338 = vsel %vm1242, %v1290, %v828
      %v1339 = vsel %vm1243, %v1291, %v839
      %v1340 = vsel %vm1244, %v1292, %v850
      %v1341 = vsel %vm1245, %v1293, %v861
      %v1342 = vsel %vm1246, %v1294, %v872
      %v1343 = vsel %vm1247, %v1295, %v883
      %v1344 = vsel %vm1248, %v1296, %v894
      %v1345 = vsel %vm1249, %v1297, %v905
      %v1346 = vsel %vm1250, %v1298, %v916
      %v1347 = vsel %vm1251, %v1299, %v927
      %v1348 = vsel %vm1252, %v1300, %v938
      %v1349 = vsel %vm1253, %v1301, %v949
      %v1350 = vsel %vm1254, %v1302, %v960
      %v1351 = vsel %vm1255, %v1303, %v971
      %v1352 = vsel %vm1256, %v1304, %v982
      %v1353 = vsel %vm1257, %v1305, %v993
      %v1354 = vsel %vm1258, %v1306, %v1004
      %v1355 = vsel %vm1259, %v1307, %v1015
      %v1356 = vsel %vm1260, %v1308, %v1026
      %v1357 = vsel %vm1261, %v1309, %v1037
      %v1358 = vsel %vm1262, %v1310, %v1048
      %v1359 = vsel %vm1263, %v1311, %v1059
      %v1360 = vsel %vm1264, %v1312, %v1070
      %v1361 = vsel %vm1265, %v1313, %v1081
      %v1362 = vsel %vm1266, %v1314, %v1092
      %v1363 = vsel %vm1267, %v1315, %v1103
      %v1364 = vsel %vm1268, %v1316, %v1114
      %v1365 = vsel %vm1269, %v1317, %v1125
      %vm1366 = vcmp.ge.s32.totalorder %v1318, 1
      %vm1367 = vcmp.ge.s32.totalorder %v1319, 1
      %vm1368 = vcmp.ge.s32.totalorder %v1320, 1
      %vm1369 = vcmp.ge.s32.totalorder %v1321, 1
      %vm1370 = vcmp.ge.s32.totalorder %v1322, 1
      %vm1371 = vcmp.ge.s32.totalorder %v1323, 1
      %vm1372 = vcmp.ge.s32.totalorder %v1324, 1
      %vm1373 = vcmp.ge.s32.totalorder %v1325, 1
      %vm1374 = vcmp.ge.s32.totalorder %v1326, 1
      %vm1375 = vcmp.ge.s32.totalorder %v1327, 1
      %vm1376 = vcmp.ge.s32.totalorder %v1328, 1
      %vm1377 = vcmp.ge.s32.totalorder %v1329, 1
      %vm1378 = vcmp.ge.s32.totalorder %v1330, 1
      %vm1379 = vcmp.ge.s32.totalorder %v1331, 1
      %vm1380 = vcmp.ge.s32.totalorder %v1332, 1
      %vm1381 = vcmp.ge.s32.totalorder %v1333, 1
      %vm1382 = vcmp.ge.s32.totalorder %v1334, 1
      %vm1383 = vcmp.ge.s32.totalorder %v1335, 1
      %vm1384 = vcmp.ge.s32.totalorder %v1336, 1
      %vm1385 = vcmp.ge.s32.totalorder %v1337, 1
      %vm1386 = vcmp.ge.s32.totalorder %v1338, 1
      %vm1387 = vcmp.ge.s32.totalorder %v1339, 1
      %vm1388 = vcmp.ge.s32.totalorder %v1340, 1
      %vm1389 = vcmp.ge.s32.totalorder %v1341, 1
      %vm1390 = vcmp.ge.s32.totalorder %v1342, 1
      %vm1391 = vcmp.ge.s32.totalorder %v1343, 1
      %vm1392 = vcmp.ge.s32.totalorder %v1344, 1
      %vm1393 = vcmp.ge.s32.totalorder %v1345, 1
      %vm1394 = vcmp.ge.s32.totalorder %v1346, 1
      %vm1395 = vcmp.ge.s32.totalorder %v1347, 1
      %vm1396 = vcmp.ge.s32.totalorder %v1348, 1
      %vm1397 = vcmp.ge.s32.totalorder %v1349, 1
      %vm1398 = vcmp.ge.s32.totalorder %v1350, 1
      %vm1399 = vcmp.ge.s32.totalorder %v1351, 1
      %vm1400 = vcmp.ge.s32.totalorder %v1352, 1
      %vm1401 = vcmp.ge.s32.totalorder %v1353, 1
      %vm1402 = vcmp.ge.s32.totalorder %v1354, 1
      %vm1403 = vcmp.ge.s32.totalorder %v1355, 1
      %vm1404 = vcmp.ge.s32.totalorder %v1356, 1
      %vm1405 = vcmp.ge.s32.totalorder %v1357, 1
      %vm1406 = vcmp.ge.s32.totalorder %v1358, 1
      %vm1407 = vcmp.ge.s32.totalorder %v1359, 1
      %vm1408 = vcmp.ge.s32.totalorder %v1360, 1
      %vm1409 = vcmp.ge.s32.totalorder %v1361, 1
      %vm1410 = vcmp.ge.s32.totalorder %v1362, 1
      %vm1411 = vcmp.ge.s32.totalorder %v1363, 1
      %vm1412 = vcmp.ge.s32.totalorder %v1364, 1
      %vm1413 = vcmp.ge.s32.totalorder %v1365, 1
      %vm1414 = vcmp.le.s32.totalorder %v1318, 16
      %vm1415 = vcmp.le.s32.totalorder %v1319, 16
      %vm1416 = vcmp.le.s32.totalorder %v1320, 16
      %vm1417 = vcmp.le.s32.totalorder %v1321, 16
      %vm1418 = vcmp.le.s32.totalorder %v1322, 16
      %vm1419 = vcmp.le.s32.totalorder %v1323, 16
      %vm1420 = vcmp.le.s32.totalorder %v1324, 16
      %vm1421 = vcmp.le.s32.totalorder %v1325, 16
      %vm1422 = vcmp.le.s32.totalorder %v1326, 16
      %vm1423 = vcmp.le.s32.totalorder %v1327, 16
      %vm1424 = vcmp.le.s32.totalorder %v1328, 16
      %vm1425 = vcmp.le.s32.totalorder %v1329, 16
      %vm1426 = vcmp.le.s32.totalorder %v1330, 16
      %vm1427 = vcmp.le.s32.totalorder %v1331, 16
      %vm1428 = vcmp.le.s32.totalorder %v1332, 16
      %vm1429 = vcmp.le.s32.totalorder %v1333, 16
      %vm1430 = vcmp.le.s32.totalorder %v1334, 16
      %vm1431 = vcmp.le.s32.totalorder %v1335, 16
      %vm1432 = vcmp.le.s32.totalorder %v1336, 16
      %vm1433 = vcmp.le.s32.totalorder %v1337, 16
      %vm1434 = vcmp.le.s32.totalorder %v1338, 16
      %vm1435 = vcmp.le.s32.totalorder %v1339, 16
      %vm1436 = vcmp.le.s32.totalorder %v1340, 16
      %vm1437 = vcmp.le.s32.totalorder %v1341, 16
      %vm1438 = vcmp.le.s32.totalorder %v1342, 16
      %vm1439 = vcmp.le.s32.totalorder %v1343, 16
      %vm1440 = vcmp.le.s32.totalorder %v1344, 16
      %vm1441 = vcmp.le.s32.totalorder %v1345, 16
      %vm1442 = vcmp.le.s32.totalorder %v1346, 16
      %vm1443 = vcmp.le.s32.totalorder %v1347, 16
      %vm1444 = vcmp.le.s32.totalorder %v1348, 16
      %vm1445 = vcmp.le.s32.totalorder %v1349, 16
      %vm1446 = vcmp.le.s32.totalorder %v1350, 16
      %vm1447 = vcmp.le.s32.totalorder %v1351, 16
      %vm1448 = vcmp.le.s32.totalorder %v1352, 16
      %vm1449 = vcmp.le.s32.totalorder %v1353, 16
      %vm1450 = vcmp.le.s32.totalorder %v1354, 16
      %vm1451 = vcmp.le.s32.totalorder %v1355, 16
      %vm1452 = vcmp.le.s32.totalorder %v1356, 16
      %vm1453 = vcmp.le.s32.totalorder %v1357, 16
      %vm1454 = vcmp.le.s32.totalorder %v1358, 16
      %vm1455 = vcmp.le.s32.totalorder %v1359, 16
      %vm1456 = vcmp.le.s32.totalorder %v1360, 16
      %vm1457 = vcmp.le.s32.totalorder %v1361, 16
      %vm1458 = vcmp.le.s32.totalorder %v1362, 16
      %vm1459 = vcmp.le.s32.totalorder %v1363, 16
      %vm1460 = vcmp.le.s32.totalorder %v1364, 16
      %vm1461 = vcmp.le.s32.totalorder %v1365, 16
      %vm1462 = vmand %vm1366, %vm1414
      %vm1463 = vmand %vm1367, %vm1415
      %vm1464 = vmand %vm1368, %vm1416
      %vm1465 = vmand %vm1369, %vm1417
      %vm1466 = vmand %vm1370, %vm1418
      %vm1467 = vmand %vm1371, %vm1419
      %vm1468 = vmand %vm1372, %vm1420
      %vm1469 = vmand %vm1373, %vm1421
      %vm1470 = vmand %vm1374, %vm1422
      %vm1471 = vmand %vm1375, %vm1423
      %vm1472 = vmand %vm1376, %vm1424
      %vm1473 = vmand %vm1377, %vm1425
      %vm1474 = vmand %vm1378, %vm1426
      %vm1475 = vmand %vm1379, %vm1427
      %vm1476 = vmand %vm1380, %vm1428
      %vm1477 = vmand %vm1381, %vm1429
      %vm1478 = vmand %vm1382, %vm1430
      %vm1479 = vmand %vm1383, %vm1431
      %vm1480 = vmand %vm1384, %vm1432
      %vm1481 = vmand %vm1385, %vm1433
      %vm1482 = vmand %vm1386, %vm1434
      %vm1483 = vmand %vm1387, %vm1435
      %vm1484 = vmand %vm1388, %vm1436
      %vm1485 = vmand %vm1389, %vm1437
      %vm1486 = vmand %vm1390, %vm1438
      %vm1487 = vmand %vm1391, %vm1439
      %vm1488 = vmand %vm1392, %vm1440
      %vm1489 = vmand %vm1393, %vm1441
      %vm1490 = vmand %vm1394, %vm1442
      %vm1491 = vmand %vm1395, %vm1443
      %vm1492 = vmand %vm1396, %vm1444
      %vm1493 = vmand %vm1397, %vm1445
      %vm1494 = vmand %vm1398, %vm1446
      %vm1495 = vmand %vm1399, %vm1447
      %vm1496 = vmand %vm1400, %vm1448
      %vm1497 = vmand %vm1401, %vm1449
      %vm1498 = vmand %vm1402, %vm1450
      %vm1499 = vmand %vm1403, %vm1451
      %vm1500 = vmand %vm1404, %vm1452
      %vm1501 = vmand %vm1405, %vm1453
      %vm1502 = vmand %vm1406, %vm1454
      %vm1503 = vmand %vm1407, %vm1455
      %vm1504 = vmand %vm1408, %vm1456
      %vm1505 = vmand %vm1409, %vm1457
      %vm1506 = vmand %vm1410, %vm1458
      %vm1507 = vmand %vm1411, %vm1459
      %vm1508 = vmand %vm1412, %vm1460
      %vm1509 = vmand %vm1413, %vm1461
      %v1510 = vld [vmem:[#allocation2] sm:$0xff]
      %v1511 = vld [vmem:[#allocation2 + $0x8] sm:$0xff]
      %v1512 = vld [vmem:[#allocation2 + $0x10] sm:$0xff]
      %v1513 = vld [vmem:[#allocation2 + $0x18] sm:$0xff]
      %v1514 = vld [vmem:[#allocation2 + $0x20] sm:$0xff]
      %v1515 = vld [vmem:[#allocation2 + $0x28] sm:$0xff]
      %v1516 = vld [vmem:[#allocation2 + $0x30] sm:$0xff]
      %v1517 = vld [vmem:[#allocation2 + $0x38] sm:$0xff]
      %v1518 = vld [vmem:[#allocation2 + $0x40] sm:$0xff]
      %v1519 = vld [vmem:[#allocation2 + $0x48] sm:$0xff]
      %v1520 = vld [vmem:[#allocation2 + $0x50] sm:$0xff]
      %v1521 = vld [vmem:[#allocation2 + $0x58] sm:$0xff]
      %v1522 = vld [vmem:[#allocation2 + $0x60] sm:$0xff]
      %v1523 = vld [vmem:[#allocation2 + $0x68] sm:$0xff]
      %v1524 = vld [vmem:[#allocation2 + $0x70] sm:$0xff]
      %v1525 = vld [vmem:[#allocation2 + $0x78] sm:$0xff]
      %v1526 = vld [vmem:[#allocation2 + $0x80] sm:$0xff]
      %v1527 = vld [vmem:[#allocation2 + $0x88] sm:$0xff]
      %v1528 = vld [vmem:[#allocation2 + $0x90] sm:$0xff]
      %v1529 = vld [vmem:[#allocation2 + $0x98] sm:$0xff]
      %v1530 = vld [vmem:[#allocation2 + $0xa0] sm:$0xff]
      %v1531 = vld [vmem:[#allocation2 + $0xa8] sm:$0xff]
      %v1532 = vld [vmem:[#allocation2 + $0xb0] sm:$0xff]
      %v1533 = vld [vmem:[#allocation2 + $0xb8] sm:$0xff]
      %v1534 = vld [vmem:[#allocation2 + $0xc0] sm:$0xff]
      %v1535 = vld [vmem:[#allocation2 + $0xc8] sm:$0xff]
      %v1536 = vld [vmem:[#allocation2 + $0xd0] sm:$0xff]
      %v1537 = vld [vmem:[#allocation2 + $0xd8] sm:$0xff]
      %v1538 = vld [vmem:[#allocation2 + $0xe0] sm:$0xff]
      %v1539 = vld [vmem:[#allocation2 + $0xe8] sm:$0xff]
      %v1540 = vld [vmem:[#allocation2 + $0xf0] sm:$0xff]
      %v1541 = vld [vmem:[#allocation2 + $0xf8] sm:$0xff]
      %v1542 = vld [vmem:[#allocation2 + $0x100] sm:$0xff]
      %v1543 = vld [vmem:[#allocation2 + $0x108] sm:$0xff]
      %v1544 = vld [vmem:[#allocation2 + $0x110] sm:$0xff]
      %v1545 = vld [vmem:[#allocation2 + $0x118] sm:$0xff]
      %v1546 = vld [vmem:[#allocation2 + $0x120] sm:$0xff]
      %v1547 = vld [vmem:[#allocation2 + $0x128] sm:$0xff]
      %v1548 = vld [vmem:[#allocation2 + $0x130] sm:$0xff]
      %v1549 = vld [vmem:[#allocation2 + $0x138] sm:$0xff]
      %v1550 = vld [vmem:[#allocation2 + $0x140] sm:$0xff]
      %v1551 = vld [vmem:[#allocation2 + $0x148] sm:$0xff]
      %v1552 = vld [vmem:[#allocation2 + $0x150] sm:$0xff]
      %v1553 = vld [vmem:[#allocation2 + $0x158] sm:$0xff]
      %v1554 = vld [vmem:[#allocation2 + $0x160] sm:$0xff]
      %v1555 = vld [vmem:[#allocation2 + $0x168] sm:$0xff]
      %v1556 = vld [vmem:[#allocation2 + $0x170] sm:$0xff]
      %v1557 = vld [vmem:[#allocation2 + $0x178] sm:$0xff]
      %v1558 = vpack.c.bf16 %v1511, %v1510
      %v1559 = vpack.c.bf16 %v1513, %v1512
      %v1560 = vpack.c.bf16 %v1515, %v1514
      %v1561 = vpack.c.bf16 %v1517, %v1516
      %v1562 = vpack.c.bf16 %v1519, %v1518
      %v1563 = vpack.c.bf16 %v1521, %v1520
      %v1564 = vpack.c.bf16 %v1523, %v1522
      %v1565 = vpack.c.bf16 %v1525, %v1524
      %v1566 = vpack.c.bf16 %v1527, %v1526
      %v1567 = vpack.c.bf16 %v1529, %v1528
      %v1568 = vpack.c.bf16 %v1531, %v1530
      %v1569 = vpack.c.bf16 %v1533, %v1532
      %v1570 = vpack.c.bf16 %v1535, %v1534
      %v1571 = vpack.c.bf16 %v1537, %v1536
      %v1572 = vpack.c.bf16 %v1539, %v1538
      %v1573 = vpack.c.bf16 %v1541, %v1540
      %v1574 = vpack.c.bf16 %v1543, %v1542
      %v1575 = vpack.c.bf16 %v1545, %v1544
      %v1576 = vpack.c.bf16 %v1547, %v1546
      %v1577 = vpack.c.bf16 %v1549, %v1548
      %v1578 = vpack.c.bf16 %v1551, %v1550
      %v1579 = vpack.c.bf16 %v1553, %v1552
      %v1580 = vpack.c.bf16 %v1555, %v1554
      %v1581 = vpack.c.bf16 %v1557, %v1556
      %v1582 = vld [vmem:[%s1] sm:$0xf]
      %v1583 = vld [vmem:[%s1 + $0x4] sm:$0xf]
      %v1584 = vld [vmem:[%s1 + $0x8] sm:$0xf]
      %v1585 = vld [vmem:[%s1 + $0xc] sm:$0xf]
      %v1586 = vld [vmem:[%s1 + $0x10] sm:$0xf]
      %v1587 = vld [vmem:[%s1 + $0x14] sm:$0xf]
      %v1588 = vld [vmem:[%s1 + $0x18] sm:$0xf]
      %v1589 = vld [vmem:[%s1 + $0x1c] sm:$0xf]
      %v1590 = vld [vmem:[%s1 + $0x20] sm:$0xf]
      %v1591 = vld [vmem:[%s1 + $0x24] sm:$0xf]
      %v1592 = vld [vmem:[%s1 + $0x28] sm:$0xf]
      %v1593 = vld [vmem:[%s1 + $0x2c] sm:$0xf]
      %v1594 = vld [vmem:[%s1 + $0x30] sm:$0xf]
      %v1595 = vld [vmem:[%s1 + $0x34] sm:$0xf]
      %v1596 = vld [vmem:[%s1 + $0x38] sm:$0xf]
      %v1597 = vld [vmem:[%s1 + $0x3c] sm:$0xf]
      %v1598 = vld [vmem:[#allocation2 + $0x1] sm:$0xff]
      %v1599 = vld [vmem:[#allocation2 + $0x9] sm:$0xff]
      %v1600 = vld [vmem:[#allocation2 + $0x11] sm:$0xff]
      %v1601 = vld [vmem:[#allocation2 + $0x19] sm:$0xff]
      %v1602 = vld [vmem:[#allocation2 + $0x21] sm:$0xff]
      %v1603 = vld [vmem:[#allocation2 + $0x29] sm:$0xff]
      %v1604 = vld [vmem:[#allocation2 + $0x31] sm:$0xff]
      %v1605 = vld [vmem:[#allocation2 + $0x39] sm:$0xff]
      %v1606 = vld [vmem:[#allocation2 + $0x41] sm:$0xff]
      %v1607 = vld [vmem:[#allocation2 + $0x49] sm:$0xff]
      %v1608 = vld [vmem:[#allocation2 + $0x51] sm:$0xff]
      %v1609 = vld [vmem:[#allocation2 + $0x59] sm:$0xff]
      %v1610 = vld [vmem:[#allocation2 + $0x61] sm:$0xff]
      %v1611 = vld [vmem:[#allocation2 + $0x69] sm:$0xff]
      %v1612 = vld [vmem:[#allocation2 + $0x71] sm:$0xff]
      %v1613 = vld [vmem:[#allocation2 + $0x79] sm:$0xff]
      %v1614 = vld [vmem:[#allocation2 + $0x81] sm:$0xff]
      %v1615 = vld [vmem:[#allocation2 + $0x89] sm:$0xff]
      %v1616 = vld [vmem:[#allocation2 + $0x91] sm:$0xff]
      %v1617 = vld [vmem:[#allocation2 + $0x99] sm:$0xff]
      %v1618 = vld [vmem:[#allocation2 + $0xa1] sm:$0xff]
      %v1619 = vld [vmem:[#allocation2 + $0xa9] sm:$0xff]
      %v1620 = vld [vmem:[#allocation2 + $0xb1] sm:$0xff]
      %v1621 = vld [vmem:[#allocation2 + $0xb9] sm:$0xff]
      %v1622 = vld [vmem:[#allocation2 + $0xc1] sm:$0xff]
      %v1623 = vld [vmem:[#allocation2 + $0xc9] sm:$0xff]
      %v1624 = vld [vmem:[#allocation2 + $0xd1] sm:$0xff]
      %v1625 = vld [vmem:[#allocation2 + $0xd9] sm:$0xff]
      %v1626 = vld [vmem:[#allocation2 + $0xe1] sm:$0xff]
      %v1627 = vld [vmem:[#allocation2 + $0xe9] sm:$0xff]
      %v1628 = vld [vmem:[#allocation2 + $0xf1] sm:$0xff]
      %v1629 = vld [vmem:[#allocation2 + $0xf9] sm:$0xff]
      %v1630 = vld [vmem:[#allocation2 + $0x101] sm:$0xff]
      %v1631 = vld [vmem:[#allocation2 + $0x109] sm:$0xff]
      %v1632 = vld [vmem:[#allocation2 + $0x111] sm:$0xff]
      %v1633 = vld [vmem:[#allocation2 + $0x119] sm:$0xff]
      %v1634 = vld [vmem:[#allocation2 + $0x121] sm:$0xff]
      %v1635 = vld [vmem:[#allocation2 + $0x129] sm:$0xff]
      %v1636 = vld [vmem:[#allocation2 + $0x131] sm:$0xff]
      %v1637 = vld [vmem:[#allocation2 + $0x139] sm:$0xff]
      %v1638 = vld [vmem:[#allocation2 + $0x141] sm:$0xff]
      %v1639 = vld [vmem:[#allocation2 + $0x149] sm:$0xff]
      %v1640 = vld [vmem:[#allocation2 + $0x151] sm:$0xff]
      %v1641 = vld [vmem:[#allocation2 + $0x159] sm:$0xff]
      %v1642 = vld [vmem:[#allocation2 + $0x161] sm:$0xff]
      %v1643 = vld [vmem:[#allocation2 + $0x169] sm:$0xff]
      %v1644 = vld [vmem:[#allocation2 + $0x171] sm:$0xff]
      %v1645 = vld [vmem:[#allocation2 + $0x179] sm:$0xff]
      %v1646 = vpack.c.bf16 %v1599, %v1598
      %v1647 = vpack.c.bf16 %v1601, %v1600
      %v1648 = vpack.c.bf16 %v1603, %v1602
      %v1649 = vpack.c.bf16 %v1605, %v1604
      %v1650 = vpack.c.bf16 %v1607, %v1606
      %v1651 = vpack.c.bf16 %v1609, %v1608
      %v1652 = vpack.c.bf16 %v1611, %v1610
      %v1653 = vpack.c.bf16 %v1613, %v1612
      %v1654 = vpack.c.bf16 %v1615, %v1614
      %v1655 = vpack.c.bf16 %v1617, %v1616
      %v1656 = vpack.c.bf16 %v1619, %v1618
      %v1657 = vpack.c.bf16 %v1621, %v1620
      %v1658 = vpack.c.bf16 %v1623, %v1622
      %v1659 = vpack.c.bf16 %v1625, %v1624
      %v1660 = vpack.c.bf16 %v1627, %v1626
      %v1661 = vpack.c.bf16 %v1629, %v1628
      %v1662 = vpack.c.bf16 %v1631, %v1630
      %v1663 = vpack.c.bf16 %v1633, %v1632
      %v1664 = vpack.c.bf16 %v1635, %v1634
      %v1665 = vpack.c.bf16 %v1637, %v1636
      %v1666 = vpack.c.bf16 %v1639, %v1638
      %v1667 = vpack.c.bf16 %v1641, %v1640
      %v1668 = vpack.c.bf16 %v1643, %v1642
      %v1669 = vpack.c.bf16 %v1645, %v1644
      %s1670 = scalar_lea.vmem %s1, 64
      %v1671 = vld [vmem:[%s1670] sm:$0xf]
      %v1672 = vld [vmem:[%s1670 + $0x4] sm:$0xf]
      %v1673 = vld [vmem:[%s1670 + $0x8] sm:$0xf]
      %v1674 = vld [vmem:[%s1670 + $0xc] sm:$0xf]
      %v1675 = vld [vmem:[%s1670 + $0x10] sm:$0xf]
      %v1676 = vld [vmem:[%s1670 + $0x14] sm:$0xf]
      %v1677 = vld [vmem:[%s1670 + $0x18] sm:$0xf]
      %v1678 = vld [vmem:[%s1670 + $0x1c] sm:$0xf]
      %v1679 = vld [vmem:[%s1670 + $0x20] sm:$0xf]
      %v1680 = vld [vmem:[%s1670 + $0x24] sm:$0xf]
      %v1681 = vld [vmem:[%s1670 + $0x28] sm:$0xf]
      %v1682 = vld [vmem:[%s1670 + $0x2c] sm:$0xf]
      %v1683 = vld [vmem:[%s1670 + $0x30] sm:$0xf]
      %v1684 = vld [vmem:[%s1670 + $0x34] sm:$0xf]
      %v1685 = vld [vmem:[%s1670 + $0x38] sm:$0xf]
      %v1686 = vld [vmem:[%s1670 + $0x3c] sm:$0xf]
      %v1703 = vunpack.c.l.b16 %v1671
      %v1704 = vunpack.c.l.b16 %v1672
      %v1705 = vunpack.c.l.b16 %v1673
      %v1706 = vunpack.c.l.b16 %v1674
      %v1707 = vunpack.c.l.b16 %v1675
      %v1708 = vunpack.c.l.b16 %v1676
      %v1709 = vunpack.c.l.b16 %v1677
      %v1710 = vunpack.c.l.b16 %v1678
      %v1711 = vunpack.c.l.b16 %v1679
      %v1712 = vunpack.c.l.b16 %v1680
      %v1713 = vunpack.c.l.b16 %v1681
      %v1714 = vunpack.c.l.b16 %v1682
      %v1715 = vunpack.c.l.b16 %v1683
      %v1716 = vunpack.c.l.b16 %v1684
      %v1717 = vunpack.c.l.b16 %v1685
      %v1718 = vunpack.c.l.b16 %v1686
      %v1719 = vpack.c.b16 %v1704, %v1703
      %v1720 = vpack.c.b16 %v1706, %v1705
      %v1721 = vpack.c.b16 %v1708, %v1707
      %v1722 = vpack.c.b16 %v1710, %v1709
      %v1723 = vpack.c.b16 %v1712, %v1711
      %v1724 = vpack.c.b16 %v1714, %v1713
      %v1725 = vpack.c.b16 %v1716, %v1715
      %v1726 = vpack.c.b16 %v1718, %v1717
      %1735 = vmatprep.subr.bf16.mxu0 0
      %1736 = vmatpush1.bf16.msra.mxu0 %v1719
      %1737 = vmatprep.subr.bf16.mxu0 0
      %1738 = vmatpush1.bf16.msra.mxu0 %v1720
      %1739 = vmatprep.subr.bf16.mxu0 0
      %1740 = vmatpush1.bf16.msra.mxu0 %v1721
      %1741 = vmatprep.subr.bf16.mxu0 0
      %1742 = vmatpush1.bf16.msra.mxu0 %v1722
      %1743 = vmatprep.subr.bf16.mxu0 0
      %1744 = vmatpush1.bf16.msra.mxu0 %v1723
      %1745 = vmatprep.subr.bf16.mxu0 0
      %1746 = vmatpush1.bf16.msra.mxu0 %v1724
      %1747 = vmatprep.subr.bf16.mxu0 0
      %1748 = vmatpush1.bf16.msra.mxu0 %v1725
      %1749 = vmatprep.subr.bf16.mxu0 0
      %1750 = vmatpush1.bf16.msra.mxu0 %v1726
      %1751 = vmatprep.subr.bf16.mxu0 0
      %1752 = vmatpush1.bf16.msra.mxu0 0
      %1753 = vmatprep.subr.bf16.mxu0 0
      %1754 = vmatpush1.bf16.msra.mxu0 0
      %1755 = vmatprep.subr.bf16.mxu0 0
      %1756 = vmatpush1.bf16.msra.mxu0 0
      %1757 = vmatprep.subr.bf16.mxu0 0
      %1758 = vmatpush1.bf16.msra.mxu0 0
      %1759 = vmatprep.subr.bf16.mxu0 0
      %1760 = vmatpush1.bf16.msra.mxu0 0
      %1761 = vmatprep.subr.bf16.mxu0 0
      %1762 = vmatpush1.bf16.msra.mxu0 0
      %1763 = vmatprep.subr.bf16.mxu0 0
      %1764 = vmatpush1.bf16.msra.mxu0 0
      %1765 = vmatprep.subr.bf16.mxu0 0
      %1766 = vmatpush1.bf16.msra.mxu0 0
      %1767 = vmatprep.mubr.bf16.mxu0 0
      %1768 = vmatmul.mubr.bf16.gmra.mrb[0].mxu0 %v1646
      %v1769 = vpop.f32.mrb[0].mxu0
      %v1770 = vadd.f32 0.0, %v1769
      %v1771 = vpop.f32.mrb[0].mxu0
      %v1772 = vpop.f32.mrb[0].mxu0
      %v1773 = vadd.f32 0.0, %v1772
      %v1774 = vpop.f32.mrb[0].mxu0
      %1775 = vmatprep.mubr.bf16.mxu0 0
      %1776 = vmatmul.mubr.bf16.gmra.mrb[0].mxu0 %v1647
      %v1777 = vpop.f32.mrb[0].mxu0
      %v1778 = vadd.f32 0.0, %v1777
      %v1779 = vpop.f32.mrb[0].mxu0
      %v1780 = vpop.f32.mrb[0].mxu0
      %v1781 = vadd.f32 0.0, %v1780
      %v1782 = vpop.f32.mrb[0].mxu0
      %1783 = vmatprep.mubr.bf16.mxu0 0
      %1784 = vmatmul.mubr.bf16.gmra.mrb[0].mxu0 %v1648
      %v1785 = vpop.f32.mrb[0].mxu0
      %v1786 = vadd.f32 0.0, %v1785
      %v1787 = vpop.f32.mrb[0].mxu0
      %v1788 = vpop.f32.mrb[0].mxu0
      %v1789 = vadd.f32 0.0, %v1788
      %v1790 = vpop.f32.mrb[0].mxu0
      %1791 = vmatprep.mubr.bf16.mxu0 0
      %1792 = vmatmul.mubr.bf16.gmra.mrb[0].mxu0 %v1649
      %v1793 = vpop.f32.mrb[0].mxu0
      %v1794 = vadd.f32 0.0, %v1793
      %v1795 = vpop.f32.mrb[0].mxu0
      %v1796 = vpop.f32.mrb[0].mxu0
      %v1797 = vadd.f32 0.0, %v1796
      %v1798 = vpop.f32.mrb[0].mxu0
      %1799 = vmatprep.mubr.bf16.mxu0 0
      %1800 = vmatmul.mubr.bf16.gmra.mrb[0].mxu0 %v1650
      %v1801 = vpop.f32.mrb[0].mxu0
      %v1802 = vadd.f32 0.0, %v1801
      %v1803 = vpop.f32.mrb[0].mxu0
      %v1804 = vpop.f32.mrb[0].mxu0
      %v1805 = vadd.f32 0.0, %v1804
      %v1806 = vpop.f32.mrb[0].mxu0
      %1807 = vmatprep.mubr.bf16.mxu0 0
      %1808 = vmatmul.mubr.bf16.gmra.mrb[0].mxu0 %v1651
      %v1809 = vpop.f32.mrb[0].mxu0
      %v1810 = vadd.f32 0.0, %v1809
      %v1811 = vpop.f32.mrb[0].mxu0
      %v1812 = vpop.f32.mrb[0].mxu0
      %v1813 = vadd.f32 0.0, %v1812
      %v1814 = vpop.f32.mrb[0].mxu0
      %1815 = vmatprep.mubr.bf16.mxu0 0
      %1816 = vmatmul.mubr.bf16.gmra.mrb[0].mxu0 %v1652
      %v1817 = vpop.f32.mrb[0].mxu0
      %v1818 = vadd.f32 0.0, %v1817
      %v1819 = vpop.f32.mrb[0].mxu0
      %v1820 = vpop.f32.mrb[0].mxu0
      %v1821 = vadd.f32 0.0, %v1820
      %v1822 = vpop.f32.mrb[0].mxu0
      %1823 = vmatprep.mubr.bf16.mxu0 0
      %1824 = vmatmul.mubr.bf16.gmra.mrb[0].mxu0 %v1653
      %v1825 = vpop.f32.mrb[0].mxu0
      %v1826 = vadd.f32 0.0, %v1825
      %v1827 = vpop.f32.mrb[0].mxu0
      %v1828 = vpop.f32.mrb[0].mxu0
      %v1829 = vadd.f32 0.0, %v1828
      %v1830 = vpop.f32.mrb[0].mxu0
      %1831 = vmatprep.mubr.bf16.mxu0 0
      %1832 = vmatmul.mubr.bf16.gmra.mrb[0].mxu0 %v1654
      %v1833 = vpop.f32.mrb[0].mxu0
      %v1834 = vadd.f32 0.0, %v1833
      %v1835 = vpop.f32.mrb[0].mxu0
      %v1836 = vpop.f32.mrb[0].mxu0
      %v1837 = vadd.f32 0.0, %v1836
      %v1838 = vpop.f32.mrb[0].mxu0
      %1839 = vmatprep.mubr.bf16.mxu0 0
      %1840 = vmatmul.mubr.bf16.gmra.mrb[0].mxu0 %v1655
      %v1841 = vpop.f32.mrb[0].mxu0
      %v1842 = vadd.f32 0.0, %v1841
      %v1843 = vpop.f32.mrb[0].mxu0
      %v1844 = vpop.f32.mrb[0].mxu0
      %v1845 = vadd.f32 0.0, %v1844
      %v1846 = vpop.f32.mrb[0].mxu0
      %1847 = vmatprep.mubr.bf16.mxu0 0
      %1848 = vmatmul.mubr.bf16.gmra.mrb[0].mxu0 %v1656
      %v1849 = vpop.f32.mrb[0].mxu0
      %v1850 = vadd.f32 0.0, %v1849
      %v1851 = vpop.f32.mrb[0].mxu0
      %v1852 = vpop.f32.mrb[0].mxu0
      %v1853 = vadd.f32 0.0, %v1852
      %v1854 = vpop.f32.mrb[0].mxu0
      %1855 = vmatprep.mubr.bf16.mxu0 0
      %1856 = vmatmul.mubr.bf16.gmra.mrb[0].mxu0 %v1657
      %v1857 = vpop.f32.mrb[0].mxu0
      %v1858 = vadd.f32 0.0, %v1857
      %v1859 = vpop.f32.mrb[0].mxu0
      %v1860 = vpop.f32.mrb[0].mxu0
      %v1861 = vadd.f32 0.0, %v1860
      %v1862 = vpop.f32.mrb[0].mxu0
      %1863 = vmatprep.mubr.bf16.mxu0 0
      %1864 = vmatmul.mubr.bf16.gmra.mrb[0].mxu0 %v1658
      %v1865 = vpop.f32.mrb[0].mxu0
      %v1866 = vadd.f32 0.0, %v1865
      %v1867 = vpop.f32.mrb[0].mxu0
      %v1868 = vpop.f32.mrb[0].mxu0
      %v1869 = vadd.f32 0.0, %v1868
      %v1870 = vpop.f32.mrb[0].mxu0
      %1871 = vmatprep.mubr.bf16.mxu0 0
      %1872 = vmatmul.mubr.bf16.gmra.mrb[0].mxu0 %v1659
      %v1873 = vpop.f32.mrb[0].mxu0
      %v1874 = vadd.f32 0.0, %v1873
      %v1875 = vpop.f32.mrb[0].mxu0
      %v1876 = vpop.f32.mrb[0].mxu0
      %v1877 = vadd.f32 0.0, %v1876
      %v1878 = vpop.f32.mrb[0].mxu0
      %1879 = vmatprep.mubr.bf16.mxu0 0
      %1880 = vmatmul.mubr.bf16.gmra.mrb[0].mxu0 %v1660
      %v1881 = vpop.f32.mrb[0].mxu0
      %v1882 = vadd.f32 0.0, %v1881
      %v1883 = vpop.f32.mrb[0].mxu0
      %v1884 = vpop.f32.mrb[0].mxu0
      %v1885 = vadd.f32 0.0, %v1884
      %v1886 = vpop.f32.mrb[0].mxu0
      %1887 = vmatprep.mubr.bf16.mxu0 0
      %1888 = vmatmul.mubr.bf16.gmra.mrb[0].mxu0 %v1661
      %v1889 = vpop.f32.mrb[0].mxu0
      %v1890 = vadd.f32 0.0, %v1889
      %v1891 = vpop.f32.mrb[0].mxu0
      %v1892 = vpop.f32.mrb[0].mxu0
      %v1893 = vadd.f32 0.0, %v1892
      %v1894 = vpop.f32.mrb[0].mxu0
      %1895 = vmatprep.mubr.bf16.mxu0 0
      %1896 = vmatmul.mubr.bf16.gmra.mrb[0].mxu0 %v1662
      %v1897 = vpop.f32.mrb[0].mxu0
      %v1898 = vadd.f32 0.0, %v1897
      %v1899 = vpop.f32.mrb[0].mxu0
      %v1900 = vpop.f32.mrb[0].mxu0
      %v1901 = vadd.f32 0.0, %v1900
      %v1902 = vpop.f32.mrb[0].mxu0
      %1903 = vmatprep.mubr.bf16.mxu0 0
      %1904 = vmatmul.mubr.bf16.gmra.mrb[0].mxu0 %v1663
      %v1905 = vpop.f32.mrb[0].mxu0
      %v1906 = vadd.f32 0.0, %v1905
      %v1907 = vpop.f32.mrb[0].mxu0
      %v1908 = vpop.f32.mrb[0].mxu0
      %v1909 = vadd.f32 0.0, %v1908
      %v1910 = vpop.f32.mrb[0].mxu0
      %1911 = vmatprep.mubr.bf16.mxu0 0
      %1912 = vmatmul.mubr.bf16.gmra.mrb[0].mxu0 %v1664
      %v1913 = vpop.f32.mrb[0].mxu0
      %v1914 = vadd.f32 0.0, %v1913
      %v1915 = vpop.f32.mrb[0].mxu0
      %v1916 = vpop.f32.mrb[0].mxu0
      %v1917 = vadd.f32 0.0, %v1916
      %v1918 = vpop.f32.mrb[0].mxu0
      %1919 = vmatprep.mubr.bf16.mxu0 0
      %1920 = vmatmul.mubr.bf16.gmra.mrb[0].mxu0 %v1665
      %v1921 = vpop.f32.mrb[0].mxu0
      %v1922 = vadd.f32 0.0, %v1921
      %v1923 = vpop.f32.mrb[0].mxu0
      %v1924 = vpop.f32.mrb[0].mxu0
      %v1925 = vadd.f32 0.0, %v1924
      %v1926 = vpop.f32.mrb[0].mxu0
      %1927 = vmatprep.mubr.bf16.mxu0 0
      %1928 = vmatmul.mubr.bf16.gmra.mrb[0].mxu0 %v1666
      %v1929 = vpop.f32.mrb[0].mxu0
      %v1930 = vadd.f32 0.0, %v1929
      %v1931 = vpop.f32.mrb[0].mxu0
      %v1932 = vpop.f32.mrb[0].mxu0
      %v1933 = vadd.f32 0.0, %v1932
      %v1934 = vpop.f32.mrb[0].mxu0
      %1935 = vmatprep.mubr.bf16.mxu0 0
      %1936 = vmatmul.mubr.bf16.gmra.mrb[0].mxu0 %v1667
      %v1937 = vpop.f32.mrb[0].mxu0
      %v1938 = vadd.f32 0.0, %v1937
      %v1939 = vpop.f32.mrb[0].mxu0
      %v1940 = vpop.f32.mrb[0].mxu0
      %v1941 = vadd.f32 0.0, %v1940
      %v1942 = vpop.f32.mrb[0].mxu0
      %1943 = vmatprep.mubr.bf16.mxu0 0
      %1944 = vmatmul.mubr.bf16.gmra.mrb[0].mxu0 %v1668
      %v1945 = vpop.f32.mrb[0].mxu0
      %v1946 = vadd.f32 0.0, %v1945
      %v1947 = vpop.f32.mrb[0].mxu0
      %v1948 = vpop.f32.mrb[0].mxu0
      %v1949 = vadd.f32 0.0, %v1948
      %v1950 = vpop.f32.mrb[0].mxu0
      %1951 = vmatprep.mubr.bf16.mxu0 0
      %1952 = vmatmul.mubr.bf16.gmra.mrb[0].mxu0 %v1669
      %v1953 = vpop.f32.mrb[0].mxu0
      %v1954 = vadd.f32 0.0, %v1953
      %v1955 = vpop.f32.mrb[0].mxu0
      %v1956 = vpop.f32.mrb[0].mxu0
      %v1957 = vadd.f32 0.0, %v1956
      %v1958 = vpop.f32.mrb[0].mxu0
      %1959 = vdwg.mxu0
      %v1976 = vunpack.c.l.b16 %v1582
      %v1977 = vunpack.c.l.b16 %v1583
      %v1978 = vunpack.c.l.b16 %v1584
      %v1979 = vunpack.c.l.b16 %v1585
      %v1980 = vunpack.c.l.b16 %v1586
      %v1981 = vunpack.c.l.b16 %v1587
      %v1982 = vunpack.c.l.b16 %v1588
      %v1983 = vunpack.c.l.b16 %v1589
      %v1984 = vunpack.c.l.b16 %v1590
      %v1985 = vunpack.c.l.b16 %v1591
      %v1986 = vunpack.c.l.b16 %v1592
      %v1987 = vunpack.c.l.b16 %v1593
      %v1988 = vunpack.c.l.b16 %v1594
      %v1989 = vunpack.c.l.b16 %v1595
      %v1990 = vunpack.c.l.b16 %v1596
      %v1991 = vunpack.c.l.b16 %v1597
      %v1992 = vpack.c.b16 %v1977, %v1976
      %v1993 = vpack.c.b16 %v1979, %v1978
      %v1994 = vpack.c.b16 %v1981, %v1980
      %v1995 = vpack.c.b16 %v1983, %v1982
      %v1996 = vpack.c.b16 %v1985, %v1984
      %v1997 = vpack.c.b16 %v1987, %v1986
      %v1998 = vpack.c.b16 %v1989, %v1988
      %v1999 = vpack.c.b16 %v1991, %v1990
      %2008 = vmatprep.subr.bf16.mxu0 0
      %2009 = vmatpush1.bf16.msra.mxu0 %v1992
      %2010 = vmatprep.subr.bf16.mxu0 0
      %2011 = vmatpush1.bf16.msra.mxu0 %v1993
      %2012 = vmatprep.subr.bf16.mxu0 0
      %2013 = vmatpush1.bf16.msra.mxu0 %v1994
      %2014 = vmatprep.subr.bf16.mxu0 0
      %2015 = vmatpush1.bf16.msra.mxu0 %v1995
      %2016 = vmatprep.subr.bf16.mxu0 0
      %2017 = vmatpush1.bf16.msra.mxu0 %v1996
      %2018 = vmatprep.subr.bf16.mxu0 0
      %2019 = vmatpush1.bf16.msra.mxu0 %v1997
      %2020 = vmatprep.subr.bf16.mxu0 0
      %2021 = vmatpush1.bf16.msra.mxu0 %v1998
      %2022 = vmatprep.subr.bf16.mxu0 0
      %2023 = vmatpush1.bf16.msra.mxu0 %v1999
      %2024 = vmatprep.subr.bf16.mxu0 0
      %2025 = vmatpush1.bf16.msra.mxu0 0
      %2026 = vmatprep.subr.bf16.mxu0 0
      %2027 = vmatpush1.bf16.msra.mxu0 0
      %2028 = vmatprep.subr.bf16.mxu0 0
      %2029 = vmatpush1.bf16.msra.mxu0 0
      %2030 = vmatprep.subr.bf16.mxu0 0
      %2031 = vmatpush1.bf16.msra.mxu0 0
      %2032 = vmatprep.subr.bf16.mxu0 0
      %2033 = vmatpush1.bf16.msra.mxu0 0
      %2034 = vmatprep.subr.bf16.mxu0 0
      %2035 = vmatpush1.bf16.msra.mxu0 0
      %2036 = vmatprep.subr.bf16.mxu0 0
      %2037 = vmatpush1.bf16.msra.mxu0 0
      %2038 = vmatprep.subr.bf16.mxu0 0
      %2039 = vmatpush1.bf16.msra.mxu0 0
      %2040 = vmatprep.mubr.bf16.mxu0 0
      %2041 = vmatmul.mubr.bf16.gmra.mrb[0].mxu0 %v1558
      %v2042 = vpop.f32.mrb[0].mxu0
      %v2043 = vadd.f32 %v1770, %v2042
      %v2044 = vpop.f32.mrb[0].mxu0
      %v2045 = vpop.f32.mrb[0].mxu0
      %v2046 = vadd.f32 %v1773, %v2045
      %v2047 = vpop.f32.mrb[0].mxu0
      %2048 = vmatprep.mubr.bf16.mxu0 0
      %2049 = vmatmul.mubr.bf16.gmra.mrb[0].mxu0 %v1559
      %v2050 = vpop.f32.mrb[0].mxu0
      %v2051 = vadd.f32 %v1778, %v2050
      %v2052 = vpop.f32.mrb[0].mxu0
      %v2053 = vpop.f32.mrb[0].mxu0
      %v2054 = vadd.f32 %v1781, %v2053
      %v2055 = vpop.f32.mrb[0].mxu0
      %2056 = vmatprep.mubr.bf16.mxu0 0
      %2057 = vmatmul.mubr.bf16.gmra.mrb[0].mxu0 %v1560
      %v2058 = vpop.f32.mrb[0].mxu0
      %v2059 = vadd.f32 %v1786, %v2058
      %v2060 = vpop.f32.mrb[0].mxu0
      %v2061 = vpop.f32.mrb[0].mxu0
      %v2062 = vadd.f32 %v1789, %v2061
      %v2063 = vpop.f32.mrb[0].mxu0
      %2064 = vmatprep.mubr.bf16.mxu0 0
      %2065 = vmatmul.mubr.bf16.gmra.mrb[0].mxu0 %v1561
      %v2066 = vpop.f32.mrb[0].mxu0
      %v2067 = vadd.f32 %v1794, %v2066
      %v2068 = vpop.f32.mrb[0].mxu0
      %v2069 = vpop.f32.mrb[0].mxu0
      %v2070 = vadd.f32 %v1797, %v2069
      %v2071 = vpop.f32.mrb[0].mxu0
      %2072 = vmatprep.mubr.bf16.mxu0 0
      %2073 = vmatmul.mubr.bf16.gmra.mrb[0].mxu0 %v1562
      %v2074 = vpop.f32.mrb[0].mxu0
      %v2075 = vadd.f32 %v1802, %v2074
      %v2076 = vpop.f32.mrb[0].mxu0
      %v2077 = vpop.f32.mrb[0].mxu0
      %v2078 = vadd.f32 %v1805, %v2077
      %v2079 = vpop.f32.mrb[0].mxu0
      %2080 = vmatprep.mubr.bf16.mxu0 0
      %2081 = vmatmul.mubr.bf16.gmra.mrb[0].mxu0 %v1563
      %v2082 = vpop.f32.mrb[0].mxu0
      %v2083 = vadd.f32 %v1810, %v2082
      %v2084 = vpop.f32.mrb[0].mxu0
      %v2085 = vpop.f32.mrb[0].mxu0
      %v2086 = vadd.f32 %v1813, %v2085
      %v2087 = vpop.f32.mrb[0].mxu0
      %2088 = vmatprep.mubr.bf16.mxu0 0
      %2089 = vmatmul.mubr.bf16.gmra.mrb[0].mxu0 %v1564
      %v2090 = vpop.f32.mrb[0].mxu0
      %v2091 = vadd.f32 %v1818, %v2090
      %v2092 = vpop.f32.mrb[0].mxu0
      %v2093 = vpop.f32.mrb[0].mxu0
      %v2094 = vadd.f32 %v1821, %v2093
      %v2095 = vpop.f32.mrb[0].mxu0
      %2096 = vmatprep.mubr.bf16.mxu0 0
      %2097 = vmatmul.mubr.bf16.gmra.mrb[0].mxu0 %v1565
      %v2098 = vpop.f32.mrb[0].mxu0
      %v2099 = vadd.f32 %v1826, %v2098
      %v2100 = vpop.f32.mrb[0].mxu0
      %v2101 = vpop.f32.mrb[0].mxu0
      %v2102 = vadd.f32 %v1829, %v2101
      %v2103 = vpop.f32.mrb[0].mxu0
      %2104 = vmatprep.mubr.bf16.mxu0 0
      %2105 = vmatmul.mubr.bf16.gmra.mrb[0].mxu0 %v1566
      %v2106 = vpop.f32.mrb[0].mxu0
      %v2107 = vadd.f32 %v1834, %v2106
      %v2108 = vpop.f32.mrb[0].mxu0
      %v2109 = vpop.f32.mrb[0].mxu0
      %v2110 = vadd.f32 %v1837, %v2109
      %v2111 = vpop.f32.mrb[0].mxu0
      %2112 = vmatprep.mubr.bf16.mxu0 0
      %2113 = vmatmul.mubr.bf16.gmra.mrb[0].mxu0 %v1567
      %v2114 = vpop.f32.mrb[0].mxu0
      %v2115 = vadd.f32 %v1842, %v2114
      %v2116 = vpop.f32.mrb[0].mxu0
      %v2117 = vpop.f32.mrb[0].mxu0
      %v2118 = vadd.f32 %v1845, %v2117
      %v2119 = vpop.f32.mrb[0].mxu0
      %2120 = vmatprep.mubr.bf16.mxu0 0
      %2121 = vmatmul.mubr.bf16.gmra.mrb[0].mxu0 %v1568
      %v2122 = vpop.f32.mrb[0].mxu0
      %v2123 = vadd.f32 %v1850, %v2122
      %v2124 = vpop.f32.mrb[0].mxu0
      %v2125 = vpop.f32.mrb[0].mxu0
      %v2126 = vadd.f32 %v1853, %v2125
      %v2127 = vpop.f32.mrb[0].mxu0
      %2128 = vmatprep.mubr.bf16.mxu0 0
      %2129 = vmatmul.mubr.bf16.gmra.mrb[0].mxu0 %v1569
      %v2130 = vpop.f32.mrb[0].mxu0
      %v2131 = vadd.f32 %v1858, %v2130
      %v2132 = vpop.f32.mrb[0].mxu0
      %v2133 = vpop.f32.mrb[0].mxu0
      %v2134 = vadd.f32 %v1861, %v2133
      %v2135 = vpop.f32.mrb[0].mxu0
      %2136 = vmatprep.mubr.bf16.mxu0 0
      %2137 = vmatmul.mubr.bf16.gmra.mrb[0].mxu0 %v1570
      %v2138 = vpop.f32.mrb[0].mxu0
      %v2139 = vadd.f32 %v1866, %v2138
      %v2140 = vpop.f32.mrb[0].mxu0
      %v2141 = vpop.f32.mrb[0].mxu0
      %v2142 = vadd.f32 %v1869, %v2141
      %v2143 = vpop.f32.mrb[0].mxu0
      %2144 = vmatprep.mubr.bf16.mxu0 0
      %2145 = vmatmul.mubr.bf16.gmra.mrb[0].mxu0 %v1571
      %v2146 = vpop.f32.mrb[0].mxu0
      %v2147 = vadd.f32 %v1874, %v2146
      %v2148 = vpop.f32.mrb[0].mxu0
      %v2149 = vpop.f32.mrb[0].mxu0
      %v2150 = vadd.f32 %v1877, %v2149
      %v2151 = vpop.f32.mrb[0].mxu0
      %2152 = vmatprep.mubr.bf16.mxu0 0
      %2153 = vmatmul.mubr.bf16.gmra.mrb[0].mxu0 %v1572
      %v2154 = vpop.f32.mrb[0].mxu0
      %v2155 = vadd.f32 %v1882, %v2154
      %v2156 = vpop.f32.mrb[0].mxu0
      %v2157 = vpop.f32.mrb[0].mxu0
      %v2158 = vadd.f32 %v1885, %v2157
      %v2159 = vpop.f32.mrb[0].mxu0
      %2160 = vmatprep.mubr.bf16.mxu0 0
      %2161 = vmatmul.mubr.bf16.gmra.mrb[0].mxu0 %v1573
      %v2162 = vpop.f32.mrb[0].mxu0
      %v2163 = vadd.f32 %v1890, %v2162
      %v2164 = vpop.f32.mrb[0].mxu0
      %v2165 = vpop.f32.mrb[0].mxu0
      %v2166 = vadd.f32 %v1893, %v2165
      %v2167 = vpop.f32.mrb[0].mxu0
      %2168 = vmatprep.mubr.bf16.mxu0 0
      %2169 = vmatmul.mubr.bf16.gmra.mrb[0].mxu0 %v1574
      %v2170 = vpop.f32.mrb[0].mxu0
      %v2171 = vadd.f32 %v1898, %v2170
      %v2172 = vpop.f32.mrb[0].mxu0
      %v2173 = vpop.f32.mrb[0].mxu0
      %v2174 = vadd.f32 %v1901, %v2173
      %v2175 = vpop.f32.mrb[0].mxu0
      %2176 = vmatprep.mubr.bf16.mxu0 0
      %2177 = vmatmul.mubr.bf16.gmra.mrb[0].mxu0 %v1575
      %v2178 = vpop.f32.mrb[0].mxu0
      %v2179 = vadd.f32 %v1906, %v2178
      %v2180 = vpop.f32.mrb[0].mxu0
      %v2181 = vpop.f32.mrb[0].mxu0
      %v2182 = vadd.f32 %v1909, %v2181
      %v2183 = vpop.f32.mrb[0].mxu0
      %2184 = vmatprep.mubr.bf16.mxu0 0
      %2185 = vmatmul.mubr.bf16.gmra.mrb[0].mxu0 %v1576
      %v2186 = vpop.f32.mrb[0].mxu0
      %v2187 = vadd.f32 %v1914, %v2186
      %v2188 = vpop.f32.mrb[0].mxu0
      %v2189 = vpop.f32.mrb[0].mxu0
      %v2190 = vadd.f32 %v1917, %v2189
      %v2191 = vpop.f32.mrb[0].mxu0
      %2192 = vmatprep.mubr.bf16.mxu0 0
      %2193 = vmatmul.mubr.bf16.gmra.mrb[0].mxu0 %v1577
      %v2194 = vpop.f32.mrb[0].mxu0
      %v2195 = vadd.f32 %v1922, %v2194
      %v2196 = vpop.f32.mrb[0].mxu0
      %v2197 = vpop.f32.mrb[0].mxu0
      %v2198 = vadd.f32 %v1925, %v2197
      %v2199 = vpop.f32.mrb[0].mxu0
      %2200 = vmatprep.mubr.bf16.mxu0 0
      %2201 = vmatmul.mubr.bf16.gmra.mrb[0].mxu0 %v1578
      %v2202 = vpop.f32.mrb[0].mxu0
      %v2203 = vadd.f32 %v1930, %v2202
      %v2204 = vpop.f32.mrb[0].mxu0
      %v2205 = vpop.f32.mrb[0].mxu0
      %v2206 = vadd.f32 %v1933, %v2205
      %v2207 = vpop.f32.mrb[0].mxu0
      %2208 = vmatprep.mubr.bf16.mxu0 0
      %2209 = vmatmul.mubr.bf16.gmra.mrb[0].mxu0 %v1579
      %v2210 = vpop.f32.mrb[0].mxu0
      %v2211 = vadd.f32 %v1938, %v2210
      %v2212 = vpop.f32.mrb[0].mxu0
      %v2213 = vpop.f32.mrb[0].mxu0
      %v2214 = vadd.f32 %v1941, %v2213
      %v2215 = vpop.f32.mrb[0].mxu0
      %2216 = vmatprep.mubr.bf16.mxu0 0
      %2217 = vmatmul.mubr.bf16.gmra.mrb[0].mxu0 %v1580
      %v2218 = vpop.f32.mrb[0].mxu0
      %v2219 = vadd.f32 %v1946, %v2218
      %v2220 = vpop.f32.mrb[0].mxu0
      %v2221 = vpop.f32.mrb[0].mxu0
      %v2222 = vadd.f32 %v1949, %v2221
      %v2223 = vpop.f32.mrb[0].mxu0
      %2224 = vmatprep.mubr.bf16.mxu0 0
      %2225 = vmatmul.mubr.bf16.gmra.mrb[0].mxu0 %v1581
      %v2226 = vpop.f32.mrb[0].mxu0
      %v2227 = vadd.f32 %v1954, %v2226
      %v2228 = vpop.f32.mrb[0].mxu0
      %v2229 = vpop.f32.mrb[0].mxu0
      %v2230 = vadd.f32 %v1957, %v2229
      %v2231 = vpop.f32.mrb[0].mxu0
      %2232 = vdwg.mxu0
      %v2233 = vld [vmem:[#allocation2 + $0x2] sm:$0xff]
      %v2234 = vld [vmem:[#allocation2 + $0xa] sm:$0xff]
      %v2235 = vld [vmem:[#allocation2 + $0x12] sm:$0xff]
      %v2236 = vld [vmem:[#allocation2 + $0x1a] sm:$0xff]
      %v2237 = vld [vmem:[#allocation2 + $0x22] sm:$0xff]
      %v2238 = vld [vmem:[#allocation2 + $0x2a] sm:$0xff]
      %v2239 = vld [vmem:[#allocation2 + $0x32] sm:$0xff]
      %v2240 = vld [vmem:[#allocation2 + $0x3a] sm:$0xff]
      %v2241 = vld [vmem:[#allocation2 + $0x42] sm:$0xff]
      %v2242 = vld [vmem:[#allocation2 + $0x4a] sm:$0xff]
      %v2243 = vld [vmem:[#allocation2 + $0x52] sm:$0xff]
      %v2244 = vld [vmem:[#allocation2 + $0x5a] sm:$0xff]
      %v2245 = vld [vmem:[#allocation2 + $0x62] sm:$0xff]
      %v2246 = vld [vmem:[#allocation2 + $0x6a] sm:$0xff]
      %v2247 = vld [vmem:[#allocation2 + $0x72] sm:$0xff]
      %v2248 = vld [vmem:[#allocation2 + $0x7a] sm:$0xff]
      %v2249 = vld [vmem:[#allocation2 + $0x82] sm:$0xff]
      %v2250 = vld [vmem:[#allocation2 + $0x8a] sm:$0xff]
      %v2251 = vld [vmem:[#allocation2 + $0x92] sm:$0xff]
      %v2252 = vld [vmem:[#allocation2 + $0x9a] sm:$0xff]
      %v2253 = vld [vmem:[#allocation2 + $0xa2] sm:$0xff]
      %v2254 = vld [vmem:[#allocation2 + $0xaa] sm:$0xff]
      %v2255 = vld [vmem:[#allocation2 + $0xb2] sm:$0xff]
      %v2256 = vld [vmem:[#allocation2 + $0xba] sm:$0xff]
      %v2257 = vld [vmem:[#allocation2 + $0xc2] sm:$0xff]
      %v2258 = vld [vmem:[#allocation2 + $0xca] sm:$0xff]
      %v2259 = vld [vmem:[#allocation2 + $0xd2] sm:$0xff]
      %v2260 = vld [vmem:[#allocation2 + $0xda] sm:$0xff]
      %v2261 = vld [vmem:[#allocation2 + $0xe2] sm:$0xff]
      %v2262 = vld [vmem:[#allocation2 + $0xea] sm:$0xff]
      %v2263 = vld [vmem:[#allocation2 + $0xf2] sm:$0xff]
      %v2264 = vld [vmem:[#allocation2 + $0xfa] sm:$0xff]
      %v2265 = vld [vmem:[#allocation2 + $0x102] sm:$0xff]
      %v2266 = vld [vmem:[#allocation2 + $0x10a] sm:$0xff]
      %v2267 = vld [vmem:[#allocation2 + $0x112] sm:$0xff]
      %v2268 = vld [vmem:[#allocation2 + $0x11a] sm:$0xff]
      %v2269 = vld [vmem:[#allocation2 + $0x122] sm:$0xff]
      %v2270 = vld [vmem:[#allocation2 + $0x12a] sm:$0xff]
      %v2271 = vld [vmem:[#allocation2 + $0x132] sm:$0xff]
      %v2272 = vld [vmem:[#allocation2 + $0x13a] sm:$0xff]
      %v2273 = vld [vmem:[#allocation2 + $0x142] sm:$0xff]
      %v2274 = vld [vmem:[#allocation2 + $0x14a] sm:$0xff]
      %v2275 = vld [vmem:[#allocation2 + $0x152] sm:$0xff]
      %v2276 = vld [vmem:[#allocation2 + $0x15a] sm:$0xff]
      %v2277 = vld [vmem:[#allocation2 + $0x162] sm:$0xff]
      %v2278 = vld [vmem:[#allocation2 + $0x16a] sm:$0xff]
      %v2279 = vld [vmem:[#allocation2 + $0x172] sm:$0xff]
      %v2280 = vld [vmem:[#allocation2 + $0x17a] sm:$0xff]
      %v2281 = vpack.c.bf16 %v2234, %v2233
      %v2282 = vpack.c.bf16 %v2236, %v2235
      %v2283 = vpack.c.bf16 %v2238, %v2237
      %v2284 = vpack.c.bf16 %v2240, %v2239
      %v2285 = vpack.c.bf16 %v2242, %v2241
      %v2286 = vpack.c.bf16 %v2244, %v2243
      %v2287 = vpack.c.bf16 %v2246, %v2245
      %v2288 = vpack.c.bf16 %v2248, %v2247
      %v2289 = vpack.c.bf16 %v2250, %v2249
      %v2290 = vpack.c.bf16 %v2252, %v2251
      %v2291 = vpack.c.bf16 %v2254, %v2253
      %v2292 = vpack.c.bf16 %v2256, %v2255
      %v2293 = vpack.c.bf16 %v2258, %v2257
      %v2294 = vpack.c.bf16 %v2260, %v2259
      %v2295 = vpack.c.bf16 %v2262, %v2261
      %v2296 = vpack.c.bf16 %v2264, %v2263
      %v2297 = vpack.c.bf16 %v2266, %v2265
      %v2298 = vpack.c.bf16 %v2268, %v2267
      %v2299 = vpack.c.bf16 %v2270, %v2269
      %v2300 = vpack.c.bf16 %v2272, %v2271
      %v2301 = vpack.c.bf16 %v2274, %v2273
      %v2302 = vpack.c.bf16 %v2276, %v2275
      %v2303 = vpack.c.bf16 %v2278, %v2277
      %v2304 = vpack.c.bf16 %v2280, %v2279
      %s2305 = scalar_lea.vmem %s1, 128
      %v2306 = vld [vmem:[%s2305] sm:$0xf]
      %v2307 = vld [vmem:[%s2305 + $0x4] sm:$0xf]
      %v2308 = vld [vmem:[%s2305 + $0x8] sm:$0xf]
      %v2309 = vld [vmem:[%s2305 + $0xc] sm:$0xf]
      %v2310 = vld [vmem:[%s2305 + $0x10] sm:$0xf]
      %v2311 = vld [vmem:[%s2305 + $0x14] sm:$0xf]
      %v2312 = vld [vmem:[%s2305 + $0x18] sm:$0xf]
      %v2313 = vld [vmem:[%s2305 + $0x1c] sm:$0xf]
      %v2314 = vld [vmem:[%s2305 + $0x20] sm:$0xf]
      %v2315 = vld [vmem:[%s2305 + $0x24] sm:$0xf]
      %v2316 = vld [vmem:[%s2305 + $0x28] sm:$0xf]
      %v2317 = vld [vmem:[%s2305 + $0x2c] sm:$0xf]
      %v2318 = vld [vmem:[%s2305 + $0x30] sm:$0xf]
      %v2319 = vld [vmem:[%s2305 + $0x34] sm:$0xf]
      %v2320 = vld [vmem:[%s2305 + $0x38] sm:$0xf]
      %v2321 = vld [vmem:[%s2305 + $0x3c] sm:$0xf]
      %v2338 = vunpack.c.l.b16 %v2306
      %v2339 = vunpack.c.l.b16 %v2307
      %v2340 = vunpack.c.l.b16 %v2308
      %v2341 = vunpack.c.l.b16 %v2309
      %v2342 = vunpack.c.l.b16 %v2310
      %v2343 = vunpack.c.l.b16 %v2311
      %v2344 = vunpack.c.l.b16 %v2312
      %v2345 = vunpack.c.l.b16 %v2313
      %v2346 = vunpack.c.l.b16 %v2314
      %v2347 = vunpack.c.l.b16 %v2315
      %v2348 = vunpack.c.l.b16 %v2316
      %v2349 = vunpack.c.l.b16 %v2317
      %v2350 = vunpack.c.l.b16 %v2318
      %v2351 = vunpack.c.l.b16 %v2319
      %v2352 = vunpack.c.l.b16 %v2320
      %v2353 = vunpack.c.l.b16 %v2321
      %v2354 = vpack.c.b16 %v2339, %v2338
      %v2355 = vpack.c.b16 %v2341, %v2340
      %v2356 = vpack.c.b16 %v2343, %v2342
      %v2357 = vpack.c.b16 %v2345, %v2344
      %v2358 = vpack.c.b16 %v2347, %v2346
      %v2359 = vpack.c.b16 %v2349, %v2348
      %v2360 = vpack.c.b16 %v2351, %v2350
      %v2361 = vpack.c.b16 %v2353, %v2352
      %2370 = vmatprep.subr.bf16.mxu0 0
      %2371 = vmatpush1.bf16.msra.mxu0 %v2354
      %2372 = vmatprep.subr.bf16.mxu0 0
      %2373 = vmatpush1.bf16.msra.mxu0 %v2355
      %2374 = vmatprep.subr.bf16.mxu0 0
      %2375 = vmatpush1.bf16.msra.mxu0 %v2356
      %2376 = vmatprep.subr.bf16.mxu0 0
      %2377 = vmatpush1.bf16.msra.mxu0 %v2357
      %2378 = vmatprep.subr.bf16.mxu0 0
      %2379 = vmatpush1.bf16.msra.mxu0 %v2358
      %2380 = vmatprep.subr.bf16.mxu0 0
      %2381 = vmatpush1.bf16.msra.mxu0 %v2359
      %2382 = vmatprep.subr.bf16.mxu0 0
      %2383 = vmatpush1.bf16.msra.mxu0 %v2360
      %2384 = vmatprep.subr.bf16.mxu0 0
      %2385 = vmatpush1.bf16.msra.mxu0 %v2361
      %2386 = vmatprep.subr.bf16.mxu0 0
      %2387 = vmatpush1.bf16.msra.mxu0 0
      %2388 = vmatprep.subr.bf16.mxu0 0
      %2389 = vmatpush1.bf16.msra.mxu0 0
      %2390 = vmatprep.subr.bf16.mxu0 0
      %2391 = vmatpush1.bf16.msra.mxu0 0
      %2392 = vmatprep.subr.bf16.mxu0 0
      %2393 = vmatpush1.bf16.msra.mxu0 0
      %2394 = vmatprep.subr.bf16.mxu0 0
      %2395 = vmatpush1.bf16.msra.mxu0 0
      %2396 = vmatprep.subr.bf16.mxu0 0
      %2397 = vmatpush1.bf16.msra.mxu0 0
      %2398 = vmatprep.subr.bf16.mxu0 0
      %2399 = vmatpush1.bf16.msra.mxu0 0
      %2400 = vmatprep.subr.bf16.mxu0 0
      %2401 = vmatpush1.bf16.msra.mxu0 0
      %2402 = vmatprep.mubr.bf16.mxu0 0
      %2403 = vmatmul.mubr.bf16.gmra.mrb[0].mxu0 %v2281
      %v2404 = vpop.f32.mrb[0].mxu0
      %v2405 = vadd.f32 0.0, %v2404
      %v2406 = vpop.f32.mrb[0].mxu0
      %v2407 = vpop.f32.mrb[0].mxu0
      %v2408 = vadd.f32 0.0, %v2407
      %v2409 = vpop.f32.mrb[0].mxu0
      %2410 = vmatprep.mubr.bf16.mxu0 0
      %2411 = vmatmul.mubr.bf16.gmra.mrb[0].mxu0 %v2282
      %v2412 = vpop.f32.mrb[0].mxu0
      %v2413 = vadd.f32 0.0, %v2412
      %v2414 = vpop.f32.mrb[0].mxu0
      %v2415 = vpop.f32.mrb[0].mxu0
      %v2416 = vadd.f32 0.0, %v2415
      %v2417 = vpop.f32.mrb[0].mxu0
      %2418 = vmatprep.mubr.bf16.mxu0 0
      %2419 = vmatmul.mubr.bf16.gmra.mrb[0].mxu0 %v2283
      %v2420 = vpop.f32.mrb[0].mxu0
      %v2421 = vadd.f32 0.0, %v2420
      %v2422 = vpop.f32.mrb[0].mxu0
      %v2423 = vpop.f32.mrb[0].mxu0
      %v2424 = vadd.f32 0.0, %v2423
      %v2425 = vpop.f32.mrb[0].mxu0
      %2426 = vmatprep.mubr.bf16.mxu0 0
      %2427 = vmatmul.mubr.bf16.gmra.mrb[0].mxu0 %v2284
      %v2428 = vpop.f32.mrb[0].mxu0
      %v2429 = vadd.f32 0.0, %v2428
      %v2430 = vpop.f32.mrb[0].mxu0
      %v2431 = vpop.f32.mrb[0].mxu0
      %v2432 = vadd.f32 0.0, %v2431
      %v2433 = vpop.f32.mrb[0].mxu0
      %2434 = vmatprep.mubr.bf16.mxu0 0
      %2435 = vmatmul.mubr.bf16.gmra.mrb[0].mxu0 %v2285
      %v2436 = vpop.f32.mrb[0].mxu0
      %v2437 = vadd.f32 0.0, %v2436
      %v2438 = vpop.f32.mrb[0].mxu0
      %v2439 = vpop.f32.mrb[0].mxu0
      %v2440 = vadd.f32 0.0, %v2439
      %v2441 = vpop.f32.mrb[0].mxu0
      %2442 = vmatprep.mubr.bf16.mxu0 0
      %2443 = vmatmul.mubr.bf16.gmra.mrb[0].mxu0 %v2286
      %v2444 = vpop.f32.mrb[0].mxu0
      %v2445 = vadd.f32 0.0, %v2444
      %v2446 = vpop.f32.mrb[0].mxu0
      %v2447 = vpop.f32.mrb[0].mxu0
      %v2448 = vadd.f32 0.0, %v2447
      %v2449 = vpop.f32.mrb[0].mxu0
      %2450 = vmatprep.mubr.bf16.mxu0 0
      %2451 = vmatmul.mubr.bf16.gmra.mrb[0].mxu0 %v2287
      %v2452 = vpop.f32.mrb[0].mxu0
      %v2453 = vadd.f32 0.0, %v2452
      %v2454 = vpop.f32.mrb[0].mxu0
      %v2455 = vpop.f32.mrb[0].mxu0
      %v2456 = vadd.f32 0.0, %v2455
      %v2457 = vpop.f32.mrb[0].mxu0
      %2458 = vmatprep.mubr.bf16.mxu0 0
      %2459 = vmatmul.mubr.bf16.gmra.mrb[0].mxu0 %v2288
      %v2460 = vpop.f32.mrb[0].mxu0
      %v2461 = vadd.f32 0.0, %v2460
      %v2462 = vpop.f32.mrb[0].mxu0
      %v2463 = vpop.f32.mrb[0].mxu0
      %v2464 = vadd.f32 0.0, %v2463
      %v2465 = vpop.f32.mrb[0].mxu0
      %2466 = vmatprep.mubr.bf16.mxu0 0
      %2467 = vmatmul.mubr.bf16.gmra.mrb[0].mxu0 %v2289
      %v2468 = vpop.f32.mrb[0].mxu0
      %v2469 = vadd.f32 0.0, %v2468
      %v2470 = vpop.f32.mrb[0].mxu0
      %v2471 = vpop.f32.mrb[0].mxu0
      %v2472 = vadd.f32 0.0, %v2471
      %v2473 = vpop.f32.mrb[0].mxu0
      %2474 = vmatprep.mubr.bf16.mxu0 0
      %2475 = vmatmul.mubr.bf16.gmra.mrb[0].mxu0 %v2290
      %v2476 = vpop.f32.mrb[0].mxu0
      %v2477 = vadd.f32 0.0, %v2476
      %v2478 = vpop.f32.mrb[0].mxu0
      %v2479 = vpop.f32.mrb[0].mxu0
      %v2480 = vadd.f32 0.0, %v2479
      %v2481 = vpop.f32.mrb[0].mxu0
      %2482 = vmatprep.mubr.bf16.mxu0 0
      %2483 = vmatmul.mubr.bf16.gmra.mrb[0].mxu0 %v2291
      %v2484 = vpop.f32.mrb[0].mxu0
      %v2485 = vadd.f32 0.0, %v2484
      %v2486 = vpop.f32.mrb[0].mxu0
      %v2487 = vpop.f32.mrb[0].mxu0
      %v2488 = vadd.f32 0.0, %v2487
      %v2489 = vpop.f32.mrb[0].mxu0
      %2490 = vmatprep.mubr.bf16.mxu0 0
      %2491 = vmatmul.mubr.bf16.gmra.mrb[0].mxu0 %v2292
      %v2492 = vpop.f32.mrb[0].mxu0
      %v2493 = vadd.f32 0.0, %v2492
      %v2494 = vpop.f32.mrb[0].mxu0
      %v2495 = vpop.f32.mrb[0].mxu0
      %v2496 = vadd.f32 0.0, %v2495
      %v2497 = vpop.f32.mrb[0].mxu0
      %2498 = vmatprep.mubr.bf16.mxu0 0
      %2499 = vmatmul.mubr.bf16.gmra.mrb[0].mxu0 %v2293
      %v2500 = vpop.f32.mrb[0].mxu0
      %v2501 = vadd.f32 0.0, %v2500
      %v2502 = vpop.f32.mrb[0].mxu0
      %v2503 = vpop.f32.mrb[0].mxu0
      %v2504 = vadd.f32 0.0, %v2503
      %v2505 = vpop.f32.mrb[0].mxu0
      %2506 = vmatprep.mubr.bf16.mxu0 0
      %2507 = vmatmul.mubr.bf16.gmra.mrb[0].mxu0 %v2294
      %v2508 = vpop.f32.mrb[0].mxu0
      %v2509 = vadd.f32 0.0, %v2508
      %v2510 = vpop.f32.mrb[0].mxu0
      %v2511 = vpop.f32.mrb[0].mxu0
      %v2512 = vadd.f32 0.0, %v2511
      %v2513 = vpop.f32.mrb[0].mxu0
      %2514 = vmatprep.mubr.bf16.mxu0 0
      %2515 = vmatmul.mubr.bf16.gmra.mrb[0].mxu0 %v2295
      %v2516 = vpop.f32.mrb[0].mxu0
      %v2517 = vadd.f32 0.0, %v2516
      %v2518 = vpop.f32.mrb[0].mxu0
      %v2519 = vpop.f32.mrb[0].mxu0
      %v2520 = vadd.f32 0.0, %v2519
      %v2521 = vpop.f32.mrb[0].mxu0
      %2522 = vmatprep.mubr.bf16.mxu0 0
      %2523 = vmatmul.mubr.bf16.gmra.mrb[0].mxu0 %v2296
      %v2524 = vpop.f32.mrb[0].mxu0
      %v2525 = vadd.f32 0.0, %v2524
      %v2526 = vpop.f32.mrb[0].mxu0
      %v2527 = vpop.f32.mrb[0].mxu0
      %v2528 = vadd.f32 0.0, %v2527
      %v2529 = vpop.f32.mrb[0].mxu0
      %2530 = vmatprep.mubr.bf16.mxu0 0
      %2531 = vmatmul.mubr.bf16.gmra.mrb[0].mxu0 %v2297
      %v2532 = vpop.f32.mrb[0].mxu0
      %v2533 = vadd.f32 0.0, %v2532
      %v2534 = vpop.f32.mrb[0].mxu0
      %v2535 = vpop.f32.mrb[0].mxu0
      %v2536 = vadd.f32 0.0, %v2535
      %v2537 = vpop.f32.mrb[0].mxu0
      %2538 = vmatprep.mubr.bf16.mxu0 0
      %2539 = vmatmul.mubr.bf16.gmra.mrb[0].mxu0 %v2298
      %v2540 = vpop.f32.mrb[0].mxu0
      %v2541 = vadd.f32 0.0, %v2540
      %v2542 = vpop.f32.mrb[0].mxu0
      %v2543 = vpop.f32.mrb[0].mxu0
      %v2544 = vadd.f32 0.0, %v2543
      %v2545 = vpop.f32.mrb[0].mxu0
      %2546 = vmatprep.mubr.bf16.mxu0 0
      %2547 = vmatmul.mubr.bf16.gmra.mrb[0].mxu0 %v2299
      %v2548 = vpop.f32.mrb[0].mxu0
      %v2549 = vadd.f32 0.0, %v2548
      %v2550 = vpop.f32.mrb[0].mxu0
      %v2551 = vpop.f32.mrb[0].mxu0
      %v2552 = vadd.f32 0.0, %v2551
      %v2553 = vpop.f32.mrb[0].mxu0
      %2554 = vmatprep.mubr.bf16.mxu0 0
      %2555 = vmatmul.mubr.bf16.gmra.mrb[0].mxu0 %v2300
      %v2556 = vpop.f32.mrb[0].mxu0
      %v2557 = vadd.f32 0.0, %v2556
      %v2558 = vpop.f32.mrb[0].mxu0
      %v2559 = vpop.f32.mrb[0].mxu0
      %v2560 = vadd.f32 0.0, %v2559
      %v2561 = vpop.f32.mrb[0].mxu0
      %2562 = vmatprep.mubr.bf16.mxu0 0
      %2563 = vmatmul.mubr.bf16.gmra.mrb[0].mxu0 %v2301
      %v2564 = vpop.f32.mrb[0].mxu0
      %v2565 = vadd.f32 0.0, %v2564
      %v2566 = vpop.f32.mrb[0].mxu0
      %v2567 = vpop.f32.mrb[0].mxu0
      %v2568 = vadd.f32 0.0, %v2567
      %v2569 = vpop.f32.mrb[0].mxu0
      %2570 = vmatprep.mubr.bf16.mxu0 0
      %2571 = vmatmul.mubr.bf16.gmra.mrb[0].mxu0 %v2302
      %v2572 = vpop.f32.mrb[0].mxu0
      %v2573 = vadd.f32 0.0, %v2572
      %v2574 = vpop.f32.mrb[0].mxu0
      %v2575 = vpop.f32.mrb[0].mxu0
      %v2576 = vadd.f32 0.0, %v2575
      %v2577 = vpop.f32.mrb[0].mxu0
      %2578 = vmatprep.mubr.bf16.mxu0 0
      %2579 = vmatmul.mubr.bf16.gmra.mrb[0].mxu0 %v2303
      %v2580 = vpop.f32.mrb[0].mxu0
      %v2581 = vadd.f32 0.0, %v2580
      %v2582 = vpop.f32.mrb[0].mxu0
      %v2583 = vpop.f32.mrb[0].mxu0
      %v2584 = vadd.f32 0.0, %v2583
      %v2585 = vpop.f32.mrb[0].mxu0
      %2586 = vmatprep.mubr.bf16.mxu0 0
      %2587 = vmatmul.mubr.bf16.gmra.mrb[0].mxu0 %v2304
      %v2588 = vpop.f32.mrb[0].mxu0
      %v2589 = vadd.f32 0.0, %v2588
      %v2590 = vpop.f32.mrb[0].mxu0
      %v2591 = vpop.f32.mrb[0].mxu0
      %v2592 = vadd.f32 0.0, %v2591
      %v2593 = vpop.f32.mrb[0].mxu0
      %2594 = vdwg.mxu0
      %v2595 = vadd.f32 %v2043, %v2405
      %v2596 = vadd.f32 %v2046, %v2408
      %v2597 = vadd.f32 %v2051, %v2413
      %v2598 = vadd.f32 %v2054, %v2416
      %v2599 = vadd.f32 %v2059, %v2421
      %v2600 = vadd.f32 %v2062, %v2424
      %v2601 = vadd.f32 %v2067, %v2429
      %v2602 = vadd.f32 %v2070, %v2432
      %v2603 = vadd.f32 %v2075, %v2437
      %v2604 = vadd.f32 %v2078, %v2440
      %v2605 = vadd.f32 %v2083, %v2445
      %v2606 = vadd.f32 %v2086, %v2448
      %v2607 = vadd.f32 %v2091, %v2453
      %v2608 = vadd.f32 %v2094, %v2456
      %v2609 = vadd.f32 %v2099, %v2461
      %v2610 = vadd.f32 %v2102, %v2464
      %v2611 = vadd.f32 %v2107, %v2469
      %v2612 = vadd.f32 %v2110, %v2472
      %v2613 = vadd.f32 %v2115, %v2477
      %v2614 = vadd.f32 %v2118, %v2480
      %v2615 = vadd.f32 %v2123, %v2485
      %v2616 = vadd.f32 %v2126, %v2488
      %v2617 = vadd.f32 %v2131, %v2493
      %v2618 = vadd.f32 %v2134, %v2496
      %v2619 = vadd.f32 %v2139, %v2501
      %v2620 = vadd.f32 %v2142, %v2504
      %v2621 = vadd.f32 %v2147, %v2509
      %v2622 = vadd.f32 %v2150, %v2512
      %v2623 = vadd.f32 %v2155, %v2517
      %v2624 = vadd.f32 %v2158, %v2520
      %v2625 = vadd.f32 %v2163, %v2525
      %v2626 = vadd.f32 %v2166, %v2528
      %v2627 = vadd.f32 %v2171, %v2533
      %v2628 = vadd.f32 %v2174, %v2536
      %v2629 = vadd.f32 %v2179, %v2541
      %v2630 = vadd.f32 %v2182, %v2544
      %v2631 = vadd.f32 %v2187, %v2549
      %v2632 = vadd.f32 %v2190, %v2552
      %v2633 = vadd.f32 %v2195, %v2557
      %v2634 = vadd.f32 %v2198, %v2560
      %v2635 = vadd.f32 %v2203, %v2565
      %v2636 = vadd.f32 %v2206, %v2568
      %v2637 = vadd.f32 %v2211, %v2573
      %v2638 = vadd.f32 %v2214, %v2576
      %v2639 = vadd.f32 %v2219, %v2581
      %v2640 = vadd.f32 %v2222, %v2584
      %v2641 = vadd.f32 %v2227, %v2589
      %v2642 = vadd.f32 %v2230, %v2592
      %v2643 = vld [vmem:[#allocation2 + $0x18] sm:$0xff]
      %v2644 = vld [vmem:[#allocation2 + $0x20] sm:$0xff]
      %v2645 = vld [vmem:[#allocation2 + $0x28] sm:$0xff]
      %v2646 = vld [vmem:[#allocation2 + $0x30] sm:$0xff]
      %v2647 = vld [vmem:[#allocation2 + $0x38] sm:$0xff]
      %v2648 = vld [vmem:[#allocation2 + $0x40] sm:$0xff]
      %v2649 = vld [vmem:[#allocation2 + $0x48] sm:$0xff]
      %v2650 = vld [vmem:[#allocation2 + $0x50] sm:$0xff]
      %v2651 = vld [vmem:[#allocation2 + $0x58] sm:$0xff]
      %v2652 = vld [vmem:[#allocation2 + $0x60] sm:$0xff]
      %v2653 = vld [vmem:[#allocation2 + $0x68] sm:$0xff]
      %v2654 = vld [vmem:[#allocation2 + $0x70] sm:$0xff]
      %v2655 = vld [vmem:[#allocation2 + $0x78] sm:$0xff]
      %v2656 = vld [vmem:[#allocation2 + $0x80] sm:$0xff]
      %v2657 = vld [vmem:[#allocation2 + $0x88] sm:$0xff]
      %v2658 = vld [vmem:[#allocation2 + $0x90] sm:$0xff]
      %v2659 = vld [vmem:[#allocation2 + $0x98] sm:$0xff]
      %v2660 = vld [vmem:[#allocation2 + $0xa0] sm:$0xff]
      %v2661 = vld [vmem:[#allocation2 + $0xa8] sm:$0xff]
      %v2662 = vld [vmem:[#allocation2 + $0xb0] sm:$0xff]
      %v2663 = vld [vmem:[#allocation2 + $0xb8] sm:$0xff]
      %v2664 = vld [vmem:[#allocation2 + $0xc0] sm:$0xff]
      %v2665 = vld [vmem:[#allocation2 + $0xc8] sm:$0xff]
      %v2666 = vld [vmem:[#allocation2 + $0xd0] sm:$0xff]
      %v2667 = vld [vmem:[#allocation2 + $0xd8] sm:$0xff]
      %v2668 = vld [vmem:[#allocation2 + $0xe0] sm:$0xff]
      %v2669 = vld [vmem:[#allocation2 + $0xe8] sm:$0xff]
      %v2670 = vld [vmem:[#allocation2 + $0xf0] sm:$0xff]
      %v2671 = vld [vmem:[#allocation2 + $0xf8] sm:$0xff]
      %v2672 = vld [vmem:[#allocation2 + $0x100] sm:$0xff]
      %v2673 = vld [vmem:[#allocation2 + $0x108] sm:$0xff]
      %v2674 = vld [vmem:[#allocation2 + $0x110] sm:$0xff]
      %v2675 = vld [vmem:[#allocation2 + $0x118] sm:$0xff]
      %v2676 = vld [vmem:[#allocation2 + $0x120] sm:$0xff]
      %v2677 = vld [vmem:[#allocation2 + $0x128] sm:$0xff]
      %v2678 = vld [vmem:[#allocation2 + $0x130] sm:$0xff]
      %v2679 = vld [vmem:[#allocation2 + $0x138] sm:$0xff]
      %v2680 = vld [vmem:[#allocation2 + $0x140] sm:$0xff]
      %v2681 = vld [vmem:[#allocation2 + $0x148] sm:$0xff]
      %v2682 = vld [vmem:[#allocation2 + $0x150] sm:$0xff]
      %v2683 = vld [vmem:[#allocation2 + $0x158] sm:$0xff]
      %v2684 = vld [vmem:[#allocation2 + $0x160] sm:$0xff]
      %v2685 = vld [vmem:[#allocation2 + $0x168] sm:$0xff]
      %v2686 = vld [vmem:[#allocation2 + $0x170] sm:$0xff]
      %v2687 = vld [vmem:[#allocation2 + $0x178] sm:$0xff]
      %v2688 = vld [vmem:[#allocation2 + $0x180] sm:$0xff]
      %v2689 = vld [vmem:[#allocation2 + $0x188] sm:$0xff]
      %v2690 = vld [vmem:[#allocation2 + $0x190] sm:$0xff]
      %v2691 = vpack.c.bf16 %v2644, %v2643
      %v2692 = vpack.c.bf16 %v2646, %v2645
      %v2693 = vpack.c.bf16 %v2648, %v2647
      %v2694 = vpack.c.bf16 %v2650, %v2649
      %v2695 = vpack.c.bf16 %v2652, %v2651
      %v2696 = vpack.c.bf16 %v2654, %v2653
      %v2697 = vpack.c.bf16 %v2656, %v2655
      %v2698 = vpack.c.bf16 %v2658, %v2657
      %v2699 = vpack.c.bf16 %v2660, %v2659
      %v2700 = vpack.c.bf16 %v2662, %v2661
      %v2701 = vpack.c.bf16 %v2664, %v2663
      %v2702 = vpack.c.bf16 %v2666, %v2665
      %v2703 = vpack.c.bf16 %v2668, %v2667
      %v2704 = vpack.c.bf16 %v2670, %v2669
      %v2705 = vpack.c.bf16 %v2672, %v2671
      %v2706 = vpack.c.bf16 %v2674, %v2673
      %v2707 = vpack.c.bf16 %v2676, %v2675
      %v2708 = vpack.c.bf16 %v2678, %v2677
      %v2709 = vpack.c.bf16 %v2680, %v2679
      %v2710 = vpack.c.bf16 %v2682, %v2681
      %v2711 = vpack.c.bf16 %v2684, %v2683
      %v2712 = vpack.c.bf16 %v2686, %v2685
      %v2713 = vpack.c.bf16 %v2688, %v2687
      %v2714 = vpack.c.bf16 %v2690, %v2689
      %s2715 = scalar_lea.vmem %s1, 192
      %v2716 = vld [vmem:[%s2715] sm:$0xf]
      %v2717 = vld [vmem:[%s2715 + $0x4] sm:$0xf]
      %v2718 = vld [vmem:[%s2715 + $0x8] sm:$0xf]
      %v2719 = vld [vmem:[%s2715 + $0xc] sm:$0xf]
      %v2720 = vld [vmem:[%s2715 + $0x10] sm:$0xf]
      %v2721 = vld [vmem:[%s2715 + $0x14] sm:$0xf]
      %v2722 = vld [vmem:[%s2715 + $0x18] sm:$0xf]
      %v2723 = vld [vmem:[%s2715 + $0x1c] sm:$0xf]
      %v2724 = vld [vmem:[%s2715 + $0x20] sm:$0xf]
      %v2725 = vld [vmem:[%s2715 + $0x24] sm:$0xf]
      %v2726 = vld [vmem:[%s2715 + $0x28] sm:$0xf]
      %v2727 = vld [vmem:[%s2715 + $0x2c] sm:$0xf]
      %v2728 = vld [vmem:[%s2715 + $0x30] sm:$0xf]
      %v2729 = vld [vmem:[%s2715 + $0x34] sm:$0xf]
      %v2730 = vld [vmem:[%s2715 + $0x38] sm:$0xf]
      %v2731 = vld [vmem:[%s2715 + $0x3c] sm:$0xf]
      %v2748 = vunpack.c.l.b16 %v2716
      %v2749 = vunpack.c.l.b16 %v2717
      %v2750 = vunpack.c.l.b16 %v2718
      %v2751 = vunpack.c.l.b16 %v2719
      %v2752 = vunpack.c.l.b16 %v2720
      %v2753 = vunpack.c.l.b16 %v2721
      %v2754 = vunpack.c.l.b16 %v2722
      %v2755 = vunpack.c.l.b16 %v2723
      %v2756 = vunpack.c.l.b16 %v2724
      %v2757 = vunpack.c.l.b16 %v2725
      %v2758 = vunpack.c.l.b16 %v2726
      %v2759 = vunpack.c.l.b16 %v2727
      %v2760 = vunpack.c.l.b16 %v2728
      %v2761 = vunpack.c.l.b16 %v2729
      %v2762 = vunpack.c.l.b16 %v2730
      %v2763 = vunpack.c.l.b16 %v2731
      %v2764 = vpack.c.b16 %v2749, %v2748
      %v2765 = vpack.c.b16 %v2751, %v2750
      %v2766 = vpack.c.b16 %v2753, %v2752
      %v2767 = vpack.c.b16 %v2755, %v2754
      %v2768 = vpack.c.b16 %v2757, %v2756
      %v2769 = vpack.c.b16 %v2759, %v2758
      %v2770 = vpack.c.b16 %v2761, %v2760
      %v2771 = vpack.c.b16 %v2763, %v2762
      %2780 = vmatprep.subr.bf16.mxu0 0
      %2781 = vmatpush1.bf16.msra.mxu0 %v2764
      %2782 = vmatprep.subr.bf16.mxu0 0
      %2783 = vmatpush1.bf16.msra.mxu0 %v2765
      %2784 = vmatprep.subr.bf16.mxu0 0
      %2785 = vmatpush1.bf16.msra.mxu0 %v2766
      %2786 = vmatprep.subr.bf16.mxu0 0
      %2787 = vmatpush1.bf16.msra.mxu0 %v2767
      %2788 = vmatprep.subr.bf16.mxu0 0
      %2789 = vmatpush1.bf16.msra.mxu0 %v2768
      %2790 = vmatprep.subr.bf16.mxu0 0
      %2791 = vmatpush1.bf16.msra.mxu0 %v2769
      %2792 = vmatprep.subr.bf16.mxu0 0
      %2793 = vmatpush1.bf16.msra.mxu0 %v2770
      %2794 = vmatprep.subr.bf16.mxu0 0
      %2795 = vmatpush1.bf16.msra.mxu0 %v2771
      %2796 = vmatprep.subr.bf16.mxu0 0
      %2797 = vmatpush1.bf16.msra.mxu0 0
      %2798 = vmatprep.subr.bf16.mxu0 0
      %2799 = vmatpush1.bf16.msra.mxu0 0
      %2800 = vmatprep.subr.bf16.mxu0 0
      %2801 = vmatpush1.bf16.msra.mxu0 0
      %2802 = vmatprep.subr.bf16.mxu0 0
      %2803 = vmatpush1.bf16.msra.mxu0 0
      %2804 = vmatprep.subr.bf16.mxu0 0
      %2805 = vmatpush1.bf16.msra.mxu0 0
      %2806 = vmatprep.subr.bf16.mxu0 0
      %2807 = vmatpush1.bf16.msra.mxu0 0
      %2808 = vmatprep.subr.bf16.mxu0 0
      %2809 = vmatpush1.bf16.msra.mxu0 0
      %2810 = vmatprep.subr.bf16.mxu0 0
      %2811 = vmatpush1.bf16.msra.mxu0 0
      %2812 = vmatprep.mubr.bf16.mxu0 0
      %2813 = vmatmul.mubr.bf16.gmra.mrb[0].mxu0 %v2691
      %v2814 = vpop.f32.mrb[0].mxu0
      %v2815 = vadd.f32 0.0, %v2814
      %v2816 = vpop.f32.mrb[0].mxu0
      %v2817 = vpop.f32.mrb[0].mxu0
      %v2818 = vadd.f32 0.0, %v2817
      %v2819 = vpop.f32.mrb[0].mxu0
      %2820 = vmatprep.mubr.bf16.mxu0 0
      %2821 = vmatmul.mubr.bf16.gmra.mrb[0].mxu0 %v2692
      %v2822 = vpop.f32.mrb[0].mxu0
      %v2823 = vadd.f32 0.0, %v2822
      %v2824 = vpop.f32.mrb[0].mxu0
      %v2825 = vpop.f32.mrb[0].mxu0
      %v2826 = vadd.f32 0.0, %v2825
      %v2827 = vpop.f32.mrb[0].mxu0
      %2828 = vmatprep.mubr.bf16.mxu0 0
      %2829 = vmatmul.mubr.bf16.gmra.mrb[0].mxu0 %v2693
      %v2830 = vpop.f32.mrb[0].mxu0
      %v2831 = vadd.f32 0.0, %v2830
      %v2832 = vpop.f32.mrb[0].mxu0
      %v2833 = vpop.f32.mrb[0].mxu0
      %v2834 = vadd.f32 0.0, %v2833
      %v2835 = vpop.f32.mrb[0].mxu0
      %2836 = vmatprep.mubr.bf16.mxu0 0
      %2837 = vmatmul.mubr.bf16.gmra.mrb[0].mxu0 %v2694
      %v2838 = vpop.f32.mrb[0].mxu0
      %v2839 = vadd.f32 0.0, %v2838
      %v2840 = vpop.f32.mrb[0].mxu0
      %v2841 = vpop.f32.mrb[0].mxu0
      %v2842 = vadd.f32 0.0, %v2841
      %v2843 = vpop.f32.mrb[0].mxu0
      %2844 = vmatprep.mubr.bf16.mxu0 0
      %2845 = vmatmul.mubr.bf16.gmra.mrb[0].mxu0 %v2695
      %v2846 = vpop.f32.mrb[0].mxu0
      %v2847 = vadd.f32 0.0, %v2846
      %v2848 = vpop.f32.mrb[0].mxu0
      %v2849 = vpop.f32.mrb[0].mxu0
      %v2850 = vadd.f32 0.0, %v2849
      %v2851 = vpop.f32.mrb[0].mxu0
      %2852 = vmatprep.mubr.bf16.mxu0 0
      %2853 = vmatmul.mubr.bf16.gmra.mrb[0].mxu0 %v2696
      %v2854 = vpop.f32.mrb[0].mxu0
      %v2855 = vadd.f32 0.0, %v2854
      %v2856 = vpop.f32.mrb[0].mxu0
      %v2857 = vpop.f32.mrb[0].mxu0
      %v2858 = vadd.f32 0.0, %v2857
      %v2859 = vpop.f32.mrb[0].mxu0
      %2860 = vmatprep.mubr.bf16.mxu0 0
      %2861 = vmatmul.mubr.bf16.gmra.mrb[0].mxu0 %v2697
      %v2862 = vpop.f32.mrb[0].mxu0
      %v2863 = vadd.f32 0.0, %v2862
      %v2864 = vpop.f32.mrb[0].mxu0
      %v2865 = vpop.f32.mrb[0].mxu0
      %v2866 = vadd.f32 0.0, %v2865
      %v2867 = vpop.f32.mrb[0].mxu0
      %2868 = vmatprep.mubr.bf16.mxu0 0
      %2869 = vmatmul.mubr.bf16.gmra.mrb[0].mxu0 %v2698
      %v2870 = vpop.f32.mrb[0].mxu0
      %v2871 = vadd.f32 0.0, %v2870
      %v2872 = vpop.f32.mrb[0].mxu0
      %v2873 = vpop.f32.mrb[0].mxu0
      %v2874 = vadd.f32 0.0, %v2873
      %v2875 = vpop.f32.mrb[0].mxu0
      %2876 = vmatprep.mubr.bf16.mxu0 0
      %2877 = vmatmul.mubr.bf16.gmra.mrb[0].mxu0 %v2699
      %v2878 = vpop.f32.mrb[0].mxu0
      %v2879 = vadd.f32 0.0, %v2878
      %v2880 = vpop.f32.mrb[0].mxu0
      %v2881 = vpop.f32.mrb[0].mxu0
      %v2882 = vadd.f32 0.0, %v2881
      %v2883 = vpop.f32.mrb[0].mxu0
      %2884 = vmatprep.mubr.bf16.mxu0 0
      %2885 = vmatmul.mubr.bf16.gmra.mrb[0].mxu0 %v2700
      %v2886 = vpop.f32.mrb[0].mxu0
      %v2887 = vadd.f32 0.0, %v2886
      %v2888 = vpop.f32.mrb[0].mxu0
      %v2889 = vpop.f32.mrb[0].mxu0
      %v2890 = vadd.f32 0.0, %v2889
      %v2891 = vpop.f32.mrb[0].mxu0
      %2892 = vmatprep.mubr.bf16.mxu0 0
      %2893 = vmatmul.mubr.bf16.gmra.mrb[0].mxu0 %v2701
      %v2894 = vpop.f32.mrb[0].mxu0
      %v2895 = vadd.f32 0.0, %v2894
      %v2896 = vpop.f32.mrb[0].mxu0
      %v2897 = vpop.f32.mrb[0].mxu0
      %v2898 = vadd.f32 0.0, %v2897
      %v2899 = vpop.f32.mrb[0].mxu0
      %2900 = vmatprep.mubr.bf16.mxu0 0
      %2901 = vmatmul.mubr.bf16.gmra.mrb[0].mxu0 %v2702
      %v2902 = vpop.f32.mrb[0].mxu0
      %v2903 = vadd.f32 0.0, %v2902
      %v2904 = vpop.f32.mrb[0].mxu0
      %v2905 = vpop.f32.mrb[0].mxu0
      %v2906 = vadd.f32 0.0, %v2905
      %v2907 = vpop.f32.mrb[0].mxu0
      %2908 = vmatprep.mubr.bf16.mxu0 0
      %2909 = vmatmul.mubr.bf16.gmra.mrb[0].mxu0 %v2703
      %v2910 = vpop.f32.mrb[0].mxu0
      %v2911 = vadd.f32 0.0, %v2910
      %v2912 = vpop.f32.mrb[0].mxu0
      %v2913 = vpop.f32.mrb[0].mxu0
      %v2914 = vadd.f32 0.0, %v2913
      %v2915 = vpop.f32.mrb[0].mxu0
      %2916 = vmatprep.mubr.bf16.mxu0 0
      %2917 = vmatmul.mubr.bf16.gmra.mrb[0].mxu0 %v2704
      %v2918 = vpop.f32.mrb[0].mxu0
      %v2919 = vadd.f32 0.0, %v2918
      %v2920 = vpop.f32.mrb[0].mxu0
      %v2921 = vpop.f32.mrb[0].mxu0
      %v2922 = vadd.f32 0.0, %v2921
      %v2923 = vpop.f32.mrb[0].mxu0
      %2924 = vmatprep.mubr.bf16.mxu0 0
      %2925 = vmatmul.mubr.bf16.gmra.mrb[0].mxu0 %v2705
      %v2926 = vpop.f32.mrb[0].mxu0
      %v2927 = vadd.f32 0.0, %v2926
      %v2928 = vpop.f32.mrb[0].mxu0
      %v2929 = vpop.f32.mrb[0].mxu0
      %v2930 = vadd.f32 0.0, %v2929
      %v2931 = vpop.f32.mrb[0].mxu0
      %2932 = vmatprep.mubr.bf16.mxu0 0
      %2933 = vmatmul.mubr.bf16.gmra.mrb[0].mxu0 %v2706
      %v2934 = vpop.f32.mrb[0].mxu0
      %v2935 = vadd.f32 0.0, %v2934
      %v2936 = vpop.f32.mrb[0].mxu0
      %v2937 = vpop.f32.mrb[0].mxu0
      %v2938 = vadd.f32 0.0, %v2937
      %v2939 = vpop.f32.mrb[0].mxu0
      %2940 = vmatprep.mubr.bf16.mxu0 0
      %2941 = vmatmul.mubr.bf16.gmra.mrb[0].mxu0 %v2707
      %v2942 = vpop.f32.mrb[0].mxu0
      %v2943 = vadd.f32 0.0, %v2942
      %v2944 = vpop.f32.mrb[0].mxu0
      %v2945 = vpop.f32.mrb[0].mxu0
      %v2946 = vadd.f32 0.0, %v2945
      %v2947 = vpop.f32.mrb[0].mxu0
      %2948 = vmatprep.mubr.bf16.mxu0 0
      %2949 = vmatmul.mubr.bf16.gmra.mrb[0].mxu0 %v2708
      %v2950 = vpop.f32.mrb[0].mxu0
      %v2951 = vadd.f32 0.0, %v2950
      %v2952 = vpop.f32.mrb[0].mxu0
      %v2953 = vpop.f32.mrb[0].mxu0
      %v2954 = vadd.f32 0.0, %v2953
      %v2955 = vpop.f32.mrb[0].mxu0
      %2956 = vmatprep.mubr.bf16.mxu0 0
      %2957 = vmatmul.mubr.bf16.gmra.mrb[0].mxu0 %v2709
      %v2958 = vpop.f32.mrb[0].mxu0
      %v2959 = vadd.f32 0.0, %v2958
      %v2960 = vpop.f32.mrb[0].mxu0
      %v2961 = vpop.f32.mrb[0].mxu0
      %v2962 = vadd.f32 0.0, %v2961
      %v2963 = vpop.f32.mrb[0].mxu0
      %2964 = vmatprep.mubr.bf16.mxu0 0
      %2965 = vmatmul.mubr.bf16.gmra.mrb[0].mxu0 %v2710
      %v2966 = vpop.f32.mrb[0].mxu0
      %v2967 = vadd.f32 0.0, %v2966
      %v2968 = vpop.f32.mrb[0].mxu0
      %v2969 = vpop.f32.mrb[0].mxu0
      %v2970 = vadd.f32 0.0, %v2969
      %v2971 = vpop.f32.mrb[0].mxu0
      %2972 = vmatprep.mubr.bf16.mxu0 0
      %2973 = vmatmul.mubr.bf16.gmra.mrb[0].mxu0 %v2711
      %v2974 = vpop.f32.mrb[0].mxu0
      %v2975 = vadd.f32 0.0, %v2974
      %v2976 = vpop.f32.mrb[0].mxu0
      %v2977 = vpop.f32.mrb[0].mxu0
      %v2978 = vadd.f32 0.0, %v2977
      %v2979 = vpop.f32.mrb[0].mxu0
      %2980 = vmatprep.mubr.bf16.mxu0 0
      %2981 = vmatmul.mubr.bf16.gmra.mrb[0].mxu0 %v2712
      %v2982 = vpop.f32.mrb[0].mxu0
      %v2983 = vadd.f32 0.0, %v2982
      %v2984 = vpop.f32.mrb[0].mxu0
      %v2985 = vpop.f32.mrb[0].mxu0
      %v2986 = vadd.f32 0.0, %v2985
      %v2987 = vpop.f32.mrb[0].mxu0
      %2988 = vmatprep.mubr.bf16.mxu0 0
      %2989 = vmatmul.mubr.bf16.gmra.mrb[0].mxu0 %v2713
      %v2990 = vpop.f32.mrb[0].mxu0
      %v2991 = vadd.f32 0.0, %v2990
      %v2992 = vpop.f32.mrb[0].mxu0
      %v2993 = vpop.f32.mrb[0].mxu0
      %v2994 = vadd.f32 0.0, %v2993
      %v2995 = vpop.f32.mrb[0].mxu0
      %2996 = vmatprep.mubr.bf16.mxu0 0
      %2997 = vmatmul.mubr.bf16.gmra.mrb[0].mxu0 %v2714
      %v2998 = vpop.f32.mrb[0].mxu0
      %v2999 = vadd.f32 0.0, %v2998
      %v3000 = vpop.f32.mrb[0].mxu0
      %v3001 = vpop.f32.mrb[0].mxu0
      %v3002 = vadd.f32 0.0, %v3001
      %v3003 = vpop.f32.mrb[0].mxu0
      %3004 = vdwg.mxu0
      %v3005 = vadd.f32 %v2595, %v2815
      %v3006 = vadd.f32 %v2596, %v2818
      %v3007 = vadd.f32 %v2597, %v2823
      %v3008 = vadd.f32 %v2598, %v2826
      %v3009 = vadd.f32 %v2599, %v2831
      %v3010 = vadd.f32 %v2600, %v2834
      %v3011 = vadd.f32 %v2601, %v2839
      %v3012 = vadd.f32 %v2602, %v2842
      %v3013 = vadd.f32 %v2603, %v2847
      %v3014 = vadd.f32 %v2604, %v2850
      %v3015 = vadd.f32 %v2605, %v2855
      %v3016 = vadd.f32 %v2606, %v2858
      %v3017 = vadd.f32 %v2607, %v2863
      %v3018 = vadd.f32 %v2608, %v2866
      %v3019 = vadd.f32 %v2609, %v2871
      %v3020 = vadd.f32 %v2610, %v2874
      %v3021 = vadd.f32 %v2611, %v2879
      %v3022 = vadd.f32 %v2612, %v2882
      %v3023 = vadd.f32 %v2613, %v2887
      %v3024 = vadd.f32 %v2614, %v2890
      %v3025 = vadd.f32 %v2615, %v2895
      %v3026 = vadd.f32 %v2616, %v2898
      %v3027 = vadd.f32 %v2617, %v2903
      %v3028 = vadd.f32 %v2618, %v2906
      %v3029 = vadd.f32 %v2619, %v2911
      %v3030 = vadd.f32 %v2620, %v2914
      %v3031 = vadd.f32 %v2621, %v2919
      %v3032 = vadd.f32 %v2622, %v2922
      %v3033 = vadd.f32 %v2623, %v2927
      %v3034 = vadd.f32 %v2624, %v2930
      %v3035 = vadd.f32 %v2625, %v2935
      %v3036 = vadd.f32 %v2626, %v2938
      %v3037 = vadd.f32 %v2627, %v2943
      %v3038 = vadd.f32 %v2628, %v2946
      %v3039 = vadd.f32 %v2629, %v2951
      %v3040 = vadd.f32 %v2630, %v2954
      %v3041 = vadd.f32 %v2631, %v2959
      %v3042 = vadd.f32 %v2632, %v2962
      %v3043 = vadd.f32 %v2633, %v2967
      %v3044 = vadd.f32 %v2634, %v2970
      %v3045 = vadd.f32 %v2635, %v2975
      %v3046 = vadd.f32 %v2636, %v2978
      %v3047 = vadd.f32 %v2637, %v2983
      %v3048 = vadd.f32 %v2638, %v2986
      %v3049 = vadd.f32 %v2639, %v2991
      %v3050 = vadd.f32 %v2640, %v2994
      %v3051 = vadd.f32 %v2641, %v2999
      %v3052 = vadd.f32 %v2642, %v3002
      %v3053 = vld [vmem:[#allocation2 + $0x19] sm:$0xff]
      %v3054 = vld [vmem:[#allocation2 + $0x21] sm:$0xff]
      %v3055 = vld [vmem:[#allocation2 + $0x29] sm:$0xff]
      %v3056 = vld [vmem:[#allocation2 + $0x31] sm:$0xff]
      %v3057 = vld [vmem:[#allocation2 + $0x39] sm:$0xff]
      %v3058 = vld [vmem:[#allocation2 + $0x41] sm:$0xff]
      %v3059 = vld [vmem:[#allocation2 + $0x49] sm:$0xff]
      %v3060 = vld [vmem:[#allocation2 + $0x51] sm:$0xff]
      %v3061 = vld [vmem:[#allocation2 + $0x59] sm:$0xff]
      %v3062 = vld [vmem:[#allocation2 + $0x61] sm:$0xff]
      %v3063 = vld [vmem:[#allocation2 + $0x69] sm:$0xff]
      %v3064 = vld [vmem:[#allocation2 + $0x71] sm:$0xff]
      %v3065 = vld [vmem:[#allocation2 + $0x79] sm:$0xff]
      %v3066 = vld [vmem:[#allocation2 + $0x81] sm:$0xff]
      %v3067 = vld [vmem:[#allocation2 + $0x89] sm:$0xff]
      %v3068 = vld [vmem:[#allocation2 + $0x91] sm:$0xff]
      %v3069 = vld [vmem:[#allocation2 + $0x99] sm:$0xff]
      %v3070 = vld [vmem:[#allocation2 + $0xa1] sm:$0xff]
      %v3071 = vld [vmem:[#allocation2 + $0xa9] sm:$0xff]
      %v3072 = vld [vmem:[#allocation2 + $0xb1] sm:$0xff]
      %v3073 = vld [vmem:[#allocation2 + $0xb9] sm:$0xff]
      %v3074 = vld [vmem:[#allocation2 + $0xc1] sm:$0xff]
      %v3075 = vld [vmem:[#allocation2 + $0xc9] sm:$0xff]
      %v3076 = vld [vmem:[#allocation2 + $0xd1] sm:$0xff]
      %v3077 = vld [vmem:[#allocation2 + $0xd9] sm:$0xff]
      %v3078 = vld [vmem:[#allocation2 + $0xe1] sm:$0xff]
      %v3079 = vld [vmem:[#allocation2 + $0xe9] sm:$0xff]
      %v3080 = vld [vmem:[#allocation2 + $0xf1] sm:$0xff]
      %v3081 = vld [vmem:[#allocation2 + $0xf9] sm:$0xff]
      %v3082 = vld [vmem:[#allocation2 + $0x101] sm:$0xff]
      %v3083 = vld [vmem:[#allocation2 + $0x109] sm:$0xff]
      %v3084 = vld [vmem:[#allocation2 + $0x111] sm:$0xff]
      %v3085 = vld [vmem:[#allocation2 + $0x119] sm:$0xff]
      %v3086 = vld [vmem:[#allocation2 + $0x121] sm:$0xff]
      %v3087 = vld [vmem:[#allocation2 + $0x129] sm:$0xff]
      %v3088 = vld [vmem:[#allocation2 + $0x131] sm:$0xff]
      %v3089 = vld [vmem:[#allocation2 + $0x139] sm:$0xff]
      %v3090 = vld [vmem:[#allocation2 + $0x141] sm:$0xff]
      %v3091 = vld [vmem:[#allocation2 + $0x149] sm:$0xff]
      %v3092 = vld [vmem:[#allocation2 + $0x151] sm:$0xff]
      %v3093 = vld [vmem:[#allocation2 + $0x159] sm:$0xff]
      %v3094 = vld [vmem:[#allocation2 + $0x161] sm:$0xff]
      %v3095 = vld [vmem:[#allocation2 + $0x169] sm:$0xff]
      %v3096 = vld [vmem:[#allocation2 + $0x171] sm:$0xff]
      %v3097 = vld [vmem:[#allocation2 + $0x179] sm:$0xff]
      %v3098 = vld [vmem:[#allocation2 + $0x181] sm:$0xff]
      %v3099 = vld [vmem:[#allocation2 + $0x189] sm:$0xff]
      %v3100 = vld [vmem:[#allocation2 + $0x191] sm:$0xff]
      %v3101 = vpack.c.bf16 %v3054, %v3053
      %v3102 = vpack.c.bf16 %v3056, %v3055
      %v3103 = vpack.c.bf16 %v3058, %v3057
      %v3104 = vpack.c.bf16 %v3060, %v3059
      %v3105 = vpack.c.bf16 %v3062, %v3061
      %v3106 = vpack.c.bf16 %v3064, %v3063
      %v3107 = vpack.c.bf16 %v3066, %v3065
      %v3108 = vpack.c.bf16 %v3068, %v3067
      %v3109 = vpack.c.bf16 %v3070, %v3069
      %v3110 = vpack.c.bf16 %v3072, %v3071
      %v3111 = vpack.c.bf16 %v3074, %v3073
      %v3112 = vpack.c.bf16 %v3076, %v3075
      %v3113 = vpack.c.bf16 %v3078, %v3077
      %v3114 = vpack.c.bf16 %v3080, %v3079
      %v3115 = vpack.c.bf16 %v3082, %v3081
      %v3116 = vpack.c.bf16 %v3084, %v3083
      %v3117 = vpack.c.bf16 %v3086, %v3085
      %v3118 = vpack.c.bf16 %v3088, %v3087
      %v3119 = vpack.c.bf16 %v3090, %v3089
      %v3120 = vpack.c.bf16 %v3092, %v3091
      %v3121 = vpack.c.bf16 %v3094, %v3093
      %v3122 = vpack.c.bf16 %v3096, %v3095
      %v3123 = vpack.c.bf16 %v3098, %v3097
      %v3124 = vpack.c.bf16 %v3100, %v3099
      %s3125 = scalar_lea.vmem %s1, 256
      %v3126 = vld [vmem:[%s3125] sm:$0xf]
      %v3127 = vld [vmem:[%s3125 + $0x4] sm:$0xf]
      %v3128 = vld [vmem:[%s3125 + $0x8] sm:$0xf]
      %v3129 = vld [vmem:[%s3125 + $0xc] sm:$0xf]
      %v3130 = vld [vmem:[%s3125 + $0x10] sm:$0xf]
      %v3131 = vld [vmem:[%s3125 + $0x14] sm:$0xf]
      %v3132 = vld [vmem:[%s3125 + $0x18] sm:$0xf]
      %v3133 = vld [vmem:[%s3125 + $0x1c] sm:$0xf]
      %v3134 = vld [vmem:[%s3125 + $0x20] sm:$0xf]
      %v3135 = vld [vmem:[%s3125 + $0x24] sm:$0xf]
      %v3136 = vld [vmem:[%s3125 + $0x28] sm:$0xf]
      %v3137 = vld [vmem:[%s3125 + $0x2c] sm:$0xf]
      %v3138 = vld [vmem:[%s3125 + $0x30] sm:$0xf]
      %v3139 = vld [vmem:[%s3125 + $0x34] sm:$0xf]
      %v3140 = vld [vmem:[%s3125 + $0x38] sm:$0xf]
      %v3141 = vld [vmem:[%s3125 + $0x3c] sm:$0xf]
      %v3158 = vunpack.c.l.b16 %v3126
      %v3159 = vunpack.c.l.b16 %v3127
      %v3160 = vunpack.c.l.b16 %v3128
      %v3161 = vunpack.c.l.b16 %v3129
      %v3162 = vunpack.c.l.b16 %v3130
      %v3163 = vunpack.c.l.b16 %v3131
      %v3164 = vunpack.c.l.b16 %v3132
      %v3165 = vunpack.c.l.b16 %v3133
      %v3166 = vunpack.c.l.b16 %v3134
      %v3167 = vunpack.c.l.b16 %v3135
      %v3168 = vunpack.c.l.b16 %v3136
      %v3169 = vunpack.c.l.b16 %v3137
      %v3170 = vunpack.c.l.b16 %v3138
      %v3171 = vunpack.c.l.b16 %v3139
      %v3172 = vunpack.c.l.b16 %v3140
      %v3173 = vunpack.c.l.b16 %v3141
      %v3174 = vpack.c.b16 %v3159, %v3158
      %v3175 = vpack.c.b16 %v3161, %v3160
      %v3176 = vpack.c.b16 %v3163, %v3162
      %v3177 = vpack.c.b16 %v3165, %v3164
      %v3178 = vpack.c.b16 %v3167, %v3166
      %v3179 = vpack.c.b16 %v3169, %v3168
      %v3180 = vpack.c.b16 %v3171, %v3170
      %v3181 = vpack.c.b16 %v3173, %v3172
      %3190 = vmatprep.subr.bf16.mxu0 0
      %3191 = vmatpush1.bf16.msra.mxu0 %v3174
      %3192 = vmatprep.subr.bf16.mxu0 0
      %3193 = vmatpush1.bf16.msra.mxu0 %v3175
      %3194 = vmatprep.subr.bf16.mxu0 0
      %3195 = vmatpush1.bf16.msra.mxu0 %v3176
      %3196 = vmatprep.subr.bf16.mxu0 0
      %3197 = vmatpush1.bf16.msra.mxu0 %v3177
      %3198 = vmatprep.subr.bf16.mxu0 0
      %3199 = vmatpush1.bf16.msra.mxu0 %v3178
      %3200 = vmatprep.subr.bf16.mxu0 0
      %3201 = vmatpush1.bf16.msra.mxu0 %v3179
      %3202 = vmatprep.subr.bf16.mxu0 0
      %3203 = vmatpush1.bf16.msra.mxu0 %v3180
      %3204 = vmatprep.subr.bf16.mxu0 0
      %3205 = vmatpush1.bf16.msra.mxu0 %v3181
      %3206 = vmatprep.subr.bf16.mxu0 0
      %3207 = vmatpush1.bf16.msra.mxu0 0
      %3208 = vmatprep.subr.bf16.mxu0 0
      %3209 = vmatpush1.bf16.msra.mxu0 0
      %3210 = vmatprep.subr.bf16.mxu0 0
      %3211 = vmatpush1.bf16.msra.mxu0 0
      %3212 = vmatprep.subr.bf16.mxu0 0
      %3213 = vmatpush1.bf16.msra.mxu0 0
      %3214 = vmatprep.subr.bf16.mxu0 0
      %3215 = vmatpush1.bf16.msra.mxu0 0
      %3216 = vmatprep.subr.bf16.mxu0 0
      %3217 = vmatpush1.bf16.msra.mxu0 0
      %3218 = vmatprep.subr.bf16.mxu0 0
      %3219 = vmatpush1.bf16.msra.mxu0 0
      %3220 = vmatprep.subr.bf16.mxu0 0
      %3221 = vmatpush1.bf16.msra.mxu0 0
      %3222 = vmatprep.mubr.bf16.mxu0 0
      %3223 = vmatmul.mubr.bf16.gmra.mrb[0].mxu0 %v3101
      %v3224 = vpop.f32.mrb[0].mxu0
      %v3225 = vadd.f32 0.0, %v3224
      %v3226 = vpop.f32.mrb[0].mxu0
      %v3227 = vpop.f32.mrb[0].mxu0
      %v3228 = vadd.f32 0.0, %v3227
      %v3229 = vpop.f32.mrb[0].mxu0
      %3230 = vmatprep.mubr.bf16.mxu0 0
      %3231 = vmatmul.mubr.bf16.gmra.mrb[0].mxu0 %v3102
      %v3232 = vpop.f32.mrb[0].mxu0
      %v3233 = vadd.f32 0.0, %v3232
      %v3234 = vpop.f32.mrb[0].mxu0
      %v3235 = vpop.f32.mrb[0].mxu0
      %v3236 = vadd.f32 0.0, %v3235
      %v3237 = vpop.f32.mrb[0].mxu0
      %3238 = vmatprep.mubr.bf16.mxu0 0
      %3239 = vmatmul.mubr.bf16.gmra.mrb[0].mxu0 %v3103
      %v3240 = vpop.f32.mrb[0].mxu0
      %v3241 = vadd.f32 0.0, %v3240
      %v3242 = vpop.f32.mrb[0].mxu0
      %v3243 = vpop.f32.mrb[0].mxu0
      %v3244 = vadd.f32 0.0, %v3243
      %v3245 = vpop.f32.mrb[0].mxu0
      %3246 = vmatprep.mubr.bf16.mxu0 0
      %3247 = vmatmul.mubr.bf16.gmra.mrb[0].mxu0 %v3104
      %v3248 = vpop.f32.mrb[0].mxu0
      %v3249 = vadd.f32 0.0, %v3248
      %v3250 = vpop.f32.mrb[0].mxu0
      %v3251 = vpop.f32.mrb[0].mxu0
      %v3252 = vadd.f32 0.0, %v3251
      %v3253 = vpop.f32.mrb[0].mxu0
      %3254 = vmatprep.mubr.bf16.mxu0 0
      %3255 = vmatmul.mubr.bf16.gmra.mrb[0].mxu0 %v3105
      %v3256 = vpop.f32.mrb[0].mxu0
      %v3257 = vadd.f32 0.0, %v3256
      %v3258 = vpop.f32.mrb[0].mxu0
      %v3259 = vpop.f32.mrb[0].mxu0
      %v3260 = vadd.f32 0.0, %v3259
      %v3261 = vpop.f32.mrb[0].mxu0
      %3262 = vmatprep.mubr.bf16.mxu0 0
      %3263 = vmatmul.mubr.bf16.gmra.mrb[0].mxu0 %v3106
      %v3264 = vpop.f32.mrb[0].mxu0
      %v3265 = vadd.f32 0.0, %v3264
      %v3266 = vpop.f32.mrb[0].mxu0
      %v3267 = vpop.f32.mrb[0].mxu0
      %v3268 = vadd.f32 0.0, %v3267
      %v3269 = vpop.f32.mrb[0].mxu0
      %3270 = vmatprep.mubr.bf16.mxu0 0
      %3271 = vmatmul.mubr.bf16.gmra.mrb[0].mxu0 %v3107
      %v3272 = vpop.f32.mrb[0].mxu0
      %v3273 = vadd.f32 0.0, %v3272
      %v3274 = vpop.f32.mrb[0].mxu0
      %v3275 = vpop.f32.mrb[0].mxu0
      %v3276 = vadd.f32 0.0, %v3275
      %v3277 = vpop.f32.mrb[0].mxu0
      %3278 = vmatprep.mubr.bf16.mxu0 0
      %3279 = vmatmul.mubr.bf16.gmra.mrb[0].mxu0 %v3108
      %v3280 = vpop.f32.mrb[0].mxu0
      %v3281 = vadd.f32 0.0, %v3280
      %v3282 = vpop.f32.mrb[0].mxu0
      %v3283 = vpop.f32.mrb[0].mxu0
      %v3284 = vadd.f32 0.0, %v3283
      %v3285 = vpop.f32.mrb[0].mxu0
      %3286 = vmatprep.mubr.bf16.mxu0 0
      %3287 = vmatmul.mubr.bf16.gmra.mrb[0].mxu0 %v3109
      %v3288 = vpop.f32.mrb[0].mxu0
      %v3289 = vadd.f32 0.0, %v3288
      %v3290 = vpop.f32.mrb[0].mxu0
      %v3291 = vpop.f32.mrb[0].mxu0
      %v3292 = vadd.f32 0.0, %v3291
      %v3293 = vpop.f32.mrb[0].mxu0
      %3294 = vmatprep.mubr.bf16.mxu0 0
      %3295 = vmatmul.mubr.bf16.gmra.mrb[0].mxu0 %v3110
      %v3296 = vpop.f32.mrb[0].mxu0
      %v3297 = vadd.f32 0.0, %v3296
      %v3298 = vpop.f32.mrb[0].mxu0
      %v3299 = vpop.f32.mrb[0].mxu0
      %v3300 = vadd.f32 0.0, %v3299
      %v3301 = vpop.f32.mrb[0].mxu0
      %3302 = vmatprep.mubr.bf16.mxu0 0
      %3303 = vmatmul.mubr.bf16.gmra.mrb[0].mxu0 %v3111
      %v3304 = vpop.f32.mrb[0].mxu0
      %v3305 = vadd.f32 0.0, %v3304
      %v3306 = vpop.f32.mrb[0].mxu0
      %v3307 = vpop.f32.mrb[0].mxu0
      %v3308 = vadd.f32 0.0, %v3307
      %v3309 = vpop.f32.mrb[0].mxu0
      %3310 = vmatprep.mubr.bf16.mxu0 0
      %3311 = vmatmul.mubr.bf16.gmra.mrb[0].mxu0 %v3112
      %v3312 = vpop.f32.mrb[0].mxu0
      %v3313 = vadd.f32 0.0, %v3312
      %v3314 = vpop.f32.mrb[0].mxu0
      %v3315 = vpop.f32.mrb[0].mxu0
      %v3316 = vadd.f32 0.0, %v3315
      %v3317 = vpop.f32.mrb[0].mxu0
      %3318 = vmatprep.mubr.bf16.mxu0 0
      %3319 = vmatmul.mubr.bf16.gmra.mrb[0].mxu0 %v3113
      %v3320 = vpop.f32.mrb[0].mxu0
      %v3321 = vadd.f32 0.0, %v3320
      %v3322 = vpop.f32.mrb[0].mxu0
      %v3323 = vpop.f32.mrb[0].mxu0
      %v3324 = vadd.f32 0.0, %v3323
      %v3325 = vpop.f32.mrb[0].mxu0
      %3326 = vmatprep.mubr.bf16.mxu0 0
      %3327 = vmatmul.mubr.bf16.gmra.mrb[0].mxu0 %v3114
      %v3328 = vpop.f32.mrb[0].mxu0
      %v3329 = vadd.f32 0.0, %v3328
      %v3330 = vpop.f32.mrb[0].mxu0
      %v3331 = vpop.f32.mrb[0].mxu0
      %v3332 = vadd.f32 0.0, %v3331
      %v3333 = vpop.f32.mrb[0].mxu0
      %3334 = vmatprep.mubr.bf16.mxu0 0
      %3335 = vmatmul.mubr.bf16.gmra.mrb[0].mxu0 %v3115
      %v3336 = vpop.f32.mrb[0].mxu0
      %v3337 = vadd.f32 0.0, %v3336
      %v3338 = vpop.f32.mrb[0].mxu0
      %v3339 = vpop.f32.mrb[0].mxu0
      %v3340 = vadd.f32 0.0, %v3339
      %v3341 = vpop.f32.mrb[0].mxu0
      %3342 = vmatprep.mubr.bf16.mxu0 0
      %3343 = vmatmul.mubr.bf16.gmra.mrb[0].mxu0 %v3116
      %v3344 = vpop.f32.mrb[0].mxu0
      %v3345 = vadd.f32 0.0, %v3344
      %v3346 = vpop.f32.mrb[0].mxu0
      %v3347 = vpop.f32.mrb[0].mxu0
      %v3348 = vadd.f32 0.0, %v3347
      %v3349 = vpop.f32.mrb[0].mxu0
      %3350 = vmatprep.mubr.bf16.mxu0 0
      %3351 = vmatmul.mubr.bf16.gmra.mrb[0].mxu0 %v3117
      %v3352 = vpop.f32.mrb[0].mxu0
      %v3353 = vadd.f32 0.0, %v3352
      %v3354 = vpop.f32.mrb[0].mxu0
      %v3355 = vpop.f32.mrb[0].mxu0
      %v3356 = vadd.f32 0.0, %v3355
      %v3357 = vpop.f32.mrb[0].mxu0
      %3358 = vmatprep.mubr.bf16.mxu0 0
      %3359 = vmatmul.mubr.bf16.gmra.mrb[0].mxu0 %v3118
      %v3360 = vpop.f32.mrb[0].mxu0
      %v3361 = vadd.f32 0.0, %v3360
      %v3362 = vpop.f32.mrb[0].mxu0
      %v3363 = vpop.f32.mrb[0].mxu0
      %v3364 = vadd.f32 0.0, %v3363
      %v3365 = vpop.f32.mrb[0].mxu0
      %3366 = vmatprep.mubr.bf16.mxu0 0
      %3367 = vmatmul.mubr.bf16.gmra.mrb[0].mxu0 %v3119
      %v3368 = vpop.f32.mrb[0].mxu0
      %v3369 = vadd.f32 0.0, %v3368
      %v3370 = vpop.f32.mrb[0].mxu0
      %v3371 = vpop.f32.mrb[0].mxu0
      %v3372 = vadd.f32 0.0, %v3371
      %v3373 = vpop.f32.mrb[0].mxu0
      %3374 = vmatprep.mubr.bf16.mxu0 0
      %3375 = vmatmul.mubr.bf16.gmra.mrb[0].mxu0 %v3120
      %v3376 = vpop.f32.mrb[0].mxu0
      %v3377 = vadd.f32 0.0, %v3376
      %v3378 = vpop.f32.mrb[0].mxu0
      %v3379 = vpop.f32.mrb[0].mxu0
      %v3380 = vadd.f32 0.0, %v3379
      %v3381 = vpop.f32.mrb[0].mxu0
      %3382 = vmatprep.mubr.bf16.mxu0 0
      %3383 = vmatmul.mubr.bf16.gmra.mrb[0].mxu0 %v3121
      %v3384 = vpop.f32.mrb[0].mxu0
      %v3385 = vadd.f32 0.0, %v3384
      %v3386 = vpop.f32.mrb[0].mxu0
      %v3387 = vpop.f32.mrb[0].mxu0
      %v3388 = vadd.f32 0.0, %v3387
      %v3389 = vpop.f32.mrb[0].mxu0
      %3390 = vmatprep.mubr.bf16.mxu0 0
      %3391 = vmatmul.mubr.bf16.gmra.mrb[0].mxu0 %v3122
      %v3392 = vpop.f32.mrb[0].mxu0
      %v3393 = vadd.f32 0.0, %v3392
      %v3394 = vpop.f32.mrb[0].mxu0
      %v3395 = vpop.f32.mrb[0].mxu0
      %v3396 = vadd.f32 0.0, %v3395
      %v3397 = vpop.f32.mrb[0].mxu0
      %3398 = vmatprep.mubr.bf16.mxu0 0
      %3399 = vmatmul.mubr.bf16.gmra.mrb[0].mxu0 %v3123
      %v3400 = vpop.f32.mrb[0].mxu0
      %v3401 = vadd.f32 0.0, %v3400
      %v3402 = vpop.f32.mrb[0].mxu0
      %v3403 = vpop.f32.mrb[0].mxu0
      %v3404 = vadd.f32 0.0, %v3403
      %v3405 = vpop.f32.mrb[0].mxu0
      %3406 = vmatprep.mubr.bf16.mxu0 0
      %3407 = vmatmul.mubr.bf16.gmra.mrb[0].mxu0 %v3124
      %v3408 = vpop.f32.mrb[0].mxu0
      %v3409 = vadd.f32 0.0, %v3408
      %v3410 = vpop.f32.mrb[0].mxu0
      %v3411 = vpop.f32.mrb[0].mxu0
      %v3412 = vadd.f32 0.0, %v3411
      %v3413 = vpop.f32.mrb[0].mxu0
      %3414 = vdwg.mxu0
      %v3415 = vadd.f32 %v3005, %v3225
      %v3416 = vadd.f32 %v3006, %v3228
      %v3417 = vadd.f32 %v3007, %v3233
      %v3418 = vadd.f32 %v3008, %v3236
      %v3419 = vadd.f32 %v3009, %v3241
      %v3420 = vadd.f32 %v3010, %v3244
      %v3421 = vadd.f32 %v3011, %v3249
      %v3422 = vadd.f32 %v3012, %v3252
      %v3423 = vadd.f32 %v3013, %v3257
      %v3424 = vadd.f32 %v3014, %v3260
      %v3425 = vadd.f32 %v3015, %v3265
      %v3426 = vadd.f32 %v3016, %v3268
      %v3427 = vadd.f32 %v3017, %v3273
      %v3428 = vadd.f32 %v3018, %v3276
      %v3429 = vadd.f32 %v3019, %v3281
      %v3430 = vadd.f32 %v3020, %v3284
      %v3431 = vadd.f32 %v3021, %v3289
      %v3432 = vadd.f32 %v3022, %v3292
      %v3433 = vadd.f32 %v3023, %v3297
      %v3434 = vadd.f32 %v3024, %v3300
      %v3435 = vadd.f32 %v3025, %v3305
      %v3436 = vadd.f32 %v3026, %v3308
      %v3437 = vadd.f32 %v3027, %v3313
      %v3438 = vadd.f32 %v3028, %v3316
      %v3439 = vadd.f32 %v3029, %v3321
      %v3440 = vadd.f32 %v3030, %v3324
      %v3441 = vadd.f32 %v3031, %v3329
      %v3442 = vadd.f32 %v3032, %v3332
      %v3443 = vadd.f32 %v3033, %v3337
      %v3444 = vadd.f32 %v3034, %v3340
      %v3445 = vadd.f32 %v3035, %v3345
      %v3446 = vadd.f32 %v3036, %v3348
      %v3447 = vadd.f32 %v3037, %v3353
      %v3448 = vadd.f32 %v3038, %v3356
      %v3449 = vadd.f32 %v3039, %v3361
      %v3450 = vadd.f32 %v3040, %v3364
      %v3451 = vadd.f32 %v3041, %v3369
      %v3452 = vadd.f32 %v3042, %v3372
      %v3453 = vadd.f32 %v3043, %v3377
      %v3454 = vadd.f32 %v3044, %v3380
      %v3455 = vadd.f32 %v3045, %v3385
      %v3456 = vadd.f32 %v3046, %v3388
      %v3457 = vadd.f32 %v3047, %v3393
      %v3458 = vadd.f32 %v3048, %v3396
      %v3459 = vadd.f32 %v3049, %v3401
      %v3460 = vadd.f32 %v3050, %v3404
      %v3461 = vadd.f32 %v3051, %v3409
      %v3462 = vadd.f32 %v3052, %v3412
      %v3463 = vld [vmem:[#allocation2 + $0x1a] sm:$0xff]
      %v3464 = vld [vmem:[#allocation2 + $0x22] sm:$0xff]
      %v3465 = vld [vmem:[#allocation2 + $0x2a] sm:$0xff]
      %v3466 = vld [vmem:[#allocation2 + $0x32] sm:$0xff]
      %v3467 = vld [vmem:[#allocation2 + $0x3a] sm:$0xff]
      %v3468 = vld [vmem:[#allocation2 + $0x42] sm:$0xff]
      %v3469 = vld [vmem:[#allocation2 + $0x4a] sm:$0xff]
      %v3470 = vld [vmem:[#allocation2 + $0x52] sm:$0xff]
      %v3471 = vld [vmem:[#allocation2 + $0x5a] sm:$0xff]
      %v3472 = vld [vmem:[#allocation2 + $0x62] sm:$0xff]
      %v3473 = vld [vmem:[#allocation2 + $0x6a] sm:$0xff]
      %v3474 = vld [vmem:[#allocation2 + $0x72] sm:$0xff]
      %v3475 = vld [vmem:[#allocation2 + $0x7a] sm:$0xff]
      %v3476 = vld [vmem:[#allocation2 + $0x82] sm:$0xff]
      %v3477 = vld [vmem:[#allocation2 + $0x8a] sm:$0xff]
      %v3478 = vld [vmem:[#allocation2 + $0x92] sm:$0xff]
      %v3479 = vld [vmem:[#allocation2 + $0x9a] sm:$0xff]
      %v3480 = vld [vmem:[#allocation2 + $0xa2] sm:$0xff]
      %v3481 = vld [vmem:[#allocation2 + $0xaa] sm:$0xff]
      %v3482 = vld [vmem:[#allocation2 + $0xb2] sm:$0xff]
      %v3483 = vld [vmem:[#allocation2 + $0xba] sm:$0xff]
      %v3484 = vld [vmem:[#allocation2 + $0xc2] sm:$0xff]
      %v3485 = vld [vmem:[#allocation2 + $0xca] sm:$0xff]
      %v3486 = vld [vmem:[#allocation2 + $0xd2] sm:$0xff]
      %v3487 = vld [vmem:[#allocation2 + $0xda] sm:$0xff]
      %v3488 = vld [vmem:[#allocation2 + $0xe2] sm:$0xff]
      %v3489 = vld [vmem:[#allocation2 + $0xea] sm:$0xff]
      %v3490 = vld [vmem:[#allocation2 + $0xf2] sm:$0xff]
      %v3491 = vld [vmem:[#allocation2 + $0xfa] sm:$0xff]
      %v3492 = vld [vmem:[#allocation2 + $0x102] sm:$0xff]
      %v3493 = vld [vmem:[#allocation2 + $0x10a] sm:$0xff]
      %v3494 = vld [vmem:[#allocation2 + $0x112] sm:$0xff]
      %v3495 = vld [vmem:[#allocation2 + $0x11a] sm:$0xff]
      %v3496 = vld [vmem:[#allocation2 + $0x122] sm:$0xff]
      %v3497 = vld [vmem:[#allocation2 + $0x12a] sm:$0xff]
      %v3498 = vld [vmem:[#allocation2 + $0x132] sm:$0xff]
      %v3499 = vld [vmem:[#allocation2 + $0x13a] sm:$0xff]
      %v3500 = vld [vmem:[#allocation2 + $0x142] sm:$0xff]
      %v3501 = vld [vmem:[#allocation2 + $0x14a] sm:$0xff]
      %v3502 = vld [vmem:[#allocation2 + $0x152] sm:$0xff]
      %v3503 = vld [vmem:[#allocation2 + $0x15a] sm:$0xff]
      %v3504 = vld [vmem:[#allocation2 + $0x162] sm:$0xff]
      %v3505 = vld [vmem:[#allocation2 + $0x16a] sm:$0xff]
      %v3506 = vld [vmem:[#allocation2 + $0x172] sm:$0xff]
      %v3507 = vld [vmem:[#allocation2 + $0x17a] sm:$0xff]
      %v3508 = vld [vmem:[#allocation2 + $0x182] sm:$0xff]
      %v3509 = vld [vmem:[#allocation2 + $0x18a] sm:$0xff]
      %v3510 = vld [vmem:[#allocation2 + $0x192] sm:$0xff]
      %v3511 = vpack.c.bf16 %v3464, %v3463
      %v3512 = vpack.c.bf16 %v3466, %v3465
      %v3513 = vpack.c.bf16 %v3468, %v3467
      %v3514 = vpack.c.bf16 %v3470, %v3469
      %v3515 = vpack.c.bf16 %v3472, %v3471
      %v3516 = vpack.c.bf16 %v3474, %v3473
      %v3517 = vpack.c.bf16 %v3476, %v3475
      %v3518 = vpack.c.bf16 %v3478, %v3477
      %v3519 = vpack.c.bf16 %v3480, %v3479
      %v3520 = vpack.c.bf16 %v3482, %v3481
      %v3521 = vpack.c.bf16 %v3484, %v3483
      %v3522 = vpack.c.bf16 %v3486, %v3485
      %v3523 = vpack.c.bf16 %v3488, %v3487
      %v3524 = vpack.c.bf16 %v3490, %v3489
      %v3525 = vpack.c.bf16 %v3492, %v3491
      %v3526 = vpack.c.bf16 %v3494, %v3493
      %v3527 = vpack.c.bf16 %v3496, %v3495
      %v3528 = vpack.c.bf16 %v3498, %v3497
      %v3529 = vpack.c.bf16 %v3500, %v3499
      %v3530 = vpack.c.bf16 %v3502, %v3501
      %v3531 = vpack.c.bf16 %v3504, %v3503
      %v3532 = vpack.c.bf16 %v3506, %v3505
      %v3533 = vpack.c.bf16 %v3508, %v3507
      %v3534 = vpack.c.bf16 %v3510, %v3509
      %s3535 = scalar_lea.vmem %s1, 320
      %v3536 = vld [vmem:[%s3535] sm:$0xf]
      %v3537 = vld [vmem:[%s3535 + $0x4] sm:$0xf]
      %v3538 = vld [vmem:[%s3535 + $0x8] sm:$0xf]
      %v3539 = vld [vmem:[%s3535 + $0xc] sm:$0xf]
      %v3540 = vld [vmem:[%s3535 + $0x10] sm:$0xf]
      %v3541 = vld [vmem:[%s3535 + $0x14] sm:$0xf]
      %v3542 = vld [vmem:[%s3535 + $0x18] sm:$0xf]
      %v3543 = vld [vmem:[%s3535 + $0x1c] sm:$0xf]
      %v3544 = vld [vmem:[%s3535 + $0x20] sm:$0xf]
      %v3545 = vld [vmem:[%s3535 + $0x24] sm:$0xf]
      %v3546 = vld [vmem:[%s3535 + $0x28] sm:$0xf]
      %v3547 = vld [vmem:[%s3535 + $0x2c] sm:$0xf]
      %v3548 = vld [vmem:[%s3535 + $0x30] sm:$0xf]
      %v3549 = vld [vmem:[%s3535 + $0x34] sm:$0xf]
      %v3550 = vld [vmem:[%s3535 + $0x38] sm:$0xf]
      %v3551 = vld [vmem:[%s3535 + $0x3c] sm:$0xf]
      %v3568 = vunpack.c.l.b16 %v3536
      %v3569 = vunpack.c.l.b16 %v3537
      %v3570 = vunpack.c.l.b16 %v3538
      %v3571 = vunpack.c.l.b16 %v3539
      %v3572 = vunpack.c.l.b16 %v3540
      %v3573 = vunpack.c.l.b16 %v3541
      %v3574 = vunpack.c.l.b16 %v3542
      %v3575 = vunpack.c.l.b16 %v3543
      %v3576 = vunpack.c.l.b16 %v3544
      %v3577 = vunpack.c.l.b16 %v3545
      %v3578 = vunpack.c.l.b16 %v3546
      %v3579 = vunpack.c.l.b16 %v3547
      %v3580 = vunpack.c.l.b16 %v3548
      %v3581 = vunpack.c.l.b16 %v3549
      %v3582 = vunpack.c.l.b16 %v3550
      %v3583 = vunpack.c.l.b16 %v3551
      %v3584 = vpack.c.b16 %v3569, %v3568
      %v3585 = vpack.c.b16 %v3571, %v3570
      %v3586 = vpack.c.b16 %v3573, %v3572
      %v3587 = vpack.c.b16 %v3575, %v3574
      %v3588 = vpack.c.b16 %v3577, %v3576
      %v3589 = vpack.c.b16 %v3579, %v3578
      %v3590 = vpack.c.b16 %v3581, %v3580
      %v3591 = vpack.c.b16 %v3583, %v3582
      %3600 = vmatprep.subr.bf16.mxu0 0
      %3601 = vmatpush1.bf16.msra.mxu0 %v3584
      %3602 = vmatprep.subr.bf16.mxu0 0
      %3603 = vmatpush1.bf16.msra.mxu0 %v3585
      %3604 = vmatprep.subr.bf16.mxu0 0
      %3605 = vmatpush1.bf16.msra.mxu0 %v3586
      %3606 = vmatprep.subr.bf16.mxu0 0
      %3607 = vmatpush1.bf16.msra.mxu0 %v3587
      %3608 = vmatprep.subr.bf16.mxu0 0
      %3609 = vmatpush1.bf16.msra.mxu0 %v3588
      %3610 = vmatprep.subr.bf16.mxu0 0
      %3611 = vmatpush1.bf16.msra.mxu0 %v3589
      %3612 = vmatprep.subr.bf16.mxu0 0
      %3613 = vmatpush1.bf16.msra.mxu0 %v3590
      %3614 = vmatprep.subr.bf16.mxu0 0
      %3615 = vmatpush1.bf16.msra.mxu0 %v3591
      %3616 = vmatprep.subr.bf16.mxu0 0
      %3617 = vmatpush1.bf16.msra.mxu0 0
      %3618 = vmatprep.subr.bf16.mxu0 0
      %3619 = vmatpush1.bf16.msra.mxu0 0
      %3620 = vmatprep.subr.bf16.mxu0 0
      %3621 = vmatpush1.bf16.msra.mxu0 0
      %3622 = vmatprep.subr.bf16.mxu0 0
      %3623 = vmatpush1.bf16.msra.mxu0 0
      %3624 = vmatprep.subr.bf16.mxu0 0
      %3625 = vmatpush1.bf16.msra.mxu0 0
      %3626 = vmatprep.subr.bf16.mxu0 0
      %3627 = vmatpush1.bf16.msra.mxu0 0
      %3628 = vmatprep.subr.bf16.mxu0 0
      %3629 = vmatpush1.bf16.msra.mxu0 0
      %3630 = vmatprep.subr.bf16.mxu0 0
      %3631 = vmatpush1.bf16.msra.mxu0 0
      %3632 = vmatprep.mubr.bf16.mxu0 0
      %3633 = vmatmul.mubr.bf16.gmra.mrb[0].mxu0 %v3511
      %v3634 = vpop.f32.mrb[0].mxu0
      %v3635 = vadd.f32 0.0, %v3634
      %v3636 = vpop.f32.mrb[0].mxu0
      %v3637 = vpop.f32.mrb[0].mxu0
      %v3638 = vadd.f32 0.0, %v3637
      %v3639 = vpop.f32.mrb[0].mxu0
      %3640 = vmatprep.mubr.bf16.mxu0 0
      %3641 = vmatmul.mubr.bf16.gmra.mrb[0].mxu0 %v3512
      %v3642 = vpop.f32.mrb[0].mxu0
      %v3643 = vadd.f32 0.0, %v3642
      %v3644 = vpop.f32.mrb[0].mxu0
      %v3645 = vpop.f32.mrb[0].mxu0
      %v3646 = vadd.f32 0.0, %v3645
      %v3647 = vpop.f32.mrb[0].mxu0
      %3648 = vmatprep.mubr.bf16.mxu0 0
      %3649 = vmatmul.mubr.bf16.gmra.mrb[0].mxu0 %v3513
      %v3650 = vpop.f32.mrb[0].mxu0
      %v3651 = vadd.f32 0.0, %v3650
      %v3652 = vpop.f32.mrb[0].mxu0
      %v3653 = vpop.f32.mrb[0].mxu0
      %v3654 = vadd.f32 0.0, %v3653
      %v3655 = vpop.f32.mrb[0].mxu0
      %3656 = vmatprep.mubr.bf16.mxu0 0
      %3657 = vmatmul.mubr.bf16.gmra.mrb[0].mxu0 %v3514
      %v3658 = vpop.f32.mrb[0].mxu0
      %v3659 = vadd.f32 0.0, %v3658
      %v3660 = vpop.f32.mrb[0].mxu0
      %v3661 = vpop.f32.mrb[0].mxu0
      %v3662 = vadd.f32 0.0, %v3661
      %v3663 = vpop.f32.mrb[0].mxu0
      %3664 = vmatprep.mubr.bf16.mxu0 0
      %3665 = vmatmul.mubr.bf16.gmra.mrb[0].mxu0 %v3515
      %v3666 = vpop.f32.mrb[0].mxu0
      %v3667 = vadd.f32 0.0, %v3666
      %v3668 = vpop.f32.mrb[0].mxu0
      %v3669 = vpop.f32.mrb[0].mxu0
      %v3670 = vadd.f32 0.0, %v3669
      %v3671 = vpop.f32.mrb[0].mxu0
      %3672 = vmatprep.mubr.bf16.mxu0 0
      %3673 = vmatmul.mubr.bf16.gmra.mrb[0].mxu0 %v3516
      %v3674 = vpop.f32.mrb[0].mxu0
      %v3675 = vadd.f32 0.0, %v3674
      %v3676 = vpop.f32.mrb[0].mxu0
      %v3677 = vpop.f32.mrb[0].mxu0
      %v3678 = vadd.f32 0.0, %v3677
      %v3679 = vpop.f32.mrb[0].mxu0
      %3680 = vmatprep.mubr.bf16.mxu0 0
      %3681 = vmatmul.mubr.bf16.gmra.mrb[0].mxu0 %v3517
      %v3682 = vpop.f32.mrb[0].mxu0
      %v3683 = vadd.f32 0.0, %v3682
      %v3684 = vpop.f32.mrb[0].mxu0
      %v3685 = vpop.f32.mrb[0].mxu0
      %v3686 = vadd.f32 0.0, %v3685
      %v3687 = vpop.f32.mrb[0].mxu0
      %3688 = vmatprep.mubr.bf16.mxu0 0
      %3689 = vmatmul.mubr.bf16.gmra.mrb[0].mxu0 %v3518
      %v3690 = vpop.f32.mrb[0].mxu0
      %v3691 = vadd.f32 0.0, %v3690
      %v3692 = vpop.f32.mrb[0].mxu0
      %v3693 = vpop.f32.mrb[0].mxu0
      %v3694 = vadd.f32 0.0, %v3693
      %v3695 = vpop.f32.mrb[0].mxu0
      %3696 = vmatprep.mubr.bf16.mxu0 0
      %3697 = vmatmul.mubr.bf16.gmra.mrb[0].mxu0 %v3519
      %v3698 = vpop.f32.mrb[0].mxu0
      %v3699 = vadd.f32 0.0, %v3698
      %v3700 = vpop.f32.mrb[0].mxu0
      %v3701 = vpop.f32.mrb[0].mxu0
      %v3702 = vadd.f32 0.0, %v3701
      %v3703 = vpop.f32.mrb[0].mxu0
      %3704 = vmatprep.mubr.bf16.mxu0 0
      %3705 = vmatmul.mubr.bf16.gmra.mrb[0].mxu0 %v3520
      %v3706 = vpop.f32.mrb[0].mxu0
      %v3707 = vadd.f32 0.0, %v3706
      %v3708 = vpop.f32.mrb[0].mxu0
      %v3709 = vpop.f32.mrb[0].mxu0
      %v3710 = vadd.f32 0.0, %v3709
      %v3711 = vpop.f32.mrb[0].mxu0
      %3712 = vmatprep.mubr.bf16.mxu0 0
      %3713 = vmatmul.mubr.bf16.gmra.mrb[0].mxu0 %v3521
      %v3714 = vpop.f32.mrb[0].mxu0
      %v3715 = vadd.f32 0.0, %v3714
      %v3716 = vpop.f32.mrb[0].mxu0
      %v3717 = vpop.f32.mrb[0].mxu0
      %v3718 = vadd.f32 0.0, %v3717
      %v3719 = vpop.f32.mrb[0].mxu0
      %3720 = vmatprep.mubr.bf16.mxu0 0
      %3721 = vmatmul.mubr.bf16.gmra.mrb[0].mxu0 %v3522
      %v3722 = vpop.f32.mrb[0].mxu0
      %v3723 = vadd.f32 0.0, %v3722
      %v3724 = vpop.f32.mrb[0].mxu0
      %v3725 = vpop.f32.mrb[0].mxu0
      %v3726 = vadd.f32 0.0, %v3725
      %v3727 = vpop.f32.mrb[0].mxu0
      %3728 = vmatprep.mubr.bf16.mxu0 0
      %3729 = vmatmul.mubr.bf16.gmra.mrb[0].mxu0 %v3523
      %v3730 = vpop.f32.mrb[0].mxu0
      %v3731 = vadd.f32 0.0, %v3730
      %v3732 = vpop.f32.mrb[0].mxu0
      %v3733 = vpop.f32.mrb[0].mxu0
      %v3734 = vadd.f32 0.0, %v3733
      %v3735 = vpop.f32.mrb[0].mxu0
      %3736 = vmatprep.mubr.bf16.mxu0 0
      %3737 = vmatmul.mubr.bf16.gmra.mrb[0].mxu0 %v3524
      %v3738 = vpop.f32.mrb[0].mxu0
      %v3739 = vadd.f32 0.0, %v3738
      %v3740 = vpop.f32.mrb[0].mxu0
      %v3741 = vpop.f32.mrb[0].mxu0
      %v3742 = vadd.f32 0.0, %v3741
      %v3743 = vpop.f32.mrb[0].mxu0
      %3744 = vmatprep.mubr.bf16.mxu0 0
      %3745 = vmatmul.mubr.bf16.gmra.mrb[0].mxu0 %v3525
      %v3746 = vpop.f32.mrb[0].mxu0
      %v3747 = vadd.f32 0.0, %v3746
      %v3748 = vpop.f32.mrb[0].mxu0
      %v3749 = vpop.f32.mrb[0].mxu0
      %v3750 = vadd.f32 0.0, %v3749
      %v3751 = vpop.f32.mrb[0].mxu0
      %3752 = vmatprep.mubr.bf16.mxu0 0
      %3753 = vmatmul.mubr.bf16.gmra.mrb[0].mxu0 %v3526
      %v3754 = vpop.f32.mrb[0].mxu0
      %v3755 = vadd.f32 0.0, %v3754
      %v3756 = vpop.f32.mrb[0].mxu0
      %v3757 = vpop.f32.mrb[0].mxu0
      %v3758 = vadd.f32 0.0, %v3757
      %v3759 = vpop.f32.mrb[0].mxu0
      %3760 = vmatprep.mubr.bf16.mxu0 0
      %3761 = vmatmul.mubr.bf16.gmra.mrb[0].mxu0 %v3527
      %v3762 = vpop.f32.mrb[0].mxu0
      %v3763 = vadd.f32 0.0, %v3762
      %v3764 = vpop.f32.mrb[0].mxu0
      %v3765 = vpop.f32.mrb[0].mxu0
      %v3766 = vadd.f32 0.0, %v3765
      %v3767 = vpop.f32.mrb[0].mxu0
      %3768 = vmatprep.mubr.bf16.mxu0 0
      %3769 = vmatmul.mubr.bf16.gmra.mrb[0].mxu0 %v3528
      %v3770 = vpop.f32.mrb[0].mxu0
      %v3771 = vadd.f32 0.0, %v3770
      %v3772 = vpop.f32.mrb[0].mxu0
      %v3773 = vpop.f32.mrb[0].mxu0
      %v3774 = vadd.f32 0.0, %v3773
      %v3775 = vpop.f32.mrb[0].mxu0
      %3776 = vmatprep.mubr.bf16.mxu0 0
      %3777 = vmatmul.mubr.bf16.gmra.mrb[0].mxu0 %v3529
      %v3778 = vpop.f32.mrb[0].mxu0
      %v3779 = vadd.f32 0.0, %v3778
      %v3780 = vpop.f32.mrb[0].mxu0
      %v3781 = vpop.f32.mrb[0].mxu0
      %v3782 = vadd.f32 0.0, %v3781
      %v3783 = vpop.f32.mrb[0].mxu0
      %3784 = vmatprep.mubr.bf16.mxu0 0
      %3785 = vmatmul.mubr.bf16.gmra.mrb[0].mxu0 %v3530
      %v3786 = vpop.f32.mrb[0].mxu0
      %v3787 = vadd.f32 0.0, %v3786
      %v3788 = vpop.f32.mrb[0].mxu0
      %v3789 = vpop.f32.mrb[0].mxu0
      %v3790 = vadd.f32 0.0, %v3789
      %v3791 = vpop.f32.mrb[0].mxu0
      %3792 = vmatprep.mubr.bf16.mxu0 0
      %3793 = vmatmul.mubr.bf16.gmra.mrb[0].mxu0 %v3531
      %v3794 = vpop.f32.mrb[0].mxu0
      %v3795 = vadd.f32 0.0, %v3794
      %v3796 = vpop.f32.mrb[0].mxu0
      %v3797 = vpop.f32.mrb[0].mxu0
      %v3798 = vadd.f32 0.0, %v3797
      %v3799 = vpop.f32.mrb[0].mxu0
      %3800 = vmatprep.mubr.bf16.mxu0 0
      %3801 = vmatmul.mubr.bf16.gmra.mrb[0].mxu0 %v3532
      %v3802 = vpop.f32.mrb[0].mxu0
      %v3803 = vadd.f32 0.0, %v3802
      %v3804 = vpop.f32.mrb[0].mxu0
      %v3805 = vpop.f32.mrb[0].mxu0
      %v3806 = vadd.f32 0.0, %v3805
      %v3807 = vpop.f32.mrb[0].mxu0
      %3808 = vmatprep.mubr.bf16.mxu0 0
      %3809 = vmatmul.mubr.bf16.gmra.mrb[0].mxu0 %v3533
      %v3810 = vpop.f32.mrb[0].mxu0
      %v3811 = vadd.f32 0.0, %v3810
      %v3812 = vpop.f32.mrb[0].mxu0
      %v3813 = vpop.f32.mrb[0].mxu0
      %v3814 = vadd.f32 0.0, %v3813
      %v3815 = vpop.f32.mrb[0].mxu0
      %3816 = vmatprep.mubr.bf16.mxu0 0
      %3817 = vmatmul.mubr.bf16.gmra.mrb[0].mxu0 %v3534
      %v3818 = vpop.f32.mrb[0].mxu0
      %v3819 = vadd.f32 0.0, %v3818
      %v3820 = vpop.f32.mrb[0].mxu0
      %v3821 = vpop.f32.mrb[0].mxu0
      %v3822 = vadd.f32 0.0, %v3821
      %v3823 = vpop.f32.mrb[0].mxu0
      %3824 = vdwg.mxu0
      %v3825 = vadd.f32 %v3415, %v3635
      %v3826 = vadd.f32 %v3416, %v3638
      %v3827 = vadd.f32 %v3417, %v3643
      %v3828 = vadd.f32 %v3418, %v3646
      %v3829 = vadd.f32 %v3419, %v3651
      %v3830 = vadd.f32 %v3420, %v3654
      %v3831 = vadd.f32 %v3421, %v3659
      %v3832 = vadd.f32 %v3422, %v3662
      %v3833 = vadd.f32 %v3423, %v3667
      %v3834 = vadd.f32 %v3424, %v3670
      %v3835 = vadd.f32 %v3425, %v3675
      %v3836 = vadd.f32 %v3426, %v3678
      %v3837 = vadd.f32 %v3427, %v3683
      %v3838 = vadd.f32 %v3428, %v3686
      %v3839 = vadd.f32 %v3429, %v3691
      %v3840 = vadd.f32 %v3430, %v3694
      %v3841 = vadd.f32 %v3431, %v3699
      %v3842 = vadd.f32 %v3432, %v3702
      %v3843 = vadd.f32 %v3433, %v3707
      %v3844 = vadd.f32 %v3434, %v3710
      %v3845 = vadd.f32 %v3435, %v3715
      %v3846 = vadd.f32 %v3436, %v3718
      %v3847 = vadd.f32 %v3437, %v3723
      %v3848 = vadd.f32 %v3438, %v3726
      %v3849 = vadd.f32 %v3439, %v3731
      %v3850 = vadd.f32 %v3440, %v3734
      %v3851 = vadd.f32 %v3441, %v3739
      %v3852 = vadd.f32 %v3442, %v3742
      %v3853 = vadd.f32 %v3443, %v3747
      %v3854 = vadd.f32 %v3444, %v3750
      %v3855 = vadd.f32 %v3445, %v3755
      %v3856 = vadd.f32 %v3446, %v3758
      %v3857 = vadd.f32 %v3447, %v3763
      %v3858 = vadd.f32 %v3448, %v3766
      %v3859 = vadd.f32 %v3449, %v3771
      %v3860 = vadd.f32 %v3450, %v3774
      %v3861 = vadd.f32 %v3451, %v3779
      %v3862 = vadd.f32 %v3452, %v3782
      %v3863 = vadd.f32 %v3453, %v3787
      %v3864 = vadd.f32 %v3454, %v3790
      %v3865 = vadd.f32 %v3455, %v3795
      %v3866 = vadd.f32 %v3456, %v3798
      %v3867 = vadd.f32 %v3457, %v3803
      %v3868 = vadd.f32 %v3458, %v3806
      %v3869 = vadd.f32 %v3459, %v3811
      %v3870 = vadd.f32 %v3460, %v3814
      %v3871 = vadd.f32 %v3461, %v3819
      %v3872 = vadd.f32 %v3462, %v3822
      %v3873 = vld [vmem:[#allocation2 + $0x30] sm:$0xff]
      %v3874 = vld [vmem:[#allocation2 + $0x38] sm:$0xff]
      %v3875 = vld [vmem:[#allocation2 + $0x40] sm:$0xff]
      %v3876 = vld [vmem:[#allocation2 + $0x48] sm:$0xff]
      %v3877 = vld [vmem:[#allocation2 + $0x50] sm:$0xff]
      %v3878 = vld [vmem:[#allocation2 + $0x58] sm:$0xff]
      %v3879 = vld [vmem:[#allocation2 + $0x60] sm:$0xff]
      %v3880 = vld [vmem:[#allocation2 + $0x68] sm:$0xff]
      %v3881 = vld [vmem:[#allocation2 + $0x70] sm:$0xff]
      %v3882 = vld [vmem:[#allocation2 + $0x78] sm:$0xff]
      %v3883 = vld [vmem:[#allocation2 + $0x80] sm:$0xff]
      %v3884 = vld [vmem:[#allocation2 + $0x88] sm:$0xff]
      %v3885 = vld [vmem:[#allocation2 + $0x90] sm:$0xff]
      %v3886 = vld [vmem:[#allocation2 + $0x98] sm:$0xff]
      %v3887 = vld [vmem:[#allocation2 + $0xa0] sm:$0xff]
      %v3888 = vld [vmem:[#allocation2 + $0xa8] sm:$0xff]
      %v3889 = vld [vmem:[#allocation2 + $0xb0] sm:$0xff]
      %v3890 = vld [vmem:[#allocation2 + $0xb8] sm:$0xff]
      %v3891 = vld [vmem:[#allocation2 + $0xc0] sm:$0xff]
      %v3892 = vld [vmem:[#allocation2 + $0xc8] sm:$0xff]
      %v3893 = vld [vmem:[#allocation2 + $0xd0] sm:$0xff]
      %v3894 = vld [vmem:[#allocation2 + $0xd8] sm:$0xff]
      %v3895 = vld [vmem:[#allocation2 + $0xe0] sm:$0xff]
      %v3896 = vld [vmem:[#allocation2 + $0xe8] sm:$0xff]
      %v3897 = vld [vmem:[#allocation2 + $0xf0] sm:$0xff]
      %v3898 = vld [vmem:[#allocation2 + $0xf8] sm:$0xff]
      %v3899 = vld [vmem:[#allocation2 + $0x100] sm:$0xff]
      %v3900 = vld [vmem:[#allocation2 + $0x108] sm:$0xff]
      %v3901 = vld [vmem:[#allocation2 + $0x110] sm:$0xff]
      %v3902 = vld [vmem:[#allocation2 + $0x118] sm:$0xff]
      %v3903 = vld [vmem:[#allocation2 + $0x120] sm:$0xff]
      %v3904 = vld [vmem:[#allocation2 + $0x128] sm:$0xff]
      %v3905 = vld [vmem:[#allocation2 + $0x130] sm:$0xff]
      %v3906 = vld [vmem:[#allocation2 + $0x138] sm:$0xff]
      %v3907 = vld [vmem:[#allocation2 + $0x140] sm:$0xff]
      %v3908 = vld [vmem:[#allocation2 + $0x148] sm:$0xff]
      %v3909 = vld [vmem:[#allocation2 + $0x150] sm:$0xff]
      %v3910 = vld [vmem:[#allocation2 + $0x158] sm:$0xff]
      %v3911 = vld [vmem:[#allocation2 + $0x160] sm:$0xff]
      %v3912 = vld [vmem:[#allocation2 + $0x168] sm:$0xff]
      %v3913 = vld [vmem:[#allocation2 + $0x170] sm:$0xff]
      %v3914 = vld [vmem:[#allocation2 + $0x178] sm:$0xff]
      %v3915 = vld [vmem:[#allocation2 + $0x180] sm:$0xff]
      %v3916 = vld [vmem:[#allocation2 + $0x188] sm:$0xff]
      %v3917 = vld [vmem:[#allocation2 + $0x190] sm:$0xff]
      %v3918 = vld [vmem:[#allocation2 + $0x198] sm:$0xff]
      %v3919 = vld [vmem:[#allocation2 + $0x1a0] sm:$0xff]
      %v3920 = vld [vmem:[#allocation2 + $0x1a8] sm:$0xff]
      %v3921 = vpack.c.bf16 %v3874, %v3873
      %v3922 = vpack.c.bf16 %v3876, %v3875
      %v3923 = vpack.c.bf16 %v3878, %v3877
      %v3924 = vpack.c.bf16 %v3880, %v3879
      %v3925 = vpack.c.bf16 %v3882, %v3881
      %v3926 = vpack.c.bf16 %v3884, %v3883
      %v3927 = vpack.c.bf16 %v3886, %v3885
      %v3928 = vpack.c.bf16 %v3888, %v3887
      %v3929 = vpack.c.bf16 %v3890, %v3889
      %v3930 = vpack.c.bf16 %v3892, %v3891
      %v3931 = vpack.c.bf16 %v3894, %v3893
      %v3932 = vpack.c.bf16 %v3896, %v3895
      %v3933 = vpack.c.bf16 %v3898, %v3897
      %v3934 = vpack.c.bf16 %v3900, %v3899
      %v3935 = vpack.c.bf16 %v3902, %v3901
      %v3936 = vpack.c.bf16 %v3904, %v3903
      %v3937 = vpack.c.bf16 %v3906, %v3905
      %v3938 = vpack.c.bf16 %v3908, %v3907
      %v3939 = vpack.c.bf16 %v3910, %v3909
      %v3940 = vpack.c.bf16 %v3912, %v3911
      %v3941 = vpack.c.bf16 %v3914, %v3913
      %v3942 = vpack.c.bf16 %v3916, %v3915
      %v3943 = vpack.c.bf16 %v3918, %v3917
      %v3944 = vpack.c.bf16 %v3920, %v3919
      %s3945 = scalar_lea.vmem %s1, 384
      %v3946 = vld [vmem:[%s3945] sm:$0xf]
      %v3947 = vld [vmem:[%s3945 + $0x4] sm:$0xf]
      %v3948 = vld [vmem:[%s3945 + $0x8] sm:$0xf]
      %v3949 = vld [vmem:[%s3945 + $0xc] sm:$0xf]
      %v3950 = vld [vmem:[%s3945 + $0x10] sm:$0xf]
      %v3951 = vld [vmem:[%s3945 + $0x14] sm:$0xf]
      %v3952 = vld [vmem:[%s3945 + $0x18] sm:$0xf]
      %v3953 = vld [vmem:[%s3945 + $0x1c] sm:$0xf]
      %v3954 = vld [vmem:[%s3945 + $0x20] sm:$0xf]
      %v3955 = vld [vmem:[%s3945 + $0x24] sm:$0xf]
      %v3956 = vld [vmem:[%s3945 + $0x28] sm:$0xf]
      %v3957 = vld [vmem:[%s3945 + $0x2c] sm:$0xf]
      %v3958 = vld [vmem:[%s3945 + $0x30] sm:$0xf]
      %v3959 = vld [vmem:[%s3945 + $0x34] sm:$0xf]
      %v3960 = vld [vmem:[%s3945 + $0x38] sm:$0xf]
      %v3961 = vld [vmem:[%s3945 + $0x3c] sm:$0xf]
      %v3978 = vunpack.c.l.b16 %v3946
      %v3979 = vunpack.c.l.b16 %v3947
      %v3980 = vunpack.c.l.b16 %v3948
      %v3981 = vunpack.c.l.b16 %v3949
      %v3982 = vunpack.c.l.b16 %v3950
      %v3983 = vunpack.c.l.b16 %v3951
      %v3984 = vunpack.c.l.b16 %v3952
      %v3985 = vunpack.c.l.b16 %v3953
      %v3986 = vunpack.c.l.b16 %v3954
      %v3987 = vunpack.c.l.b16 %v3955
      %v3988 = vunpack.c.l.b16 %v3956
      %v3989 = vunpack.c.l.b16 %v3957
      %v3990 = vunpack.c.l.b16 %v3958
      %v3991 = vunpack.c.l.b16 %v3959
      %v3992 = vunpack.c.l.b16 %v3960
      %v3993 = vunpack.c.l.b16 %v3961
      %v3994 = vpack.c.b16 %v3979, %v3978
      %v3995 = vpack.c.b16 %v3981, %v3980
      %v3996 = vpack.c.b16 %v3983, %v3982
      %v3997 = vpack.c.b16 %v3985, %v3984
      %v3998 = vpack.c.b16 %v3987, %v3986
      %v3999 = vpack.c.b16 %v3989, %v3988
      %v4000 = vpack.c.b16 %v3991, %v3990
      %v4001 = vpack.c.b16 %v3993, %v3992
      %4010 = vmatprep.subr.bf16.mxu0 0
      %4011 = vmatpush1.bf16.msra.mxu0 %v3994
      %4012 = vmatprep.subr.bf16.mxu0 0
      %4013 = vmatpush1.bf16.msra.mxu0 %v3995
      %4014 = vmatprep.subr.bf16.mxu0 0
      %4015 = vmatpush1.bf16.msra.mxu0 %v3996
      %4016 = vmatprep.subr.bf16.mxu0 0
      %4017 = vmatpush1.bf16.msra.mxu0 %v3997
      %4018 = vmatprep.subr.bf16.mxu0 0
      %4019 = vmatpush1.bf16.msra.mxu0 %v3998
      %4020 = vmatprep.subr.bf16.mxu0 0
      %4021 = vmatpush1.bf16.msra.mxu0 %v3999
      %4022 = vmatprep.subr.bf16.mxu0 0
      %4023 = vmatpush1.bf16.msra.mxu0 %v4000
      %4024 = vmatprep.subr.bf16.mxu0 0
      %4025 = vmatpush1.bf16.msra.mxu0 %v4001
      %4026 = vmatprep.subr.bf16.mxu0 0
      %4027 = vmatpush1.bf16.msra.mxu0 0
      %4028 = vmatprep.subr.bf16.mxu0 0
      %4029 = vmatpush1.bf16.msra.mxu0 0
      %4030 = vmatprep.subr.bf16.mxu0 0
      %4031 = vmatpush1.bf16.msra.mxu0 0
      %4032 = vmatprep.subr.bf16.mxu0 0
      %4033 = vmatpush1.bf16.msra.mxu0 0
      %4034 = vmatprep.subr.bf16.mxu0 0
      %4035 = vmatpush1.bf16.msra.mxu0 0
      %4036 = vmatprep.subr.bf16.mxu0 0
      %4037 = vmatpush1.bf16.msra.mxu0 0
      %4038 = vmatprep.subr.bf16.mxu0 0
      %4039 = vmatpush1.bf16.msra.mxu0 0
      %4040 = vmatprep.subr.bf16.mxu0 0
      %4041 = vmatpush1.bf16.msra.mxu0 0
      %4042 = vmatprep.mubr.bf16.mxu0 0
      %4043 = vmatmul.mubr.bf16.gmra.mrb[0].mxu0 %v3921
      %v4044 = vpop.f32.mrb[0].mxu0
      %v4045 = vadd.f32 0.0, %v4044
      %v4046 = vpop.f32.mrb[0].mxu0
      %v4047 = vpop.f32.mrb[0].mxu0
      %v4048 = vadd.f32 0.0, %v4047
      %v4049 = vpop.f32.mrb[0].mxu0
      %4050 = vmatprep.mubr.bf16.mxu0 0
      %4051 = vmatmul.mubr.bf16.gmra.mrb[0].mxu0 %v3922
      %v4052 = vpop.f32.mrb[0].mxu0
      %v4053 = vadd.f32 0.0, %v4052
      %v4054 = vpop.f32.mrb[0].mxu0
      %v4055 = vpop.f32.mrb[0].mxu0
      %v4056 = vadd.f32 0.0, %v4055
      %v4057 = vpop.f32.mrb[0].mxu0
      %4058 = vmatprep.mubr.bf16.mxu0 0
      %4059 = vmatmul.mubr.bf16.gmra.mrb[0].mxu0 %v3923
      %v4060 = vpop.f32.mrb[0].mxu0
      %v4061 = vadd.f32 0.0, %v4060
      %v4062 = vpop.f32.mrb[0].mxu0
      %v4063 = vpop.f32.mrb[0].mxu0
      %v4064 = vadd.f32 0.0, %v4063
      %v4065 = vpop.f32.mrb[0].mxu0
      %4066 = vmatprep.mubr.bf16.mxu0 0
      %4067 = vmatmul.mubr.bf16.gmra.mrb[0].mxu0 %v3924
      %v4068 = vpop.f32.mrb[0].mxu0
      %v4069 = vadd.f32 0.0, %v4068
      %v4070 = vpop.f32.mrb[0].mxu0
      %v4071 = vpop.f32.mrb[0].mxu0
      %v4072 = vadd.f32 0.0, %v4071
      %v4073 = vpop.f32.mrb[0].mxu0
      %4074 = vmatprep.mubr.bf16.mxu0 0
      %4075 = vmatmul.mubr.bf16.gmra.mrb[0].mxu0 %v3925
      %v4076 = vpop.f32.mrb[0].mxu0
      %v4077 = vadd.f32 0.0, %v4076
      %v4078 = vpop.f32.mrb[0].mxu0
      %v4079 = vpop.f32.mrb[0].mxu0
      %v4080 = vadd.f32 0.0, %v4079
      %v4081 = vpop.f32.mrb[0].mxu0
      %4082 = vmatprep.mubr.bf16.mxu0 0
      %4083 = vmatmul.mubr.bf16.gmra.mrb[0].mxu0 %v3926
      %v4084 = vpop.f32.mrb[0].mxu0
      %v4085 = vadd.f32 0.0, %v4084
      %v4086 = vpop.f32.mrb[0].mxu0
      %v4087 = vpop.f32.mrb[0].mxu0
      %v4088 = vadd.f32 0.0, %v4087
      %v4089 = vpop.f32.mrb[0].mxu0
      %4090 = vmatprep.mubr.bf16.mxu0 0
      %4091 = vmatmul.mubr.bf16.gmra.mrb[0].mxu0 %v3927
      %v4092 = vpop.f32.mrb[0].mxu0
      %v4093 = vadd.f32 0.0, %v4092
      %v4094 = vpop.f32.mrb[0].mxu0
      %v4095 = vpop.f32.mrb[0].mxu0
      %v4096 = vadd.f32 0.0, %v4095
      %v4097 = vpop.f32.mrb[0].mxu0
      %4098 = vmatprep.mubr.bf16.mxu0 0
      %4099 = vmatmul.mubr.bf16.gmra.mrb[0].mxu0 %v3928
      %v4100 = vpop.f32.mrb[0].mxu0
      %v4101 = vadd.f32 0.0, %v4100
      %v4102 = vpop.f32.mrb[0].mxu0
      %v4103 = vpop.f32.mrb[0].mxu0
      %v4104 = vadd.f32 0.0, %v4103
      %v4105 = vpop.f32.mrb[0].mxu0
      %4106 = vmatprep.mubr.bf16.mxu0 0
      %4107 = vmatmul.mubr.bf16.gmra.mrb[0].mxu0 %v3929
      %v4108 = vpop.f32.mrb[0].mxu0
      %v4109 = vadd.f32 0.0, %v4108
      %v4110 = vpop.f32.mrb[0].mxu0
      %v4111 = vpop.f32.mrb[0].mxu0
      %v4112 = vadd.f32 0.0, %v4111
      %v4113 = vpop.f32.mrb[0].mxu0
      %4114 = vmatprep.mubr.bf16.mxu0 0
      %4115 = vmatmul.mubr.bf16.gmra.mrb[0].mxu0 %v3930
      %v4116 = vpop.f32.mrb[0].mxu0
      %v4117 = vadd.f32 0.0, %v4116
      %v4118 = vpop.f32.mrb[0].mxu0
      %v4119 = vpop.f32.mrb[0].mxu0
      %v4120 = vadd.f32 0.0, %v4119
      %v4121 = vpop.f32.mrb[0].mxu0
      %4122 = vmatprep.mubr.bf16.mxu0 0
      %4123 = vmatmul.mubr.bf16.gmra.mrb[0].mxu0 %v3931
      %v4124 = vpop.f32.mrb[0].mxu0
      %v4125 = vadd.f32 0.0, %v4124
      %v4126 = vpop.f32.mrb[0].mxu0
      %v4127 = vpop.f32.mrb[0].mxu0
      %v4128 = vadd.f32 0.0, %v4127
      %v4129 = vpop.f32.mrb[0].mxu0
      %4130 = vmatprep.mubr.bf16.mxu0 0
      %4131 = vmatmul.mubr.bf16.gmra.mrb[0].mxu0 %v3932
      %v4132 = vpop.f32.mrb[0].mxu0
      %v4133 = vadd.f32 0.0, %v4132
      %v4134 = vpop.f32.mrb[0].mxu0
      %v4135 = vpop.f32.mrb[0].mxu0
      %v4136 = vadd.f32 0.0, %v4135
      %v4137 = vpop.f32.mrb[0].mxu0
      %4138 = vmatprep.mubr.bf16.mxu0 0
      %4139 = vmatmul.mubr.bf16.gmra.mrb[0].mxu0 %v3933
      %v4140 = vpop.f32.mrb[0].mxu0
      %v4141 = vadd.f32 0.0, %v4140
      %v4142 = vpop.f32.mrb[0].mxu0
      %v4143 = vpop.f32.mrb[0].mxu0
      %v4144 = vadd.f32 0.0, %v4143
      %v4145 = vpop.f32.mrb[0].mxu0
      %4146 = vmatprep.mubr.bf16.mxu0 0
      %4147 = vmatmul.mubr.bf16.gmra.mrb[0].mxu0 %v3934
      %v4148 = vpop.f32.mrb[0].mxu0
      %v4149 = vadd.f32 0.0, %v4148
      %v4150 = vpop.f32.mrb[0].mxu0
      %v4151 = vpop.f32.mrb[0].mxu0
      %v4152 = vadd.f32 0.0, %v4151
      %v4153 = vpop.f32.mrb[0].mxu0
      %4154 = vmatprep.mubr.bf16.mxu0 0
      %4155 = vmatmul.mubr.bf16.gmra.mrb[0].mxu0 %v3935
      %v4156 = vpop.f32.mrb[0].mxu0
      %v4157 = vadd.f32 0.0, %v4156
      %v4158 = vpop.f32.mrb[0].mxu0
      %v4159 = vpop.f32.mrb[0].mxu0
      %v4160 = vadd.f32 0.0, %v4159
      %v4161 = vpop.f32.mrb[0].mxu0
      %4162 = vmatprep.mubr.bf16.mxu0 0
      %4163 = vmatmul.mubr.bf16.gmra.mrb[0].mxu0 %v3936
      %v4164 = vpop.f32.mrb[0].mxu0
      %v4165 = vadd.f32 0.0, %v4164
      %v4166 = vpop.f32.mrb[0].mxu0
      %v4167 = vpop.f32.mrb[0].mxu0
      %v4168 = vadd.f32 0.0, %v4167
      %v4169 = vpop.f32.mrb[0].mxu0
      %4170 = vmatprep.mubr.bf16.mxu0 0
      %4171 = vmatmul.mubr.bf16.gmra.mrb[0].mxu0 %v3937
      %v4172 = vpop.f32.mrb[0].mxu0
      %v4173 = vadd.f32 0.0, %v4172
      %v4174 = vpop.f32.mrb[0].mxu0
      %v4175 = vpop.f32.mrb[0].mxu0
      %v4176 = vadd.f32 0.0, %v4175
      %v4177 = vpop.f32.mrb[0].mxu0
      %4178 = vmatprep.mubr.bf16.mxu0 0
      %4179 = vmatmul.mubr.bf16.gmra.mrb[0].mxu0 %v3938
      %v4180 = vpop.f32.mrb[0].mxu0
      %v4181 = vadd.f32 0.0, %v4180
      %v4182 = vpop.f32.mrb[0].mxu0
      %v4183 = vpop.f32.mrb[0].mxu0
      %v4184 = vadd.f32 0.0, %v4183
      %v4185 = vpop.f32.mrb[0].mxu0
      %4186 = vmatprep.mubr.bf16.mxu0 0
      %4187 = vmatmul.mubr.bf16.gmra.mrb[0].mxu0 %v3939
      %v4188 = vpop.f32.mrb[0].mxu0
      %v4189 = vadd.f32 0.0, %v4188
      %v4190 = vpop.f32.mrb[0].mxu0
      %v4191 = vpop.f32.mrb[0].mxu0
      %v4192 = vadd.f32 0.0, %v4191
      %v4193 = vpop.f32.mrb[0].mxu0
      %4194 = vmatprep.mubr.bf16.mxu0 0
      %4195 = vmatmul.mubr.bf16.gmra.mrb[0].mxu0 %v3940
      %v4196 = vpop.f32.mrb[0].mxu0
      %v4197 = vadd.f32 0.0, %v4196
      %v4198 = vpop.f32.mrb[0].mxu0
      %v4199 = vpop.f32.mrb[0].mxu0
      %v4200 = vadd.f32 0.0, %v4199
      %v4201 = vpop.f32.mrb[0].mxu0
      %4202 = vmatprep.mubr.bf16.mxu0 0
      %4203 = vmatmul.mubr.bf16.gmra.mrb[0].mxu0 %v3941
      %v4204 = vpop.f32.mrb[0].mxu0
      %v4205 = vadd.f32 0.0, %v4204
      %v4206 = vpop.f32.mrb[0].mxu0
      %v4207 = vpop.f32.mrb[0].mxu0
      %v4208 = vadd.f32 0.0, %v4207
      %v4209 = vpop.f32.mrb[0].mxu0
      %4210 = vmatprep.mubr.bf16.mxu0 0
      %4211 = vmatmul.mubr.bf16.gmra.mrb[0].mxu0 %v3942
      %v4212 = vpop.f32.mrb[0].mxu0
      %v4213 = vadd.f32 0.0, %v4212
      %v4214 = vpop.f32.mrb[0].mxu0
      %v4215 = vpop.f32.mrb[0].mxu0
      %v4216 = vadd.f32 0.0, %v4215
      %v4217 = vpop.f32.mrb[0].mxu0
      %4218 = vmatprep.mubr.bf16.mxu0 0
      %4219 = vmatmul.mubr.bf16.gmra.mrb[0].mxu0 %v3943
      %v4220 = vpop.f32.mrb[0].mxu0
      %v4221 = vadd.f32 0.0, %v4220
      %v4222 = vpop.f32.mrb[0].mxu0
      %v4223 = vpop.f32.mrb[0].mxu0
      %v4224 = vadd.f32 0.0, %v4223
      %v4225 = vpop.f32.mrb[0].mxu0
      %4226 = vmatprep.mubr.bf16.mxu0 0
      %4227 = vmatmul.mubr.bf16.gmra.mrb[0].mxu0 %v3944
      %v4228 = vpop.f32.mrb[0].mxu0
      %v4229 = vadd.f32 0.0, %v4228
      %v4230 = vpop.f32.mrb[0].mxu0
      %v4231 = vpop.f32.mrb[0].mxu0
      %v4232 = vadd.f32 0.0, %v4231
      %v4233 = vpop.f32.mrb[0].mxu0
      %4234 = vdwg.mxu0
      %v4235 = vadd.f32 %v3825, %v4045
      %v4236 = vadd.f32 %v3826, %v4048
      %v4237 = vadd.f32 %v3827, %v4053
      %v4238 = vadd.f32 %v3828, %v4056
      %v4239 = vadd.f32 %v3829, %v4061
      %v4240 = vadd.f32 %v3830, %v4064
      %v4241 = vadd.f32 %v3831, %v4069
      %v4242 = vadd.f32 %v3832, %v4072
      %v4243 = vadd.f32 %v3833, %v4077
      %v4244 = vadd.f32 %v3834, %v4080
      %v4245 = vadd.f32 %v3835, %v4085
      %v4246 = vadd.f32 %v3836, %v4088
      %v4247 = vadd.f32 %v3837, %v4093
      %v4248 = vadd.f32 %v3838, %v4096
      %v4249 = vadd.f32 %v3839, %v4101
      %v4250 = vadd.f32 %v3840, %v4104
      %v4251 = vadd.f32 %v3841, %v4109
      %v4252 = vadd.f32 %v3842, %v4112
      %v4253 = vadd.f32 %v3843, %v4117
      %v4254 = vadd.f32 %v3844, %v4120
      %v4255 = vadd.f32 %v3845, %v4125
      %v4256 = vadd.f32 %v3846, %v4128
      %v4257 = vadd.f32 %v3847, %v4133
      %v4258 = vadd.f32 %v3848, %v4136
      %v4259 = vadd.f32 %v3849, %v4141
      %v4260 = vadd.f32 %v3850, %v4144
      %v4261 = vadd.f32 %v3851, %v4149
      %v4262 = vadd.f32 %v3852, %v4152
      %v4263 = vadd.f32 %v3853, %v4157
      %v4264 = vadd.f32 %v3854, %v4160
      %v4265 = vadd.f32 %v3855, %v4165
      %v4266 = vadd.f32 %v3856, %v4168
      %v4267 = vadd.f32 %v3857, %v4173
      %v4268 = vadd.f32 %v3858, %v4176
      %v4269 = vadd.f32 %v3859, %v4181
      %v4270 = vadd.f32 %v3860, %v4184
      %v4271 = vadd.f32 %v3861, %v4189
      %v4272 = vadd.f32 %v3862, %v4192
      %v4273 = vadd.f32 %v3863, %v4197
      %v4274 = vadd.f32 %v3864, %v4200
      %v4275 = vadd.f32 %v3865, %v4205
      %v4276 = vadd.f32 %v3866, %v4208
      %v4277 = vadd.f32 %v3867, %v4213
      %v4278 = vadd.f32 %v3868, %v4216
      %v4279 = vadd.f32 %v3869, %v4221
      %v4280 = vadd.f32 %v3870, %v4224
      %v4281 = vadd.f32 %v3871, %v4229
      %v4282 = vadd.f32 %v3872, %v4232
      %v4283 = vld [vmem:[#allocation2 + $0x31] sm:$0xff]
      %v4284 = vld [vmem:[#allocation2 + $0x39] sm:$0xff]
      %v4285 = vld [vmem:[#allocation2 + $0x41] sm:$0xff]
      %v4286 = vld [vmem:[#allocation2 + $0x49] sm:$0xff]
      %v4287 = vld [vmem:[#allocation2 + $0x51] sm:$0xff]
      %v4288 = vld [vmem:[#allocation2 + $0x59] sm:$0xff]
      %v4289 = vld [vmem:[#allocation2 + $0x61] sm:$0xff]
      %v4290 = vld [vmem:[#allocation2 + $0x69] sm:$0xff]
      %v4291 = vld [vmem:[#allocation2 + $0x71] sm:$0xff]
      %v4292 = vld [vmem:[#allocation2 + $0x79] sm:$0xff]
      %v4293 = vld [vmem:[#allocation2 + $0x81] sm:$0xff]
      %v4294 = vld [vmem:[#allocation2 + $0x89] sm:$0xff]
      %v4295 = vld [vmem:[#allocation2 + $0x91] sm:$0xff]
      %v4296 = vld [vmem:[#allocation2 + $0x99] sm:$0xff]
      %v4297 = vld [vmem:[#allocation2 + $0xa1] sm:$0xff]
      %v4298 = vld [vmem:[#allocation2 + $0xa9] sm:$0xff]
      %v4299 = vld [vmem:[#allocation2 + $0xb1] sm:$0xff]
      %v4300 = vld [vmem:[#allocation2 + $0xb9] sm:$0xff]
      %v4301 = vld [vmem:[#allocation2 + $0xc1] sm:$0xff]
      %v4302 = vld [vmem:[#allocation2 + $0xc9] sm:$0xff]
      %v4303 = vld [vmem:[#allocation2 + $0xd1] sm:$0xff]
      %v4304 = vld [vmem:[#allocation2 + $0xd9] sm:$0xff]
      %v4305 = vld [vmem:[#allocation2 + $0xe1] sm:$0xff]
      %v4306 = vld [vmem:[#allocation2 + $0xe9] sm:$0xff]
      %v4307 = vld [vmem:[#allocation2 + $0xf1] sm:$0xff]
      %v4308 = vld [vmem:[#allocation2 + $0xf9] sm:$0xff]
      %v4309 = vld [vmem:[#allocation2 + $0x101] sm:$0xff]
      %v4310 = vld [vmem:[#allocation2 + $0x109] sm:$0xff]
      %v4311 = vld [vmem:[#allocation2 + $0x111] sm:$0xff]
      %v4312 = vld [vmem:[#allocation2 + $0x119] sm:$0xff]
      %v4313 = vld [vmem:[#allocation2 + $0x121] sm:$0xff]
      %v4314 = vld [vmem:[#allocation2 + $0x129] sm:$0xff]
      %v4315 = vld [vmem:[#allocation2 + $0x131] sm:$0xff]
      %v4316 = vld [vmem:[#allocation2 + $0x139] sm:$0xff]
      %v4317 = vld [vmem:[#allocation2 + $0x141] sm:$0xff]
      %v4318 = vld [vmem:[#allocation2 + $0x149] sm:$0xff]
      %v4319 = vld [vmem:[#allocation2 + $0x151] sm:$0xff]
      %v4320 = vld [vmem:[#allocation2 + $0x159] sm:$0xff]
      %v4321 = vld [vmem:[#allocation2 + $0x161] sm:$0xff]
      %v4322 = vld [vmem:[#allocation2 + $0x169] sm:$0xff]
      %v4323 = vld [vmem:[#allocation2 + $0x171] sm:$0xff]
      %v4324 = vld [vmem:[#allocation2 + $0x179] sm:$0xff]
      %v4325 = vld [vmem:[#allocation2 + $0x181] sm:$0xff]
      %v4326 = vld [vmem:[#allocation2 + $0x189] sm:$0xff]
      %v4327 = vld [vmem:[#allocation2 + $0x191] sm:$0xff]
      %v4328 = vld [vmem:[#allocation2 + $0x199] sm:$0xff]
      %v4329 = vld [vmem:[#allocation2 + $0x1a1] sm:$0xff]
      %v4330 = vld [vmem:[#allocation2 + $0x1a9] sm:$0xff]
      %v4331 = vpack.c.bf16 %v4284, %v4283
      %v4332 = vpack.c.bf16 %v4286, %v4285
      %v4333 = vpack.c.bf16 %v4288, %v4287
      %v4334 = vpack.c.bf16 %v4290, %v4289
      %v4335 = vpack.c.bf16 %v4292, %v4291
      %v4336 = vpack.c.bf16 %v4294, %v4293
      %v4337 = vpack.c.bf16 %v4296, %v4295
      %v4338 = vpack.c.bf16 %v4298, %v4297
      %v4339 = vpack.c.bf16 %v4300, %v4299
      %v4340 = vpack.c.bf16 %v4302, %v4301
      %v4341 = vpack.c.bf16 %v4304, %v4303
      %v4342 = vpack.c.bf16 %v4306, %v4305
      %v4343 = vpack.c.bf16 %v4308, %v4307
      %v4344 = vpack.c.bf16 %v4310, %v4309
      %v4345 = vpack.c.bf16 %v4312, %v4311
      %v4346 = vpack.c.bf16 %v4314, %v4313
      %v4347 = vpack.c.bf16 %v4316, %v4315
      %v4348 = vpack.c.bf16 %v4318, %v4317
      %v4349 = vpack.c.bf16 %v4320, %v4319
      %v4350 = vpack.c.bf16 %v4322, %v4321
      %v4351 = vpack.c.bf16 %v4324, %v4323
      %v4352 = vpack.c.bf16 %v4326, %v4325
      %v4353 = vpack.c.bf16 %v4328, %v4327
      %v4354 = vpack.c.bf16 %v4330, %v4329
      %s4355 = scalar_lea.vmem %s1, 448
      %v4356 = vld [vmem:[%s4355] sm:$0xf]
      %v4357 = vld [vmem:[%s4355 + $0x4] sm:$0xf]
      %v4358 = vld [vmem:[%s4355 + $0x8] sm:$0xf]
      %v4359 = vld [vmem:[%s4355 + $0xc] sm:$0xf]
      %v4360 = vld [vmem:[%s4355 + $0x10] sm:$0xf]
      %v4361 = vld [vmem:[%s4355 + $0x14] sm:$0xf]
      %v4362 = vld [vmem:[%s4355 + $0x18] sm:$0xf]
      %v4363 = vld [vmem:[%s4355 + $0x1c] sm:$0xf]
      %v4364 = vld [vmem:[%s4355 + $0x20] sm:$0xf]
      %v4365 = vld [vmem:[%s4355 + $0x24] sm:$0xf]
      %v4366 = vld [vmem:[%s4355 + $0x28] sm:$0xf]
      %v4367 = vld [vmem:[%s4355 + $0x2c] sm:$0xf]
      %v4368 = vld [vmem:[%s4355 + $0x30] sm:$0xf]
      %v4369 = vld [vmem:[%s4355 + $0x34] sm:$0xf]
      %v4370 = vld [vmem:[%s4355 + $0x38] sm:$0xf]
      %v4371 = vld [vmem:[%s4355 + $0x3c] sm:$0xf]
      %v4388 = vunpack.c.l.b16 %v4356
      %v4389 = vunpack.c.l.b16 %v4357
      %v4390 = vunpack.c.l.b16 %v4358
      %v4391 = vunpack.c.l.b16 %v4359
      %v4392 = vunpack.c.l.b16 %v4360
      %v4393 = vunpack.c.l.b16 %v4361
      %v4394 = vunpack.c.l.b16 %v4362
      %v4395 = vunpack.c.l.b16 %v4363
      %v4396 = vunpack.c.l.b16 %v4364
      %v4397 = vunpack.c.l.b16 %v4365
      %v4398 = vunpack.c.l.b16 %v4366
      %v4399 = vunpack.c.l.b16 %v4367
      %v4400 = vunpack.c.l.b16 %v4368
      %v4401 = vunpack.c.l.b16 %v4369
      %v4402 = vunpack.c.l.b16 %v4370
      %v4403 = vunpack.c.l.b16 %v4371
      %v4404 = vpack.c.b16 %v4389, %v4388
      %v4405 = vpack.c.b16 %v4391, %v4390
      %v4406 = vpack.c.b16 %v4393, %v4392
      %v4407 = vpack.c.b16 %v4395, %v4394
      %v4408 = vpack.c.b16 %v4397, %v4396
      %v4409 = vpack.c.b16 %v4399, %v4398
      %v4410 = vpack.c.b16 %v4401, %v4400
      %v4411 = vpack.c.b16 %v4403, %v4402
      %4420 = vmatprep.subr.bf16.mxu0 0
      %4421 = vmatpush1.bf16.msra.mxu0 %v4404
      %4422 = vmatprep.subr.bf16.mxu0 0
      %4423 = vmatpush1.bf16.msra.mxu0 %v4405
      %4424 = vmatprep.subr.bf16.mxu0 0
      %4425 = vmatpush1.bf16.msra.mxu0 %v4406
      %4426 = vmatprep.subr.bf16.mxu0 0
      %4427 = vmatpush1.bf16.msra.mxu0 %v4407
      %4428 = vmatprep.subr.bf16.mxu0 0
      %4429 = vmatpush1.bf16.msra.mxu0 %v4408
      %4430 = vmatprep.subr.bf16.mxu0 0
      %4431 = vmatpush1.bf16.msra.mxu0 %v4409
      %4432 = vmatprep.subr.bf16.mxu0 0
      %4433 = vmatpush1.bf16.msra.mxu0 %v4410
      %4434 = vmatprep.subr.bf16.mxu0 0
      %4435 = vmatpush1.bf16.msra.mxu0 %v4411
      %4436 = vmatprep.subr.bf16.mxu0 0
      %4437 = vmatpush1.bf16.msra.mxu0 0
      %4438 = vmatprep.subr.bf16.mxu0 0
      %4439 = vmatpush1.bf16.msra.mxu0 0
      %4440 = vmatprep.subr.bf16.mxu0 0
      %4441 = vmatpush1.bf16.msra.mxu0 0
      %4442 = vmatprep.subr.bf16.mxu0 0
      %4443 = vmatpush1.bf16.msra.mxu0 0
      %4444 = vmatprep.subr.bf16.mxu0 0
      %4445 = vmatpush1.bf16.msra.mxu0 0
      %4446 = vmatprep.subr.bf16.mxu0 0
      %4447 = vmatpush1.bf16.msra.mxu0 0
      %4448 = vmatprep.subr.bf16.mxu0 0
      %4449 = vmatpush1.bf16.msra.mxu0 0
      %4450 = vmatprep.subr.bf16.mxu0 0
      %4451 = vmatpush1.bf16.msra.mxu0 0
      %4452 = vmatprep.mubr.bf16.mxu0 0
      %4453 = vmatmul.mubr.bf16.gmra.mrb[0].mxu0 %v4331
      %v4454 = vpop.f32.mrb[0].mxu0
      %v4455 = vadd.f32 0.0, %v4454
      %v4456 = vpop.f32.mrb[0].mxu0
      %v4457 = vpop.f32.mrb[0].mxu0
      %v4458 = vadd.f32 0.0, %v4457
      %v4459 = vpop.f32.mrb[0].mxu0
      %4460 = vmatprep.mubr.bf16.mxu0 0
      %4461 = vmatmul.mubr.bf16.gmra.mrb[0].mxu0 %v4332
      %v4462 = vpop.f32.mrb[0].mxu0
      %v4463 = vadd.f32 0.0, %v4462
      %v4464 = vpop.f32.mrb[0].mxu0
      %v4465 = vpop.f32.mrb[0].mxu0
      %v4466 = vadd.f32 0.0, %v4465
      %v4467 = vpop.f32.mrb[0].mxu0
      %4468 = vmatprep.mubr.bf16.mxu0 0
      %4469 = vmatmul.mubr.bf16.gmra.mrb[0].mxu0 %v4333
      %v4470 = vpop.f32.mrb[0].mxu0
      %v4471 = vadd.f32 0.0, %v4470
      %v4472 = vpop.f32.mrb[0].mxu0
      %v4473 = vpop.f32.mrb[0].mxu0
      %v4474 = vadd.f32 0.0, %v4473
      %v4475 = vpop.f32.mrb[0].mxu0
      %4476 = vmatprep.mubr.bf16.mxu0 0
      %4477 = vmatmul.mubr.bf16.gmra.mrb[0].mxu0 %v4334
      %v4478 = vpop.f32.mrb[0].mxu0
      %v4479 = vadd.f32 0.0, %v4478
      %v4480 = vpop.f32.mrb[0].mxu0
      %v4481 = vpop.f32.mrb[0].mxu0
      %v4482 = vadd.f32 0.0, %v4481
      %v4483 = vpop.f32.mrb[0].mxu0
      %4484 = vmatprep.mubr.bf16.mxu0 0
      %4485 = vmatmul.mubr.bf16.gmra.mrb[0].mxu0 %v4335
      %v4486 = vpop.f32.mrb[0].mxu0
      %v4487 = vadd.f32 0.0, %v4486
      %v4488 = vpop.f32.mrb[0].mxu0
      %v4489 = vpop.f32.mrb[0].mxu0
      %v4490 = vadd.f32 0.0, %v4489
      %v4491 = vpop.f32.mrb[0].mxu0
      %4492 = vmatprep.mubr.bf16.mxu0 0
      %4493 = vmatmul.mubr.bf16.gmra.mrb[0].mxu0 %v4336
      %v4494 = vpop.f32.mrb[0].mxu0
      %v4495 = vadd.f32 0.0, %v4494
      %v4496 = vpop.f32.mrb[0].mxu0
      %v4497 = vpop.f32.mrb[0].mxu0
      %v4498 = vadd.f32 0.0, %v4497
      %v4499 = vpop.f32.mrb[0].mxu0
      %4500 = vmatprep.mubr.bf16.mxu0 0
      %4501 = vmatmul.mubr.bf16.gmra.mrb[0].mxu0 %v4337
      %v4502 = vpop.f32.mrb[0].mxu0
      %v4503 = vadd.f32 0.0, %v4502
      %v4504 = vpop.f32.mrb[0].mxu0
      %v4505 = vpop.f32.mrb[0].mxu0
      %v4506 = vadd.f32 0.0, %v4505
      %v4507 = vpop.f32.mrb[0].mxu0
      %4508 = vmatprep.mubr.bf16.mxu0 0
      %4509 = vmatmul.mubr.bf16.gmra.mrb[0].mxu0 %v4338
      %v4510 = vpop.f32.mrb[0].mxu0
      %v4511 = vadd.f32 0.0, %v4510
      %v4512 = vpop.f32.mrb[0].mxu0
      %v4513 = vpop.f32.mrb[0].mxu0
      %v4514 = vadd.f32 0.0, %v4513
      %v4515 = vpop.f32.mrb[0].mxu0
      %4516 = vmatprep.mubr.bf16.mxu0 0
      %4517 = vmatmul.mubr.bf16.gmra.mrb[0].mxu0 %v4339
      %v4518 = vpop.f32.mrb[0].mxu0
      %v4519 = vadd.f32 0.0, %v4518
      %v4520 = vpop.f32.mrb[0].mxu0
      %v4521 = vpop.f32.mrb[0].mxu0
      %v4522 = vadd.f32 0.0, %v4521
      %v4523 = vpop.f32.mrb[0].mxu0
      %4524 = vmatprep.mubr.bf16.mxu0 0
      %4525 = vmatmul.mubr.bf16.gmra.mrb[0].mxu0 %v4340
      %v4526 = vpop.f32.mrb[0].mxu0
      %v4527 = vadd.f32 0.0, %v4526
      %v4528 = vpop.f32.mrb[0].mxu0
      %v4529 = vpop.f32.mrb[0].mxu0
      %v4530 = vadd.f32 0.0, %v4529
      %v4531 = vpop.f32.mrb[0].mxu0
      %4532 = vmatprep.mubr.bf16.mxu0 0
      %4533 = vmatmul.mubr.bf16.gmra.mrb[0].mxu0 %v4341
      %v4534 = vpop.f32.mrb[0].mxu0
      %v4535 = vadd.f32 0.0, %v4534
      %v4536 = vpop.f32.mrb[0].mxu0
      %v4537 = vpop.f32.mrb[0].mxu0
      %v4538 = vadd.f32 0.0, %v4537
      %v4539 = vpop.f32.mrb[0].mxu0
      %4540 = vmatprep.mubr.bf16.mxu0 0
      %4541 = vmatmul.mubr.bf16.gmra.mrb[0].mxu0 %v4342
      %v4542 = vpop.f32.mrb[0].mxu0
      %v4543 = vadd.f32 0.0, %v4542
      %v4544 = vpop.f32.mrb[0].mxu0
      %v4545 = vpop.f32.mrb[0].mxu0
      %v4546 = vadd.f32 0.0, %v4545
      %v4547 = vpop.f32.mrb[0].mxu0
      %4548 = vmatprep.mubr.bf16.mxu0 0
      %4549 = vmatmul.mubr.bf16.gmra.mrb[0].mxu0 %v4343
      %v4550 = vpop.f32.mrb[0].mxu0
      %v4551 = vadd.f32 0.0, %v4550
      %v4552 = vpop.f32.mrb[0].mxu0
      %v4553 = vpop.f32.mrb[0].mxu0
      %v4554 = vadd.f32 0.0, %v4553
      %v4555 = vpop.f32.mrb[0].mxu0
      %4556 = vmatprep.mubr.bf16.mxu0 0
      %4557 = vmatmul.mubr.bf16.gmra.mrb[0].mxu0 %v4344
      %v4558 = vpop.f32.mrb[0].mxu0
      %v4559 = vadd.f32 0.0, %v4558
      %v4560 = vpop.f32.mrb[0].mxu0
      %v4561 = vpop.f32.mrb[0].mxu0
      %v4562 = vadd.f32 0.0, %v4561
      %v4563 = vpop.f32.mrb[0].mxu0
      %4564 = vmatprep.mubr.bf16.mxu0 0
      %4565 = vmatmul.mubr.bf16.gmra.mrb[0].mxu0 %v4345
      %v4566 = vpop.f32.mrb[0].mxu0
      %v4567 = vadd.f32 0.0, %v4566
      %v4568 = vpop.f32.mrb[0].mxu0
      %v4569 = vpop.f32.mrb[0].mxu0
      %v4570 = vadd.f32 0.0, %v4569
      %v4571 = vpop.f32.mrb[0].mxu0
      %4572 = vmatprep.mubr.bf16.mxu0 0
      %4573 = vmatmul.mubr.bf16.gmra.mrb[0].mxu0 %v4346
      %v4574 = vpop.f32.mrb[0].mxu0
      %v4575 = vadd.f32 0.0, %v4574
      %v4576 = vpop.f32.mrb[0].mxu0
      %v4577 = vpop.f32.mrb[0].mxu0
      %v4578 = vadd.f32 0.0, %v4577
      %v4579 = vpop.f32.mrb[0].mxu0
      %4580 = vmatprep.mubr.bf16.mxu0 0
      %4581 = vmatmul.mubr.bf16.gmra.mrb[0].mxu0 %v4347
      %v4582 = vpop.f32.mrb[0].mxu0
      %v4583 = vadd.f32 0.0, %v4582
      %v4584 = vpop.f32.mrb[0].mxu0
      %v4585 = vpop.f32.mrb[0].mxu0
      %v4586 = vadd.f32 0.0, %v4585
      %v4587 = vpop.f32.mrb[0].mxu0
      %4588 = vmatprep.mubr.bf16.mxu0 0
      %4589 = vmatmul.mubr.bf16.gmra.mrb[0].mxu0 %v4348
      %v4590 = vpop.f32.mrb[0].mxu0
      %v4591 = vadd.f32 0.0, %v4590
      %v4592 = vpop.f32.mrb[0].mxu0
      %v4593 = vpop.f32.mrb[0].mxu0
      %v4594 = vadd.f32 0.0, %v4593
      %v4595 = vpop.f32.mrb[0].mxu0
      %4596 = vmatprep.mubr.bf16.mxu0 0
      %4597 = vmatmul.mubr.bf16.gmra.mrb[0].mxu0 %v4349
      %v4598 = vpop.f32.mrb[0].mxu0
      %v4599 = vadd.f32 0.0, %v4598
      %v4600 = vpop.f32.mrb[0].mxu0
      %v4601 = vpop.f32.mrb[0].mxu0
      %v4602 = vadd.f32 0.0, %v4601
      %v4603 = vpop.f32.mrb[0].mxu0
      %4604 = vmatprep.mubr.bf16.mxu0 0
      %4605 = vmatmul.mubr.bf16.gmra.mrb[0].mxu0 %v4350
      %v4606 = vpop.f32.mrb[0].mxu0
      %v4607 = vadd.f32 0.0, %v4606
      %v4608 = vpop.f32.mrb[0].mxu0
      %v4609 = vpop.f32.mrb[0].mxu0
      %v4610 = vadd.f32 0.0, %v4609
      %v4611 = vpop.f32.mrb[0].mxu0
      %4612 = vmatprep.mubr.bf16.mxu0 0
      %4613 = vmatmul.mubr.bf16.gmra.mrb[0].mxu0 %v4351
      %v4614 = vpop.f32.mrb[0].mxu0
      %v4615 = vadd.f32 0.0, %v4614
      %v4616 = vpop.f32.mrb[0].mxu0
      %v4617 = vpop.f32.mrb[0].mxu0
      %v4618 = vadd.f32 0.0, %v4617
      %v4619 = vpop.f32.mrb[0].mxu0
      %4620 = vmatprep.mubr.bf16.mxu0 0
      %4621 = vmatmul.mubr.bf16.gmra.mrb[0].mxu0 %v4352
      %v4622 = vpop.f32.mrb[0].mxu0
      %v4623 = vadd.f32 0.0, %v4622
      %v4624 = vpop.f32.mrb[0].mxu0
      %v4625 = vpop.f32.mrb[0].mxu0
      %v4626 = vadd.f32 0.0, %v4625
      %v4627 = vpop.f32.mrb[0].mxu0
      %4628 = vmatprep.mubr.bf16.mxu0 0
      %4629 = vmatmul.mubr.bf16.gmra.mrb[0].mxu0 %v4353
      %v4630 = vpop.f32.mrb[0].mxu0
      %v4631 = vadd.f32 0.0, %v4630
      %v4632 = vpop.f32.mrb[0].mxu0
      %v4633 = vpop.f32.mrb[0].mxu0
      %v4634 = vadd.f32 0.0, %v4633
      %v4635 = vpop.f32.mrb[0].mxu0
      %4636 = vmatprep.mubr.bf16.mxu0 0
      %4637 = vmatmul.mubr.bf16.gmra.mrb[0].mxu0 %v4354
      %v4638 = vpop.f32.mrb[0].mxu0
      %v4639 = vadd.f32 0.0, %v4638
      %v4640 = vpop.f32.mrb[0].mxu0
      %v4641 = vpop.f32.mrb[0].mxu0
      %v4642 = vadd.f32 0.0, %v4641
      %v4643 = vpop.f32.mrb[0].mxu0
      %4644 = vdwg.mxu0
      %v4645 = vadd.f32 %v4235, %v4455
      %v4646 = vadd.f32 %v4236, %v4458
      %v4647 = vadd.f32 %v4237, %v4463
      %v4648 = vadd.f32 %v4238, %v4466
      %v4649 = vadd.f32 %v4239, %v4471
      %v4650 = vadd.f32 %v4240, %v4474
      %v4651 = vadd.f32 %v4241, %v4479
      %v4652 = vadd.f32 %v4242, %v4482
      %v4653 = vadd.f32 %v4243, %v4487
      %v4654 = vadd.f32 %v4244, %v4490
      %v4655 = vadd.f32 %v4245, %v4495
      %v4656 = vadd.f32 %v4246, %v4498
      %v4657 = vadd.f32 %v4247, %v4503
      %v4658 = vadd.f32 %v4248, %v4506
      %v4659 = vadd.f32 %v4249, %v4511
      %v4660 = vadd.f32 %v4250, %v4514
      %v4661 = vadd.f32 %v4251, %v4519
      %v4662 = vadd.f32 %v4252, %v4522
      %v4663 = vadd.f32 %v4253, %v4527
      %v4664 = vadd.f32 %v4254, %v4530
      %v4665 = vadd.f32 %v4255, %v4535
      %v4666 = vadd.f32 %v4256, %v4538
      %v4667 = vadd.f32 %v4257, %v4543
      %v4668 = vadd.f32 %v4258, %v4546
      %v4669 = vadd.f32 %v4259, %v4551
      %v4670 = vadd.f32 %v4260, %v4554
      %v4671 = vadd.f32 %v4261, %v4559
      %v4672 = vadd.f32 %v4262, %v4562
      %v4673 = vadd.f32 %v4263, %v4567
      %v4674 = vadd.f32 %v4264, %v4570
      %v4675 = vadd.f32 %v4265, %v4575
      %v4676 = vadd.f32 %v4266, %v4578
      %v4677 = vadd.f32 %v4267, %v4583
      %v4678 = vadd.f32 %v4268, %v4586
      %v4679 = vadd.f32 %v4269, %v4591
      %v4680 = vadd.f32 %v4270, %v4594
      %v4681 = vadd.f32 %v4271, %v4599
      %v4682 = vadd.f32 %v4272, %v4602
      %v4683 = vadd.f32 %v4273, %v4607
      %v4684 = vadd.f32 %v4274, %v4610
      %v4685 = vadd.f32 %v4275, %v4615
      %v4686 = vadd.f32 %v4276, %v4618
      %v4687 = vadd.f32 %v4277, %v4623
      %v4688 = vadd.f32 %v4278, %v4626
      %v4689 = vadd.f32 %v4279, %v4631
      %v4690 = vadd.f32 %v4280, %v4634
      %v4691 = vadd.f32 %v4281, %v4639
      %v4692 = vadd.f32 %v4282, %v4642
      %v4693 = vld [vmem:[#allocation2 + $0x32] sm:$0xff]
      %v4694 = vld [vmem:[#allocation2 + $0x3a] sm:$0xff]
      %v4695 = vld [vmem:[#allocation2 + $0x42] sm:$0xff]
      %v4696 = vld [vmem:[#allocation2 + $0x4a] sm:$0xff]
      %v4697 = vld [vmem:[#allocation2 + $0x52] sm:$0xff]
      %v4698 = vld [vmem:[#allocation2 + $0x5a] sm:$0xff]
      %v4699 = vld [vmem:[#allocation2 + $0x62] sm:$0xff]
      %v4700 = vld [vmem:[#allocation2 + $0x6a] sm:$0xff]
      %v4701 = vld [vmem:[#allocation2 + $0x72] sm:$0xff]
      %v4702 = vld [vmem:[#allocation2 + $0x7a] sm:$0xff]
      %v4703 = vld [vmem:[#allocation2 + $0x82] sm:$0xff]
      %v4704 = vld [vmem:[#allocation2 + $0x8a] sm:$0xff]
      %v4705 = vld [vmem:[#allocation2 + $0x92] sm:$0xff]
      %v4706 = vld [vmem:[#allocation2 + $0x9a] sm:$0xff]
      %v4707 = vld [vmem:[#allocation2 + $0xa2] sm:$0xff]
      %v4708 = vld [vmem:[#allocation2 + $0xaa] sm:$0xff]
      %v4709 = vld [vmem:[#allocation2 + $0xb2] sm:$0xff]
      %v4710 = vld [vmem:[#allocation2 + $0xba] sm:$0xff]
      %v4711 = vld [vmem:[#allocation2 + $0xc2] sm:$0xff]
      %v4712 = vld [vmem:[#allocation2 + $0xca] sm:$0xff]
      %v4713 = vld [vmem:[#allocation2 + $0xd2] sm:$0xff]
      %v4714 = vld [vmem:[#allocation2 + $0xda] sm:$0xff]
      %v4715 = vld [vmem:[#allocation2 + $0xe2] sm:$0xff]
      %v4716 = vld [vmem:[#allocation2 + $0xea] sm:$0xff]
      %v4717 = vld [vmem:[#allocation2 + $0xf2] sm:$0xff]
      %v4718 = vld [vmem:[#allocation2 + $0xfa] sm:$0xff]
      %v4719 = vld [vmem:[#allocation2 + $0x102] sm:$0xff]
      %v4720 = vld [vmem:[#allocation2 + $0x10a] sm:$0xff]
      %v4721 = vld [vmem:[#allocation2 + $0x112] sm:$0xff]
      %v4722 = vld [vmem:[#allocation2 + $0x11a] sm:$0xff]
      %v4723 = vld [vmem:[#allocation2 + $0x122] sm:$0xff]
      %v4724 = vld [vmem:[#allocation2 + $0x12a] sm:$0xff]
      %v4725 = vld [vmem:[#allocation2 + $0x132] sm:$0xff]
      %v4726 = vld [vmem:[#allocation2 + $0x13a] sm:$0xff]
      %v4727 = vld [vmem:[#allocation2 + $0x142] sm:$0xff]
      %v4728 = vld [vmem:[#allocation2 + $0x14a] sm:$0xff]
      %v4729 = vld [vmem:[#allocation2 + $0x152] sm:$0xff]
      %v4730 = vld [vmem:[#allocation2 + $0x15a] sm:$0xff]
      %v4731 = vld [vmem:[#allocation2 + $0x162] sm:$0xff]
      %v4732 = vld [vmem:[#allocation2 + $0x16a] sm:$0xff]
      %v4733 = vld [vmem:[#allocation2 + $0x172] sm:$0xff]
      %v4734 = vld [vmem:[#allocation2 + $0x17a] sm:$0xff]
      %v4735 = vld [vmem:[#allocation2 + $0x182] sm:$0xff]
      %v4736 = vld [vmem:[#allocation2 + $0x18a] sm:$0xff]
      %v4737 = vld [vmem:[#allocation2 + $0x192] sm:$0xff]
      %v4738 = vld [vmem:[#allocation2 + $0x19a] sm:$0xff]
      %v4739 = vld [vmem:[#allocation2 + $0x1a2] sm:$0xff]
      %v4740 = vld [vmem:[#allocation2 + $0x1aa] sm:$0xff]
      %v4741 = vpack.c.bf16 %v4694, %v4693
      %v4742 = vpack.c.bf16 %v4696, %v4695
      %v4743 = vpack.c.bf16 %v4698, %v4697
      %v4744 = vpack.c.bf16 %v4700, %v4699
      %v4745 = vpack.c.bf16 %v4702, %v4701
      %v4746 = vpack.c.bf16 %v4704, %v4703
      %v4747 = vpack.c.bf16 %v4706, %v4705
      %v4748 = vpack.c.bf16 %v4708, %v4707
      %v4749 = vpack.c.bf16 %v4710, %v4709
      %v4750 = vpack.c.bf16 %v4712, %v4711
      %v4751 = vpack.c.bf16 %v4714, %v4713
      %v4752 = vpack.c.bf16 %v4716, %v4715
      %v4753 = vpack.c.bf16 %v4718, %v4717
      %v4754 = vpack.c.bf16 %v4720, %v4719
      %v4755 = vpack.c.bf16 %v4722, %v4721
      %v4756 = vpack.c.bf16 %v4724, %v4723
      %v4757 = vpack.c.bf16 %v4726, %v4725
      %v4758 = vpack.c.bf16 %v4728, %v4727
      %v4759 = vpack.c.bf16 %v4730, %v4729
      %v4760 = vpack.c.bf16 %v4732, %v4731
      %v4761 = vpack.c.bf16 %v4734, %v4733
      %v4762 = vpack.c.bf16 %v4736, %v4735
      %v4763 = vpack.c.bf16 %v4738, %v4737
      %v4764 = vpack.c.bf16 %v4740, %v4739
      %s4765 = scalar_lea.vmem %s1, 512
      %v4766 = vld [vmem:[%s4765] sm:$0xf]
      %v4767 = vld [vmem:[%s4765 + $0x4] sm:$0xf]
      %v4768 = vld [vmem:[%s4765 + $0x8] sm:$0xf]
      %v4769 = vld [vmem:[%s4765 + $0xc] sm:$0xf]
      %v4770 = vld [vmem:[%s4765 + $0x10] sm:$0xf]
      %v4771 = vld [vmem:[%s4765 + $0x14] sm:$0xf]
      %v4772 = vld [vmem:[%s4765 + $0x18] sm:$0xf]
      %v4773 = vld [vmem:[%s4765 + $0x1c] sm:$0xf]
      %v4774 = vld [vmem:[%s4765 + $0x20] sm:$0xf]
      %v4775 = vld [vmem:[%s4765 + $0x24] sm:$0xf]
      %v4776 = vld [vmem:[%s4765 + $0x28] sm:$0xf]
      %v4777 = vld [vmem:[%s4765 + $0x2c] sm:$0xf]
      %v4778 = vld [vmem:[%s4765 + $0x30] sm:$0xf]
      %v4779 = vld [vmem:[%s4765 + $0x34] sm:$0xf]
      %v4780 = vld [vmem:[%s4765 + $0x38] sm:$0xf]
      %v4781 = vld [vmem:[%s4765 + $0x3c] sm:$0xf]
      %v4798 = vunpack.c.l.b16 %v4766
      %v4799 = vunpack.c.l.b16 %v4767
      %v4800 = vunpack.c.l.b16 %v4768
      %v4801 = vunpack.c.l.b16 %v4769
      %v4802 = vunpack.c.l.b16 %v4770
      %v4803 = vunpack.c.l.b16 %v4771
      %v4804 = vunpack.c.l.b16 %v4772
      %v4805 = vunpack.c.l.b16 %v4773
      %v4806 = vunpack.c.l.b16 %v4774
      %v4807 = vunpack.c.l.b16 %v4775
      %v4808 = vunpack.c.l.b16 %v4776
      %v4809 = vunpack.c.l.b16 %v4777
      %v4810 = vunpack.c.l.b16 %v4778
      %v4811 = vunpack.c.l.b16 %v4779
      %v4812 = vunpack.c.l.b16 %v4780
      %v4813 = vunpack.c.l.b16 %v4781
      %v4814 = vpack.c.b16 %v4799, %v4798
      %v4815 = vpack.c.b16 %v4801, %v4800
      %v4816 = vpack.c.b16 %v4803, %v4802
      %v4817 = vpack.c.b16 %v4805, %v4804
      %v4818 = vpack.c.b16 %v4807, %v4806
      %v4819 = vpack.c.b16 %v4809, %v4808
      %v4820 = vpack.c.b16 %v4811, %v4810
      %v4821 = vpack.c.b16 %v4813, %v4812
      %4830 = vmatprep.subr.bf16.mxu0 0
      %4831 = vmatpush1.bf16.msra.mxu0 %v4814
      %4832 = vmatprep.subr.bf16.mxu0 0
      %4833 = vmatpush1.bf16.msra.mxu0 %v4815
      %4834 = vmatprep.subr.bf16.mxu0 0
      %4835 = vmatpush1.bf16.msra.mxu0 %v4816
      %4836 = vmatprep.subr.bf16.mxu0 0
      %4837 = vmatpush1.bf16.msra.mxu0 %v4817
      %4838 = vmatprep.subr.bf16.mxu0 0
      %4839 = vmatpush1.bf16.msra.mxu0 %v4818
      %4840 = vmatprep.subr.bf16.mxu0 0
      %4841 = vmatpush1.bf16.msra.mxu0 %v4819
      %4842 = vmatprep.subr.bf16.mxu0 0
      %4843 = vmatpush1.bf16.msra.mxu0 %v4820
      %4844 = vmatprep.subr.bf16.mxu0 0
      %4845 = vmatpush1.bf16.msra.mxu0 %v4821
      %4846 = vmatprep.subr.bf16.mxu0 0
      %4847 = vmatpush1.bf16.msra.mxu0 0
      %4848 = vmatprep.subr.bf16.mxu0 0
      %4849 = vmatpush1.bf16.msra.mxu0 0
      %4850 = vmatprep.subr.bf16.mxu0 0
      %4851 = vmatpush1.bf16.msra.mxu0 0
      %4852 = vmatprep.subr.bf16.mxu0 0
      %4853 = vmatpush1.bf16.msra.mxu0 0
      %4854 = vmatprep.subr.bf16.mxu0 0
      %4855 = vmatpush1.bf16.msra.mxu0 0
      %4856 = vmatprep.subr.bf16.mxu0 0
      %4857 = vmatpush1.bf16.msra.mxu0 0
      %4858 = vmatprep.subr.bf16.mxu0 0
      %4859 = vmatpush1.bf16.msra.mxu0 0
      %4860 = vmatprep.subr.bf16.mxu0 0
      %4861 = vmatpush1.bf16.msra.mxu0 0
      %4862 = vmatprep.mubr.bf16.mxu0 0
      %4863 = vmatmul.mubr.bf16.gmra.mrb[0].mxu0 %v4741
      %v4864 = vpop.f32.mrb[0].mxu0
      %v4865 = vadd.f32 0.0, %v4864
      %v4866 = vpop.f32.mrb[0].mxu0
      %v4867 = vpop.f32.mrb[0].mxu0
      %v4868 = vadd.f32 0.0, %v4867
      %v4869 = vpop.f32.mrb[0].mxu0
      %4870 = vmatprep.mubr.bf16.mxu0 0
      %4871 = vmatmul.mubr.bf16.gmra.mrb[0].mxu0 %v4742
      %v4872 = vpop.f32.mrb[0].mxu0
      %v4873 = vadd.f32 0.0, %v4872
      %v4874 = vpop.f32.mrb[0].mxu0
      %v4875 = vpop.f32.mrb[0].mxu0
      %v4876 = vadd.f32 0.0, %v4875
      %v4877 = vpop.f32.mrb[0].mxu0
      %4878 = vmatprep.mubr.bf16.mxu0 0
      %4879 = vmatmul.mubr.bf16.gmra.mrb[0].mxu0 %v4743
      %v4880 = vpop.f32.mrb[0].mxu0
      %v4881 = vadd.f32 0.0, %v4880
      %v4882 = vpop.f32.mrb[0].mxu0
      %v4883 = vpop.f32.mrb[0].mxu0
      %v4884 = vadd.f32 0.0, %v4883
      %v4885 = vpop.f32.mrb[0].mxu0
      %4886 = vmatprep.mubr.bf16.mxu0 0
      %4887 = vmatmul.mubr.bf16.gmra.mrb[0].mxu0 %v4744
      %v4888 = vpop.f32.mrb[0].mxu0
      %v4889 = vadd.f32 0.0, %v4888
      %v4890 = vpop.f32.mrb[0].mxu0
      %v4891 = vpop.f32.mrb[0].mxu0
      %v4892 = vadd.f32 0.0, %v4891
      %v4893 = vpop.f32.mrb[0].mxu0
      %4894 = vmatprep.mubr.bf16.mxu0 0
      %4895 = vmatmul.mubr.bf16.gmra.mrb[0].mxu0 %v4745
      %v4896 = vpop.f32.mrb[0].mxu0
      %v4897 = vadd.f32 0.0, %v4896
      %v4898 = vpop.f32.mrb[0].mxu0
      %v4899 = vpop.f32.mrb[0].mxu0
      %v4900 = vadd.f32 0.0, %v4899
      %v4901 = vpop.f32.mrb[0].mxu0
      %4902 = vmatprep.mubr.bf16.mxu0 0
      %4903 = vmatmul.mubr.bf16.gmra.mrb[0].mxu0 %v4746
      %v4904 = vpop.f32.mrb[0].mxu0
      %v4905 = vadd.f32 0.0, %v4904
      %v4906 = vpop.f32.mrb[0].mxu0
      %v4907 = vpop.f32.mrb[0].mxu0
      %v4908 = vadd.f32 0.0, %v4907
      %v4909 = vpop.f32.mrb[0].mxu0
      %4910 = vmatprep.mubr.bf16.mxu0 0
      %4911 = vmatmul.mubr.bf16.gmra.mrb[0].mxu0 %v4747
      %v4912 = vpop.f32.mrb[0].mxu0
      %v4913 = vadd.f32 0.0, %v4912
      %v4914 = vpop.f32.mrb[0].mxu0
      %v4915 = vpop.f32.mrb[0].mxu0
      %v4916 = vadd.f32 0.0, %v4915
      %v4917 = vpop.f32.mrb[0].mxu0
      %4918 = vmatprep.mubr.bf16.mxu0 0
      %4919 = vmatmul.mubr.bf16.gmra.mrb[0].mxu0 %v4748
      %v4920 = vpop.f32.mrb[0].mxu0
      %v4921 = vadd.f32 0.0, %v4920
      %v4922 = vpop.f32.mrb[0].mxu0
      %v4923 = vpop.f32.mrb[0].mxu0
      %v4924 = vadd.f32 0.0, %v4923
      %v4925 = vpop.f32.mrb[0].mxu0
      %4926 = vmatprep.mubr.bf16.mxu0 0
      %4927 = vmatmul.mubr.bf16.gmra.mrb[0].mxu0 %v4749
      %v4928 = vpop.f32.mrb[0].mxu0
      %v4929 = vadd.f32 0.0, %v4928
      %v4930 = vpop.f32.mrb[0].mxu0
      %v4931 = vpop.f32.mrb[0].mxu0
      %v4932 = vadd.f32 0.0, %v4931
      %v4933 = vpop.f32.mrb[0].mxu0
      %4934 = vmatprep.mubr.bf16.mxu0 0
      %4935 = vmatmul.mubr.bf16.gmra.mrb[0].mxu0 %v4750
      %v4936 = vpop.f32.mrb[0].mxu0
      %v4937 = vadd.f32 0.0, %v4936
      %v4938 = vpop.f32.mrb[0].mxu0
      %v4939 = vpop.f32.mrb[0].mxu0
      %v4940 = vadd.f32 0.0, %v4939
      %v4941 = vpop.f32.mrb[0].mxu0
      %4942 = vmatprep.mubr.bf16.mxu0 0
      %4943 = vmatmul.mubr.bf16.gmra.mrb[0].mxu0 %v4751
      %v4944 = vpop.f32.mrb[0].mxu0
      %v4945 = vadd.f32 0.0, %v4944
      %v4946 = vpop.f32.mrb[0].mxu0
      %v4947 = vpop.f32.mrb[0].mxu0
      %v4948 = vadd.f32 0.0, %v4947
      %v4949 = vpop.f32.mrb[0].mxu0
      %4950 = vmatprep.mubr.bf16.mxu0 0
      %4951 = vmatmul.mubr.bf16.gmra.mrb[0].mxu0 %v4752
      %v4952 = vpop.f32.mrb[0].mxu0
      %v4953 = vadd.f32 0.0, %v4952
      %v4954 = vpop.f32.mrb[0].mxu0
      %v4955 = vpop.f32.mrb[0].mxu0
      %v4956 = vadd.f32 0.0, %v4955
      %v4957 = vpop.f32.mrb[0].mxu0
      %4958 = vmatprep.mubr.bf16.mxu0 0
      %4959 = vmatmul.mubr.bf16.gmra.mrb[0].mxu0 %v4753
      %v4960 = vpop.f32.mrb[0].mxu0
      %v4961 = vadd.f32 0.0, %v4960
      %v4962 = vpop.f32.mrb[0].mxu0
      %v4963 = vpop.f32.mrb[0].mxu0
      %v4964 = vadd.f32 0.0, %v4963
      %v4965 = vpop.f32.mrb[0].mxu0
      %4966 = vmatprep.mubr.bf16.mxu0 0
      %4967 = vmatmul.mubr.bf16.gmra.mrb[0].mxu0 %v4754
      %v4968 = vpop.f32.mrb[0].mxu0
      %v4969 = vadd.f32 0.0, %v4968
      %v4970 = vpop.f32.mrb[0].mxu0
      %v4971 = vpop.f32.mrb[0].mxu0
      %v4972 = vadd.f32 0.0, %v4971
      %v4973 = vpop.f32.mrb[0].mxu0
      %4974 = vmatprep.mubr.bf16.mxu0 0
      %4975 = vmatmul.mubr.bf16.gmra.mrb[0].mxu0 %v4755
      %v4976 = vpop.f32.mrb[0].mxu0
      %v4977 = vadd.f32 0.0, %v4976
      %v4978 = vpop.f32.mrb[0].mxu0
      %v4979 = vpop.f32.mrb[0].mxu0
      %v4980 = vadd.f32 0.0, %v4979
      %v4981 = vpop.f32.mrb[0].mxu0
      %4982 = vmatprep.mubr.bf16.mxu0 0
      %4983 = vmatmul.mubr.bf16.gmra.mrb[0].mxu0 %v4756
      %v4984 = vpop.f32.mrb[0].mxu0
      %v4985 = vadd.f32 0.0, %v4984
      %v4986 = vpop.f32.mrb[0].mxu0
      %v4987 = vpop.f32.mrb[0].mxu0
      %v4988 = vadd.f32 0.0, %v4987
      %v4989 = vpop.f32.mrb[0].mxu0
      %4990 = vmatprep.mubr.bf16.mxu0 0
      %4991 = vmatmul.mubr.bf16.gmra.mrb[0].mxu0 %v4757
      %v4992 = vpop.f32.mrb[0].mxu0
      %v4993 = vadd.f32 0.0, %v4992
      %v4994 = vpop.f32.mrb[0].mxu0
      %v4995 = vpop.f32.mrb[0].mxu0
      %v4996 = vadd.f32 0.0, %v4995
      %v4997 = vpop.f32.mrb[0].mxu0
      %4998 = vmatprep.mubr.bf16.mxu0 0
      %4999 = vmatmul.mubr.bf16.gmra.mrb[0].mxu0 %v4758
      %v5000 = vpop.f32.mrb[0].mxu0
      %v5001 = vadd.f32 0.0, %v5000
      %v5002 = vpop.f32.mrb[0].mxu0
      %v5003 = vpop.f32.mrb[0].mxu0
      %v5004 = vadd.f32 0.0, %v5003
      %v5005 = vpop.f32.mrb[0].mxu0
      %5006 = vmatprep.mubr.bf16.mxu0 0
      %5007 = vmatmul.mubr.bf16.gmra.mrb[0].mxu0 %v4759
      %v5008 = vpop.f32.mrb[0].mxu0
      %v5009 = vadd.f32 0.0, %v5008
      %v5010 = vpop.f32.mrb[0].mxu0
      %v5011 = vpop.f32.mrb[0].mxu0
      %v5012 = vadd.f32 0.0, %v5011
      %v5013 = vpop.f32.mrb[0].mxu0
      %5014 = vmatprep.mubr.bf16.mxu0 0
      %5015 = vmatmul.mubr.bf16.gmra.mrb[0].mxu0 %v4760
      %v5016 = vpop.f32.mrb[0].mxu0
      %v5017 = vadd.f32 0.0, %v5016
      %v5018 = vpop.f32.mrb[0].mxu0
      %v5019 = vpop.f32.mrb[0].mxu0
      %v5020 = vadd.f32 0.0, %v5019
      %v5021 = vpop.f32.mrb[0].mxu0
      %5022 = vmatprep.mubr.bf16.mxu0 0
      %5023 = vmatmul.mubr.bf16.gmra.mrb[0].mxu0 %v4761
      %v5024 = vpop.f32.mrb[0].mxu0
      %v5025 = vadd.f32 0.0, %v5024
      %v5026 = vpop.f32.mrb[0].mxu0
      %v5027 = vpop.f32.mrb[0].mxu0
      %v5028 = vadd.f32 0.0, %v5027
      %v5029 = vpop.f32.mrb[0].mxu0
      %5030 = vmatprep.mubr.bf16.mxu0 0
      %5031 = vmatmul.mubr.bf16.gmra.mrb[0].mxu0 %v4762
      %v5032 = vpop.f32.mrb[0].mxu0
      %v5033 = vadd.f32 0.0, %v5032
      %v5034 = vpop.f32.mrb[0].mxu0
      %v5035 = vpop.f32.mrb[0].mxu0
      %v5036 = vadd.f32 0.0, %v5035
      %v5037 = vpop.f32.mrb[0].mxu0
      %5038 = vmatprep.mubr.bf16.mxu0 0
      %5039 = vmatmul.mubr.bf16.gmra.mrb[0].mxu0 %v4763
      %v5040 = vpop.f32.mrb[0].mxu0
      %v5041 = vadd.f32 0.0, %v5040
      %v5042 = vpop.f32.mrb[0].mxu0
      %v5043 = vpop.f32.mrb[0].mxu0
      %v5044 = vadd.f32 0.0, %v5043
      %v5045 = vpop.f32.mrb[0].mxu0
      %5046 = vmatprep.mubr.bf16.mxu0 0
      %5047 = vmatmul.mubr.bf16.gmra.mrb[0].mxu0 %v4764
      %v5048 = vpop.f32.mrb[0].mxu0
      %v5049 = vadd.f32 0.0, %v5048
      %v5050 = vpop.f32.mrb[0].mxu0
      %v5051 = vpop.f32.mrb[0].mxu0
      %v5052 = vadd.f32 0.0, %v5051
      %v5053 = vpop.f32.mrb[0].mxu0
      %5054 = vdwg.mxu0
      %v5055 = vadd.f32 %v4645, %v4865
      %v5056 = vadd.f32 %v4646, %v4868
      %v5057 = vadd.f32 %v4647, %v4873
      %v5058 = vadd.f32 %v4648, %v4876
      %v5059 = vadd.f32 %v4649, %v4881
      %v5060 = vadd.f32 %v4650, %v4884
      %v5061 = vadd.f32 %v4651, %v4889
      %v5062 = vadd.f32 %v4652, %v4892
      %v5063 = vadd.f32 %v4653, %v4897
      %v5064 = vadd.f32 %v4654, %v4900
      %v5065 = vadd.f32 %v4655, %v4905
      %v5066 = vadd.f32 %v4656, %v4908
      %v5067 = vadd.f32 %v4657, %v4913
      %v5068 = vadd.f32 %v4658, %v4916
      %v5069 = vadd.f32 %v4659, %v4921
      %v5070 = vadd.f32 %v4660, %v4924
      %v5071 = vadd.f32 %v4661, %v4929
      %v5072 = vadd.f32 %v4662, %v4932
      %v5073 = vadd.f32 %v4663, %v4937
      %v5074 = vadd.f32 %v4664, %v4940
      %v5075 = vadd.f32 %v4665, %v4945
      %v5076 = vadd.f32 %v4666, %v4948
      %v5077 = vadd.f32 %v4667, %v4953
      %v5078 = vadd.f32 %v4668, %v4956
      %v5079 = vadd.f32 %v4669, %v4961
      %v5080 = vadd.f32 %v4670, %v4964
      %v5081 = vadd.f32 %v4671, %v4969
      %v5082 = vadd.f32 %v4672, %v4972
      %v5083 = vadd.f32 %v4673, %v4977
      %v5084 = vadd.f32 %v4674, %v4980
      %v5085 = vadd.f32 %v4675, %v4985
      %v5086 = vadd.f32 %v4676, %v4988
      %v5087 = vadd.f32 %v4677, %v4993
      %v5088 = vadd.f32 %v4678, %v4996
      %v5089 = vadd.f32 %v4679, %v5001
      %v5090 = vadd.f32 %v4680, %v5004
      %v5091 = vadd.f32 %v4681, %v5009
      %v5092 = vadd.f32 %v4682, %v5012
      %v5093 = vadd.f32 %v4683, %v5017
      %v5094 = vadd.f32 %v4684, %v5020
      %v5095 = vadd.f32 %v4685, %v5025
      %v5096 = vadd.f32 %v4686, %v5028
      %v5097 = vadd.f32 %v4687, %v5033
      %v5098 = vadd.f32 %v4688, %v5036
      %v5099 = vadd.f32 %v4689, %v5041
      %v5100 = vadd.f32 %v4690, %v5044
      %v5101 = vadd.f32 %v4691, %v5049
      %v5102 = vadd.f32 %v4692, %v5052
      %v5104 = vlaneseq
      %v5105 = vshrl.u32 %v5104, 7
      %v5106 = vsub.s32 0, %v5105
      %v5107 = vrot.slane %v547, %v5106
      %v5109 = vadd.f32 %v5055, %v5107
      %v5110 = vadd.f32 %v5056, %v5107
      %v5111 = vadd.f32 %v5057, %v5107
      %v5112 = vadd.f32 %v5058, %v5107
      %v5113 = vadd.f32 %v5059, %v5107
      %v5114 = vadd.f32 %v5060, %v5107
      %v5115 = vadd.f32 %v5061, %v5107
      %v5116 = vadd.f32 %v5062, %v5107
      %v5117 = vadd.f32 %v5063, %v5107
      %v5118 = vadd.f32 %v5064, %v5107
      %v5119 = vadd.f32 %v5065, %v5107
      %v5120 = vadd.f32 %v5066, %v5107
      %v5121 = vadd.f32 %v5067, %v5107
      %v5122 = vadd.f32 %v5068, %v5107
      %v5123 = vadd.f32 %v5069, %v5107
      %v5124 = vadd.f32 %v5070, %v5107
      %v5125 = vadd.f32 %v5071, %v5107
      %v5126 = vadd.f32 %v5072, %v5107
      %v5127 = vadd.f32 %v5073, %v5107
      %v5128 = vadd.f32 %v5074, %v5107
      %v5129 = vadd.f32 %v5075, %v5107
      %v5130 = vadd.f32 %v5076, %v5107
      %v5131 = vadd.f32 %v5077, %v5107
      %v5132 = vadd.f32 %v5078, %v5107
      %v5133 = vadd.f32 %v5079, %v5107
      %v5134 = vadd.f32 %v5080, %v5107
      %v5135 = vadd.f32 %v5081, %v5107
      %v5136 = vadd.f32 %v5082, %v5107
      %v5137 = vadd.f32 %v5083, %v5107
      %v5138 = vadd.f32 %v5084, %v5107
      %v5139 = vadd.f32 %v5085, %v5107
      %v5140 = vadd.f32 %v5086, %v5107
      %v5141 = vadd.f32 %v5087, %v5107
      %v5142 = vadd.f32 %v5088, %v5107
      %v5143 = vadd.f32 %v5089, %v5107
      %v5144 = vadd.f32 %v5090, %v5107
      %v5145 = vadd.f32 %v5091, %v5107
      %v5146 = vadd.f32 %v5092, %v5107
      %v5147 = vadd.f32 %v5093, %v5107
      %v5148 = vadd.f32 %v5094, %v5107
      %v5149 = vadd.f32 %v5095, %v5107
      %v5150 = vadd.f32 %v5096, %v5107
      %v5151 = vadd.f32 %v5097, %v5107
      %v5152 = vadd.f32 %v5098, %v5107
      %v5153 = vadd.f32 %v5099, %v5107
      %v5154 = vadd.f32 %v5100, %v5107
      %v5155 = vadd.f32 %v5101, %v5107
      %v5156 = vadd.f32 %v5102, %v5107
      %vm5157 = vcmp.gt.f32.partialorder %v5109, 0.0
      %vm5158 = vcmp.gt.f32.partialorder %v5110, 0.0
      %vm5159 = vcmp.gt.f32.partialorder %v5111, 0.0
      %vm5160 = vcmp.gt.f32.partialorder %v5112, 0.0
      %vm5161 = vcmp.gt.f32.partialorder %v5113, 0.0
      %vm5162 = vcmp.gt.f32.partialorder %v5114, 0.0
      %vm5163 = vcmp.gt.f32.partialorder %v5115, 0.0
      %vm5164 = vcmp.gt.f32.partialorder %v5116, 0.0
      %vm5165 = vcmp.gt.f32.partialorder %v5117, 0.0
      %vm5166 = vcmp.gt.f32.partialorder %v5118, 0.0
      %vm5167 = vcmp.gt.f32.partialorder %v5119, 0.0
      %vm5168 = vcmp.gt.f32.partialorder %v5120, 0.0
      %vm5169 = vcmp.gt.f32.partialorder %v5121, 0.0
      %vm5170 = vcmp.gt.f32.partialorder %v5122, 0.0
      %vm5171 = vcmp.gt.f32.partialorder %v5123, 0.0
      %vm5172 = vcmp.gt.f32.partialorder %v5124, 0.0
      %vm5173 = vcmp.gt.f32.partialorder %v5125, 0.0
      %vm5174 = vcmp.gt.f32.partialorder %v5126, 0.0
      %vm5175 = vcmp.gt.f32.partialorder %v5127, 0.0
      %vm5176 = vcmp.gt.f32.partialorder %v5128, 0.0
      %vm5177 = vcmp.gt.f32.partialorder %v5129, 0.0
      %vm5178 = vcmp.gt.f32.partialorder %v5130, 0.0
      %vm5179 = vcmp.gt.f32.partialorder %v5131, 0.0
      %vm5180 = vcmp.gt.f32.partialorder %v5132, 0.0
      %vm5181 = vcmp.gt.f32.partialorder %v5133, 0.0
      %vm5182 = vcmp.gt.f32.partialorder %v5134, 0.0
      %vm5183 = vcmp.gt.f32.partialorder %v5135, 0.0
      %vm5184 = vcmp.gt.f32.partialorder %v5136, 0.0
      %vm5185 = vcmp.gt.f32.partialorder %v5137, 0.0
      %vm5186 = vcmp.gt.f32.partialorder %v5138, 0.0
      %vm5187 = vcmp.gt.f32.partialorder %v5139, 0.0
      %vm5188 = vcmp.gt.f32.partialorder %v5140, 0.0
      %vm5189 = vcmp.gt.f32.partialorder %v5141, 0.0
      %vm5190 = vcmp.gt.f32.partialorder %v5142, 0.0
      %vm5191 = vcmp.gt.f32.partialorder %v5143, 0.0
      %vm5192 = vcmp.gt.f32.partialorder %v5144, 0.0
      %vm5193 = vcmp.gt.f32.partialorder %v5145, 0.0
      %vm5194 = vcmp.gt.f32.partialorder %v5146, 0.0
      %vm5195 = vcmp.gt.f32.partialorder %v5147, 0.0
      %vm5196 = vcmp.gt.f32.partialorder %v5148, 0.0
      %vm5197 = vcmp.gt.f32.partialorder %v5149, 0.0
      %vm5198 = vcmp.gt.f32.partialorder %v5150, 0.0
      %vm5199 = vcmp.gt.f32.partialorder %v5151, 0.0
      %vm5200 = vcmp.gt.f32.partialorder %v5152, 0.0
      %vm5201 = vcmp.gt.f32.partialorder %v5153, 0.0
      %vm5202 = vcmp.gt.f32.partialorder %v5154, 0.0
      %vm5203 = vcmp.gt.f32.partialorder %v5155, 0.0
      %vm5204 = vcmp.gt.f32.partialorder %v5156, 0.0
      %v5205 = vmul.f32 %v5109, 0.2
      %v5206 = vmul.f32 %v5110, 0.2
      %v5207 = vmul.f32 %v5111, 0.2
      %v5208 = vmul.f32 %v5112, 0.2
      %v5209 = vmul.f32 %v5113, 0.2
      %v5210 = vmul.f32 %v5114, 0.2
      %v5211 = vmul.f32 %v5115, 0.2
      %v5212 = vmul.f32 %v5116, 0.2
      %v5213 = vmul.f32 %v5117, 0.2
      %v5214 = vmul.f32 %v5118, 0.2
      %v5215 = vmul.f32 %v5119, 0.2
      %v5216 = vmul.f32 %v5120, 0.2
      %v5217 = vmul.f32 %v5121, 0.2
      %v5218 = vmul.f32 %v5122, 0.2
      %v5219 = vmul.f32 %v5123, 0.2
      %v5220 = vmul.f32 %v5124, 0.2
      %v5221 = vmul.f32 %v5125, 0.2
      %v5222 = vmul.f32 %v5126, 0.2
      %v5223 = vmul.f32 %v5127, 0.2
      %v5224 = vmul.f32 %v5128, 0.2
      %v5225 = vmul.f32 %v5129, 0.2
      %v5226 = vmul.f32 %v5130, 0.2
      %v5227 = vmul.f32 %v5131, 0.2
      %v5228 = vmul.f32 %v5132, 0.2
      %v5229 = vmul.f32 %v5133, 0.2
      %v5230 = vmul.f32 %v5134, 0.2
      %v5231 = vmul.f32 %v5135, 0.2
      %v5232 = vmul.f32 %v5136, 0.2
      %v5233 = vmul.f32 %v5137, 0.2
      %v5234 = vmul.f32 %v5138, 0.2
      %v5235 = vmul.f32 %v5139, 0.2
      %v5236 = vmul.f32 %v5140, 0.2
      %v5237 = vmul.f32 %v5141, 0.2
      %v5238 = vmul.f32 %v5142, 0.2
      %v5239 = vmul.f32 %v5143, 0.2
      %v5240 = vmul.f32 %v5144, 0.2
      %v5241 = vmul.f32 %v5145, 0.2
      %v5242 = vmul.f32 %v5146, 0.2
      %v5243 = vmul.f32 %v5147, 0.2
      %v5244 = vmul.f32 %v5148, 0.2
      %v5245 = vmul.f32 %v5149, 0.2
      %v5246 = vmul.f32 %v5150, 0.2
      %v5247 = vmul.f32 %v5151, 0.2
      %v5248 = vmul.f32 %v5152, 0.2
      %v5249 = vmul.f32 %v5153, 0.2
      %v5250 = vmul.f32 %v5154, 0.2
      %v5251 = vmul.f32 %v5155, 0.2
      %v5252 = vmul.f32 %v5156, 0.2
      %v5253 = vsel %vm5157, %v5109, %v5205
      %v5254 = vsel %vm5158, %v5110, %v5206
      %v5255 = vsel %vm5159, %v5111, %v5207
      %v5256 = vsel %vm5160, %v5112, %v5208
      %v5257 = vsel %vm5161, %v5113, %v5209
      %v5258 = vsel %vm5162, %v5114, %v5210
      %v5259 = vsel %vm5163, %v5115, %v5211
      %v5260 = vsel %vm5164, %v5116, %v5212
      %v5261 = vsel %vm5165, %v5117, %v5213
      %v5262 = vsel %vm5166, %v5118, %v5214
      %v5263 = vsel %vm5167, %v5119, %v5215
      %v5264 = vsel %vm5168, %v5120, %v5216
      %v5265 = vsel %vm5169, %v5121, %v5217
      %v5266 = vsel %vm5170, %v5122, %v5218
      %v5267 = vsel %vm5171, %v5123, %v5219
      %v5268 = vsel %vm5172, %v5124, %v5220
      %v5269 = vsel %vm5173, %v5125, %v5221
      %v5270 = vsel %vm5174, %v5126, %v5222
      %v5271 = vsel %vm5175, %v5127, %v5223
      %v5272 = vsel %vm5176, %v5128, %v5224
      %v5273 = vsel %vm5177, %v5129, %v5225
      %v5274 = vsel %vm5178, %v5130, %v5226
      %v5275 = vsel %vm5179, %v5131, %v5227
      %v5276 = vsel %vm5180, %v5132, %v5228
      %v5277 = vsel %vm5181, %v5133, %v5229
      %v5278 = vsel %vm5182, %v5134, %v5230
      %v5279 = vsel %vm5183, %v5135, %v5231
      %v5280 = vsel %vm5184, %v5136, %v5232
      %v5281 = vsel %vm5185, %v5137, %v5233
      %v5282 = vsel %vm5186, %v5138, %v5234
      %v5283 = vsel %vm5187, %v5139, %v5235
      %v5284 = vsel %vm5188, %v5140, %v5236
      %v5285 = vsel %vm5189, %v5141, %v5237
      %v5286 = vsel %vm5190, %v5142, %v5238
      %v5287 = vsel %vm5191, %v5143, %v5239
      %v5288 = vsel %vm5192, %v5144, %v5240
      %v5289 = vsel %vm5193, %v5145, %v5241
      %v5290 = vsel %vm5194, %v5146, %v5242
      %v5291 = vsel %vm5195, %v5147, %v5243
      %v5292 = vsel %vm5196, %v5148, %v5244
      %v5293 = vsel %vm5197, %v5149, %v5245
      %v5294 = vsel %vm5198, %v5150, %v5246
      %v5295 = vsel %vm5199, %v5151, %v5247
      %v5296 = vsel %vm5200, %v5152, %v5248
      %v5297 = vsel %vm5201, %v5153, %v5249
      %v5298 = vsel %vm5202, %v5154, %v5250
      %v5299 = vsel %vm5203, %v5155, %v5251
      %v5300 = vsel %vm5204, %v5156, %v5252
      %v5301 = vsel %vm1462, 1, 0
      %v5302 = vsel %vm1463, 1, 0
      %v5303 = vsel %vm1464, 1, 0
      %v5304 = vsel %vm1465, 1, 0
      %v5305 = vsel %vm1466, 1, 0
      %v5306 = vsel %vm1467, 1, 0
      %v5307 = vsel %vm1468, 1, 0
      %v5308 = vsel %vm1469, 1, 0
      %v5309 = vsel %vm1470, 1, 0
      %v5310 = vsel %vm1471, 1, 0
      %v5311 = vsel %vm1472, 1, 0
      %v5312 = vsel %vm1473, 1, 0
      %v5313 = vsel %vm1474, 1, 0
      %v5314 = vsel %vm1475, 1, 0
      %v5315 = vsel %vm1476, 1, 0
      %v5316 = vsel %vm1477, 1, 0
      %v5317 = vsel %vm1478, 1, 0
      %v5318 = vsel %vm1479, 1, 0
      %v5319 = vsel %vm1480, 1, 0
      %v5320 = vsel %vm1481, 1, 0
      %v5321 = vsel %vm1482, 1, 0
      %v5322 = vsel %vm1483, 1, 0
      %v5323 = vsel %vm1484, 1, 0
      %v5324 = vsel %vm1485, 1, 0
      %v5325 = vsel %vm1486, 1, 0
      %v5326 = vsel %vm1487, 1, 0
      %v5327 = vsel %vm1488, 1, 0
      %v5328 = vsel %vm1489, 1, 0
      %v5329 = vsel %vm1490, 1, 0
      %v5330 = vsel %vm1491, 1, 0
      %v5331 = vsel %vm1492, 1, 0
      %v5332 = vsel %vm1493, 1, 0
      %v5333 = vsel %vm1494, 1, 0
      %v5334 = vsel %vm1495, 1, 0
      %v5335 = vsel %vm1496, 1, 0
      %v5336 = vsel %vm1497, 1, 0
      %v5337 = vsel %vm1498, 1, 0
      %v5338 = vsel %vm1499, 1, 0
      %v5339 = vsel %vm1500, 1, 0
      %v5340 = vsel %vm1501, 1, 0
      %v5341 = vsel %vm1502, 1, 0
      %v5342 = vsel %vm1503, 1, 0
      %v5343 = vsel %vm1504, 1, 0
      %v5344 = vsel %vm1505, 1, 0
      %v5345 = vsel %vm1506, 1, 0
      %v5346 = vsel %vm1507, 1, 0
      %v5347 = vsel %vm1508, 1, 0
      %v5348 = vsel %vm1509, 1, 0
      %vm5349 = vcmp.eq.s32.totalorder %v5301, 1
      %vm5350 = vcmp.eq.s32.totalorder %v5302, 1
      %vm5351 = vcmp.eq.s32.totalorder %v5303, 1
      %vm5352 = vcmp.eq.s32.totalorder %v5304, 1
      %vm5353 = vcmp.eq.s32.totalorder %v5305, 1
      %vm5354 = vcmp.eq.s32.totalorder %v5306, 1
      %vm5355 = vcmp.eq.s32.totalorder %v5307, 1
      %vm5356 = vcmp.eq.s32.totalorder %v5308, 1
      %vm5357 = vcmp.eq.s32.totalorder %v5309, 1
      %vm5358 = vcmp.eq.s32.totalorder %v5310, 1
      %vm5359 = vcmp.eq.s32.totalorder %v5311, 1
      %vm5360 = vcmp.eq.s32.totalorder %v5312, 1
      %vm5361 = vcmp.eq.s32.totalorder %v5313, 1
      %vm5362 = vcmp.eq.s32.totalorder %v5314, 1
      %vm5363 = vcmp.eq.s32.totalorder %v5315, 1
      %vm5364 = vcmp.eq.s32.totalorder %v5316, 1
      %vm5365 = vcmp.eq.s32.totalorder %v5317, 1
      %vm5366 = vcmp.eq.s32.totalorder %v5318, 1
      %vm5367 = vcmp.eq.s32.totalorder %v5319, 1
      %vm5368 = vcmp.eq.s32.totalorder %v5320, 1
      %vm5369 = vcmp.eq.s32.totalorder %v5321, 1
      %vm5370 = vcmp.eq.s32.totalorder %v5322, 1
      %vm5371 = vcmp.eq.s32.totalorder %v5323, 1
      %vm5372 = vcmp.eq.s32.totalorder %v5324, 1
      %vm5373 = vcmp.eq.s32.totalorder %v5325, 1
      %vm5374 = vcmp.eq.s32.totalorder %v5326, 1
      %vm5375 = vcmp.eq.s32.totalorder %v5327, 1
      %vm5376 = vcmp.eq.s32.totalorder %v5328, 1
      %vm5377 = vcmp.eq.s32.totalorder %v5329, 1
      %vm5378 = vcmp.eq.s32.totalorder %v5330, 1
      %vm5379 = vcmp.eq.s32.totalorder %v5331, 1
      %vm5380 = vcmp.eq.s32.totalorder %v5332, 1
      %vm5381 = vcmp.eq.s32.totalorder %v5333, 1
      %vm5382 = vcmp.eq.s32.totalorder %v5334, 1
      %vm5383 = vcmp.eq.s32.totalorder %v5335, 1
      %vm5384 = vcmp.eq.s32.totalorder %v5336, 1
      %vm5385 = vcmp.eq.s32.totalorder %v5337, 1
      %vm5386 = vcmp.eq.s32.totalorder %v5338, 1
      %vm5387 = vcmp.eq.s32.totalorder %v5339, 1
      %vm5388 = vcmp.eq.s32.totalorder %v5340, 1
      %vm5389 = vcmp.eq.s32.totalorder %v5341, 1
      %vm5390 = vcmp.eq.s32.totalorder %v5342, 1
      %vm5391 = vcmp.eq.s32.totalorder %v5343, 1
      %vm5392 = vcmp.eq.s32.totalorder %v5344, 1
      %vm5393 = vcmp.eq.s32.totalorder %v5345, 1
      %vm5394 = vcmp.eq.s32.totalorder %v5346, 1
      %vm5395 = vcmp.eq.s32.totalorder %v5347, 1
      %vm5396 = vcmp.eq.s32.totalorder %v5348, 1
      %v5397 = vsel %vm5349, %v5253, 0.0
      %v5398 = vsel %vm5350, %v5254, 0.0
      %v5399 = vsel %vm5351, %v5255, 0.0
      %v5400 = vsel %vm5352, %v5256, 0.0
      %v5401 = vsel %vm5353, %v5257, 0.0
      %v5402 = vsel %vm5354, %v5258, 0.0
      %v5403 = vsel %vm5355, %v5259, 0.0
      %v5404 = vsel %vm5356, %v5260, 0.0
      %v5405 = vsel %vm5357, %v5261, 0.0
      %v5406 = vsel %vm5358, %v5262, 0.0
      %v5407 = vsel %vm5359, %v5263, 0.0
      %v5408 = vsel %vm5360, %v5264, 0.0
      %v5409 = vsel %vm5361, %v5265, 0.0
      %v5410 = vsel %vm5362, %v5266, 0.0
      %v5411 = vsel %vm5363, %v5267, 0.0
      %v5412 = vsel %vm5364, %v5268, 0.0
      %v5413 = vsel %vm5365, %v5269, 0.0
      %v5414 = vsel %vm5366, %v5270, 0.0
      %v5415 = vsel %vm5367, %v5271, 0.0
      %v5416 = vsel %vm5368, %v5272, 0.0
      %v5417 = vsel %vm5369, %v5273, 0.0
      %v5418 = vsel %vm5370, %v5274, 0.0
      %v5419 = vsel %vm5371, %v5275, 0.0
      %v5420 = vsel %vm5372, %v5276, 0.0
      %v5421 = vsel %vm5373, %v5277, 0.0
      %v5422 = vsel %vm5374, %v5278, 0.0
      %v5423 = vsel %vm5375, %v5279, 0.0
      %v5424 = vsel %vm5376, %v5280, 0.0
      %v5425 = vsel %vm5377, %v5281, 0.0
      %v5426 = vsel %vm5378, %v5282, 0.0
      %v5427 = vsel %vm5379, %v5283, 0.0
      %v5428 = vsel %vm5380, %v5284, 0.0
      %v5429 = vsel %vm5381, %v5285, 0.0
      %v5430 = vsel %vm5382, %v5286, 0.0
      %v5431 = vsel %vm5383, %v5287, 0.0
      %v5432 = vsel %vm5384, %v5288, 0.0
      %v5433 = vsel %vm5385, %v5289, 0.0
      %v5434 = vsel %vm5386, %v5290, 0.0
      %v5435 = vsel %vm5387, %v5291, 0.0
      %v5436 = vsel %vm5388, %v5292, 0.0
      %v5437 = vsel %vm5389, %v5293, 0.0
      %v5438 = vsel %vm5390, %v5294, 0.0
      %v5439 = vsel %vm5391, %v5295, 0.0
      %v5440 = vsel %vm5392, %v5296, 0.0
      %v5441 = vsel %vm5393, %v5297, 0.0
      %v5442 = vsel %vm5394, %v5298, 0.0
      %v5443 = vsel %vm5395, %v5299, 0.0
      %v5444 = vsel %vm5396, %v5300, 0.0
      %5445 = vst [vmem:[#allocation3 + $0x18] sm:$0xff] %v5397
      %5446 = vst [vmem:[#allocation3 + $0x20] sm:$0xff] %v5398
      %5447 = vst [vmem:[#allocation3 + $0x28] sm:$0xff] %v5399
      %5448 = vst [vmem:[#allocation3 + $0x30] sm:$0xff] %v5400
      %5449 = vst [vmem:[#allocation3 + $0x38] sm:$0xff] %v5401
      %5450 = vst [vmem:[#allocation3 + $0x40] sm:$0xff] %v5402
      %5451 = vst [vmem:[#allocation3 + $0x48] sm:$0xff] %v5403
      %5452 = vst [vmem:[#allocation3 + $0x50] sm:$0xff] %v5404
      %5453 = vst [vmem:[#allocation3 + $0x58] sm:$0xff] %v5405
      %5454 = vst [vmem:[#allocation3 + $0x60] sm:$0xff] %v5406
      %5455 = vst [vmem:[#allocation3 + $0x68] sm:$0xff] %v5407
      %5456 = vst [vmem:[#allocation3 + $0x70] sm:$0xff] %v5408
      %5457 = vst [vmem:[#allocation3 + $0x78] sm:$0xff] %v5409
      %5458 = vst [vmem:[#allocation3 + $0x80] sm:$0xff] %v5410
      %5459 = vst [vmem:[#allocation3 + $0x88] sm:$0xff] %v5411
      %5460 = vst [vmem:[#allocation3 + $0x90] sm:$0xff] %v5412
      %5461 = vst [vmem:[#allocation3 + $0x98] sm:$0xff] %v5413
      %5462 = vst [vmem:[#allocation3 + $0xa0] sm:$0xff] %v5414
      %5463 = vst [vmem:[#allocation3 + $0xa8] sm:$0xff] %v5415
      %5464 = vst [vmem:[#allocation3 + $0xb0] sm:$0xff] %v5416
      %5465 = vst [vmem:[#allocation3 + $0xb8] sm:$0xff] %v5417
      %5466 = vst [vmem:[#allocation3 + $0xc0] sm:$0xff] %v5418
      %5467 = vst [vmem:[#allocation3 + $0xc8] sm:$0xff] %v5419
      %5468 = vst [vmem:[#allocation3 + $0xd0] sm:$0xff] %v5420
      %5469 = vst [vmem:[#allocation3 + $0xd8] sm:$0xff] %v5421
      %5470 = vst [vmem:[#allocation3 + $0xe0] sm:$0xff] %v5422
      %5471 = vst [vmem:[#allocation3 + $0xe8] sm:$0xff] %v5423
      %5472 = vst [vmem:[#allocation3 + $0xf0] sm:$0xff] %v5424
      %5473 = vst [vmem:[#allocation3 + $0xf8] sm:$0xff] %v5425
      %5474 = vst [vmem:[#allocation3 + $0x100] sm:$0xff] %v5426
      %5475 = vst [vmem:[#allocation3 + $0x108] sm:$0xff] %v5427
      %5476 = vst [vmem:[#allocation3 + $0x110] sm:$0xff] %v5428
      %5477 = vst [vmem:[#allocation3 + $0x118] sm:$0xff] %v5429
      %5478 = vst [vmem:[#allocation3 + $0x120] sm:$0xff] %v5430
      %5479 = vst [vmem:[#allocation3 + $0x128] sm:$0xff] %v5431
      %5480 = vst [vmem:[#allocation3 + $0x130] sm:$0xff] %v5432
      %5481 = vst [vmem:[#allocation3 + $0x138] sm:$0xff] %v5433
      %5482 = vst [vmem:[#allocation3 + $0x140] sm:$0xff] %v5434
      %5483 = vst [vmem:[#allocation3 + $0x148] sm:$0xff] %v5435
      %5484 = vst [vmem:[#allocation3 + $0x150] sm:$0xff] %v5436
      %5485 = vst [vmem:[#allocation3 + $0x158] sm:$0xff] %v5437
      %5486 = vst [vmem:[#allocation3 + $0x160] sm:$0xff] %v5438
      %5487 = vst [vmem:[#allocation3 + $0x168] sm:$0xff] %v5439
      %5488 = vst [vmem:[#allocation3 + $0x170] sm:$0xff] %v5440
      %5489 = vst [vmem:[#allocation3 + $0x178] sm:$0xff] %v5441
      %5490 = vst [vmem:[#allocation3 + $0x180] sm:$0xff] %v5442
      %5491 = vst [vmem:[#allocation3 + $0x188] sm:$0xff] %v5443
      %5492 = vst [vmem:[#allocation3 + $0x190] sm:$0xff] %v5444
      %v5493 = vld [vmem:[#allocation3] sm:$0xff]
      %v5494 = vld [vmem:[#allocation3 + $0x8] sm:$0xff]
      %v5495 = vld [vmem:[#allocation3 + $0x10] sm:$0xff]
      %v5496 = vld [vmem:[#allocation3 + $0x18] sm:$0xff]
      %v5497 = vld [vmem:[#allocation3 + $0x20] sm:$0xff]
      %v5498 = vld [vmem:[#allocation3 + $0x28] sm:$0xff]
      %v5499 = vld [vmem:[#allocation3 + $0x30] sm:$0xff]
      %v5500 = vld [vmem:[#allocation3 + $0x38] sm:$0xff]
      %v5501 = vld [vmem:[#allocation3 + $0x40] sm:$0xff]
      %v5502 = vld [vmem:[#allocation3 + $0x48] sm:$0xff]
      %v5503 = vld [vmem:[#allocation3 + $0x50] sm:$0xff]
      %v5504 = vld [vmem:[#allocation3 + $0x58] sm:$0xff]
      %v5505 = vld [vmem:[#allocation3 + $0x60] sm:$0xff]
      %v5506 = vld [vmem:[#allocation3 + $0x68] sm:$0xff]
      %v5507 = vld [vmem:[#allocation3 + $0x70] sm:$0xff]
      %v5508 = vld [vmem:[#allocation3 + $0x78] sm:$0xff]
      %v5509 = vld [vmem:[#allocation3 + $0x80] sm:$0xff]
      %v5510 = vld [vmem:[#allocation3 + $0x88] sm:$0xff]
      %v5511 = vld [vmem:[#allocation3 + $0x90] sm:$0xff]
      %v5512 = vld [vmem:[#allocation3 + $0x98] sm:$0xff]
      %v5513 = vld [vmem:[#allocation3 + $0xa0] sm:$0xff]
      %v5514 = vld [vmem:[#allocation3 + $0xa8] sm:$0xff]
      %v5515 = vld [vmem:[#allocation3 + $0xb0] sm:$0xff]
      %v5516 = vld [vmem:[#allocation3 + $0xb8] sm:$0xff]
      %v5517 = vld [vmem:[#allocation3 + $0xc0] sm:$0xff]
      %v5518 = vld [vmem:[#allocation3 + $0xc8] sm:$0xff]
      %v5519 = vld [vmem:[#allocation3 + $0xd0] sm:$0xff]
      %v5520 = vld [vmem:[#allocation3 + $0xd8] sm:$0xff]
      %v5521 = vld [vmem:[#allocation3 + $0xe0] sm:$0xff]
      %v5522 = vld [vmem:[#allocation3 + $0xe8] sm:$0xff]
      %v5523 = vld [vmem:[#allocation3 + $0xf0] sm:$0xff]
      %v5524 = vld [vmem:[#allocation3 + $0xf8] sm:$0xff]
      %v5525 = vld [vmem:[#allocation3 + $0x100] sm:$0xff]
      %v5526 = vld [vmem:[#allocation3 + $0x108] sm:$0xff]
      %v5527 = vld [vmem:[#allocation3 + $0x110] sm:$0xff]
      %v5528 = vld [vmem:[#allocation3 + $0x118] sm:$0xff]
      %v5529 = vld [vmem:[#allocation3 + $0x120] sm:$0xff]
      %v5530 = vld [vmem:[#allocation3 + $0x128] sm:$0xff]
      %v5531 = vld [vmem:[#allocation3 + $0x130] sm:$0xff]
      %v5532 = vld [vmem:[#allocation3 + $0x138] sm:$0xff]
      %v5533 = vld [vmem:[#allocation3 + $0x140] sm:$0xff]
      %v5534 = vld [vmem:[#allocation3 + $0x148] sm:$0xff]
      %v5535 = vld [vmem:[#allocation3 + $0x150] sm:$0xff]
      %v5536 = vld [vmem:[#allocation3 + $0x158] sm:$0xff]
      %v5537 = vld [vmem:[#allocation3 + $0x160] sm:$0xff]
      %v5538 = vld [vmem:[#allocation3 + $0x168] sm:$0xff]
      %v5539 = vld [vmem:[#allocation3 + $0x170] sm:$0xff]
      %v5540 = vld [vmem:[#allocation3 + $0x178] sm:$0xff]
      %v5541 = vpack.c.bf16 %v5494, %v5493
      %v5542 = vpack.c.bf16 %v5496, %v5495
      %v5543 = vpack.c.bf16 %v5498, %v5497
      %v5544 = vpack.c.bf16 %v5500, %v5499
      %v5545 = vpack.c.bf16 %v5502, %v5501
      %v5546 = vpack.c.bf16 %v5504, %v5503
      %v5547 = vpack.c.bf16 %v5506, %v5505
      %v5548 = vpack.c.bf16 %v5508, %v5507
      %v5549 = vpack.c.bf16 %v5510, %v5509
      %v5550 = vpack.c.bf16 %v5512, %v5511
      %v5551 = vpack.c.bf16 %v5514, %v5513
      %v5552 = vpack.c.bf16 %v5516, %v5515
      %v5553 = vpack.c.bf16 %v5518, %v5517
      %v5554 = vpack.c.bf16 %v5520, %v5519
      %v5555 = vpack.c.bf16 %v5522, %v5521
      %v5556 = vpack.c.bf16 %v5524, %v5523
      %v5557 = vpack.c.bf16 %v5526, %v5525
      %v5558 = vpack.c.bf16 %v5528, %v5527
      %v5559 = vpack.c.bf16 %v5530, %v5529
      %v5560 = vpack.c.bf16 %v5532, %v5531
      %v5561 = vpack.c.bf16 %v5534, %v5533
      %v5562 = vpack.c.bf16 %v5536, %v5535
      %v5563 = vpack.c.bf16 %v5538, %v5537
      %v5564 = vpack.c.bf16 %v5540, %v5539
      %v5565 = vld [vmem:[%s3] sm:$0xf]
      %v5566 = vld [vmem:[%s3 + $0x4] sm:$0xf]
      %v5567 = vld [vmem:[%s3 + $0x8] sm:$0xf]
      %v5568 = vld [vmem:[%s3 + $0xc] sm:$0xf]
      %v5569 = vld [vmem:[%s3 + $0x10] sm:$0xf]
      %v5570 = vld [vmem:[%s3 + $0x14] sm:$0xf]
      %v5571 = vld [vmem:[%s3 + $0x18] sm:$0xf]
      %v5572 = vld [vmem:[%s3 + $0x1c] sm:$0xf]
      %v5573 = vld [vmem:[%s3 + $0x20] sm:$0xf]
      %v5574 = vld [vmem:[%s3 + $0x24] sm:$0xf]
      %v5575 = vld [vmem:[%s3 + $0x28] sm:$0xf]
      %v5576 = vld [vmem:[%s3 + $0x2c] sm:$0xf]
      %v5577 = vld [vmem:[%s3 + $0x30] sm:$0xf]
      %v5578 = vld [vmem:[%s3 + $0x34] sm:$0xf]
      %v5579 = vld [vmem:[%s3 + $0x38] sm:$0xf]
      %v5580 = vld [vmem:[%s3 + $0x3c] sm:$0xf]
      %v5581 = vld [vmem:[#allocation3 + $0x1] sm:$0xff]
      %v5582 = vld [vmem:[#allocation3 + $0x9] sm:$0xff]
      %v5583 = vld [vmem:[#allocation3 + $0x11] sm:$0xff]
      %v5584 = vld [vmem:[#allocation3 + $0x19] sm:$0xff]
      %v5585 = vld [vmem:[#allocation3 + $0x21] sm:$0xff]
      %v5586 = vld [vmem:[#allocation3 + $0x29] sm:$0xff]
      %v5587 = vld [vmem:[#allocation3 + $0x31] sm:$0xff]
      %v5588 = vld [vmem:[#allocation3 + $0x39] sm:$0xff]
      %v5589 = vld [vmem:[#allocation3 + $0x41] sm:$0xff]
      %v5590 = vld [vmem:[#allocation3 + $0x49] sm:$0xff]
      %v5591 = vld [vmem:[#allocation3 + $0x51] sm:$0xff]
      %v5592 = vld [vmem:[#allocation3 + $0x59] sm:$0xff]
      %v5593 = vld [vmem:[#allocation3 + $0x61] sm:$0xff]
      %v5594 = vld [vmem:[#allocation3 + $0x69] sm:$0xff]
      %v5595 = vld [vmem:[#allocation3 + $0x71] sm:$0xff]
      %v5596 = vld [vmem:[#allocation3 + $0x79] sm:$0xff]
      %v5597 = vld [vmem:[#allocation3 + $0x81] sm:$0xff]
      %v5598 = vld [vmem:[#allocation3 + $0x89] sm:$0xff]
      %v5599 = vld [vmem:[#allocation3 + $0x91] sm:$0xff]
      %v5600 = vld [vmem:[#allocation3 + $0x99] sm:$0xff]
      %v5601 = vld [vmem:[#allocation3 + $0xa1] sm:$0xff]
      %v5602 = vld [vmem:[#allocation3 + $0xa9] sm:$0xff]
      %v5603 = vld [vmem:[#allocation3 + $0xb1] sm:$0xff]
      %v5604 = vld [vmem:[#allocation3 + $0xb9] sm:$0xff]
      %v5605 = vld [vmem:[#allocation3 + $0xc1] sm:$0xff]
      %v5606 = vld [vmem:[#allocation3 + $0xc9] sm:$0xff]
      %v5607 = vld [vmem:[#allocation3 + $0xd1] sm:$0xff]
      %v5608 = vld [vmem:[#allocation3 + $0xd9] sm:$0xff]
      %v5609 = vld [vmem:[#allocation3 + $0xe1] sm:$0xff]
      %v5610 = vld [vmem:[#allocation3 + $0xe9] sm:$0xff]
      %v5611 = vld [vmem:[#allocation3 + $0xf1] sm:$0xff]
      %v5612 = vld [vmem:[#allocation3 + $0xf9] sm:$0xff]
      %v5613 = vld [vmem:[#allocation3 + $0x101] sm:$0xff]
      %v5614 = vld [vmem:[#allocation3 + $0x109] sm:$0xff]
      %v5615 = vld [vmem:[#allocation3 + $0x111] sm:$0xff]
      %v5616 = vld [vmem:[#allocation3 + $0x119] sm:$0xff]
      %v5617 = vld [vmem:[#allocation3 + $0x121] sm:$0xff]
      %v5618 = vld [vmem:[#allocation3 + $0x129] sm:$0xff]
      %v5619 = vld [vmem:[#allocation3 + $0x131] sm:$0xff]
      %v5620 = vld [vmem:[#allocation3 + $0x139] sm:$0xff]
      %v5621 = vld [vmem:[#allocation3 + $0x141] sm:$0xff]
      %v5622 = vld [vmem:[#allocation3 + $0x149] sm:$0xff]
      %v5623 = vld [vmem:[#allocation3 + $0x151] sm:$0xff]
      %v5624 = vld [vmem:[#allocation3 + $0x159] sm:$0xff]
      %v5625 = vld [vmem:[#allocation3 + $0x161] sm:$0xff]
      %v5626 = vld [vmem:[#allocation3 + $0x169] sm:$0xff]
      %v5627 = vld [vmem:[#allocation3 + $0x171] sm:$0xff]
      %v5628 = vld [vmem:[#allocation3 + $0x179] sm:$0xff]
      %v5629 = vpack.c.bf16 %v5582, %v5581
      %v5630 = vpack.c.bf16 %v5584, %v5583
      %v5631 = vpack.c.bf16 %v5586, %v5585
      %v5632 = vpack.c.bf16 %v5588, %v5587
      %v5633 = vpack.c.bf16 %v5590, %v5589
      %v5634 = vpack.c.bf16 %v5592, %v5591
      %v5635 = vpack.c.bf16 %v5594, %v5593
      %v5636 = vpack.c.bf16 %v5596, %v5595
      %v5637 = vpack.c.bf16 %v5598, %v5597
      %v5638 = vpack.c.bf16 %v5600, %v5599
      %v5639 = vpack.c.bf16 %v5602, %v5601
      %v5640 = vpack.c.bf16 %v5604, %v5603
      %v5641 = vpack.c.bf16 %v5606, %v5605
      %v5642 = vpack.c.bf16 %v5608, %v5607
      %v5643 = vpack.c.bf16 %v5610, %v5609
      %v5644 = vpack.c.bf16 %v5612, %v5611
      %v5645 = vpack.c.bf16 %v5614, %v5613
      %v5646 = vpack.c.bf16 %v5616, %v5615
      %v5647 = vpack.c.bf16 %v5618, %v5617
      %v5648 = vpack.c.bf16 %v5620, %v5619
      %v5649 = vpack.c.bf16 %v5622, %v5621
      %v5650 = vpack.c.bf16 %v5624, %v5623
      %v5651 = vpack.c.bf16 %v5626, %v5625
      %v5652 = vpack.c.bf16 %v5628, %v5627
      %s5653 = scalar_lea.vmem %s3, 64
      %v5654 = vld [vmem:[%s5653] sm:$0xf]
      %v5655 = vld [vmem:[%s5653 + $0x4] sm:$0xf]
      %v5656 = vld [vmem:[%s5653 + $0x8] sm:$0xf]
      %v5657 = vld [vmem:[%s5653 + $0xc] sm:$0xf]
      %v5658 = vld [vmem:[%s5653 + $0x10] sm:$0xf]
      %v5659 = vld [vmem:[%s5653 + $0x14] sm:$0xf]
      %v5660 = vld [vmem:[%s5653 + $0x18] sm:$0xf]
      %v5661 = vld [vmem:[%s5653 + $0x1c] sm:$0xf]
      %v5662 = vld [vmem:[%s5653 + $0x20] sm:$0xf]
      %v5663 = vld [vmem:[%s5653 + $0x24] sm:$0xf]
      %v5664 = vld [vmem:[%s5653 + $0x28] sm:$0xf]
      %v5665 = vld [vmem:[%s5653 + $0x2c] sm:$0xf]
      %v5666 = vld [vmem:[%s5653 + $0x30] sm:$0xf]
      %v5667 = vld [vmem:[%s5653 + $0x34] sm:$0xf]
      %v5668 = vld [vmem:[%s5653 + $0x38] sm:$0xf]
      %v5669 = vld [vmem:[%s5653 + $0x3c] sm:$0xf]
      %v5686 = vunpack.c.l.b16 %v5654
      %v5687 = vunpack.c.l.b16 %v5655
      %v5688 = vunpack.c.l.b16 %v5656
      %v5689 = vunpack.c.l.b16 %v5657
      %v5690 = vunpack.c.l.b16 %v5658
      %v5691 = vunpack.c.l.b16 %v5659
      %v5692 = vunpack.c.l.b16 %v5660
      %v5693 = vunpack.c.l.b16 %v5661
      %v5694 = vunpack.c.l.b16 %v5662
      %v5695 = vunpack.c.l.b16 %v5663
      %v5696 = vunpack.c.l.b16 %v5664
      %v5697 = vunpack.c.l.b16 %v5665
      %v5698 = vunpack.c.l.b16 %v5666
      %v5699 = vunpack.c.l.b16 %v5667
      %v5700 = vunpack.c.l.b16 %v5668
      %v5701 = vunpack.c.l.b16 %v5669
      %v5702 = vpack.c.b16 %v5687, %v5686
      %v5703 = vpack.c.b16 %v5689, %v5688
      %v5704 = vpack.c.b16 %v5691, %v5690
      %v5705 = vpack.c.b16 %v5693, %v5692
      %v5706 = vpack.c.b16 %v5695, %v5694
      %v5707 = vpack.c.b16 %v5697, %v5696
      %v5708 = vpack.c.b16 %v5699, %v5698
      %v5709 = vpack.c.b16 %v5701, %v5700
      %5718 = vmatprep.subr.bf16.mxu0 0
      %5719 = vmatpush1.bf16.msra.mxu0 %v5702
      %5720 = vmatprep.subr.bf16.mxu0 0
      %5721 = vmatpush1.bf16.msra.mxu0 %v5703
      %5722 = vmatprep.subr.bf16.mxu0 0
      %5723 = vmatpush1.bf16.msra.mxu0 %v5704
      %5724 = vmatprep.subr.bf16.mxu0 0
      %5725 = vmatpush1.bf16.msra.mxu0 %v5705
      %5726 = vmatprep.subr.bf16.mxu0 0
      %5727 = vmatpush1.bf16.msra.mxu0 %v5706
      %5728 = vmatprep.subr.bf16.mxu0 0
      %5729 = vmatpush1.bf16.msra.mxu0 %v5707
      %5730 = vmatprep.subr.bf16.mxu0 0
      %5731 = vmatpush1.bf16.msra.mxu0 %v5708
      %5732 = vmatprep.subr.bf16.mxu0 0
      %5733 = vmatpush1.bf16.msra.mxu0 %v5709
      %5734 = vmatprep.subr.bf16.mxu0 0
      %5735 = vmatpush1.bf16.msra.mxu0 0
      %5736 = vmatprep.subr.bf16.mxu0 0
      %5737 = vmatpush1.bf16.msra.mxu0 0
      %5738 = vmatprep.subr.bf16.mxu0 0
      %5739 = vmatpush1.bf16.msra.mxu0 0
      %5740 = vmatprep.subr.bf16.mxu0 0
      %5741 = vmatpush1.bf16.msra.mxu0 0
      %5742 = vmatprep.subr.bf16.mxu0 0
      %5743 = vmatpush1.bf16.msra.mxu0 0
      %5744 = vmatprep.subr.bf16.mxu0 0
      %5745 = vmatpush1.bf16.msra.mxu0 0
      %5746 = vmatprep.subr.bf16.mxu0 0
      %5747 = vmatpush1.bf16.msra.mxu0 0
      %5748 = vmatprep.subr.bf16.mxu0 0
      %5749 = vmatpush1.bf16.msra.mxu0 0
      %5750 = vmatprep.mubr.bf16.mxu0 0
      %5751 = vmatmul.mubr.bf16.gmra.mrb[0].mxu0 %v5629
      %v5752 = vpop.f32.mrb[0].mxu0
      %v5753 = vadd.f32 0.0, %v5752
      %v5754 = vpop.f32.mrb[0].mxu0
      %v5755 = vpop.f32.mrb[0].mxu0
      %v5756 = vadd.f32 0.0, %v5755
      %v5757 = vpop.f32.mrb[0].mxu0
      %5758 = vmatprep.mubr.bf16.mxu0 0
      %5759 = vmatmul.mubr.bf16.gmra.mrb[0].mxu0 %v5630
      %v5760 = vpop.f32.mrb[0].mxu0
      %v5761 = vadd.f32 0.0, %v5760
      %v5762 = vpop.f32.mrb[0].mxu0
      %v5763 = vpop.f32.mrb[0].mxu0
      %v5764 = vadd.f32 0.0, %v5763
      %v5765 = vpop.f32.mrb[0].mxu0
      %5766 = vmatprep.mubr.bf16.mxu0 0
      %5767 = vmatmul.mubr.bf16.gmra.mrb[0].mxu0 %v5631
      %v5768 = vpop.f32.mrb[0].mxu0
      %v5769 = vadd.f32 0.0, %v5768
      %v5770 = vpop.f32.mrb[0].mxu0
      %v5771 = vpop.f32.mrb[0].mxu0
      %v5772 = vadd.f32 0.0, %v5771
      %v5773 = vpop.f32.mrb[0].mxu0
      %5774 = vmatprep.mubr.bf16.mxu0 0
      %5775 = vmatmul.mubr.bf16.gmra.mrb[0].mxu0 %v5632
      %v5776 = vpop.f32.mrb[0].mxu0
      %v5777 = vadd.f32 0.0, %v5776
      %v5778 = vpop.f32.mrb[0].mxu0
      %v5779 = vpop.f32.mrb[0].mxu0
      %v5780 = vadd.f32 0.0, %v5779
      %v5781 = vpop.f32.mrb[0].mxu0
      %5782 = vmatprep.mubr.bf16.mxu0 0
      %5783 = vmatmul.mubr.bf16.gmra.mrb[0].mxu0 %v5633
      %v5784 = vpop.f32.mrb[0].mxu0
      %v5785 = vadd.f32 0.0, %v5784
      %v5786 = vpop.f32.mrb[0].mxu0
      %v5787 = vpop.f32.mrb[0].mxu0
      %v5788 = vadd.f32 0.0, %v5787
      %v5789 = vpop.f32.mrb[0].mxu0
      %5790 = vmatprep.mubr.bf16.mxu0 0
      %5791 = vmatmul.mubr.bf16.gmra.mrb[0].mxu0 %v5634
      %v5792 = vpop.f32.mrb[0].mxu0
      %v5793 = vadd.f32 0.0, %v5792
      %v5794 = vpop.f32.mrb[0].mxu0
      %v5795 = vpop.f32.mrb[0].mxu0
      %v5796 = vadd.f32 0.0, %v5795
      %v5797 = vpop.f32.mrb[0].mxu0
      %5798 = vmatprep.mubr.bf16.mxu0 0
      %5799 = vmatmul.mubr.bf16.gmra.mrb[0].mxu0 %v5635
      %v5800 = vpop.f32.mrb[0].mxu0
      %v5801 = vadd.f32 0.0, %v5800
      %v5802 = vpop.f32.mrb[0].mxu0
      %v5803 = vpop.f32.mrb[0].mxu0
      %v5804 = vadd.f32 0.0, %v5803
      %v5805 = vpop.f32.mrb[0].mxu0
      %5806 = vmatprep.mubr.bf16.mxu0 0
      %5807 = vmatmul.mubr.bf16.gmra.mrb[0].mxu0 %v5636
      %v5808 = vpop.f32.mrb[0].mxu0
      %v5809 = vadd.f32 0.0, %v5808
      %v5810 = vpop.f32.mrb[0].mxu0
      %v5811 = vpop.f32.mrb[0].mxu0
      %v5812 = vadd.f32 0.0, %v5811
      %v5813 = vpop.f32.mrb[0].mxu0
      %5814 = vmatprep.mubr.bf16.mxu0 0
      %5815 = vmatmul.mubr.bf16.gmra.mrb[0].mxu0 %v5637
      %v5816 = vpop.f32.mrb[0].mxu0
      %v5817 = vadd.f32 0.0, %v5816
      %v5818 = vpop.f32.mrb[0].mxu0
      %v5819 = vpop.f32.mrb[0].mxu0
      %v5820 = vadd.f32 0.0, %v5819
      %v5821 = vpop.f32.mrb[0].mxu0
      %5822 = vmatprep.mubr.bf16.mxu0 0
      %5823 = vmatmul.mubr.bf16.gmra.mrb[0].mxu0 %v5638
      %v5824 = vpop.f32.mrb[0].mxu0
      %v5825 = vadd.f32 0.0, %v5824
      %v5826 = vpop.f32.mrb[0].mxu0
      %v5827 = vpop.f32.mrb[0].mxu0
      %v5828 = vadd.f32 0.0, %v5827
      %v5829 = vpop.f32.mrb[0].mxu0
      %5830 = vmatprep.mubr.bf16.mxu0 0
      %5831 = vmatmul.mubr.bf16.gmra.mrb[0].mxu0 %v5639
      %v5832 = vpop.f32.mrb[0].mxu0
      %v5833 = vadd.f32 0.0, %v5832
      %v5834 = vpop.f32.mrb[0].mxu0
      %v5835 = vpop.f32.mrb[0].mxu0
      %v5836 = vadd.f32 0.0, %v5835
      %v5837 = vpop.f32.mrb[0].mxu0
      %5838 = vmatprep.mubr.bf16.mxu0 0
      %5839 = vmatmul.mubr.bf16.gmra.mrb[0].mxu0 %v5640
      %v5840 = vpop.f32.mrb[0].mxu0
      %v5841 = vadd.f32 0.0, %v5840
      %v5842 = vpop.f32.mrb[0].mxu0
      %v5843 = vpop.f32.mrb[0].mxu0
      %v5844 = vadd.f32 0.0, %v5843
      %v5845 = vpop.f32.mrb[0].mxu0
      %5846 = vmatprep.mubr.bf16.mxu0 0
      %5847 = vmatmul.mubr.bf16.gmra.mrb[0].mxu0 %v5641
      %v5848 = vpop.f32.mrb[0].mxu0
      %v5849 = vadd.f32 0.0, %v5848
      %v5850 = vpop.f32.mrb[0].mxu0
      %v5851 = vpop.f32.mrb[0].mxu0
      %v5852 = vadd.f32 0.0, %v5851
      %v5853 = vpop.f32.mrb[0].mxu0
      %5854 = vmatprep.mubr.bf16.mxu0 0
      %5855 = vmatmul.mubr.bf16.gmra.mrb[0].mxu0 %v5642
      %v5856 = vpop.f32.mrb[0].mxu0
      %v5857 = vadd.f32 0.0, %v5856
      %v5858 = vpop.f32.mrb[0].mxu0
      %v5859 = vpop.f32.mrb[0].mxu0
      %v5860 = vadd.f32 0.0, %v5859
      %v5861 = vpop.f32.mrb[0].mxu0
      %5862 = vmatprep.mubr.bf16.mxu0 0
      %5863 = vmatmul.mubr.bf16.gmra.mrb[0].mxu0 %v5643
      %v5864 = vpop.f32.mrb[0].mxu0
      %v5865 = vadd.f32 0.0, %v5864
      %v5866 = vpop.f32.mrb[0].mxu0
      %v5867 = vpop.f32.mrb[0].mxu0
      %v5868 = vadd.f32 0.0, %v5867
      %v5869 = vpop.f32.mrb[0].mxu0
      %5870 = vmatprep.mubr.bf16.mxu0 0
      %5871 = vmatmul.mubr.bf16.gmra.mrb[0].mxu0 %v5644
      %v5872 = vpop.f32.mrb[0].mxu0
      %v5873 = vadd.f32 0.0, %v5872
      %v5874 = vpop.f32.mrb[0].mxu0
      %v5875 = vpop.f32.mrb[0].mxu0
      %v5876 = vadd.f32 0.0, %v5875
      %v5877 = vpop.f32.mrb[0].mxu0
      %5878 = vmatprep.mubr.bf16.mxu0 0
      %5879 = vmatmul.mubr.bf16.gmra.mrb[0].mxu0 %v5645
      %v5880 = vpop.f32.mrb[0].mxu0
      %v5881 = vadd.f32 0.0, %v5880
      %v5882 = vpop.f32.mrb[0].mxu0
      %v5883 = vpop.f32.mrb[0].mxu0
      %v5884 = vadd.f32 0.0, %v5883
      %v5885 = vpop.f32.mrb[0].mxu0
      %5886 = vmatprep.mubr.bf16.mxu0 0
      %5887 = vmatmul.mubr.bf16.gmra.mrb[0].mxu0 %v5646
      %v5888 = vpop.f32.mrb[0].mxu0
      %v5889 = vadd.f32 0.0, %v5888
      %v5890 = vpop.f32.mrb[0].mxu0
      %v5891 = vpop.f32.mrb[0].mxu0
      %v5892 = vadd.f32 0.0, %v5891
      %v5893 = vpop.f32.mrb[0].mxu0
      %5894 = vmatprep.mubr.bf16.mxu0 0
      %5895 = vmatmul.mubr.bf16.gmra.mrb[0].mxu0 %v5647
      %v5896 = vpop.f32.mrb[0].mxu0
      %v5897 = vadd.f32 0.0, %v5896
      %v5898 = vpop.f32.mrb[0].mxu0
      %v5899 = vpop.f32.mrb[0].mxu0
      %v5900 = vadd.f32 0.0, %v5899
      %v5901 = vpop.f32.mrb[0].mxu0
      %5902 = vmatprep.mubr.bf16.mxu0 0
      %5903 = vmatmul.mubr.bf16.gmra.mrb[0].mxu0 %v5648
      %v5904 = vpop.f32.mrb[0].mxu0
      %v5905 = vadd.f32 0.0, %v5904
      %v5906 = vpop.f32.mrb[0].mxu0
      %v5907 = vpop.f32.mrb[0].mxu0
      %v5908 = vadd.f32 0.0, %v5907
      %v5909 = vpop.f32.mrb[0].mxu0
      %5910 = vmatprep.mubr.bf16.mxu0 0
      %5911 = vmatmul.mubr.bf16.gmra.mrb[0].mxu0 %v5649
      %v5912 = vpop.f32.mrb[0].mxu0
      %v5913 = vadd.f32 0.0, %v5912
      %v5914 = vpop.f32.mrb[0].mxu0
      %v5915 = vpop.f32.mrb[0].mxu0
      %v5916 = vadd.f32 0.0, %v5915
      %v5917 = vpop.f32.mrb[0].mxu0
      %5918 = vmatprep.mubr.bf16.mxu0 0
      %5919 = vmatmul.mubr.bf16.gmra.mrb[0].mxu0 %v5650
      %v5920 = vpop.f32.mrb[0].mxu0
      %v5921 = vadd.f32 0.0, %v5920
      %v5922 = vpop.f32.mrb[0].mxu0
      %v5923 = vpop.f32.mrb[0].mxu0
      %v5924 = vadd.f32 0.0, %v5923
      %v5925 = vpop.f32.mrb[0].mxu0
      %5926 = vmatprep.mubr.bf16.mxu0 0
      %5927 = vmatmul.mubr.bf16.gmra.mrb[0].mxu0 %v5651
      %v5928 = vpop.f32.mrb[0].mxu0
      %v5929 = vadd.f32 0.0, %v5928
      %v5930 = vpop.f32.mrb[0].mxu0
      %v5931 = vpop.f32.mrb[0].mxu0
      %v5932 = vadd.f32 0.0, %v5931
      %v5933 = vpop.f32.mrb[0].mxu0
      %5934 = vmatprep.mubr.bf16.mxu0 0
      %5935 = vmatmul.mubr.bf16.gmra.mrb[0].mxu0 %v5652
      %v5936 = vpop.f32.mrb[0].mxu0
      %v5937 = vadd.f32 0.0, %v5936
      %v5938 = vpop.f32.mrb[0].mxu0
      %v5939 = vpop.f32.mrb[0].mxu0
      %v5940 = vadd.f32 0.0, %v5939
      %v5941 = vpop.f32.mrb[0].mxu0
      %5942 = vdwg.mxu0
      %v5959 = vunpack.c.l.b16 %v5565
      %v5960 = vunpack.c.l.b16 %v5566
      %v5961 = vunpack.c.l.b16 %v5567
      %v5962 = vunpack.c.l.b16 %v5568
      %v5963 = vunpack.c.l.b16 %v5569
      %v5964 = vunpack.c.l.b16 %v5570
      %v5965 = vunpack.c.l.b16 %v5571
      %v5966 = vunpack.c.l.b16 %v5572
      %v5967 = vunpack.c.l.b16 %v5573
      %v5968 = vunpack.c.l.b16 %v5574
      %v5969 = vunpack.c.l.b16 %v5575
      %v5970 = vunpack.c.l.b16 %v5576
      %v5971 = vunpack.c.l.b16 %v5577
      %v5972 = vunpack.c.l.b16 %v5578
      %v5973 = vunpack.c.l.b16 %v5579
      %v5974 = vunpack.c.l.b16 %v5580
      %v5975 = vpack.c.b16 %v5960, %v5959
      %v5976 = vpack.c.b16 %v5962, %v5961
      %v5977 = vpack.c.b16 %v5964, %v5963
      %v5978 = vpack.c.b16 %v5966, %v5965
      %v5979 = vpack.c.b16 %v5968, %v5967
      %v5980 = vpack.c.b16 %v5970, %v5969
      %v5981 = vpack.c.b16 %v5972, %v5971
      %v5982 = vpack.c.b16 %v5974, %v5973
      %5991 = vmatprep.subr.bf16.mxu0 0
      %5992 = vmatpush1.bf16.msra.mxu0 %v5975
      %5993 = vmatprep.subr.bf16.mxu0 0
      %5994 = vmatpush1.bf16.msra.mxu0 %v5976
      %5995 = vmatprep.subr.bf16.mxu0 0
      %5996 = vmatpush1.bf16.msra.mxu0 %v5977
      %5997 = vmatprep.subr.bf16.mxu0 0
      %5998 = vmatpush1.bf16.msra.mxu0 %v5978
      %5999 = vmatprep.subr.bf16.mxu0 0
      %6000 = vmatpush1.bf16.msra.mxu0 %v5979
      %6001 = vmatprep.subr.bf16.mxu0 0
      %6002 = vmatpush1.bf16.msra.mxu0 %v5980
      %6003 = vmatprep.subr.bf16.mxu0 0
      %6004 = vmatpush1.bf16.msra.mxu0 %v5981
      %6005 = vmatprep.subr.bf16.mxu0 0
      %6006 = vmatpush1.bf16.msra.mxu0 %v5982
      %6007 = vmatprep.subr.bf16.mxu0 0
      %6008 = vmatpush1.bf16.msra.mxu0 0
      %6009 = vmatprep.subr.bf16.mxu0 0
      %6010 = vmatpush1.bf16.msra.mxu0 0
      %6011 = vmatprep.subr.bf16.mxu0 0
      %6012 = vmatpush1.bf16.msra.mxu0 0
      %6013 = vmatprep.subr.bf16.mxu0 0
      %6014 = vmatpush1.bf16.msra.mxu0 0
      %6015 = vmatprep.subr.bf16.mxu0 0
      %6016 = vmatpush1.bf16.msra.mxu0 0
      %6017 = vmatprep.subr.bf16.mxu0 0
      %6018 = vmatpush1.bf16.msra.mxu0 0
      %6019 = vmatprep.subr.bf16.mxu0 0
      %6020 = vmatpush1.bf16.msra.mxu0 0
      %6021 = vmatprep.subr.bf16.mxu0 0
      %6022 = vmatpush1.bf16.msra.mxu0 0
      %6023 = vmatprep.mubr.bf16.mxu0 0
      %6024 = vmatmul.mubr.bf16.gmra.mrb[0].mxu0 %v5541
      %v6025 = vpop.f32.mrb[0].mxu0
      %v6026 = vadd.f32 %v5753, %v6025
      %v6027 = vpop.f32.mrb[0].mxu0
      %v6028 = vpop.f32.mrb[0].mxu0
      %v6029 = vadd.f32 %v5756, %v6028
      %v6030 = vpop.f32.mrb[0].mxu0
      %6031 = vmatprep.mubr.bf16.mxu0 0
      %6032 = vmatmul.mubr.bf16.gmra.mrb[0].mxu0 %v5542
      %v6033 = vpop.f32.mrb[0].mxu0
      %v6034 = vadd.f32 %v5761, %v6033
      %v6035 = vpop.f32.mrb[0].mxu0
      %v6036 = vpop.f32.mrb[0].mxu0
      %v6037 = vadd.f32 %v5764, %v6036
      %v6038 = vpop.f32.mrb[0].mxu0
      %6039 = vmatprep.mubr.bf16.mxu0 0
      %6040 = vmatmul.mubr.bf16.gmra.mrb[0].mxu0 %v5543
      %v6041 = vpop.f32.mrb[0].mxu0
      %v6042 = vadd.f32 %v5769, %v6041
      %v6043 = vpop.f32.mrb[0].mxu0
      %v6044 = vpop.f32.mrb[0].mxu0
      %v6045 = vadd.f32 %v5772, %v6044
      %v6046 = vpop.f32.mrb[0].mxu0
      %6047 = vmatprep.mubr.bf16.mxu0 0
      %6048 = vmatmul.mubr.bf16.gmra.mrb[0].mxu0 %v5544
      %v6049 = vpop.f32.mrb[0].mxu0
      %v6050 = vadd.f32 %v5777, %v6049
      %v6051 = vpop.f32.mrb[0].mxu0
      %v6052 = vpop.f32.mrb[0].mxu0
      %v6053 = vadd.f32 %v5780, %v6052
      %v6054 = vpop.f32.mrb[0].mxu0
      %6055 = vmatprep.mubr.bf16.mxu0 0
      %6056 = vmatmul.mubr.bf16.gmra.mrb[0].mxu0 %v5545
      %v6057 = vpop.f32.mrb[0].mxu0
      %v6058 = vadd.f32 %v5785, %v6057
      %v6059 = vpop.f32.mrb[0].mxu0
      %v6060 = vpop.f32.mrb[0].mxu0
      %v6061 = vadd.f32 %v5788, %v6060
      %v6062 = vpop.f32.mrb[0].mxu0
      %6063 = vmatprep.mubr.bf16.mxu0 0
      %6064 = vmatmul.mubr.bf16.gmra.mrb[0].mxu0 %v5546
      %v6065 = vpop.f32.mrb[0].mxu0
      %v6066 = vadd.f32 %v5793, %v6065
      %v6067 = vpop.f32.mrb[0].mxu0
      %v6068 = vpop.f32.mrb[0].mxu0
      %v6069 = vadd.f32 %v5796, %v6068
      %v6070 = vpop.f32.mrb[0].mxu0
      %6071 = vmatprep.mubr.bf16.mxu0 0
      %6072 = vmatmul.mubr.bf16.gmra.mrb[0].mxu0 %v5547
      %v6073 = vpop.f32.mrb[0].mxu0
      %v6074 = vadd.f32 %v5801, %v6073
      %v6075 = vpop.f32.mrb[0].mxu0
      %v6076 = vpop.f32.mrb[0].mxu0
      %v6077 = vadd.f32 %v5804, %v6076
      %v6078 = vpop.f32.mrb[0].mxu0
      %6079 = vmatprep.mubr.bf16.mxu0 0
      %6080 = vmatmul.mubr.bf16.gmra.mrb[0].mxu0 %v5548
      %v6081 = vpop.f32.mrb[0].mxu0
      %v6082 = vadd.f32 %v5809, %v6081
      %v6083 = vpop.f32.mrb[0].mxu0
      %v6084 = vpop.f32.mrb[0].mxu0
      %v6085 = vadd.f32 %v5812, %v6084
      %v6086 = vpop.f32.mrb[0].mxu0
      %6087 = vmatprep.mubr.bf16.mxu0 0
      %6088 = vmatmul.mubr.bf16.gmra.mrb[0].mxu0 %v5549
      %v6089 = vpop.f32.mrb[0].mxu0
      %v6090 = vadd.f32 %v5817, %v6089
      %v6091 = vpop.f32.mrb[0].mxu0
      %v6092 = vpop.f32.mrb[0].mxu0
      %v6093 = vadd.f32 %v5820, %v6092
      %v6094 = vpop.f32.mrb[0].mxu0
      %6095 = vmatprep.mubr.bf16.mxu0 0
      %6096 = vmatmul.mubr.bf16.gmra.mrb[0].mxu0 %v5550
      %v6097 = vpop.f32.mrb[0].mxu0
      %v6098 = vadd.f32 %v5825, %v6097
      %v6099 = vpop.f32.mrb[0].mxu0
      %v6100 = vpop.f32.mrb[0].mxu0
      %v6101 = vadd.f32 %v5828, %v6100
      %v6102 = vpop.f32.mrb[0].mxu0
      %6103 = vmatprep.mubr.bf16.mxu0 0
      %6104 = vmatmul.mubr.bf16.gmra.mrb[0].mxu0 %v5551
      %v6105 = vpop.f32.mrb[0].mxu0
      %v6106 = vadd.f32 %v5833, %v6105
      %v6107 = vpop.f32.mrb[0].mxu0
      %v6108 = vpop.f32.mrb[0].mxu0
      %v6109 = vadd.f32 %v5836, %v6108
      %v6110 = vpop.f32.mrb[0].mxu0
      %6111 = vmatprep.mubr.bf16.mxu0 0
      %6112 = vmatmul.mubr.bf16.gmra.mrb[0].mxu0 %v5552
      %v6113 = vpop.f32.mrb[0].mxu0
      %v6114 = vadd.f32 %v5841, %v6113
      %v6115 = vpop.f32.mrb[0].mxu0
      %v6116 = vpop.f32.mrb[0].mxu0
      %v6117 = vadd.f32 %v5844, %v6116
      %v6118 = vpop.f32.mrb[0].mxu0
      %6119 = vmatprep.mubr.bf16.mxu0 0
      %6120 = vmatmul.mubr.bf16.gmra.mrb[0].mxu0 %v5553
      %v6121 = vpop.f32.mrb[0].mxu0
      %v6122 = vadd.f32 %v5849, %v6121
      %v6123 = vpop.f32.mrb[0].mxu0
      %v6124 = vpop.f32.mrb[0].mxu0
      %v6125 = vadd.f32 %v5852, %v6124
      %v6126 = vpop.f32.mrb[0].mxu0
      %6127 = vmatprep.mubr.bf16.mxu0 0
      %6128 = vmatmul.mubr.bf16.gmra.mrb[0].mxu0 %v5554
      %v6129 = vpop.f32.mrb[0].mxu0
      %v6130 = vadd.f32 %v5857, %v6129
      %v6131 = vpop.f32.mrb[0].mxu0
      %v6132 = vpop.f32.mrb[0].mxu0
      %v6133 = vadd.f32 %v5860, %v6132
      %v6134 = vpop.f32.mrb[0].mxu0
      %6135 = vmatprep.mubr.bf16.mxu0 0
      %6136 = vmatmul.mubr.bf16.gmra.mrb[0].mxu0 %v5555
      %v6137 = vpop.f32.mrb[0].mxu0
      %v6138 = vadd.f32 %v5865, %v6137
      %v6139 = vpop.f32.mrb[0].mxu0
      %v6140 = vpop.f32.mrb[0].mxu0
      %v6141 = vadd.f32 %v5868, %v6140
      %v6142 = vpop.f32.mrb[0].mxu0
      %6143 = vmatprep.mubr.bf16.mxu0 0
      %6144 = vmatmul.mubr.bf16.gmra.mrb[0].mxu0 %v5556
      %v6145 = vpop.f32.mrb[0].mxu0
      %v6146 = vadd.f32 %v5873, %v6145
      %v6147 = vpop.f32.mrb[0].mxu0
      %v6148 = vpop.f32.mrb[0].mxu0
      %v6149 = vadd.f32 %v5876, %v6148
      %v6150 = vpop.f32.mrb[0].mxu0
      %6151 = vmatprep.mubr.bf16.mxu0 0
      %6152 = vmatmul.mubr.bf16.gmra.mrb[0].mxu0 %v5557
      %v6153 = vpop.f32.mrb[0].mxu0
      %v6154 = vadd.f32 %v5881, %v6153
      %v6155 = vpop.f32.mrb[0].mxu0
      %v6156 = vpop.f32.mrb[0].mxu0
      %v6157 = vadd.f32 %v5884, %v6156
      %v6158 = vpop.f32.mrb[0].mxu0
      %6159 = vmatprep.mubr.bf16.mxu0 0
      %6160 = vmatmul.mubr.bf16.gmra.mrb[0].mxu0 %v5558
      %v6161 = vpop.f32.mrb[0].mxu0
      %v6162 = vadd.f32 %v5889, %v6161
      %v6163 = vpop.f32.mrb[0].mxu0
      %v6164 = vpop.f32.mrb[0].mxu0
      %v6165 = vadd.f32 %v5892, %v6164
      %v6166 = vpop.f32.mrb[0].mxu0
      %6167 = vmatprep.mubr.bf16.mxu0 0
      %6168 = vmatmul.mubr.bf16.gmra.mrb[0].mxu0 %v5559
      %v6169 = vpop.f32.mrb[0].mxu0
      %v6170 = vadd.f32 %v5897, %v6169
      %v6171 = vpop.f32.mrb[0].mxu0
      %v6172 = vpop.f32.mrb[0].mxu0
      %v6173 = vadd.f32 %v5900, %v6172
      %v6174 = vpop.f32.mrb[0].mxu0
      %6175 = vmatprep.mubr.bf16.mxu0 0
      %6176 = vmatmul.mubr.bf16.gmra.mrb[0].mxu0 %v5560
      %v6177 = vpop.f32.mrb[0].mxu0
      %v6178 = vadd.f32 %v5905, %v6177
      %v6179 = vpop.f32.mrb[0].mxu0
      %v6180 = vpop.f32.mrb[0].mxu0
      %v6181 = vadd.f32 %v5908, %v6180
      %v6182 = vpop.f32.mrb[0].mxu0
      %6183 = vmatprep.mubr.bf16.mxu0 0
      %6184 = vmatmul.mubr.bf16.gmra.mrb[0].mxu0 %v5561
      %v6185 = vpop.f32.mrb[0].mxu0
      %v6186 = vadd.f32 %v5913, %v6185
      %v6187 = vpop.f32.mrb[0].mxu0
      %v6188 = vpop.f32.mrb[0].mxu0
      %v6189 = vadd.f32 %v5916, %v6188
      %v6190 = vpop.f32.mrb[0].mxu0
      %6191 = vmatprep.mubr.bf16.mxu0 0
      %6192 = vmatmul.mubr.bf16.gmra.mrb[0].mxu0 %v5562
      %v6193 = vpop.f32.mrb[0].mxu0
      %v6194 = vadd.f32 %v5921, %v6193
      %v6195 = vpop.f32.mrb[0].mxu0
      %v6196 = vpop.f32.mrb[0].mxu0
      %v6197 = vadd.f32 %v5924, %v6196
      %v6198 = vpop.f32.mrb[0].mxu0
      %6199 = vmatprep.mubr.bf16.mxu0 0
      %6200 = vmatmul.mubr.bf16.gmra.mrb[0].mxu0 %v5563
      %v6201 = vpop.f32.mrb[0].mxu0
      %v6202 = vadd.f32 %v5929, %v6201
      %v6203 = vpop.f32.mrb[0].mxu0
      %v6204 = vpop.f32.mrb[0].mxu0
      %v6205 = vadd.f32 %v5932, %v6204
      %v6206 = vpop.f32.mrb[0].mxu0
      %6207 = vmatprep.mubr.bf16.mxu0 0
      %6208 = vmatmul.mubr.bf16.gmra.mrb[0].mxu0 %v5564
      %v6209 = vpop.f32.mrb[0].mxu0
      %v6210 = vadd.f32 %v5937, %v6209
      %v6211 = vpop.f32.mrb[0].mxu0
      %v6212 = vpop.f32.mrb[0].mxu0
      %v6213 = vadd.f32 %v5940, %v6212
      %v6214 = vpop.f32.mrb[0].mxu0
      %6215 = vdwg.mxu0
      %v6216 = vld [vmem:[#allocation3 + $0x2] sm:$0xff]
      %v6217 = vld [vmem:[#allocation3 + $0xa] sm:$0xff]
      %v6218 = vld [vmem:[#allocation3 + $0x12] sm:$0xff]
      %v6219 = vld [vmem:[#allocation3 + $0x1a] sm:$0xff]
      %v6220 = vld [vmem:[#allocation3 + $0x22] sm:$0xff]
      %v6221 = vld [vmem:[#allocation3 + $0x2a] sm:$0xff]
      %v6222 = vld [vmem:[#allocation3 + $0x32] sm:$0xff]
      %v6223 = vld [vmem:[#allocation3 + $0x3a] sm:$0xff]
      %v6224 = vld [vmem:[#allocation3 + $0x42] sm:$0xff]
      %v6225 = vld [vmem:[#allocation3 + $0x4a] sm:$0xff]
      %v6226 = vld [vmem:[#allocation3 + $0x52] sm:$0xff]
      %v6227 = vld [vmem:[#allocation3 + $0x5a] sm:$0xff]
      %v6228 = vld [vmem:[#allocation3 + $0x62] sm:$0xff]
      %v6229 = vld [vmem:[#allocation3 + $0x6a] sm:$0xff]
      %v6230 = vld [vmem:[#allocation3 + $0x72] sm:$0xff]
      %v6231 = vld [vmem:[#allocation3 + $0x7a] sm:$0xff]
      %v6232 = vld [vmem:[#allocation3 + $0x82] sm:$0xff]
      %v6233 = vld [vmem:[#allocation3 + $0x8a] sm:$0xff]
      %v6234 = vld [vmem:[#allocation3 + $0x92] sm:$0xff]
      %v6235 = vld [vmem:[#allocation3 + $0x9a] sm:$0xff]
      %v6236 = vld [vmem:[#allocation3 + $0xa2] sm:$0xff]
      %v6237 = vld [vmem:[#allocation3 + $0xaa] sm:$0xff]
      %v6238 = vld [vmem:[#allocation3 + $0xb2] sm:$0xff]
      %v6239 = vld [vmem:[#allocation3 + $0xba] sm:$0xff]
      %v6240 = vld [vmem:[#allocation3 + $0xc2] sm:$0xff]
      %v6241 = vld [vmem:[#allocation3 + $0xca] sm:$0xff]
      %v6242 = vld [vmem:[#allocation3 + $0xd2] sm:$0xff]
      %v6243 = vld [vmem:[#allocation3 + $0xda] sm:$0xff]
      %v6244 = vld [vmem:[#allocation3 + $0xe2] sm:$0xff]
      %v6245 = vld [vmem:[#allocation3 + $0xea] sm:$0xff]
      %v6246 = vld [vmem:[#allocation3 + $0xf2] sm:$0xff]
      %v6247 = vld [vmem:[#allocation3 + $0xfa] sm:$0xff]
      %v6248 = vld [vmem:[#allocation3 + $0x102] sm:$0xff]
      %v6249 = vld [vmem:[#allocation3 + $0x10a] sm:$0xff]
      %v6250 = vld [vmem:[#allocation3 + $0x112] sm:$0xff]
      %v6251 = vld [vmem:[#allocation3 + $0x11a] sm:$0xff]
      %v6252 = vld [vmem:[#allocation3 + $0x122] sm:$0xff]
      %v6253 = vld [vmem:[#allocation3 + $0x12a] sm:$0xff]
      %v6254 = vld [vmem:[#allocation3 + $0x132] sm:$0xff]
      %v6255 = vld [vmem:[#allocation3 + $0x13a] sm:$0xff]
      %v6256 = vld [vmem:[#allocation3 + $0x142] sm:$0xff]
      %v6257 = vld [vmem:[#allocation3 + $0x14a] sm:$0xff]
      %v6258 = vld [vmem:[#allocation3 + $0x152] sm:$0xff]
      %v6259 = vld [vmem:[#allocation3 + $0x15a] sm:$0xff]
      %v6260 = vld [vmem:[#allocation3 + $0x162] sm:$0xff]
      %v6261 = vld [vmem:[#allocation3 + $0x16a] sm:$0xff]
      %v6262 = vld [vmem:[#allocation3 + $0x172] sm:$0xff]
      %v6263 = vld [vmem:[#allocation3 + $0x17a] sm:$0xff]
      %v6264 = vpack.c.bf16 %v6217, %v6216
      %v6265 = vpack.c.bf16 %v6219, %v6218
      %v6266 = vpack.c.bf16 %v6221, %v6220
      %v6267 = vpack.c.bf16 %v6223, %v6222
      %v6268 = vpack.c.bf16 %v6225, %v6224
      %v6269 = vpack.c.bf16 %v6227, %v6226
      %v6270 = vpack.c.bf16 %v6229, %v6228
      %v6271 = vpack.c.bf16 %v6231, %v6230
      %v6272 = vpack.c.bf16 %v6233, %v6232
      %v6273 = vpack.c.bf16 %v6235, %v6234
      %v6274 = vpack.c.bf16 %v6237, %v6236
      %v6275 = vpack.c.bf16 %v6239, %v6238
      %v6276 = vpack.c.bf16 %v6241, %v6240
      %v6277 = vpack.c.bf16 %v6243, %v6242
      %v6278 = vpack.c.bf16 %v6245, %v6244
      %v6279 = vpack.c.bf16 %v6247, %v6246
      %v6280 = vpack.c.bf16 %v6249, %v6248
      %v6281 = vpack.c.bf16 %v6251, %v6250
      %v6282 = vpack.c.bf16 %v6253, %v6252
      %v6283 = vpack.c.bf16 %v6255, %v6254
      %v6284 = vpack.c.bf16 %v6257, %v6256
      %v6285 = vpack.c.bf16 %v6259, %v6258
      %v6286 = vpack.c.bf16 %v6261, %v6260
      %v6287 = vpack.c.bf16 %v6263, %v6262
      %s6288 = scalar_lea.vmem %s3, 128
      %v6289 = vld [vmem:[%s6288] sm:$0xf]
      %v6290 = vld [vmem:[%s6288 + $0x4] sm:$0xf]
      %v6291 = vld [vmem:[%s6288 + $0x8] sm:$0xf]
      %v6292 = vld [vmem:[%s6288 + $0xc] sm:$0xf]
      %v6293 = vld [vmem:[%s6288 + $0x10] sm:$0xf]
      %v6294 = vld [vmem:[%s6288 + $0x14] sm:$0xf]
      %v6295 = vld [vmem:[%s6288 + $0x18] sm:$0xf]
      %v6296 = vld [vmem:[%s6288 + $0x1c] sm:$0xf]
      %v6297 = vld [vmem:[%s6288 + $0x20] sm:$0xf]
      %v6298 = vld [vmem:[%s6288 + $0x24] sm:$0xf]
      %v6299 = vld [vmem:[%s6288 + $0x28] sm:$0xf]
      %v6300 = vld [vmem:[%s6288 + $0x2c] sm:$0xf]
      %v6301 = vld [vmem:[%s6288 + $0x30] sm:$0xf]
      %v6302 = vld [vmem:[%s6288 + $0x34] sm:$0xf]
      %v6303 = vld [vmem:[%s6288 + $0x38] sm:$0xf]
      %v6304 = vld [vmem:[%s6288 + $0x3c] sm:$0xf]
      %v6321 = vunpack.c.l.b16 %v6289
      %v6322 = vunpack.c.l.b16 %v6290
      %v6323 = vunpack.c.l.b16 %v6291
      %v6324 = vunpack.c.l.b16 %v6292
      %v6325 = vunpack.c.l.b16 %v6293
      %v6326 = vunpack.c.l.b16 %v6294
      %v6327 = vunpack.c.l.b16 %v6295
      %v6328 = vunpack.c.l.b16 %v6296
      %v6329 = vunpack.c.l.b16 %v6297
      %v6330 = vunpack.c.l.b16 %v6298
      %v6331 = vunpack.c.l.b16 %v6299
      %v6332 = vunpack.c.l.b16 %v6300
      %v6333 = vunpack.c.l.b16 %v6301
      %v6334 = vunpack.c.l.b16 %v6302
      %v6335 = vunpack.c.l.b16 %v6303
      %v6336 = vunpack.c.l.b16 %v6304
      %v6337 = vpack.c.b16 %v6322, %v6321
      %v6338 = vpack.c.b16 %v6324, %v6323
      %v6339 = vpack.c.b16 %v6326, %v6325
      %v6340 = vpack.c.b16 %v6328, %v6327
      %v6341 = vpack.c.b16 %v6330, %v6329
      %v6342 = vpack.c.b16 %v6332, %v6331
      %v6343 = vpack.c.b16 %v6334, %v6333
      %v6344 = vpack.c.b16 %v6336, %v6335
      %6353 = vmatprep.subr.bf16.mxu0 0
      %6354 = vmatpush1.bf16.msra.mxu0 %v6337
      %6355 = vmatprep.subr.bf16.mxu0 0
      %6356 = vmatpush1.bf16.msra.mxu0 %v6338
      %6357 = vmatprep.subr.bf16.mxu0 0
      %6358 = vmatpush1.bf16.msra.mxu0 %v6339
      %6359 = vmatprep.subr.bf16.mxu0 0
      %6360 = vmatpush1.bf16.msra.mxu0 %v6340
      %6361 = vmatprep.subr.bf16.mxu0 0
      %6362 = vmatpush1.bf16.msra.mxu0 %v6341
      %6363 = vmatprep.subr.bf16.mxu0 0
      %6364 = vmatpush1.bf16.msra.mxu0 %v6342
      %6365 = vmatprep.subr.bf16.mxu0 0
      %6366 = vmatpush1.bf16.msra.mxu0 %v6343
      %6367 = vmatprep.subr.bf16.mxu0 0
      %6368 = vmatpush1.bf16.msra.mxu0 %v6344
      %6369 = vmatprep.subr.bf16.mxu0 0
      %6370 = vmatpush1.bf16.msra.mxu0 0
      %6371 = vmatprep.subr.bf16.mxu0 0
      %6372 = vmatpush1.bf16.msra.mxu0 0
      %6373 = vmatprep.subr.bf16.mxu0 0
      %6374 = vmatpush1.bf16.msra.mxu0 0
      %6375 = vmatprep.subr.bf16.mxu0 0
      %6376 = vmatpush1.bf16.msra.mxu0 0
      %6377 = vmatprep.subr.bf16.mxu0 0
      %6378 = vmatpush1.bf16.msra.mxu0 0
      %6379 = vmatprep.subr.bf16.mxu0 0
      %6380 = vmatpush1.bf16.msra.mxu0 0
      %6381 = vmatprep.subr.bf16.mxu0 0
      %6382 = vmatpush1.bf16.msra.mxu0 0
      %6383 = vmatprep.subr.bf16.mxu0 0
      %6384 = vmatpush1.bf16.msra.mxu0 0
      %6385 = vmatprep.mubr.bf16.mxu0 0
      %6386 = vmatmul.mubr.bf16.gmra.mrb[0].mxu0 %v6264
      %v6387 = vpop.f32.mrb[0].mxu0
      %v6388 = vadd.f32 0.0, %v6387
      %v6389 = vpop.f32.mrb[0].mxu0
      %v6390 = vpop.f32.mrb[0].mxu0
      %v6391 = vadd.f32 0.0, %v6390
      %v6392 = vpop.f32.mrb[0].mxu0
      %6393 = vmatprep.mubr.bf16.mxu0 0
      %6394 = vmatmul.mubr.bf16.gmra.mrb[0].mxu0 %v6265
      %v6395 = vpop.f32.mrb[0].mxu0
      %v6396 = vadd.f32 0.0, %v6395
      %v6397 = vpop.f32.mrb[0].mxu0
      %v6398 = vpop.f32.mrb[0].mxu0
      %v6399 = vadd.f32 0.0, %v6398
      %v6400 = vpop.f32.mrb[0].mxu0
      %6401 = vmatprep.mubr.bf16.mxu0 0
      %6402 = vmatmul.mubr.bf16.gmra.mrb[0].mxu0 %v6266
      %v6403 = vpop.f32.mrb[0].mxu0
      %v6404 = vadd.f32 0.0, %v6403
      %v6405 = vpop.f32.mrb[0].mxu0
      %v6406 = vpop.f32.mrb[0].mxu0
      %v6407 = vadd.f32 0.0, %v6406
      %v6408 = vpop.f32.mrb[0].mxu0
      %6409 = vmatprep.mubr.bf16.mxu0 0
      %6410 = vmatmul.mubr.bf16.gmra.mrb[0].mxu0 %v6267
      %v6411 = vpop.f32.mrb[0].mxu0
      %v6412 = vadd.f32 0.0, %v6411
      %v6413 = vpop.f32.mrb[0].mxu0
      %v6414 = vpop.f32.mrb[0].mxu0
      %v6415 = vadd.f32 0.0, %v6414
      %v6416 = vpop.f32.mrb[0].mxu0
      %6417 = vmatprep.mubr.bf16.mxu0 0
      %6418 = vmatmul.mubr.bf16.gmra.mrb[0].mxu0 %v6268
      %v6419 = vpop.f32.mrb[0].mxu0
      %v6420 = vadd.f32 0.0, %v6419
      %v6421 = vpop.f32.mrb[0].mxu0
      %v6422 = vpop.f32.mrb[0].mxu0
      %v6423 = vadd.f32 0.0, %v6422
      %v6424 = vpop.f32.mrb[0].mxu0
      %6425 = vmatprep.mubr.bf16.mxu0 0
      %6426 = vmatmul.mubr.bf16.gmra.mrb[0].mxu0 %v6269
      %v6427 = vpop.f32.mrb[0].mxu0
      %v6428 = vadd.f32 0.0, %v6427
      %v6429 = vpop.f32.mrb[0].mxu0
      %v6430 = vpop.f32.mrb[0].mxu0
      %v6431 = vadd.f32 0.0, %v6430
      %v6432 = vpop.f32.mrb[0].mxu0
      %6433 = vmatprep.mubr.bf16.mxu0 0
      %6434 = vmatmul.mubr.bf16.gmra.mrb[0].mxu0 %v6270
      %v6435 = vpop.f32.mrb[0].mxu0
      %v6436 = vadd.f32 0.0, %v6435
      %v6437 = vpop.f32.mrb[0].mxu0
      %v6438 = vpop.f32.mrb[0].mxu0
      %v6439 = vadd.f32 0.0, %v6438
      %v6440 = vpop.f32.mrb[0].mxu0
      %6441 = vmatprep.mubr.bf16.mxu0 0
      %6442 = vmatmul.mubr.bf16.gmra.mrb[0].mxu0 %v6271
      %v6443 = vpop.f32.mrb[0].mxu0
      %v6444 = vadd.f32 0.0, %v6443
      %v6445 = vpop.f32.mrb[0].mxu0
      %v6446 = vpop.f32.mrb[0].mxu0
      %v6447 = vadd.f32 0.0, %v6446
      %v6448 = vpop.f32.mrb[0].mxu0
      %6449 = vmatprep.mubr.bf16.mxu0 0
      %6450 = vmatmul.mubr.bf16.gmra.mrb[0].mxu0 %v6272
      %v6451 = vpop.f32.mrb[0].mxu0
      %v6452 = vadd.f32 0.0, %v6451
      %v6453 = vpop.f32.mrb[0].mxu0
      %v6454 = vpop.f32.mrb[0].mxu0
      %v6455 = vadd.f32 0.0, %v6454
      %v6456 = vpop.f32.mrb[0].mxu0
      %6457 = vmatprep.mubr.bf16.mxu0 0
      %6458 = vmatmul.mubr.bf16.gmra.mrb[0].mxu0 %v6273
      %v6459 = vpop.f32.mrb[0].mxu0
      %v6460 = vadd.f32 0.0, %v6459
      %v6461 = vpop.f32.mrb[0].mxu0
      %v6462 = vpop.f32.mrb[0].mxu0
      %v6463 = vadd.f32 0.0, %v6462
      %v6464 = vpop.f32.mrb[0].mxu0
      %6465 = vmatprep.mubr.bf16.mxu0 0
      %6466 = vmatmul.mubr.bf16.gmra.mrb[0].mxu0 %v6274
      %v6467 = vpop.f32.mrb[0].mxu0
      %v6468 = vadd.f32 0.0, %v6467
      %v6469 = vpop.f32.mrb[0].mxu0
      %v6470 = vpop.f32.mrb[0].mxu0
      %v6471 = vadd.f32 0.0, %v6470
      %v6472 = vpop.f32.mrb[0].mxu0
      %6473 = vmatprep.mubr.bf16.mxu0 0
      %6474 = vmatmul.mubr.bf16.gmra.mrb[0].mxu0 %v6275
      %v6475 = vpop.f32.mrb[0].mxu0
      %v6476 = vadd.f32 0.0, %v6475
      %v6477 = vpop.f32.mrb[0].mxu0
      %v6478 = vpop.f32.mrb[0].mxu0
      %v6479 = vadd.f32 0.0, %v6478
      %v6480 = vpop.f32.mrb[0].mxu0
      %6481 = vmatprep.mubr.bf16.mxu0 0
      %6482 = vmatmul.mubr.bf16.gmra.mrb[0].mxu0 %v6276
      %v6483 = vpop.f32.mrb[0].mxu0
      %v6484 = vadd.f32 0.0, %v6483
      %v6485 = vpop.f32.mrb[0].mxu0
      %v6486 = vpop.f32.mrb[0].mxu0
      %v6487 = vadd.f32 0.0, %v6486
      %v6488 = vpop.f32.mrb[0].mxu0
      %6489 = vmatprep.mubr.bf16.mxu0 0
      %6490 = vmatmul.mubr.bf16.gmra.mrb[0].mxu0 %v6277
      %v6491 = vpop.f32.mrb[0].mxu0
      %v6492 = vadd.f32 0.0, %v6491
      %v6493 = vpop.f32.mrb[0].mxu0
      %v6494 = vpop.f32.mrb[0].mxu0
      %v6495 = vadd.f32 0.0, %v6494
      %v6496 = vpop.f32.mrb[0].mxu0
      %6497 = vmatprep.mubr.bf16.mxu0 0
      %6498 = vmatmul.mubr.bf16.gmra.mrb[0].mxu0 %v6278
      %v6499 = vpop.f32.mrb[0].mxu0
      %v6500 = vadd.f32 0.0, %v6499
      %v6501 = vpop.f32.mrb[0].mxu0
      %v6502 = vpop.f32.mrb[0].mxu0
      %v6503 = vadd.f32 0.0, %v6502
      %v6504 = vpop.f32.mrb[0].mxu0
      %6505 = vmatprep.mubr.bf16.mxu0 0
      %6506 = vmatmul.mubr.bf16.gmra.mrb[0].mxu0 %v6279
      %v6507 = vpop.f32.mrb[0].mxu0
      %v6508 = vadd.f32 0.0, %v6507
      %v6509 = vpop.f32.mrb[0].mxu0
      %v6510 = vpop.f32.mrb[0].mxu0
      %v6511 = vadd.f32 0.0, %v6510
      %v6512 = vpop.f32.mrb[0].mxu0
      %6513 = vmatprep.mubr.bf16.mxu0 0
      %6514 = vmatmul.mubr.bf16.gmra.mrb[0].mxu0 %v6280
      %v6515 = vpop.f32.mrb[0].mxu0
      %v6516 = vadd.f32 0.0, %v6515
      %v6517 = vpop.f32.mrb[0].mxu0
      %v6518 = vpop.f32.mrb[0].mxu0
      %v6519 = vadd.f32 0.0, %v6518
      %v6520 = vpop.f32.mrb[0].mxu0
      %6521 = vmatprep.mubr.bf16.mxu0 0
      %6522 = vmatmul.mubr.bf16.gmra.mrb[0].mxu0 %v6281
      %v6523 = vpop.f32.mrb[0].mxu0
      %v6524 = vadd.f32 0.0, %v6523
      %v6525 = vpop.f32.mrb[0].mxu0
      %v6526 = vpop.f32.mrb[0].mxu0
      %v6527 = vadd.f32 0.0, %v6526
      %v6528 = vpop.f32.mrb[0].mxu0
      %6529 = vmatprep.mubr.bf16.mxu0 0
      %6530 = vmatmul.mubr.bf16.gmra.mrb[0].mxu0 %v6282
      %v6531 = vpop.f32.mrb[0].mxu0
      %v6532 = vadd.f32 0.0, %v6531
      %v6533 = vpop.f32.mrb[0].mxu0
      %v6534 = vpop.f32.mrb[0].mxu0
      %v6535 = vadd.f32 0.0, %v6534
      %v6536 = vpop.f32.mrb[0].mxu0
      %6537 = vmatprep.mubr.bf16.mxu0 0
      %6538 = vmatmul.mubr.bf16.gmra.mrb[0].mxu0 %v6283
      %v6539 = vpop.f32.mrb[0].mxu0
      %v6540 = vadd.f32 0.0, %v6539
      %v6541 = vpop.f32.mrb[0].mxu0
      %v6542 = vpop.f32.mrb[0].mxu0
      %v6543 = vadd.f32 0.0, %v6542
      %v6544 = vpop.f32.mrb[0].mxu0
      %6545 = vmatprep.mubr.bf16.mxu0 0
      %6546 = vmatmul.mubr.bf16.gmra.mrb[0].mxu0 %v6284
      %v6547 = vpop.f32.mrb[0].mxu0
      %v6548 = vadd.f32 0.0, %v6547
      %v6549 = vpop.f32.mrb[0].mxu0
      %v6550 = vpop.f32.mrb[0].mxu0
      %v6551 = vadd.f32 0.0, %v6550
      %v6552 = vpop.f32.mrb[0].mxu0
      %6553 = vmatprep.mubr.bf16.mxu0 0
      %6554 = vmatmul.mubr.bf16.gmra.mrb[0].mxu0 %v6285
      %v6555 = vpop.f32.mrb[0].mxu0
      %v6556 = vadd.f32 0.0, %v6555
      %v6557 = vpop.f32.mrb[0].mxu0
      %v6558 = vpop.f32.mrb[0].mxu0
      %v6559 = vadd.f32 0.0, %v6558
      %v6560 = vpop.f32.mrb[0].mxu0
      %6561 = vmatprep.mubr.bf16.mxu0 0
      %6562 = vmatmul.mubr.bf16.gmra.mrb[0].mxu0 %v6286
      %v6563 = vpop.f32.mrb[0].mxu0
      %v6564 = vadd.f32 0.0, %v6563
      %v6565 = vpop.f32.mrb[0].mxu0
      %v6566 = vpop.f32.mrb[0].mxu0
      %v6567 = vadd.f32 0.0, %v6566
      %v6568 = vpop.f32.mrb[0].mxu0
      %6569 = vmatprep.mubr.bf16.mxu0 0
      %6570 = vmatmul.mubr.bf16.gmra.mrb[0].mxu0 %v6287
      %v6571 = vpop.f32.mrb[0].mxu0
      %v6572 = vadd.f32 0.0, %v6571
      %v6573 = vpop.f32.mrb[0].mxu0
      %v6574 = vpop.f32.mrb[0].mxu0
      %v6575 = vadd.f32 0.0, %v6574
      %v6576 = vpop.f32.mrb[0].mxu0
      %6577 = vdwg.mxu0
      %v6578 = vadd.f32 %v6026, %v6388
      %v6579 = vadd.f32 %v6029, %v6391
      %v6580 = vadd.f32 %v6034, %v6396
      %v6581 = vadd.f32 %v6037, %v6399
      %v6582 = vadd.f32 %v6042, %v6404
      %v6583 = vadd.f32 %v6045, %v6407
      %v6584 = vadd.f32 %v6050, %v6412
      %v6585 = vadd.f32 %v6053, %v6415
      %v6586 = vadd.f32 %v6058, %v6420
      %v6587 = vadd.f32 %v6061, %v6423
      %v6588 = vadd.f32 %v6066, %v6428
      %v6589 = vadd.f32 %v6069, %v6431
      %v6590 = vadd.f32 %v6074, %v6436
      %v6591 = vadd.f32 %v6077, %v6439
      %v6592 = vadd.f32 %v6082, %v6444
      %v6593 = vadd.f32 %v6085, %v6447
      %v6594 = vadd.f32 %v6090, %v6452
      %v6595 = vadd.f32 %v6093, %v6455
      %v6596 = vadd.f32 %v6098, %v6460
      %v6597 = vadd.f32 %v6101, %v6463
      %v6598 = vadd.f32 %v6106, %v6468
      %v6599 = vadd.f32 %v6109, %v6471
      %v6600 = vadd.f32 %v6114, %v6476
      %v6601 = vadd.f32 %v6117, %v6479
      %v6602 = vadd.f32 %v6122, %v6484
      %v6603 = vadd.f32 %v6125, %v6487
      %v6604 = vadd.f32 %v6130, %v6492
      %v6605 = vadd.f32 %v6133, %v6495
      %v6606 = vadd.f32 %v6138, %v6500
      %v6607 = vadd.f32 %v6141, %v6503
      %v6608 = vadd.f32 %v6146, %v6508
      %v6609 = vadd.f32 %v6149, %v6511
      %v6610 = vadd.f32 %v6154, %v6516
      %v6611 = vadd.f32 %v6157, %v6519
      %v6612 = vadd.f32 %v6162, %v6524
      %v6613 = vadd.f32 %v6165, %v6527
      %v6614 = vadd.f32 %v6170, %v6532
      %v6615 = vadd.f32 %v6173, %v6535
      %v6616 = vadd.f32 %v6178, %v6540
      %v6617 = vadd.f32 %v6181, %v6543
      %v6618 = vadd.f32 %v6186, %v6548
      %v6619 = vadd.f32 %v6189, %v6551
      %v6620 = vadd.f32 %v6194, %v6556
      %v6621 = vadd.f32 %v6197, %v6559
      %v6622 = vadd.f32 %v6202, %v6564
      %v6623 = vadd.f32 %v6205, %v6567
      %v6624 = vadd.f32 %v6210, %v6572
      %v6625 = vadd.f32 %v6213, %v6575
      %v6626 = vld [vmem:[#allocation3 + $0x18] sm:$0xff]
      %v6627 = vld [vmem:[#allocation3 + $0x20] sm:$0xff]
      %v6628 = vld [vmem:[#allocation3 + $0x28] sm:$0xff]
      %v6629 = vld [vmem:[#allocation3 + $0x30] sm:$0xff]
      %v6630 = vld [vmem:[#allocation3 + $0x38] sm:$0xff]
      %v6631 = vld [vmem:[#allocation3 + $0x40] sm:$0xff]
      %v6632 = vld [vmem:[#allocation3 + $0x48] sm:$0xff]
      %v6633 = vld [vmem:[#allocation3 + $0x50] sm:$0xff]
      %v6634 = vld [vmem:[#allocation3 + $0x58] sm:$0xff]
      %v6635 = vld [vmem:[#allocation3 + $0x60] sm:$0xff]
      %v6636 = vld [vmem:[#allocation3 + $0x68] sm:$0xff]
      %v6637 = vld [vmem:[#allocation3 + $0x70] sm:$0xff]
      %v6638 = vld [vmem:[#allocation3 + $0x78] sm:$0xff]
      %v6639 = vld [vmem:[#allocation3 + $0x80] sm:$0xff]
      %v6640 = vld [vmem:[#allocation3 + $0x88] sm:$0xff]
      %v6641 = vld [vmem:[#allocation3 + $0x90] sm:$0xff]
      %v6642 = vld [vmem:[#allocation3 + $0x98] sm:$0xff]
      %v6643 = vld [vmem:[#allocation3 + $0xa0] sm:$0xff]
      %v6644 = vld [vmem:[#allocation3 + $0xa8] sm:$0xff]
      %v6645 = vld [vmem:[#allocation3 + $0xb0] sm:$0xff]
      %v6646 = vld [vmem:[#allocation3 + $0xb8] sm:$0xff]
      %v6647 = vld [vmem:[#allocation3 + $0xc0] sm:$0xff]
      %v6648 = vld [vmem:[#allocation3 + $0xc8] sm:$0xff]
      %v6649 = vld [vmem:[#allocation3 + $0xd0] sm:$0xff]
      %v6650 = vld [vmem:[#allocation3 + $0xd8] sm:$0xff]
      %v6651 = vld [vmem:[#allocation3 + $0xe0] sm:$0xff]
      %v6652 = vld [vmem:[#allocation3 + $0xe8] sm:$0xff]
      %v6653 = vld [vmem:[#allocation3 + $0xf0] sm:$0xff]
      %v6654 = vld [vmem:[#allocation3 + $0xf8] sm:$0xff]
      %v6655 = vld [vmem:[#allocation3 + $0x100] sm:$0xff]
      %v6656 = vld [vmem:[#allocation3 + $0x108] sm:$0xff]
      %v6657 = vld [vmem:[#allocation3 + $0x110] sm:$0xff]
      %v6658 = vld [vmem:[#allocation3 + $0x118] sm:$0xff]
      %v6659 = vld [vmem:[#allocation3 + $0x120] sm:$0xff]
      %v6660 = vld [vmem:[#allocation3 + $0x128] sm:$0xff]
      %v6661 = vld [vmem:[#allocation3 + $0x130] sm:$0xff]
      %v6662 = vld [vmem:[#allocation3 + $0x138] sm:$0xff]
      %v6663 = vld [vmem:[#allocation3 + $0x140] sm:$0xff]
      %v6664 = vld [vmem:[#allocation3 + $0x148] sm:$0xff]
      %v6665 = vld [vmem:[#allocation3 + $0x150] sm:$0xff]
      %v6666 = vld [vmem:[#allocation3 + $0x158] sm:$0xff]
      %v6667 = vld [vmem:[#allocation3 + $0x160] sm:$0xff]
      %v6668 = vld [vmem:[#allocation3 + $0x168] sm:$0xff]
      %v6669 = vld [vmem:[#allocation3 + $0x170] sm:$0xff]
      %v6670 = vld [vmem:[#allocation3 + $0x178] sm:$0xff]
      %v6671 = vld [vmem:[#allocation3 + $0x180] sm:$0xff]
      %v6672 = vld [vmem:[#allocation3 + $0x188] sm:$0xff]
      %v6673 = vld [vmem:[#allocation3 + $0x190] sm:$0xff]
      %v6674 = vpack.c.bf16 %v6627, %v6626
      %v6675 = vpack.c.bf16 %v6629, %v6628
      %v6676 = vpack.c.bf16 %v6631, %v6630
      %v6677 = vpack.c.bf16 %v6633, %v6632
      %v6678 = vpack.c.bf16 %v6635, %v6634
      %v6679 = vpack.c.bf16 %v6637, %v6636
      %v6680 = vpack.c.bf16 %v6639, %v6638
      %v6681 = vpack.c.bf16 %v6641, %v6640
      %v6682 = vpack.c.bf16 %v6643, %v6642
      %v6683 = vpack.c.bf16 %v6645, %v6644
      %v6684 = vpack.c.bf16 %v6647, %v6646
      %v6685 = vpack.c.bf16 %v6649, %v6648
      %v6686 = vpack.c.bf16 %v6651, %v6650
      %v6687 = vpack.c.bf16 %v6653, %v6652
      %v6688 = vpack.c.bf16 %v6655, %v6654
      %v6689 = vpack.c.bf16 %v6657, %v6656
      %v6690 = vpack.c.bf16 %v6659, %v6658
      %v6691 = vpack.c.bf16 %v6661, %v6660
      %v6692 = vpack.c.bf16 %v6663, %v6662
      %v6693 = vpack.c.bf16 %v6665, %v6664
      %v6694 = vpack.c.bf16 %v6667, %v6666
      %v6695 = vpack.c.bf16 %v6669, %v6668
      %v6696 = vpack.c.bf16 %v6671, %v6670
      %v6697 = vpack.c.bf16 %v6673, %v6672
      %s6698 = scalar_lea.vmem %s3, 192
      %v6699 = vld [vmem:[%s6698] sm:$0xf]
      %v6700 = vld [vmem:[%s6698 + $0x4] sm:$0xf]
      %v6701 = vld [vmem:[%s6698 + $0x8] sm:$0xf]
      %v6702 = vld [vmem:[%s6698 + $0xc] sm:$0xf]
      %v6703 = vld [vmem:[%s6698 + $0x10] sm:$0xf]
      %v6704 = vld [vmem:[%s6698 + $0x14] sm:$0xf]
      %v6705 = vld [vmem:[%s6698 + $0x18] sm:$0xf]
      %v6706 = vld [vmem:[%s6698 + $0x1c] sm:$0xf]
      %v6707 = vld [vmem:[%s6698 + $0x20] sm:$0xf]
      %v6708 = vld [vmem:[%s6698 + $0x24] sm:$0xf]
      %v6709 = vld [vmem:[%s6698 + $0x28] sm:$0xf]
      %v6710 = vld [vmem:[%s6698 + $0x2c] sm:$0xf]
      %v6711 = vld [vmem:[%s6698 + $0x30] sm:$0xf]
      %v6712 = vld [vmem:[%s6698 + $0x34] sm:$0xf]
      %v6713 = vld [vmem:[%s6698 + $0x38] sm:$0xf]
      %v6714 = vld [vmem:[%s6698 + $0x3c] sm:$0xf]
      %v6731 = vunpack.c.l.b16 %v6699
      %v6732 = vunpack.c.l.b16 %v6700
      %v6733 = vunpack.c.l.b16 %v6701
      %v6734 = vunpack.c.l.b16 %v6702
      %v6735 = vunpack.c.l.b16 %v6703
      %v6736 = vunpack.c.l.b16 %v6704
      %v6737 = vunpack.c.l.b16 %v6705
      %v6738 = vunpack.c.l.b16 %v6706
      %v6739 = vunpack.c.l.b16 %v6707
      %v6740 = vunpack.c.l.b16 %v6708
      %v6741 = vunpack.c.l.b16 %v6709
      %v6742 = vunpack.c.l.b16 %v6710
      %v6743 = vunpack.c.l.b16 %v6711
      %v6744 = vunpack.c.l.b16 %v6712
      %v6745 = vunpack.c.l.b16 %v6713
      %v6746 = vunpack.c.l.b16 %v6714
      %v6747 = vpack.c.b16 %v6732, %v6731
      %v6748 = vpack.c.b16 %v6734, %v6733
      %v6749 = vpack.c.b16 %v6736, %v6735
      %v6750 = vpack.c.b16 %v6738, %v6737
      %v6751 = vpack.c.b16 %v6740, %v6739
      %v6752 = vpack.c.b16 %v6742, %v6741
      %v6753 = vpack.c.b16 %v6744, %v6743
      %v6754 = vpack.c.b16 %v6746, %v6745
      %6763 = vmatprep.subr.bf16.mxu0 0
      %6764 = vmatpush1.bf16.msra.mxu0 %v6747
      %6765 = vmatprep.subr.bf16.mxu0 0
      %6766 = vmatpush1.bf16.msra.mxu0 %v6748
      %6767 = vmatprep.subr.bf16.mxu0 0
      %6768 = vmatpush1.bf16.msra.mxu0 %v6749
      %6769 = vmatprep.subr.bf16.mxu0 0
      %6770 = vmatpush1.bf16.msra.mxu0 %v6750
      %6771 = vmatprep.subr.bf16.mxu0 0
      %6772 = vmatpush1.bf16.msra.mxu0 %v6751
      %6773 = vmatprep.subr.bf16.mxu0 0
      %6774 = vmatpush1.bf16.msra.mxu0 %v6752
      %6775 = vmatprep.subr.bf16.mxu0 0
      %6776 = vmatpush1.bf16.msra.mxu0 %v6753
      %6777 = vmatprep.subr.bf16.mxu0 0
      %6778 = vmatpush1.bf16.msra.mxu0 %v6754
      %6779 = vmatprep.subr.bf16.mxu0 0
      %6780 = vmatpush1.bf16.msra.mxu0 0
      %6781 = vmatprep.subr.bf16.mxu0 0
      %6782 = vmatpush1.bf16.msra.mxu0 0
      %6783 = vmatprep.subr.bf16.mxu0 0
      %6784 = vmatpush1.bf16.msra.mxu0 0
      %6785 = vmatprep.subr.bf16.mxu0 0
      %6786 = vmatpush1.bf16.msra.mxu0 0
      %6787 = vmatprep.subr.bf16.mxu0 0
      %6788 = vmatpush1.bf16.msra.mxu0 0
      %6789 = vmatprep.subr.bf16.mxu0 0
      %6790 = vmatpush1.bf16.msra.mxu0 0
      %6791 = vmatprep.subr.bf16.mxu0 0
      %6792 = vmatpush1.bf16.msra.mxu0 0
      %6793 = vmatprep.subr.bf16.mxu0 0
      %6794 = vmatpush1.bf16.msra.mxu0 0
      %6795 = vmatprep.mubr.bf16.mxu0 0
      %6796 = vmatmul.mubr.bf16.gmra.mrb[0].mxu0 %v6674
      %v6797 = vpop.f32.mrb[0].mxu0
      %v6798 = vadd.f32 0.0, %v6797
      %v6799 = vpop.f32.mrb[0].mxu0
      %v6800 = vpop.f32.mrb[0].mxu0
      %v6801 = vadd.f32 0.0, %v6800
      %v6802 = vpop.f32.mrb[0].mxu0
      %6803 = vmatprep.mubr.bf16.mxu0 0
      %6804 = vmatmul.mubr.bf16.gmra.mrb[0].mxu0 %v6675
      %v6805 = vpop.f32.mrb[0].mxu0
      %v6806 = vadd.f32 0.0, %v6805
      %v6807 = vpop.f32.mrb[0].mxu0
      %v6808 = vpop.f32.mrb[0].mxu0
      %v6809 = vadd.f32 0.0, %v6808
      %v6810 = vpop.f32.mrb[0].mxu0
      %6811 = vmatprep.mubr.bf16.mxu0 0
      %6812 = vmatmul.mubr.bf16.gmra.mrb[0].mxu0 %v6676
      %v6813 = vpop.f32.mrb[0].mxu0
      %v6814 = vadd.f32 0.0, %v6813
      %v6815 = vpop.f32.mrb[0].mxu0
      %v6816 = vpop.f32.mrb[0].mxu0
      %v6817 = vadd.f32 0.0, %v6816
      %v6818 = vpop.f32.mrb[0].mxu0
      %6819 = vmatprep.mubr.bf16.mxu0 0
      %6820 = vmatmul.mubr.bf16.gmra.mrb[0].mxu0 %v6677
      %v6821 = vpop.f32.mrb[0].mxu0
      %v6822 = vadd.f32 0.0, %v6821
      %v6823 = vpop.f32.mrb[0].mxu0
      %v6824 = vpop.f32.mrb[0].mxu0
      %v6825 = vadd.f32 0.0, %v6824
      %v6826 = vpop.f32.mrb[0].mxu0
      %6827 = vmatprep.mubr.bf16.mxu0 0
      %6828 = vmatmul.mubr.bf16.gmra.mrb[0].mxu0 %v6678
      %v6829 = vpop.f32.mrb[0].mxu0
      %v6830 = vadd.f32 0.0, %v6829
      %v6831 = vpop.f32.mrb[0].mxu0
      %v6832 = vpop.f32.mrb[0].mxu0
      %v6833 = vadd.f32 0.0, %v6832
      %v6834 = vpop.f32.mrb[0].mxu0
      %6835 = vmatprep.mubr.bf16.mxu0 0
      %6836 = vmatmul.mubr.bf16.gmra.mrb[0].mxu0 %v6679
      %v6837 = vpop.f32.mrb[0].mxu0
      %v6838 = vadd.f32 0.0, %v6837
      %v6839 = vpop.f32.mrb[0].mxu0
      %v6840 = vpop.f32.mrb[0].mxu0
      %v6841 = vadd.f32 0.0, %v6840
      %v6842 = vpop.f32.mrb[0].mxu0
      %6843 = vmatprep.mubr.bf16.mxu0 0
      %6844 = vmatmul.mubr.bf16.gmra.mrb[0].mxu0 %v6680
      %v6845 = vpop.f32.mrb[0].mxu0
      %v6846 = vadd.f32 0.0, %v6845
      %v6847 = vpop.f32.mrb[0].mxu0
      %v6848 = vpop.f32.mrb[0].mxu0
      %v6849 = vadd.f32 0.0, %v6848
      %v6850 = vpop.f32.mrb[0].mxu0
      %6851 = vmatprep.mubr.bf16.mxu0 0
      %6852 = vmatmul.mubr.bf16.gmra.mrb[0].mxu0 %v6681
      %v6853 = vpop.f32.mrb[0].mxu0
      %v6854 = vadd.f32 0.0, %v6853
      %v6855 = vpop.f32.mrb[0].mxu0
      %v6856 = vpop.f32.mrb[0].mxu0
      %v6857 = vadd.f32 0.0, %v6856
      %v6858 = vpop.f32.mrb[0].mxu0
      %6859 = vmatprep.mubr.bf16.mxu0 0
      %6860 = vmatmul.mubr.bf16.gmra.mrb[0].mxu0 %v6682
      %v6861 = vpop.f32.mrb[0].mxu0
      %v6862 = vadd.f32 0.0, %v6861
      %v6863 = vpop.f32.mrb[0].mxu0
      %v6864 = vpop.f32.mrb[0].mxu0
      %v6865 = vadd.f32 0.0, %v6864
      %v6866 = vpop.f32.mrb[0].mxu0
      %6867 = vmatprep.mubr.bf16.mxu0 0
      %6868 = vmatmul.mubr.bf16.gmra.mrb[0].mxu0 %v6683
      %v6869 = vpop.f32.mrb[0].mxu0
      %v6870 = vadd.f32 0.0, %v6869
      %v6871 = vpop.f32.mrb[0].mxu0
      %v6872 = vpop.f32.mrb[0].mxu0
      %v6873 = vadd.f32 0.0, %v6872
      %v6874 = vpop.f32.mrb[0].mxu0
      %6875 = vmatprep.mubr.bf16.mxu0 0
      %6876 = vmatmul.mubr.bf16.gmra.mrb[0].mxu0 %v6684
      %v6877 = vpop.f32.mrb[0].mxu0
      %v6878 = vadd.f32 0.0, %v6877
      %v6879 = vpop.f32.mrb[0].mxu0
      %v6880 = vpop.f32.mrb[0].mxu0
      %v6881 = vadd.f32 0.0, %v6880
      %v6882 = vpop.f32.mrb[0].mxu0
      %6883 = vmatprep.mubr.bf16.mxu0 0
      %6884 = vmatmul.mubr.bf16.gmra.mrb[0].mxu0 %v6685
      %v6885 = vpop.f32.mrb[0].mxu0
      %v6886 = vadd.f32 0.0, %v6885
      %v6887 = vpop.f32.mrb[0].mxu0
      %v6888 = vpop.f32.mrb[0].mxu0
      %v6889 = vadd.f32 0.0, %v6888
      %v6890 = vpop.f32.mrb[0].mxu0
      %6891 = vmatprep.mubr.bf16.mxu0 0
      %6892 = vmatmul.mubr.bf16.gmra.mrb[0].mxu0 %v6686
      %v6893 = vpop.f32.mrb[0].mxu0
      %v6894 = vadd.f32 0.0, %v6893
      %v6895 = vpop.f32.mrb[0].mxu0
      %v6896 = vpop.f32.mrb[0].mxu0
      %v6897 = vadd.f32 0.0, %v6896
      %v6898 = vpop.f32.mrb[0].mxu0
      %6899 = vmatprep.mubr.bf16.mxu0 0
      %6900 = vmatmul.mubr.bf16.gmra.mrb[0].mxu0 %v6687
      %v6901 = vpop.f32.mrb[0].mxu0
      %v6902 = vadd.f32 0.0, %v6901
      %v6903 = vpop.f32.mrb[0].mxu0
      %v6904 = vpop.f32.mrb[0].mxu0
      %v6905 = vadd.f32 0.0, %v6904
      %v6906 = vpop.f32.mrb[0].mxu0
      %6907 = vmatprep.mubr.bf16.mxu0 0
      %6908 = vmatmul.mubr.bf16.gmra.mrb[0].mxu0 %v6688
      %v6909 = vpop.f32.mrb[0].mxu0
      %v6910 = vadd.f32 0.0, %v6909
      %v6911 = vpop.f32.mrb[0].mxu0
      %v6912 = vpop.f32.mrb[0].mxu0
      %v6913 = vadd.f32 0.0, %v6912
      %v6914 = vpop.f32.mrb[0].mxu0
      %6915 = vmatprep.mubr.bf16.mxu0 0
      %6916 = vmatmul.mubr.bf16.gmra.mrb[0].mxu0 %v6689
      %v6917 = vpop.f32.mrb[0].mxu0
      %v6918 = vadd.f32 0.0, %v6917
      %v6919 = vpop.f32.mrb[0].mxu0
      %v6920 = vpop.f32.mrb[0].mxu0
      %v6921 = vadd.f32 0.0, %v6920
      %v6922 = vpop.f32.mrb[0].mxu0
      %6923 = vmatprep.mubr.bf16.mxu0 0
      %6924 = vmatmul.mubr.bf16.gmra.mrb[0].mxu0 %v6690
      %v6925 = vpop.f32.mrb[0].mxu0
      %v6926 = vadd.f32 0.0, %v6925
      %v6927 = vpop.f32.mrb[0].mxu0
      %v6928 = vpop.f32.mrb[0].mxu0
      %v6929 = vadd.f32 0.0, %v6928
      %v6930 = vpop.f32.mrb[0].mxu0
      %6931 = vmatprep.mubr.bf16.mxu0 0
      %6932 = vmatmul.mubr.bf16.gmra.mrb[0].mxu0 %v6691
      %v6933 = vpop.f32.mrb[0].mxu0
      %v6934 = vadd.f32 0.0, %v6933
      %v6935 = vpop.f32.mrb[0].mxu0
      %v6936 = vpop.f32.mrb[0].mxu0
      %v6937 = vadd.f32 0.0, %v6936
      %v6938 = vpop.f32.mrb[0].mxu0
      %6939 = vmatprep.mubr.bf16.mxu0 0
      %6940 = vmatmul.mubr.bf16.gmra.mrb[0].mxu0 %v6692
      %v6941 = vpop.f32.mrb[0].mxu0
      %v6942 = vadd.f32 0.0, %v6941
      %v6943 = vpop.f32.mrb[0].mxu0
      %v6944 = vpop.f32.mrb[0].mxu0
      %v6945 = vadd.f32 0.0, %v6944
      %v6946 = vpop.f32.mrb[0].mxu0
      %6947 = vmatprep.mubr.bf16.mxu0 0
      %6948 = vmatmul.mubr.bf16.gmra.mrb[0].mxu0 %v6693
      %v6949 = vpop.f32.mrb[0].mxu0
      %v6950 = vadd.f32 0.0, %v6949
      %v6951 = vpop.f32.mrb[0].mxu0
      %v6952 = vpop.f32.mrb[0].mxu0
      %v6953 = vadd.f32 0.0, %v6952
      %v6954 = vpop.f32.mrb[0].mxu0
      %6955 = vmatprep.mubr.bf16.mxu0 0
      %6956 = vmatmul.mubr.bf16.gmra.mrb[0].mxu0 %v6694
      %v6957 = vpop.f32.mrb[0].mxu0
      %v6958 = vadd.f32 0.0, %v6957
      %v6959 = vpop.f32.mrb[0].mxu0
      %v6960 = vpop.f32.mrb[0].mxu0
      %v6961 = vadd.f32 0.0, %v6960
      %v6962 = vpop.f32.mrb[0].mxu0
      %6963 = vmatprep.mubr.bf16.mxu0 0
      %6964 = vmatmul.mubr.bf16.gmra.mrb[0].mxu0 %v6695
      %v6965 = vpop.f32.mrb[0].mxu0
      %v6966 = vadd.f32 0.0, %v6965
      %v6967 = vpop.f32.mrb[0].mxu0
      %v6968 = vpop.f32.mrb[0].mxu0
      %v6969 = vadd.f32 0.0, %v6968
      %v6970 = vpop.f32.mrb[0].mxu0
      %6971 = vmatprep.mubr.bf16.mxu0 0
      %6972 = vmatmul.mubr.bf16.gmra.mrb[0].mxu0 %v6696
      %v6973 = vpop.f32.mrb[0].mxu0
      %v6974 = vadd.f32 0.0, %v6973
      %v6975 = vpop.f32.mrb[0].mxu0
      %v6976 = vpop.f32.mrb[0].mxu0
      %v6977 = vadd.f32 0.0, %v6976
      %v6978 = vpop.f32.mrb[0].mxu0
      %6979 = vmatprep.mubr.bf16.mxu0 0
      %6980 = vmatmul.mubr.bf16.gmra.mrb[0].mxu0 %v6697
      %v6981 = vpop.f32.mrb[0].mxu0
      %v6982 = vadd.f32 0.0, %v6981
      %v6983 = vpop.f32.mrb[0].mxu0
      %v6984 = vpop.f32.mrb[0].mxu0
      %v6985 = vadd.f32 0.0, %v6984
      %v6986 = vpop.f32.mrb[0].mxu0
      %6987 = vdwg.mxu0
      %v6988 = vadd.f32 %v6578, %v6798
      %v6989 = vadd.f32 %v6579, %v6801
      %v6990 = vadd.f32 %v6580, %v6806
      %v6991 = vadd.f32 %v6581, %v6809
      %v6992 = vadd.f32 %v6582, %v6814
      %v6993 = vadd.f32 %v6583, %v6817
      %v6994 = vadd.f32 %v6584, %v6822
      %v6995 = vadd.f32 %v6585, %v6825
      %v6996 = vadd.f32 %v6586, %v6830
      %v6997 = vadd.f32 %v6587, %v6833
      %v6998 = vadd.f32 %v6588, %v6838
      %v6999 = vadd.f32 %v6589, %v6841
      %v7000 = vadd.f32 %v6590, %v6846
      %v7001 = vadd.f32 %v6591, %v6849
      %v7002 = vadd.f32 %v6592, %v6854
      %v7003 = vadd.f32 %v6593, %v6857
      %v7004 = vadd.f32 %v6594, %v6862
      %v7005 = vadd.f32 %v6595, %v6865
      %v7006 = vadd.f32 %v6596, %v6870
      %v7007 = vadd.f32 %v6597, %v6873
      %v7008 = vadd.f32 %v6598, %v6878
      %v7009 = vadd.f32 %v6599, %v6881
      %v7010 = vadd.f32 %v6600, %v6886
      %v7011 = vadd.f32 %v6601, %v6889
      %v7012 = vadd.f32 %v6602, %v6894
      %v7013 = vadd.f32 %v6603, %v6897
      %v7014 = vadd.f32 %v6604, %v6902
      %v7015 = vadd.f32 %v6605, %v6905
      %v7016 = vadd.f32 %v6606, %v6910
      %v7017 = vadd.f32 %v6607, %v6913
      %v7018 = vadd.f32 %v6608, %v6918
      %v7019 = vadd.f32 %v6609, %v6921
      %v7020 = vadd.f32 %v6610, %v6926
      %v7021 = vadd.f32 %v6611, %v6929
      %v7022 = vadd.f32 %v6612, %v6934
      %v7023 = vadd.f32 %v6613, %v6937
      %v7024 = vadd.f32 %v6614, %v6942
      %v7025 = vadd.f32 %v6615, %v6945
      %v7026 = vadd.f32 %v6616, %v6950
      %v7027 = vadd.f32 %v6617, %v6953
      %v7028 = vadd.f32 %v6618, %v6958
      %v7029 = vadd.f32 %v6619, %v6961
      %v7030 = vadd.f32 %v6620, %v6966
      %v7031 = vadd.f32 %v6621, %v6969
      %v7032 = vadd.f32 %v6622, %v6974
      %v7033 = vadd.f32 %v6623, %v6977
      %v7034 = vadd.f32 %v6624, %v6982
      %v7035 = vadd.f32 %v6625, %v6985
      %v7036 = vld [vmem:[#allocation3 + $0x19] sm:$0xff]
      %v7037 = vld [vmem:[#allocation3 + $0x21] sm:$0xff]
      %v7038 = vld [vmem:[#allocation3 + $0x29] sm:$0xff]
      %v7039 = vld [vmem:[#allocation3 + $0x31] sm:$0xff]
      %v7040 = vld [vmem:[#allocation3 + $0x39] sm:$0xff]
      %v7041 = vld [vmem:[#allocation3 + $0x41] sm:$0xff]
      %v7042 = vld [vmem:[#allocation3 + $0x49] sm:$0xff]
      %v7043 = vld [vmem:[#allocation3 + $0x51] sm:$0xff]
      %v7044 = vld [vmem:[#allocation3 + $0x59] sm:$0xff]
      %v7045 = vld [vmem:[#allocation3 + $0x61] sm:$0xff]
      %v7046 = vld [vmem:[#allocation3 + $0x69] sm:$0xff]
      %v7047 = vld [vmem:[#allocation3 + $0x71] sm:$0xff]
      %v7048 = vld [vmem:[#allocation3 + $0x79] sm:$0xff]
      %v7049 = vld [vmem:[#allocation3 + $0x81] sm:$0xff]
      %v7050 = vld [vmem:[#allocation3 + $0x89] sm:$0xff]
      %v7051 = vld [vmem:[#allocation3 + $0x91] sm:$0xff]
      %v7052 = vld [vmem:[#allocation3 + $0x99] sm:$0xff]
      %v7053 = vld [vmem:[#allocation3 + $0xa1] sm:$0xff]
      %v7054 = vld [vmem:[#allocation3 + $0xa9] sm:$0xff]
      %v7055 = vld [vmem:[#allocation3 + $0xb1] sm:$0xff]
      %v7056 = vld [vmem:[#allocation3 + $0xb9] sm:$0xff]
      %v7057 = vld [vmem:[#allocation3 + $0xc1] sm:$0xff]
      %v7058 = vld [vmem:[#allocation3 + $0xc9] sm:$0xff]
      %v7059 = vld [vmem:[#allocation3 + $0xd1] sm:$0xff]
      %v7060 = vld [vmem:[#allocation3 + $0xd9] sm:$0xff]
      %v7061 = vld [vmem:[#allocation3 + $0xe1] sm:$0xff]
      %v7062 = vld [vmem:[#allocation3 + $0xe9] sm:$0xff]
      %v7063 = vld [vmem:[#allocation3 + $0xf1] sm:$0xff]
      %v7064 = vld [vmem:[#allocation3 + $0xf9] sm:$0xff]
      %v7065 = vld [vmem:[#allocation3 + $0x101] sm:$0xff]
      %v7066 = vld [vmem:[#allocation3 + $0x109] sm:$0xff]
      %v7067 = vld [vmem:[#allocation3 + $0x111] sm:$0xff]
      %v7068 = vld [vmem:[#allocation3 + $0x119] sm:$0xff]
      %v7069 = vld [vmem:[#allocation3 + $0x121] sm:$0xff]
      %v7070 = vld [vmem:[#allocation3 + $0x129] sm:$0xff]
      %v7071 = vld [vmem:[#allocation3 + $0x131] sm:$0xff]
      %v7072 = vld [vmem:[#allocation3 + $0x139] sm:$0xff]
      %v7073 = vld [vmem:[#allocation3 + $0x141] sm:$0xff]
      %v7074 = vld [vmem:[#allocation3 + $0x149] sm:$0xff]
      %v7075 = vld [vmem:[#allocation3 + $0x151] sm:$0xff]
      %v7076 = vld [vmem:[#allocation3 + $0x159] sm:$0xff]
      %v7077 = vld [vmem:[#allocation3 + $0x161] sm:$0xff]
      %v7078 = vld [vmem:[#allocation3 + $0x169] sm:$0xff]
      %v7079 = vld [vmem:[#allocation3 + $0x171] sm:$0xff]
      %v7080 = vld [vmem:[#allocation3 + $0x179] sm:$0xff]
      %v7081 = vld [vmem:[#allocation3 + $0x181] sm:$0xff]
      %v7082 = vld [vmem:[#allocation3 + $0x189] sm:$0xff]
      %v7083 = vld [vmem:[#allocation3 + $0x191] sm:$0xff]
      %v7084 = vpack.c.bf16 %v7037, %v7036
      %v7085 = vpack.c.bf16 %v7039, %v7038
      %v7086 = vpack.c.bf16 %v7041, %v7040
      %v7087 = vpack.c.bf16 %v7043, %v7042
      %v7088 = vpack.c.bf16 %v7045, %v7044
      %v7089 = vpack.c.bf16 %v7047, %v7046
      %v7090 = vpack.c.bf16 %v7049, %v7048
      %v7091 = vpack.c.bf16 %v7051, %v7050
      %v7092 = vpack.c.bf16 %v7053, %v7052
      %v7093 = vpack.c.bf16 %v7055, %v7054
      %v7094 = vpack.c.bf16 %v7057, %v7056
      %v7095 = vpack.c.bf16 %v7059, %v7058
      %v7096 = vpack.c.bf16 %v7061, %v7060
      %v7097 = vpack.c.bf16 %v7063, %v7062
      %v7098 = vpack.c.bf16 %v7065, %v7064
      %v7099 = vpack.c.bf16 %v7067, %v7066
      %v7100 = vpack.c.bf16 %v7069, %v7068
      %v7101 = vpack.c.bf16 %v7071, %v7070
      %v7102 = vpack.c.bf16 %v7073, %v7072
      %v7103 = vpack.c.bf16 %v7075, %v7074
      %v7104 = vpack.c.bf16 %v7077, %v7076
      %v7105 = vpack.c.bf16 %v7079, %v7078
      %v7106 = vpack.c.bf16 %v7081, %v7080
      %v7107 = vpack.c.bf16 %v7083, %v7082
      %s7108 = scalar_lea.vmem %s3, 256
      %v7109 = vld [vmem:[%s7108] sm:$0xf]
      %v7110 = vld [vmem:[%s7108 + $0x4] sm:$0xf]
      %v7111 = vld [vmem:[%s7108 + $0x8] sm:$0xf]
      %v7112 = vld [vmem:[%s7108 + $0xc] sm:$0xf]
      %v7113 = vld [vmem:[%s7108 + $0x10] sm:$0xf]
      %v7114 = vld [vmem:[%s7108 + $0x14] sm:$0xf]
      %v7115 = vld [vmem:[%s7108 + $0x18] sm:$0xf]
      %v7116 = vld [vmem:[%s7108 + $0x1c] sm:$0xf]
      %v7117 = vld [vmem:[%s7108 + $0x20] sm:$0xf]
      %v7118 = vld [vmem:[%s7108 + $0x24] sm:$0xf]
      %v7119 = vld [vmem:[%s7108 + $0x28] sm:$0xf]
      %v7120 = vld [vmem:[%s7108 + $0x2c] sm:$0xf]
      %v7121 = vld [vmem:[%s7108 + $0x30] sm:$0xf]
      %v7122 = vld [vmem:[%s7108 + $0x34] sm:$0xf]
      %v7123 = vld [vmem:[%s7108 + $0x38] sm:$0xf]
      %v7124 = vld [vmem:[%s7108 + $0x3c] sm:$0xf]
      %v7141 = vunpack.c.l.b16 %v7109
      %v7142 = vunpack.c.l.b16 %v7110
      %v7143 = vunpack.c.l.b16 %v7111
      %v7144 = vunpack.c.l.b16 %v7112
      %v7145 = vunpack.c.l.b16 %v7113
      %v7146 = vunpack.c.l.b16 %v7114
      %v7147 = vunpack.c.l.b16 %v7115
      %v7148 = vunpack.c.l.b16 %v7116
      %v7149 = vunpack.c.l.b16 %v7117
      %v7150 = vunpack.c.l.b16 %v7118
      %v7151 = vunpack.c.l.b16 %v7119
      %v7152 = vunpack.c.l.b16 %v7120
      %v7153 = vunpack.c.l.b16 %v7121
      %v7154 = vunpack.c.l.b16 %v7122
      %v7155 = vunpack.c.l.b16 %v7123
      %v7156 = vunpack.c.l.b16 %v7124
      %v7157 = vpack.c.b16 %v7142, %v7141
      %v7158 = vpack.c.b16 %v7144, %v7143
      %v7159 = vpack.c.b16 %v7146, %v7145
      %v7160 = vpack.c.b16 %v7148, %v7147
      %v7161 = vpack.c.b16 %v7150, %v7149
      %v7162 = vpack.c.b16 %v7152, %v7151
      %v7163 = vpack.c.b16 %v7154, %v7153
      %v7164 = vpack.c.b16 %v7156, %v7155
      %7173 = vmatprep.subr.bf16.mxu0 0
      %7174 = vmatpush1.bf16.msra.mxu0 %v7157
      %7175 = vmatprep.subr.bf16.mxu0 0
      %7176 = vmatpush1.bf16.msra.mxu0 %v7158
      %7177 = vmatprep.subr.bf16.mxu0 0
      %7178 = vmatpush1.bf16.msra.mxu0 %v7159
      %7179 = vmatprep.subr.bf16.mxu0 0
      %7180 = vmatpush1.bf16.msra.mxu0 %v7160
      %7181 = vmatprep.subr.bf16.mxu0 0
      %7182 = vmatpush1.bf16.msra.mxu0 %v7161
      %7183 = vmatprep.subr.bf16.mxu0 0
      %7184 = vmatpush1.bf16.msra.mxu0 %v7162
      %7185 = vmatprep.subr.bf16.mxu0 0
      %7186 = vmatpush1.bf16.msra.mxu0 %v7163
      %7187 = vmatprep.subr.bf16.mxu0 0
      %7188 = vmatpush1.bf16.msra.mxu0 %v7164
      %7189 = vmatprep.subr.bf16.mxu0 0
      %7190 = vmatpush1.bf16.msra.mxu0 0
      %7191 = vmatprep.subr.bf16.mxu0 0
      %7192 = vmatpush1.bf16.msra.mxu0 0
      %7193 = vmatprep.subr.bf16.mxu0 0
      %7194 = vmatpush1.bf16.msra.mxu0 0
      %7195 = vmatprep.subr.bf16.mxu0 0
      %7196 = vmatpush1.bf16.msra.mxu0 0
      %7197 = vmatprep.subr.bf16.mxu0 0
      %7198 = vmatpush1.bf16.msra.mxu0 0
      %7199 = vmatprep.subr.bf16.mxu0 0
      %7200 = vmatpush1.bf16.msra.mxu0 0
      %7201 = vmatprep.subr.bf16.mxu0 0
      %7202 = vmatpush1.bf16.msra.mxu0 0
      %7203 = vmatprep.subr.bf16.mxu0 0
      %7204 = vmatpush1.bf16.msra.mxu0 0
      %7205 = vmatprep.mubr.bf16.mxu0 0
      %7206 = vmatmul.mubr.bf16.gmra.mrb[0].mxu0 %v7084
      %v7207 = vpop.f32.mrb[0].mxu0
      %v7208 = vadd.f32 0.0, %v7207
      %v7209 = vpop.f32.mrb[0].mxu0
      %v7210 = vpop.f32.mrb[0].mxu0
      %v7211 = vadd.f32 0.0, %v7210
      %v7212 = vpop.f32.mrb[0].mxu0
      %7213 = vmatprep.mubr.bf16.mxu0 0
      %7214 = vmatmul.mubr.bf16.gmra.mrb[0].mxu0 %v7085
      %v7215 = vpop.f32.mrb[0].mxu0
      %v7216 = vadd.f32 0.0, %v7215
      %v7217 = vpop.f32.mrb[0].mxu0
      %v7218 = vpop.f32.mrb[0].mxu0
      %v7219 = vadd.f32 0.0, %v7218
      %v7220 = vpop.f32.mrb[0].mxu0
      %7221 = vmatprep.mubr.bf16.mxu0 0
      %7222 = vmatmul.mubr.bf16.gmra.mrb[0].mxu0 %v7086
      %v7223 = vpop.f32.mrb[0].mxu0
      %v7224 = vadd.f32 0.0, %v7223
      %v7225 = vpop.f32.mrb[0].mxu0
      %v7226 = vpop.f32.mrb[0].mxu0
      %v7227 = vadd.f32 0.0, %v7226
      %v7228 = vpop.f32.mrb[0].mxu0
      %7229 = vmatprep.mubr.bf16.mxu0 0
      %7230 = vmatmul.mubr.bf16.gmra.mrb[0].mxu0 %v7087
      %v7231 = vpop.f32.mrb[0].mxu0
      %v7232 = vadd.f32 0.0, %v7231
      %v7233 = vpop.f32.mrb[0].mxu0
      %v7234 = vpop.f32.mrb[0].mxu0
      %v7235 = vadd.f32 0.0, %v7234
      %v7236 = vpop.f32.mrb[0].mxu0
      %7237 = vmatprep.mubr.bf16.mxu0 0
      %7238 = vmatmul.mubr.bf16.gmra.mrb[0].mxu0 %v7088
      %v7239 = vpop.f32.mrb[0].mxu0
      %v7240 = vadd.f32 0.0, %v7239
      %v7241 = vpop.f32.mrb[0].mxu0
      %v7242 = vpop.f32.mrb[0].mxu0
      %v7243 = vadd.f32 0.0, %v7242
      %v7244 = vpop.f32.mrb[0].mxu0
      %7245 = vmatprep.mubr.bf16.mxu0 0
      %7246 = vmatmul.mubr.bf16.gmra.mrb[0].mxu0 %v7089
      %v7247 = vpop.f32.mrb[0].mxu0
      %v7248 = vadd.f32 0.0, %v7247
      %v7249 = vpop.f32.mrb[0].mxu0
      %v7250 = vpop.f32.mrb[0].mxu0
      %v7251 = vadd.f32 0.0, %v7250
      %v7252 = vpop.f32.mrb[0].mxu0
      %7253 = vmatprep.mubr.bf16.mxu0 0
      %7254 = vmatmul.mubr.bf16.gmra.mrb[0].mxu0 %v7090
      %v7255 = vpop.f32.mrb[0].mxu0
      %v7256 = vadd.f32 0.0, %v7255
      %v7257 = vpop.f32.mrb[0].mxu0
      %v7258 = vpop.f32.mrb[0].mxu0
      %v7259 = vadd.f32 0.0, %v7258
      %v7260 = vpop.f32.mrb[0].mxu0
      %7261 = vmatprep.mubr.bf16.mxu0 0
      %7262 = vmatmul.mubr.bf16.gmra.mrb[0].mxu0 %v7091
      %v7263 = vpop.f32.mrb[0].mxu0
      %v7264 = vadd.f32 0.0, %v7263
      %v7265 = vpop.f32.mrb[0].mxu0
      %v7266 = vpop.f32.mrb[0].mxu0
      %v7267 = vadd.f32 0.0, %v7266
      %v7268 = vpop.f32.mrb[0].mxu0
      %7269 = vmatprep.mubr.bf16.mxu0 0
      %7270 = vmatmul.mubr.bf16.gmra.mrb[0].mxu0 %v7092
      %v7271 = vpop.f32.mrb[0].mxu0
      %v7272 = vadd.f32 0.0, %v7271
      %v7273 = vpop.f32.mrb[0].mxu0
      %v7274 = vpop.f32.mrb[0].mxu0
      %v7275 = vadd.f32 0.0, %v7274
      %v7276 = vpop.f32.mrb[0].mxu0
      %7277 = vmatprep.mubr.bf16.mxu0 0
      %7278 = vmatmul.mubr.bf16.gmra.mrb[0].mxu0 %v7093
      %v7279 = vpop.f32.mrb[0].mxu0
      %v7280 = vadd.f32 0.0, %v7279
      %v7281 = vpop.f32.mrb[0].mxu0
      %v7282 = vpop.f32.mrb[0].mxu0
      %v7283 = vadd.f32 0.0, %v7282
      %v7284 = vpop.f32.mrb[0].mxu0
      %7285 = vmatprep.mubr.bf16.mxu0 0
      %7286 = vmatmul.mubr.bf16.gmra.mrb[0].mxu0 %v7094
      %v7287 = vpop.f32.mrb[0].mxu0
      %v7288 = vadd.f32 0.0, %v7287
      %v7289 = vpop.f32.mrb[0].mxu0
      %v7290 = vpop.f32.mrb[0].mxu0
      %v7291 = vadd.f32 0.0, %v7290
      %v7292 = vpop.f32.mrb[0].mxu0
      %7293 = vmatprep.mubr.bf16.mxu0 0
      %7294 = vmatmul.mubr.bf16.gmra.mrb[0].mxu0 %v7095
      %v7295 = vpop.f32.mrb[0].mxu0
      %v7296 = vadd.f32 0.0, %v7295
      %v7297 = vpop.f32.mrb[0].mxu0
      %v7298 = vpop.f32.mrb[0].mxu0
      %v7299 = vadd.f32 0.0, %v7298
      %v7300 = vpop.f32.mrb[0].mxu0
      %7301 = vmatprep.mubr.bf16.mxu0 0
      %7302 = vmatmul.mubr.bf16.gmra.mrb[0].mxu0 %v7096
      %v7303 = vpop.f32.mrb[0].mxu0
      %v7304 = vadd.f32 0.0, %v7303
      %v7305 = vpop.f32.mrb[0].mxu0
      %v7306 = vpop.f32.mrb[0].mxu0
      %v7307 = vadd.f32 0.0, %v7306
      %v7308 = vpop.f32.mrb[0].mxu0
      %7309 = vmatprep.mubr.bf16.mxu0 0
      %7310 = vmatmul.mubr.bf16.gmra.mrb[0].mxu0 %v7097
      %v7311 = vpop.f32.mrb[0].mxu0
      %v7312 = vadd.f32 0.0, %v7311
      %v7313 = vpop.f32.mrb[0].mxu0
      %v7314 = vpop.f32.mrb[0].mxu0
      %v7315 = vadd.f32 0.0, %v7314
      %v7316 = vpop.f32.mrb[0].mxu0
      %7317 = vmatprep.mubr.bf16.mxu0 0
      %7318 = vmatmul.mubr.bf16.gmra.mrb[0].mxu0 %v7098
      %v7319 = vpop.f32.mrb[0].mxu0
      %v7320 = vadd.f32 0.0, %v7319
      %v7321 = vpop.f32.mrb[0].mxu0
      %v7322 = vpop.f32.mrb[0].mxu0
      %v7323 = vadd.f32 0.0, %v7322
      %v7324 = vpop.f32.mrb[0].mxu0
      %7325 = vmatprep.mubr.bf16.mxu0 0
      %7326 = vmatmul.mubr.bf16.gmra.mrb[0].mxu0 %v7099
      %v7327 = vpop.f32.mrb[0].mxu0
      %v7328 = vadd.f32 0.0, %v7327
      %v7329 = vpop.f32.mrb[0].mxu0
      %v7330 = vpop.f32.mrb[0].mxu0
      %v7331 = vadd.f32 0.0, %v7330
      %v7332 = vpop.f32.mrb[0].mxu0
      %7333 = vmatprep.mubr.bf16.mxu0 0
      %7334 = vmatmul.mubr.bf16.gmra.mrb[0].mxu0 %v7100
      %v7335 = vpop.f32.mrb[0].mxu0
      %v7336 = vadd.f32 0.0, %v7335
      %v7337 = vpop.f32.mrb[0].mxu0
      %v7338 = vpop.f32.mrb[0].mxu0
      %v7339 = vadd.f32 0.0, %v7338
      %v7340 = vpop.f32.mrb[0].mxu0
      %7341 = vmatprep.mubr.bf16.mxu0 0
      %7342 = vmatmul.mubr.bf16.gmra.mrb[0].mxu0 %v7101
      %v7343 = vpop.f32.mrb[0].mxu0
      %v7344 = vadd.f32 0.0, %v7343
      %v7345 = vpop.f32.mrb[0].mxu0
      %v7346 = vpop.f32.mrb[0].mxu0
      %v7347 = vadd.f32 0.0, %v7346
      %v7348 = vpop.f32.mrb[0].mxu0
      %7349 = vmatprep.mubr.bf16.mxu0 0
      %7350 = vmatmul.mubr.bf16.gmra.mrb[0].mxu0 %v7102
      %v7351 = vpop.f32.mrb[0].mxu0
      %v7352 = vadd.f32 0.0, %v7351
      %v7353 = vpop.f32.mrb[0].mxu0
      %v7354 = vpop.f32.mrb[0].mxu0
      %v7355 = vadd.f32 0.0, %v7354
      %v7356 = vpop.f32.mrb[0].mxu0
      %7357 = vmatprep.mubr.bf16.mxu0 0
      %7358 = vmatmul.mubr.bf16.gmra.mrb[0].mxu0 %v7103
      %v7359 = vpop.f32.mrb[0].mxu0
      %v7360 = vadd.f32 0.0, %v7359
      %v7361 = vpop.f32.mrb[0].mxu0
      %v7362 = vpop.f32.mrb[0].mxu0
      %v7363 = vadd.f32 0.0, %v7362
      %v7364 = vpop.f32.mrb[0].mxu0
      %7365 = vmatprep.mubr.bf16.mxu0 0
      %7366 = vmatmul.mubr.bf16.gmra.mrb[0].mxu0 %v7104
      %v7367 = vpop.f32.mrb[0].mxu0
      %v7368 = vadd.f32 0.0, %v7367
      %v7369 = vpop.f32.mrb[0].mxu0
      %v7370 = vpop.f32.mrb[0].mxu0
      %v7371 = vadd.f32 0.0, %v7370
      %v7372 = vpop.f32.mrb[0].mxu0
      %7373 = vmatprep.mubr.bf16.mxu0 0
      %7374 = vmatmul.mubr.bf16.gmra.mrb[0].mxu0 %v7105
      %v7375 = vpop.f32.mrb[0].mxu0
      %v7376 = vadd.f32 0.0, %v7375
      %v7377 = vpop.f32.mrb[0].mxu0
      %v7378 = vpop.f32.mrb[0].mxu0
      %v7379 = vadd.f32 0.0, %v7378
      %v7380 = vpop.f32.mrb[0].mxu0
      %7381 = vmatprep.mubr.bf16.mxu0 0
      %7382 = vmatmul.mubr.bf16.gmra.mrb[0].mxu0 %v7106
      %v7383 = vpop.f32.mrb[0].mxu0
      %v7384 = vadd.f32 0.0, %v7383
      %v7385 = vpop.f32.mrb[0].mxu0
      %v7386 = vpop.f32.mrb[0].mxu0
      %v7387 = vadd.f32 0.0, %v7386
      %v7388 = vpop.f32.mrb[0].mxu0
      %7389 = vmatprep.mubr.bf16.mxu0 0
      %7390 = vmatmul.mubr.bf16.gmra.mrb[0].mxu0 %v7107
      %v7391 = vpop.f32.mrb[0].mxu0
      %v7392 = vadd.f32 0.0, %v7391
      %v7393 = vpop.f32.mrb[0].mxu0
      %v7394 = vpop.f32.mrb[0].mxu0
      %v7395 = vadd.f32 0.0, %v7394
      %v7396 = vpop.f32.mrb[0].mxu0
      %7397 = vdwg.mxu0
      %v7398 = vadd.f32 %v6988, %v7208
      %v7399 = vadd.f32 %v6989, %v7211
      %v7400 = vadd.f32 %v6990, %v7216
      %v7401 = vadd.f32 %v6991, %v7219
      %v7402 = vadd.f32 %v6992, %v7224
      %v7403 = vadd.f32 %v6993, %v7227
      %v7404 = vadd.f32 %v6994, %v7232
      %v7405 = vadd.f32 %v6995, %v7235
      %v7406 = vadd.f32 %v6996, %v7240
      %v7407 = vadd.f32 %v6997, %v7243
      %v7408 = vadd.f32 %v6998, %v7248
      %v7409 = vadd.f32 %v6999, %v7251
      %v7410 = vadd.f32 %v7000, %v7256
      %v7411 = vadd.f32 %v7001, %v7259
      %v7412 = vadd.f32 %v7002, %v7264
      %v7413 = vadd.f32 %v7003, %v7267
      %v7414 = vadd.f32 %v7004, %v7272
      %v7415 = vadd.f32 %v7005, %v7275
      %v7416 = vadd.f32 %v7006, %v7280
      %v7417 = vadd.f32 %v7007, %v7283
      %v7418 = vadd.f32 %v7008, %v7288
      %v7419 = vadd.f32 %v7009, %v7291
      %v7420 = vadd.f32 %v7010, %v7296
      %v7421 = vadd.f32 %v7011, %v7299
      %v7422 = vadd.f32 %v7012, %v7304
      %v7423 = vadd.f32 %v7013, %v7307
      %v7424 = vadd.f32 %v7014, %v7312
      %v7425 = vadd.f32 %v7015, %v7315
      %v7426 = vadd.f32 %v7016, %v7320
      %v7427 = vadd.f32 %v7017, %v7323
      %v7428 = vadd.f32 %v7018, %v7328
      %v7429 = vadd.f32 %v7019, %v7331
      %v7430 = vadd.f32 %v7020, %v7336
      %v7431 = vadd.f32 %v7021, %v7339
      %v7432 = vadd.f32 %v7022, %v7344
      %v7433 = vadd.f32 %v7023, %v7347
      %v7434 = vadd.f32 %v7024, %v7352
      %v7435 = vadd.f32 %v7025, %v7355
      %v7436 = vadd.f32 %v7026, %v7360
      %v7437 = vadd.f32 %v7027, %v7363
      %v7438 = vadd.f32 %v7028, %v7368
      %v7439 = vadd.f32 %v7029, %v7371
      %v7440 = vadd.f32 %v7030, %v7376
      %v7441 = vadd.f32 %v7031, %v7379
      %v7442 = vadd.f32 %v7032, %v7384
      %v7443 = vadd.f32 %v7033, %v7387
      %v7444 = vadd.f32 %v7034, %v7392
      %v7445 = vadd.f32 %v7035, %v7395
      %v7446 = vld [vmem:[#allocation3 + $0x1a] sm:$0xff]
      %v7447 = vld [vmem:[#allocation3 + $0x22] sm:$0xff]
      %v7448 = vld [vmem:[#allocation3 + $0x2a] sm:$0xff]
      %v7449 = vld [vmem:[#allocation3 + $0x32] sm:$0xff]
      %v7450 = vld [vmem:[#allocation3 + $0x3a] sm:$0xff]
      %v7451 = vld [vmem:[#allocation3 + $0x42] sm:$0xff]
      %v7452 = vld [vmem:[#allocation3 + $0x4a] sm:$0xff]
      %v7453 = vld [vmem:[#allocation3 + $0x52] sm:$0xff]
      %v7454 = vld [vmem:[#allocation3 + $0x5a] sm:$0xff]
      %v7455 = vld [vmem:[#allocation3 + $0x62] sm:$0xff]
      %v7456 = vld [vmem:[#allocation3 + $0x6a] sm:$0xff]
      %v7457 = vld [vmem:[#allocation3 + $0x72] sm:$0xff]
      %v7458 = vld [vmem:[#allocation3 + $0x7a] sm:$0xff]
      %v7459 = vld [vmem:[#allocation3 + $0x82] sm:$0xff]
      %v7460 = vld [vmem:[#allocation3 + $0x8a] sm:$0xff]
      %v7461 = vld [vmem:[#allocation3 + $0x92] sm:$0xff]
      %v7462 = vld [vmem:[#allocation3 + $0x9a] sm:$0xff]
      %v7463 = vld [vmem:[#allocation3 + $0xa2] sm:$0xff]
      %v7464 = vld [vmem:[#allocation3 + $0xaa] sm:$0xff]
      %v7465 = vld [vmem:[#allocation3 + $0xb2] sm:$0xff]
      %v7466 = vld [vmem:[#allocation3 + $0xba] sm:$0xff]
      %v7467 = vld [vmem:[#allocation3 + $0xc2] sm:$0xff]
      %v7468 = vld [vmem:[#allocation3 + $0xca] sm:$0xff]
      %v7469 = vld [vmem:[#allocation3 + $0xd2] sm:$0xff]
      %v7470 = vld [vmem:[#allocation3 + $0xda] sm:$0xff]
      %v7471 = vld [vmem:[#allocation3 + $0xe2] sm:$0xff]
      %v7472 = vld [vmem:[#allocation3 + $0xea] sm:$0xff]
      %v7473 = vld [vmem:[#allocation3 + $0xf2] sm:$0xff]
      %v7474 = vld [vmem:[#allocation3 + $0xfa] sm:$0xff]
      %v7475 = vld [vmem:[#allocation3 + $0x102] sm:$0xff]
      %v7476 = vld [vmem:[#allocation3 + $0x10a] sm:$0xff]
      %v7477 = vld [vmem:[#allocation3 + $0x112] sm:$0xff]
      %v7478 = vld [vmem:[#allocation3 + $0x11a] sm:$0xff]
      %v7479 = vld [vmem:[#allocation3 + $0x122] sm:$0xff]
      %v7480 = vld [vmem:[#allocation3 + $0x12a] sm:$0xff]
      %v7481 = vld [vmem:[#allocation3 + $0x132] sm:$0xff]
      %v7482 = vld [vmem:[#allocation3 + $0x13a] sm:$0xff]
      %v7483 = vld [vmem:[#allocation3 + $0x142] sm:$0xff]
      %v7484 = vld [vmem:[#allocation3 + $0x14a] sm:$0xff]
      %v7485 = vld [vmem:[#allocation3 + $0x152] sm:$0xff]
      %v7486 = vld [vmem:[#allocation3 + $0x15a] sm:$0xff]
      %v7487 = vld [vmem:[#allocation3 + $0x162] sm:$0xff]
      %v7488 = vld [vmem:[#allocation3 + $0x16a] sm:$0xff]
      %v7489 = vld [vmem:[#allocation3 + $0x172] sm:$0xff]
      %v7490 = vld [vmem:[#allocation3 + $0x17a] sm:$0xff]
      %v7491 = vld [vmem:[#allocation3 + $0x182] sm:$0xff]
      %v7492 = vld [vmem:[#allocation3 + $0x18a] sm:$0xff]
      %v7493 = vld [vmem:[#allocation3 + $0x192] sm:$0xff]
      %v7494 = vpack.c.bf16 %v7447, %v7446
      %v7495 = vpack.c.bf16 %v7449, %v7448
      %v7496 = vpack.c.bf16 %v7451, %v7450
      %v7497 = vpack.c.bf16 %v7453, %v7452
      %v7498 = vpack.c.bf16 %v7455, %v7454
      %v7499 = vpack.c.bf16 %v7457, %v7456
      %v7500 = vpack.c.bf16 %v7459, %v7458
      %v7501 = vpack.c.bf16 %v7461, %v7460
      %v7502 = vpack.c.bf16 %v7463, %v7462
      %v7503 = vpack.c.bf16 %v7465, %v7464
      %v7504 = vpack.c.bf16 %v7467, %v7466
      %v7505 = vpack.c.bf16 %v7469, %v7468
      %v7506 = vpack.c.bf16 %v7471, %v7470
      %v7507 = vpack.c.bf16 %v7473, %v7472
      %v7508 = vpack.c.bf16 %v7475, %v7474
      %v7509 = vpack.c.bf16 %v7477, %v7476
      %v7510 = vpack.c.bf16 %v7479, %v7478
      %v7511 = vpack.c.bf16 %v7481, %v7480
      %v7512 = vpack.c.bf16 %v7483, %v7482
      %v7513 = vpack.c.bf16 %v7485, %v7484
      %v7514 = vpack.c.bf16 %v7487, %v7486
      %v7515 = vpack.c.bf16 %v7489, %v7488
      %v7516 = vpack.c.bf16 %v7491, %v7490
      %v7517 = vpack.c.bf16 %v7493, %v7492
      %s7518 = scalar_lea.vmem %s3, 320
      %v7519 = vld [vmem:[%s7518] sm:$0xf]
      %v7520 = vld [vmem:[%s7518 + $0x4] sm:$0xf]
      %v7521 = vld [vmem:[%s7518 + $0x8] sm:$0xf]
      %v7522 = vld [vmem:[%s7518 + $0xc] sm:$0xf]
      %v7523 = vld [vmem:[%s7518 + $0x10] sm:$0xf]
      %v7524 = vld [vmem:[%s7518 + $0x14] sm:$0xf]
      %v7525 = vld [vmem:[%s7518 + $0x18] sm:$0xf]
      %v7526 = vld [vmem:[%s7518 + $0x1c] sm:$0xf]
      %v7527 = vld [vmem:[%s7518 + $0x20] sm:$0xf]
      %v7528 = vld [vmem:[%s7518 + $0x24] sm:$0xf]
      %v7529 = vld [vmem:[%s7518 + $0x28] sm:$0xf]
      %v7530 = vld [vmem:[%s7518 + $0x2c] sm:$0xf]
      %v7531 = vld [vmem:[%s7518 + $0x30] sm:$0xf]
      %v7532 = vld [vmem:[%s7518 + $0x34] sm:$0xf]
      %v7533 = vld [vmem:[%s7518 + $0x38] sm:$0xf]
      %v7534 = vld [vmem:[%s7518 + $0x3c] sm:$0xf]
      %v7551 = vunpack.c.l.b16 %v7519
      %v7552 = vunpack.c.l.b16 %v7520
      %v7553 = vunpack.c.l.b16 %v7521
      %v7554 = vunpack.c.l.b16 %v7522
      %v7555 = vunpack.c.l.b16 %v7523
      %v7556 = vunpack.c.l.b16 %v7524
      %v7557 = vunpack.c.l.b16 %v7525
      %v7558 = vunpack.c.l.b16 %v7526
      %v7559 = vunpack.c.l.b16 %v7527
      %v7560 = vunpack.c.l.b16 %v7528
      %v7561 = vunpack.c.l.b16 %v7529
      %v7562 = vunpack.c.l.b16 %v7530
      %v7563 = vunpack.c.l.b16 %v7531
      %v7564 = vunpack.c.l.b16 %v7532
      %v7565 = vunpack.c.l.b16 %v7533
      %v7566 = vunpack.c.l.b16 %v7534
      %v7567 = vpack.c.b16 %v7552, %v7551
      %v7568 = vpack.c.b16 %v7554, %v7553
      %v7569 = vpack.c.b16 %v7556, %v7555
      %v7570 = vpack.c.b16 %v7558, %v7557
      %v7571 = vpack.c.b16 %v7560, %v7559
      %v7572 = vpack.c.b16 %v7562, %v7561
      %v7573 = vpack.c.b16 %v7564, %v7563
      %v7574 = vpack.c.b16 %v7566, %v7565
      %7583 = vmatprep.subr.bf16.mxu0 0
      %7584 = vmatpush1.bf16.msra.mxu0 %v7567
      %7585 = vmatprep.subr.bf16.mxu0 0
      %7586 = vmatpush1.bf16.msra.mxu0 %v7568
      %7587 = vmatprep.subr.bf16.mxu0 0
      %7588 = vmatpush1.bf16.msra.mxu0 %v7569
      %7589 = vmatprep.subr.bf16.mxu0 0
      %7590 = vmatpush1.bf16.msra.mxu0 %v7570
      %7591 = vmatprep.subr.bf16.mxu0 0
      %7592 = vmatpush1.bf16.msra.mxu0 %v7571
      %7593 = vmatprep.subr.bf16.mxu0 0
      %7594 = vmatpush1.bf16.msra.mxu0 %v7572
      %7595 = vmatprep.subr.bf16.mxu0 0
      %7596 = vmatpush1.bf16.msra.mxu0 %v7573
      %7597 = vmatprep.subr.bf16.mxu0 0
      %7598 = vmatpush1.bf16.msra.mxu0 %v7574
      %7599 = vmatprep.subr.bf16.mxu0 0
      %7600 = vmatpush1.bf16.msra.mxu0 0
      %7601 = vmatprep.subr.bf16.mxu0 0
      %7602 = vmatpush1.bf16.msra.mxu0 0
      %7603 = vmatprep.subr.bf16.mxu0 0
      %7604 = vmatpush1.bf16.msra.mxu0 0
      %7605 = vmatprep.subr.bf16.mxu0 0
      %7606 = vmatpush1.bf16.msra.mxu0 0
      %7607 = vmatprep.subr.bf16.mxu0 0
      %7608 = vmatpush1.bf16.msra.mxu0 0
      %7609 = vmatprep.subr.bf16.mxu0 0
      %7610 = vmatpush1.bf16.msra.mxu0 0
      %7611 = vmatprep.subr.bf16.mxu0 0
      %7612 = vmatpush1.bf16.msra.mxu0 0
      %7613 = vmatprep.subr.bf16.mxu0 0
      %7614 = vmatpush1.bf16.msra.mxu0 0
      %7615 = vmatprep.mubr.bf16.mxu0 0
      %7616 = vmatmul.mubr.bf16.gmra.mrb[0].mxu0 %v7494
      %v7617 = vpop.f32.mrb[0].mxu0
      %v7618 = vadd.f32 0.0, %v7617
      %v7619 = vpop.f32.mrb[0].mxu0
      %v7620 = vpop.f32.mrb[0].mxu0
      %v7621 = vadd.f32 0.0, %v7620
      %v7622 = vpop.f32.mrb[0].mxu0
      %7623 = vmatprep.mubr.bf16.mxu0 0
      %7624 = vmatmul.mubr.bf16.gmra.mrb[0].mxu0 %v7495
      %v7625 = vpop.f32.mrb[0].mxu0
      %v7626 = vadd.f32 0.0, %v7625
      %v7627 = vpop.f32.mrb[0].mxu0
      %v7628 = vpop.f32.mrb[0].mxu0
      %v7629 = vadd.f32 0.0, %v7628
      %v7630 = vpop.f32.mrb[0].mxu0
      %7631 = vmatprep.mubr.bf16.mxu0 0
      %7632 = vmatmul.mubr.bf16.gmra.mrb[0].mxu0 %v7496
      %v7633 = vpop.f32.mrb[0].mxu0
      %v7634 = vadd.f32 0.0, %v7633
      %v7635 = vpop.f32.mrb[0].mxu0
      %v7636 = vpop.f32.mrb[0].mxu0
      %v7637 = vadd.f32 0.0, %v7636
      %v7638 = vpop.f32.mrb[0].mxu0
      %7639 = vmatprep.mubr.bf16.mxu0 0
      %7640 = vmatmul.mubr.bf16.gmra.mrb[0].mxu0 %v7497
      %v7641 = vpop.f32.mrb[0].mxu0
      %v7642 = vadd.f32 0.0, %v7641
      %v7643 = vpop.f32.mrb[0].mxu0
      %v7644 = vpop.f32.mrb[0].mxu0
      %v7645 = vadd.f32 0.0, %v7644
      %v7646 = vpop.f32.mrb[0].mxu0
      %7647 = vmatprep.mubr.bf16.mxu0 0
      %7648 = vmatmul.mubr.bf16.gmra.mrb[0].mxu0 %v7498
      %v7649 = vpop.f32.mrb[0].mxu0
      %v7650 = vadd.f32 0.0, %v7649
      %v7651 = vpop.f32.mrb[0].mxu0
      %v7652 = vpop.f32.mrb[0].mxu0
      %v7653 = vadd.f32 0.0, %v7652
      %v7654 = vpop.f32.mrb[0].mxu0
      %7655 = vmatprep.mubr.bf16.mxu0 0
      %7656 = vmatmul.mubr.bf16.gmra.mrb[0].mxu0 %v7499
      %v7657 = vpop.f32.mrb[0].mxu0
      %v7658 = vadd.f32 0.0, %v7657
      %v7659 = vpop.f32.mrb[0].mxu0
      %v7660 = vpop.f32.mrb[0].mxu0
      %v7661 = vadd.f32 0.0, %v7660
      %v7662 = vpop.f32.mrb[0].mxu0
      %7663 = vmatprep.mubr.bf16.mxu0 0
      %7664 = vmatmul.mubr.bf16.gmra.mrb[0].mxu0 %v7500
      %v7665 = vpop.f32.mrb[0].mxu0
      %v7666 = vadd.f32 0.0, %v7665
      %v7667 = vpop.f32.mrb[0].mxu0
      %v7668 = vpop.f32.mrb[0].mxu0
      %v7669 = vadd.f32 0.0, %v7668
      %v7670 = vpop.f32.mrb[0].mxu0
      %7671 = vmatprep.mubr.bf16.mxu0 0
      %7672 = vmatmul.mubr.bf16.gmra.mrb[0].mxu0 %v7501
      %v7673 = vpop.f32.mrb[0].mxu0
      %v7674 = vadd.f32 0.0, %v7673
      %v7675 = vpop.f32.mrb[0].mxu0
      %v7676 = vpop.f32.mrb[0].mxu0
      %v7677 = vadd.f32 0.0, %v7676
      %v7678 = vpop.f32.mrb[0].mxu0
      %7679 = vmatprep.mubr.bf16.mxu0 0
      %7680 = vmatmul.mubr.bf16.gmra.mrb[0].mxu0 %v7502
      %v7681 = vpop.f32.mrb[0].mxu0
      %v7682 = vadd.f32 0.0, %v7681
      %v7683 = vpop.f32.mrb[0].mxu0
      %v7684 = vpop.f32.mrb[0].mxu0
      %v7685 = vadd.f32 0.0, %v7684
      %v7686 = vpop.f32.mrb[0].mxu0
      %7687 = vmatprep.mubr.bf16.mxu0 0
      %7688 = vmatmul.mubr.bf16.gmra.mrb[0].mxu0 %v7503
      %v7689 = vpop.f32.mrb[0].mxu0
      %v7690 = vadd.f32 0.0, %v7689
      %v7691 = vpop.f32.mrb[0].mxu0
      %v7692 = vpop.f32.mrb[0].mxu0
      %v7693 = vadd.f32 0.0, %v7692
      %v7694 = vpop.f32.mrb[0].mxu0
      %7695 = vmatprep.mubr.bf16.mxu0 0
      %7696 = vmatmul.mubr.bf16.gmra.mrb[0].mxu0 %v7504
      %v7697 = vpop.f32.mrb[0].mxu0
      %v7698 = vadd.f32 0.0, %v7697
      %v7699 = vpop.f32.mrb[0].mxu0
      %v7700 = vpop.f32.mrb[0].mxu0
      %v7701 = vadd.f32 0.0, %v7700
      %v7702 = vpop.f32.mrb[0].mxu0
      %7703 = vmatprep.mubr.bf16.mxu0 0
      %7704 = vmatmul.mubr.bf16.gmra.mrb[0].mxu0 %v7505
      %v7705 = vpop.f32.mrb[0].mxu0
      %v7706 = vadd.f32 0.0, %v7705
      %v7707 = vpop.f32.mrb[0].mxu0
      %v7708 = vpop.f32.mrb[0].mxu0
      %v7709 = vadd.f32 0.0, %v7708
      %v7710 = vpop.f32.mrb[0].mxu0
      %7711 = vmatprep.mubr.bf16.mxu0 0
      %7712 = vmatmul.mubr.bf16.gmra.mrb[0].mxu0 %v7506
      %v7713 = vpop.f32.mrb[0].mxu0
      %v7714 = vadd.f32 0.0, %v7713
      %v7715 = vpop.f32.mrb[0].mxu0
      %v7716 = vpop.f32.mrb[0].mxu0
      %v7717 = vadd.f32 0.0, %v7716
      %v7718 = vpop.f32.mrb[0].mxu0
      %7719 = vmatprep.mubr.bf16.mxu0 0
      %7720 = vmatmul.mubr.bf16.gmra.mrb[0].mxu0 %v7507
      %v7721 = vpop.f32.mrb[0].mxu0
      %v7722 = vadd.f32 0.0, %v7721
      %v7723 = vpop.f32.mrb[0].mxu0
      %v7724 = vpop.f32.mrb[0].mxu0
      %v7725 = vadd.f32 0.0, %v7724
      %v7726 = vpop.f32.mrb[0].mxu0
      %7727 = vmatprep.mubr.bf16.mxu0 0
      %7728 = vmatmul.mubr.bf16.gmra.mrb[0].mxu0 %v7508
      %v7729 = vpop.f32.mrb[0].mxu0
      %v7730 = vadd.f32 0.0, %v7729
      %v7731 = vpop.f32.mrb[0].mxu0
      %v7732 = vpop.f32.mrb[0].mxu0
      %v7733 = vadd.f32 0.0, %v7732
      %v7734 = vpop.f32.mrb[0].mxu0
      %7735 = vmatprep.mubr.bf16.mxu0 0
      %7736 = vmatmul.mubr.bf16.gmra.mrb[0].mxu0 %v7509
      %v7737 = vpop.f32.mrb[0].mxu0
      %v7738 = vadd.f32 0.0, %v7737
      %v7739 = vpop.f32.mrb[0].mxu0
      %v7740 = vpop.f32.mrb[0].mxu0
      %v7741 = vadd.f32 0.0, %v7740
      %v7742 = vpop.f32.mrb[0].mxu0
      %7743 = vmatprep.mubr.bf16.mxu0 0
      %7744 = vmatmul.mubr.bf16.gmra.mrb[0].mxu0 %v7510
      %v7745 = vpop.f32.mrb[0].mxu0
      %v7746 = vadd.f32 0.0, %v7745
      %v7747 = vpop.f32.mrb[0].mxu0
      %v7748 = vpop.f32.mrb[0].mxu0
      %v7749 = vadd.f32 0.0, %v7748
      %v7750 = vpop.f32.mrb[0].mxu0
      %7751 = vmatprep.mubr.bf16.mxu0 0
      %7752 = vmatmul.mubr.bf16.gmra.mrb[0].mxu0 %v7511
      %v7753 = vpop.f32.mrb[0].mxu0
      %v7754 = vadd.f32 0.0, %v7753
      %v7755 = vpop.f32.mrb[0].mxu0
      %v7756 = vpop.f32.mrb[0].mxu0
      %v7757 = vadd.f32 0.0, %v7756
      %v7758 = vpop.f32.mrb[0].mxu0
      %7759 = vmatprep.mubr.bf16.mxu0 0
      %7760 = vmatmul.mubr.bf16.gmra.mrb[0].mxu0 %v7512
      %v7761 = vpop.f32.mrb[0].mxu0
      %v7762 = vadd.f32 0.0, %v7761
      %v7763 = vpop.f32.mrb[0].mxu0
      %v7764 = vpop.f32.mrb[0].mxu0
      %v7765 = vadd.f32 0.0, %v7764
      %v7766 = vpop.f32.mrb[0].mxu0
      %7767 = vmatprep.mubr.bf16.mxu0 0
      %7768 = vmatmul.mubr.bf16.gmra.mrb[0].mxu0 %v7513
      %v7769 = vpop.f32.mrb[0].mxu0
      %v7770 = vadd.f32 0.0, %v7769
      %v7771 = vpop.f32.mrb[0].mxu0
      %v7772 = vpop.f32.mrb[0].mxu0
      %v7773 = vadd.f32 0.0, %v7772
      %v7774 = vpop.f32.mrb[0].mxu0
      %7775 = vmatprep.mubr.bf16.mxu0 0
      %7776 = vmatmul.mubr.bf16.gmra.mrb[0].mxu0 %v7514
      %v7777 = vpop.f32.mrb[0].mxu0
      %v7778 = vadd.f32 0.0, %v7777
      %v7779 = vpop.f32.mrb[0].mxu0
      %v7780 = vpop.f32.mrb[0].mxu0
      %v7781 = vadd.f32 0.0, %v7780
      %v7782 = vpop.f32.mrb[0].mxu0
      %7783 = vmatprep.mubr.bf16.mxu0 0
      %7784 = vmatmul.mubr.bf16.gmra.mrb[0].mxu0 %v7515
      %v7785 = vpop.f32.mrb[0].mxu0
      %v7786 = vadd.f32 0.0, %v7785
      %v7787 = vpop.f32.mrb[0].mxu0
      %v7788 = vpop.f32.mrb[0].mxu0
      %v7789 = vadd.f32 0.0, %v7788
      %v7790 = vpop.f32.mrb[0].mxu0
      %7791 = vmatprep.mubr.bf16.mxu0 0
      %7792 = vmatmul.mubr.bf16.gmra.mrb[0].mxu0 %v7516
      %v7793 = vpop.f32.mrb[0].mxu0
      %v7794 = vadd.f32 0.0, %v7793
      %v7795 = vpop.f32.mrb[0].mxu0
      %v7796 = vpop.f32.mrb[0].mxu0
      %v7797 = vadd.f32 0.0, %v7796
      %v7798 = vpop.f32.mrb[0].mxu0
      %7799 = vmatprep.mubr.bf16.mxu0 0
      %7800 = vmatmul.mubr.bf16.gmra.mrb[0].mxu0 %v7517
      %v7801 = vpop.f32.mrb[0].mxu0
      %v7802 = vadd.f32 0.0, %v7801
      %v7803 = vpop.f32.mrb[0].mxu0
      %v7804 = vpop.f32.mrb[0].mxu0
      %v7805 = vadd.f32 0.0, %v7804
      %v7806 = vpop.f32.mrb[0].mxu0
      %7807 = vdwg.mxu0
      %v7808 = vadd.f32 %v7398, %v7618
      %v7809 = vadd.f32 %v7399, %v7621
      %v7810 = vadd.f32 %v7400, %v7626
      %v7811 = vadd.f32 %v7401, %v7629
      %v7812 = vadd.f32 %v7402, %v7634
      %v7813 = vadd.f32 %v7403, %v7637
      %v7814 = vadd.f32 %v7404, %v7642
      %v7815 = vadd.f32 %v7405, %v7645
      %v7816 = vadd.f32 %v7406, %v7650
      %v7817 = vadd.f32 %v7407, %v7653
      %v7818 = vadd.f32 %v7408, %v7658
      %v7819 = vadd.f32 %v7409, %v7661
      %v7820 = vadd.f32 %v7410, %v7666
      %v7821 = vadd.f32 %v7411, %v7669
      %v7822 = vadd.f32 %v7412, %v7674
      %v7823 = vadd.f32 %v7413, %v7677
      %v7824 = vadd.f32 %v7414, %v7682
      %v7825 = vadd.f32 %v7415, %v7685
      %v7826 = vadd.f32 %v7416, %v7690
      %v7827 = vadd.f32 %v7417, %v7693
      %v7828 = vadd.f32 %v7418, %v7698
      %v7829 = vadd.f32 %v7419, %v7701
      %v7830 = vadd.f32 %v7420, %v7706
      %v7831 = vadd.f32 %v7421, %v7709
      %v7832 = vadd.f32 %v7422, %v7714
      %v7833 = vadd.f32 %v7423, %v7717
      %v7834 = vadd.f32 %v7424, %v7722
      %v7835 = vadd.f32 %v7425, %v7725
      %v7836 = vadd.f32 %v7426, %v7730
      %v7837 = vadd.f32 %v7427, %v7733
      %v7838 = vadd.f32 %v7428, %v7738
      %v7839 = vadd.f32 %v7429, %v7741
      %v7840 = vadd.f32 %v7430, %v7746
      %v7841 = vadd.f32 %v7431, %v7749
      %v7842 = vadd.f32 %v7432, %v7754
      %v7843 = vadd.f32 %v7433, %v7757
      %v7844 = vadd.f32 %v7434, %v7762
      %v7845 = vadd.f32 %v7435, %v7765
      %v7846 = vadd.f32 %v7436, %v7770
      %v7847 = vadd.f32 %v7437, %v7773
      %v7848 = vadd.f32 %v7438, %v7778
      %v7849 = vadd.f32 %v7439, %v7781
      %v7850 = vadd.f32 %v7440, %v7786
      %v7851 = vadd.f32 %v7441, %v7789
      %v7852 = vadd.f32 %v7442, %v7794
      %v7853 = vadd.f32 %v7443, %v7797
      %v7854 = vadd.f32 %v7444, %v7802
      %v7855 = vadd.f32 %v7445, %v7805
      %v7856 = vld [vmem:[#allocation3 + $0x30] sm:$0xff]
      %v7857 = vld [vmem:[#allocation3 + $0x38] sm:$0xff]
      %v7858 = vld [vmem:[#allocation3 + $0x40] sm:$0xff]
      %v7859 = vld [vmem:[#allocation3 + $0x48] sm:$0xff]
      %v7860 = vld [vmem:[#allocation3 + $0x50] sm:$0xff]
      %v7861 = vld [vmem:[#allocation3 + $0x58] sm:$0xff]
      %v7862 = vld [vmem:[#allocation3 + $0x60] sm:$0xff]
      %v7863 = vld [vmem:[#allocation3 + $0x68] sm:$0xff]
      %v7864 = vld [vmem:[#allocation3 + $0x70] sm:$0xff]
      %v7865 = vld [vmem:[#allocation3 + $0x78] sm:$0xff]
      %v7866 = vld [vmem:[#allocation3 + $0x80] sm:$0xff]
      %v7867 = vld [vmem:[#allocation3 + $0x88] sm:$0xff]
      %v7868 = vld [vmem:[#allocation3 + $0x90] sm:$0xff]
      %v7869 = vld [vmem:[#allocation3 + $0x98] sm:$0xff]
      %v7870 = vld [vmem:[#allocation3 + $0xa0] sm:$0xff]
      %v7871 = vld [vmem:[#allocation3 + $0xa8] sm:$0xff]
      %v7872 = vld [vmem:[#allocation3 + $0xb0] sm:$0xff]
      %v7873 = vld [vmem:[#allocation3 + $0xb8] sm:$0xff]
      %v7874 = vld [vmem:[#allocation3 + $0xc0] sm:$0xff]
      %v7875 = vld [vmem:[#allocation3 + $0xc8] sm:$0xff]
      %v7876 = vld [vmem:[#allocation3 + $0xd0] sm:$0xff]
      %v7877 = vld [vmem:[#allocation3 + $0xd8] sm:$0xff]
      %v7878 = vld [vmem:[#allocation3 + $0xe0] sm:$0xff]
      %v7879 = vld [vmem:[#allocation3 + $0xe8] sm:$0xff]
      %v7880 = vld [vmem:[#allocation3 + $0xf0] sm:$0xff]
      %v7881 = vld [vmem:[#allocation3 + $0xf8] sm:$0xff]
      %v7882 = vld [vmem:[#allocation3 + $0x100] sm:$0xff]
      %v7883 = vld [vmem:[#allocation3 + $0x108] sm:$0xff]
      %v7884 = vld [vmem:[#allocation3 + $0x110] sm:$0xff]
      %v7885 = vld [vmem:[#allocation3 + $0x118] sm:$0xff]
      %v7886 = vld [vmem:[#allocation3 + $0x120] sm:$0xff]
      %v7887 = vld [vmem:[#allocation3 + $0x128] sm:$0xff]
      %v7888 = vld [vmem:[#allocation3 + $0x130] sm:$0xff]
      %v7889 = vld [vmem:[#allocation3 + $0x138] sm:$0xff]
      %v7890 = vld [vmem:[#allocation3 + $0x140] sm:$0xff]
      %v7891 = vld [vmem:[#allocation3 + $0x148] sm:$0xff]
      %v7892 = vld [vmem:[#allocation3 + $0x150] sm:$0xff]
      %v7893 = vld [vmem:[#allocation3 + $0x158] sm:$0xff]
      %v7894 = vld [vmem:[#allocation3 + $0x160] sm:$0xff]
      %v7895 = vld [vmem:[#allocation3 + $0x168] sm:$0xff]
      %v7896 = vld [vmem:[#allocation3 + $0x170] sm:$0xff]
      %v7897 = vld [vmem:[#allocation3 + $0x178] sm:$0xff]
      %v7898 = vld [vmem:[#allocation3 + $0x180] sm:$0xff]
      %v7899 = vld [vmem:[#allocation3 + $0x188] sm:$0xff]
      %v7900 = vld [vmem:[#allocation3 + $0x190] sm:$0xff]
      %v7901 = vld [vmem:[#allocation3 + $0x198] sm:$0xff]
      %v7902 = vld [vmem:[#allocation3 + $0x1a0] sm:$0xff]
      %v7903 = vld [vmem:[#allocation3 + $0x1a8] sm:$0xff]
      %v7904 = vpack.c.bf16 %v7857, %v7856
      %v7905 = vpack.c.bf16 %v7859, %v7858
      %v7906 = vpack.c.bf16 %v7861, %v7860
      %v7907 = vpack.c.bf16 %v7863, %v7862
      %v7908 = vpack.c.bf16 %v7865, %v7864
      %v7909 = vpack.c.bf16 %v7867, %v7866
      %v7910 = vpack.c.bf16 %v7869, %v7868
      %v7911 = vpack.c.bf16 %v7871, %v7870
      %v7912 = vpack.c.bf16 %v7873, %v7872
      %v7913 = vpack.c.bf16 %v7875, %v7874
      %v7914 = vpack.c.bf16 %v7877, %v7876
      %v7915 = vpack.c.bf16 %v7879, %v7878
      %v7916 = vpack.c.bf16 %v7881, %v7880
      %v7917 = vpack.c.bf16 %v7883, %v7882
      %v7918 = vpack.c.bf16 %v7885, %v7884
      %v7919 = vpack.c.bf16 %v7887, %v7886
      %v7920 = vpack.c.bf16 %v7889, %v7888
      %v7921 = vpack.c.bf16 %v7891, %v7890
      %v7922 = vpack.c.bf16 %v7893, %v7892
      %v7923 = vpack.c.bf16 %v7895, %v7894
      %v7924 = vpack.c.bf16 %v7897, %v7896
      %v7925 = vpack.c.bf16 %v7899, %v7898
      %v7926 = vpack.c.bf16 %v7901, %v7900
      %v7927 = vpack.c.bf16 %v7903, %v7902
      %s7928 = scalar_lea.vmem %s3, 384
      %v7929 = vld [vmem:[%s7928] sm:$0xf]
      %v7930 = vld [vmem:[%s7928 + $0x4] sm:$0xf]
      %v7931 = vld [vmem:[%s7928 + $0x8] sm:$0xf]
      %v7932 = vld [vmem:[%s7928 + $0xc] sm:$0xf]
      %v7933 = vld [vmem:[%s7928 + $0x10] sm:$0xf]
      %v7934 = vld [vmem:[%s7928 + $0x14] sm:$0xf]
      %v7935 = vld [vmem:[%s7928 + $0x18] sm:$0xf]
      %v7936 = vld [vmem:[%s7928 + $0x1c] sm:$0xf]
      %v7937 = vld [vmem:[%s7928 + $0x20] sm:$0xf]
      %v7938 = vld [vmem:[%s7928 + $0x24] sm:$0xf]
      %v7939 = vld [vmem:[%s7928 + $0x28] sm:$0xf]
      %v7940 = vld [vmem:[%s7928 + $0x2c] sm:$0xf]
      %v7941 = vld [vmem:[%s7928 + $0x30] sm:$0xf]
      %v7942 = vld [vmem:[%s7928 + $0x34] sm:$0xf]
      %v7943 = vld [vmem:[%s7928 + $0x38] sm:$0xf]
      %v7944 = vld [vmem:[%s7928 + $0x3c] sm:$0xf]
      %v7961 = vunpack.c.l.b16 %v7929
      %v7962 = vunpack.c.l.b16 %v7930
      %v7963 = vunpack.c.l.b16 %v7931
      %v7964 = vunpack.c.l.b16 %v7932
      %v7965 = vunpack.c.l.b16 %v7933
      %v7966 = vunpack.c.l.b16 %v7934
      %v7967 = vunpack.c.l.b16 %v7935
      %v7968 = vunpack.c.l.b16 %v7936
      %v7969 = vunpack.c.l.b16 %v7937
      %v7970 = vunpack.c.l.b16 %v7938
      %v7971 = vunpack.c.l.b16 %v7939
      %v7972 = vunpack.c.l.b16 %v7940
      %v7973 = vunpack.c.l.b16 %v7941
      %v7974 = vunpack.c.l.b16 %v7942
      %v7975 = vunpack.c.l.b16 %v7943
      %v7976 = vunpack.c.l.b16 %v7944
      %v7977 = vpack.c.b16 %v7962, %v7961
      %v7978 = vpack.c.b16 %v7964, %v7963
      %v7979 = vpack.c.b16 %v7966, %v7965
      %v7980 = vpack.c.b16 %v7968, %v7967
      %v7981 = vpack.c.b16 %v7970, %v7969
      %v7982 = vpack.c.b16 %v7972, %v7971
      %v7983 = vpack.c.b16 %v7974, %v7973
      %v7984 = vpack.c.b16 %v7976, %v7975
      %7993 = vmatprep.subr.bf16.mxu0 0
      %7994 = vmatpush1.bf16.msra.mxu0 %v7977
      %7995 = vmatprep.subr.bf16.mxu0 0
      %7996 = vmatpush1.bf16.msra.mxu0 %v7978
      %7997 = vmatprep.subr.bf16.mxu0 0
      %7998 = vmatpush1.bf16.msra.mxu0 %v7979
      %7999 = vmatprep.subr.bf16.mxu0 0
      %8000 = vmatpush1.bf16.msra.mxu0 %v7980
      %8001 = vmatprep.subr.bf16.mxu0 0
      %8002 = vmatpush1.bf16.msra.mxu0 %v7981
      %8003 = vmatprep.subr.bf16.mxu0 0
      %8004 = vmatpush1.bf16.msra.mxu0 %v7982
      %8005 = vmatprep.subr.bf16.mxu0 0
      %8006 = vmatpush1.bf16.msra.mxu0 %v7983
      %8007 = vmatprep.subr.bf16.mxu0 0
      %8008 = vmatpush1.bf16.msra.mxu0 %v7984
      %8009 = vmatprep.subr.bf16.mxu0 0
      %8010 = vmatpush1.bf16.msra.mxu0 0
      %8011 = vmatprep.subr.bf16.mxu0 0
      %8012 = vmatpush1.bf16.msra.mxu0 0
      %8013 = vmatprep.subr.bf16.mxu0 0
      %8014 = vmatpush1.bf16.msra.mxu0 0
      %8015 = vmatprep.subr.bf16.mxu0 0
      %8016 = vmatpush1.bf16.msra.mxu0 0
      %8017 = vmatprep.subr.bf16.mxu0 0
      %8018 = vmatpush1.bf16.msra.mxu0 0
      %8019 = vmatprep.subr.bf16.mxu0 0
      %8020 = vmatpush1.bf16.msra.mxu0 0
      %8021 = vmatprep.subr.bf16.mxu0 0
      %8022 = vmatpush1.bf16.msra.mxu0 0
      %8023 = vmatprep.subr.bf16.mxu0 0
      %8024 = vmatpush1.bf16.msra.mxu0 0
      %8025 = vmatprep.mubr.bf16.mxu0 0
      %8026 = vmatmul.mubr.bf16.gmra.mrb[0].mxu0 %v7904
      %v8027 = vpop.f32.mrb[0].mxu0
      %v8028 = vadd.f32 0.0, %v8027
      %v8029 = vpop.f32.mrb[0].mxu0
      %v8030 = vpop.f32.mrb[0].mxu0
      %v8031 = vadd.f32 0.0, %v8030
      %v8032 = vpop.f32.mrb[0].mxu0
      %8033 = vmatprep.mubr.bf16.mxu0 0
      %8034 = vmatmul.mubr.bf16.gmra.mrb[0].mxu0 %v7905
      %v8035 = vpop.f32.mrb[0].mxu0
      %v8036 = vadd.f32 0.0, %v8035
      %v8037 = vpop.f32.mrb[0].mxu0
      %v8038 = vpop.f32.mrb[0].mxu0
      %v8039 = vadd.f32 0.0, %v8038
      %v8040 = vpop.f32.mrb[0].mxu0
      %8041 = vmatprep.mubr.bf16.mxu0 0
      %8042 = vmatmul.mubr.bf16.gmra.mrb[0].mxu0 %v7906
      %v8043 = vpop.f32.mrb[0].mxu0
      %v8044 = vadd.f32 0.0, %v8043
      %v8045 = vpop.f32.mrb[0].mxu0
      %v8046 = vpop.f32.mrb[0].mxu0
      %v8047 = vadd.f32 0.0, %v8046
      %v8048 = vpop.f32.mrb[0].mxu0
      %8049 = vmatprep.mubr.bf16.mxu0 0
      %8050 = vmatmul.mubr.bf16.gmra.mrb[0].mxu0 %v7907
      %v8051 = vpop.f32.mrb[0].mxu0
      %v8052 = vadd.f32 0.0, %v8051
      %v8053 = vpop.f32.mrb[0].mxu0
      %v8054 = vpop.f32.mrb[0].mxu0
      %v8055 = vadd.f32 0.0, %v8054
      %v8056 = vpop.f32.mrb[0].mxu0
      %8057 = vmatprep.mubr.bf16.mxu0 0
      %8058 = vmatmul.mubr.bf16.gmra.mrb[0].mxu0 %v7908
      %v8059 = vpop.f32.mrb[0].mxu0
      %v8060 = vadd.f32 0.0, %v8059
      %v8061 = vpop.f32.mrb[0].mxu0
      %v8062 = vpop.f32.mrb[0].mxu0
      %v8063 = vadd.f32 0.0, %v8062
      %v8064 = vpop.f32.mrb[0].mxu0
      %8065 = vmatprep.mubr.bf16.mxu0 0
      %8066 = vmatmul.mubr.bf16.gmra.mrb[0].mxu0 %v7909
      %v8067 = vpop.f32.mrb[0].mxu0
      %v8068 = vadd.f32 0.0, %v8067
      %v8069 = vpop.f32.mrb[0].mxu0
      %v8070 = vpop.f32.mrb[0].mxu0
      %v8071 = vadd.f32 0.0, %v8070
      %v8072 = vpop.f32.mrb[0].mxu0
      %8073 = vmatprep.mubr.bf16.mxu0 0
      %8074 = vmatmul.mubr.bf16.gmra.mrb[0].mxu0 %v7910
      %v8075 = vpop.f32.mrb[0].mxu0
      %v8076 = vadd.f32 0.0, %v8075
      %v8077 = vpop.f32.mrb[0].mxu0
      %v8078 = vpop.f32.mrb[0].mxu0
      %v8079 = vadd.f32 0.0, %v8078
      %v8080 = vpop.f32.mrb[0].mxu0
      %8081 = vmatprep.mubr.bf16.mxu0 0
      %8082 = vmatmul.mubr.bf16.gmra.mrb[0].mxu0 %v7911
      %v8083 = vpop.f32.mrb[0].mxu0
      %v8084 = vadd.f32 0.0, %v8083
      %v8085 = vpop.f32.mrb[0].mxu0
      %v8086 = vpop.f32.mrb[0].mxu0
      %v8087 = vadd.f32 0.0, %v8086
      %v8088 = vpop.f32.mrb[0].mxu0
      %8089 = vmatprep.mubr.bf16.mxu0 0
      %8090 = vmatmul.mubr.bf16.gmra.mrb[0].mxu0 %v7912
      %v8091 = vpop.f32.mrb[0].mxu0
      %v8092 = vadd.f32 0.0, %v8091
      %v8093 = vpop.f32.mrb[0].mxu0
      %v8094 = vpop.f32.mrb[0].mxu0
      %v8095 = vadd.f32 0.0, %v8094
      %v8096 = vpop.f32.mrb[0].mxu0
      %8097 = vmatprep.mubr.bf16.mxu0 0
      %8098 = vmatmul.mubr.bf16.gmra.mrb[0].mxu0 %v7913
      %v8099 = vpop.f32.mrb[0].mxu0
      %v8100 = vadd.f32 0.0, %v8099
      %v8101 = vpop.f32.mrb[0].mxu0
      %v8102 = vpop.f32.mrb[0].mxu0
      %v8103 = vadd.f32 0.0, %v8102
      %v8104 = vpop.f32.mrb[0].mxu0
      %8105 = vmatprep.mubr.bf16.mxu0 0
      %8106 = vmatmul.mubr.bf16.gmra.mrb[0].mxu0 %v7914
      %v8107 = vpop.f32.mrb[0].mxu0
      %v8108 = vadd.f32 0.0, %v8107
      %v8109 = vpop.f32.mrb[0].mxu0
      %v8110 = vpop.f32.mrb[0].mxu0
      %v8111 = vadd.f32 0.0, %v8110
      %v8112 = vpop.f32.mrb[0].mxu0
      %8113 = vmatprep.mubr.bf16.mxu0 0
      %8114 = vmatmul.mubr.bf16.gmra.mrb[0].mxu0 %v7915
      %v8115 = vpop.f32.mrb[0].mxu0
      %v8116 = vadd.f32 0.0, %v8115
      %v8117 = vpop.f32.mrb[0].mxu0
      %v8118 = vpop.f32.mrb[0].mxu0
      %v8119 = vadd.f32 0.0, %v8118
      %v8120 = vpop.f32.mrb[0].mxu0
      %8121 = vmatprep.mubr.bf16.mxu0 0
      %8122 = vmatmul.mubr.bf16.gmra.mrb[0].mxu0 %v7916
      %v8123 = vpop.f32.mrb[0].mxu0
      %v8124 = vadd.f32 0.0, %v8123
      %v8125 = vpop.f32.mrb[0].mxu0
      %v8126 = vpop.f32.mrb[0].mxu0
      %v8127 = vadd.f32 0.0, %v8126
      %v8128 = vpop.f32.mrb[0].mxu0
      %8129 = vmatprep.mubr.bf16.mxu0 0
      %8130 = vmatmul.mubr.bf16.gmra.mrb[0].mxu0 %v7917
      %v8131 = vpop.f32.mrb[0].mxu0
      %v8132 = vadd.f32 0.0, %v8131
      %v8133 = vpop.f32.mrb[0].mxu0
      %v8134 = vpop.f32.mrb[0].mxu0
      %v8135 = vadd.f32 0.0, %v8134
      %v8136 = vpop.f32.mrb[0].mxu0
      %8137 = vmatprep.mubr.bf16.mxu0 0
      %8138 = vmatmul.mubr.bf16.gmra.mrb[0].mxu0 %v7918
      %v8139 = vpop.f32.mrb[0].mxu0
      %v8140 = vadd.f32 0.0, %v8139
      %v8141 = vpop.f32.mrb[0].mxu0
      %v8142 = vpop.f32.mrb[0].mxu0
      %v8143 = vadd.f32 0.0, %v8142
      %v8144 = vpop.f32.mrb[0].mxu0
      %8145 = vmatprep.mubr.bf16.mxu0 0
      %8146 = vmatmul.mubr.bf16.gmra.mrb[0].mxu0 %v7919
      %v8147 = vpop.f32.mrb[0].mxu0
      %v8148 = vadd.f32 0.0, %v8147
      %v8149 = vpop.f32.mrb[0].mxu0
      %v8150 = vpop.f32.mrb[0].mxu0
      %v8151 = vadd.f32 0.0, %v8150
      %v8152 = vpop.f32.mrb[0].mxu0
      %8153 = vmatprep.mubr.bf16.mxu0 0
      %8154 = vmatmul.mubr.bf16.gmra.mrb[0].mxu0 %v7920
      %v8155 = vpop.f32.mrb[0].mxu0
      %v8156 = vadd.f32 0.0, %v8155
      %v8157 = vpop.f32.mrb[0].mxu0
      %v8158 = vpop.f32.mrb[0].mxu0
      %v8159 = vadd.f32 0.0, %v8158
      %v8160 = vpop.f32.mrb[0].mxu0
      %8161 = vmatprep.mubr.bf16.mxu0 0
      %8162 = vmatmul.mubr.bf16.gmra.mrb[0].mxu0 %v7921
      %v8163 = vpop.f32.mrb[0].mxu0
      %v8164 = vadd.f32 0.0, %v8163
      %v8165 = vpop.f32.mrb[0].mxu0
      %v8166 = vpop.f32.mrb[0].mxu0
      %v8167 = vadd.f32 0.0, %v8166
      %v8168 = vpop.f32.mrb[0].mxu0
      %8169 = vmatprep.mubr.bf16.mxu0 0
      %8170 = vmatmul.mubr.bf16.gmra.mrb[0].mxu0 %v7922
      %v8171 = vpop.f32.mrb[0].mxu0
      %v8172 = vadd.f32 0.0, %v8171
      %v8173 = vpop.f32.mrb[0].mxu0
      %v8174 = vpop.f32.mrb[0].mxu0
      %v8175 = vadd.f32 0.0, %v8174
      %v8176 = vpop.f32.mrb[0].mxu0
      %8177 = vmatprep.mubr.bf16.mxu0 0
      %8178 = vmatmul.mubr.bf16.gmra.mrb[0].mxu0 %v7923
      %v8179 = vpop.f32.mrb[0].mxu0
      %v8180 = vadd.f32 0.0, %v8179
      %v8181 = vpop.f32.mrb[0].mxu0
      %v8182 = vpop.f32.mrb[0].mxu0
      %v8183 = vadd.f32 0.0, %v8182
      %v8184 = vpop.f32.mrb[0].mxu0
      %8185 = vmatprep.mubr.bf16.mxu0 0
      %8186 = vmatmul.mubr.bf16.gmra.mrb[0].mxu0 %v7924
      %v8187 = vpop.f32.mrb[0].mxu0
      %v8188 = vadd.f32 0.0, %v8187
      %v8189 = vpop.f32.mrb[0].mxu0
      %v8190 = vpop.f32.mrb[0].mxu0
      %v8191 = vadd.f32 0.0, %v8190
      %v8192 = vpop.f32.mrb[0].mxu0
      %8193 = vmatprep.mubr.bf16.mxu0 0
      %8194 = vmatmul.mubr.bf16.gmra.mrb[0].mxu0 %v7925
      %v8195 = vpop.f32.mrb[0].mxu0
      %v8196 = vadd.f32 0.0, %v8195
      %v8197 = vpop.f32.mrb[0].mxu0
      %v8198 = vpop.f32.mrb[0].mxu0
      %v8199 = vadd.f32 0.0, %v8198
      %v8200 = vpop.f32.mrb[0].mxu0
      %8201 = vmatprep.mubr.bf16.mxu0 0
      %8202 = vmatmul.mubr.bf16.gmra.mrb[0].mxu0 %v7926
      %v8203 = vpop.f32.mrb[0].mxu0
      %v8204 = vadd.f32 0.0, %v8203
      %v8205 = vpop.f32.mrb[0].mxu0
      %v8206 = vpop.f32.mrb[0].mxu0
      %v8207 = vadd.f32 0.0, %v8206
      %v8208 = vpop.f32.mrb[0].mxu0
      %8209 = vmatprep.mubr.bf16.mxu0 0
      %8210 = vmatmul.mubr.bf16.gmra.mrb[0].mxu0 %v7927
      %v8211 = vpop.f32.mrb[0].mxu0
      %v8212 = vadd.f32 0.0, %v8211
      %v8213 = vpop.f32.mrb[0].mxu0
      %v8214 = vpop.f32.mrb[0].mxu0
      %v8215 = vadd.f32 0.0, %v8214
      %v8216 = vpop.f32.mrb[0].mxu0
      %8217 = vdwg.mxu0
      %v8218 = vadd.f32 %v7808, %v8028
      %v8219 = vadd.f32 %v7809, %v8031
      %v8220 = vadd.f32 %v7810, %v8036
      %v8221 = vadd.f32 %v7811, %v8039
      %v8222 = vadd.f32 %v7812, %v8044
      %v8223 = vadd.f32 %v7813, %v8047
      %v8224 = vadd.f32 %v7814, %v8052
      %v8225 = vadd.f32 %v7815, %v8055
      %v8226 = vadd.f32 %v7816, %v8060
      %v8227 = vadd.f32 %v7817, %v8063
      %v8228 = vadd.f32 %v7818, %v8068
      %v8229 = vadd.f32 %v7819, %v8071
      %v8230 = vadd.f32 %v7820, %v8076
      %v8231 = vadd.f32 %v7821, %v8079
      %v8232 = vadd.f32 %v7822, %v8084
      %v8233 = vadd.f32 %v7823, %v8087
      %v8234 = vadd.f32 %v7824, %v8092
      %v8235 = vadd.f32 %v7825, %v8095
      %v8236 = vadd.f32 %v7826, %v8100
      %v8237 = vadd.f32 %v7827, %v8103
      %v8238 = vadd.f32 %v7828, %v8108
      %v8239 = vadd.f32 %v7829, %v8111
      %v8240 = vadd.f32 %v7830, %v8116
      %v8241 = vadd.f32 %v7831, %v8119
      %v8242 = vadd.f32 %v7832, %v8124
      %v8243 = vadd.f32 %v7833, %v8127
      %v8244 = vadd.f32 %v7834, %v8132
      %v8245 = vadd.f32 %v7835, %v8135
      %v8246 = vadd.f32 %v7836, %v8140
      %v8247 = vadd.f32 %v7837, %v8143
      %v8248 = vadd.f32 %v7838, %v8148
      %v8249 = vadd.f32 %v7839, %v8151
      %v8250 = vadd.f32 %v7840, %v8156
      %v8251 = vadd.f32 %v7841, %v8159
      %v8252 = vadd.f32 %v7842, %v8164
      %v8253 = vadd.f32 %v7843, %v8167
      %v8254 = vadd.f32 %v7844, %v8172
      %v8255 = vadd.f32 %v7845, %v8175
      %v8256 = vadd.f32 %v7846, %v8180
      %v8257 = vadd.f32 %v7847, %v8183
      %v8258 = vadd.f32 %v7848, %v8188
      %v8259 = vadd.f32 %v7849, %v8191
      %v8260 = vadd.f32 %v7850, %v8196
      %v8261 = vadd.f32 %v7851, %v8199
      %v8262 = vadd.f32 %v7852, %v8204
      %v8263 = vadd.f32 %v7853, %v8207
      %v8264 = vadd.f32 %v7854, %v8212
      %v8265 = vadd.f32 %v7855, %v8215
      %v8266 = vld [vmem:[#allocation3 + $0x31] sm:$0xff]
      %v8267 = vld [vmem:[#allocation3 + $0x39] sm:$0xff]
      %v8268 = vld [vmem:[#allocation3 + $0x41] sm:$0xff]
      %v8269 = vld [vmem:[#allocation3 + $0x49] sm:$0xff]
      %v8270 = vld [vmem:[#allocation3 + $0x51] sm:$0xff]
      %v8271 = vld [vmem:[#allocation3 + $0x59] sm:$0xff]
      %v8272 = vld [vmem:[#allocation3 + $0x61] sm:$0xff]
      %v8273 = vld [vmem:[#allocation3 + $0x69] sm:$0xff]
      %v8274 = vld [vmem:[#allocation3 + $0x71] sm:$0xff]
      %v8275 = vld [vmem:[#allocation3 + $0x79] sm:$0xff]
      %v8276 = vld [vmem:[#allocation3 + $0x81] sm:$0xff]
      %v8277 = vld [vmem:[#allocation3 + $0x89] sm:$0xff]
      %v8278 = vld [vmem:[#allocation3 + $0x91] sm:$0xff]
      %v8279 = vld [vmem:[#allocation3 + $0x99] sm:$0xff]
      %v8280 = vld [vmem:[#allocation3 + $0xa1] sm:$0xff]
      %v8281 = vld [vmem:[#allocation3 + $0xa9] sm:$0xff]
      %v8282 = vld [vmem:[#allocation3 + $0xb1] sm:$0xff]
      %v8283 = vld [vmem:[#allocation3 + $0xb9] sm:$0xff]
      %v8284 = vld [vmem:[#allocation3 + $0xc1] sm:$0xff]
      %v8285 = vld [vmem:[#allocation3 + $0xc9] sm:$0xff]
      %v8286 = vld [vmem:[#allocation3 + $0xd1] sm:$0xff]
      %v8287 = vld [vmem:[#allocation3 + $0xd9] sm:$0xff]
      %v8288 = vld [vmem:[#allocation3 + $0xe1] sm:$0xff]
      %v8289 = vld [vmem:[#allocation3 + $0xe9] sm:$0xff]
      %v8290 = vld [vmem:[#allocation3 + $0xf1] sm:$0xff]
      %v8291 = vld [vmem:[#allocation3 + $0xf9] sm:$0xff]
      %v8292 = vld [vmem:[#allocation3 + $0x101] sm:$0xff]
      %v8293 = vld [vmem:[#allocation3 + $0x109] sm:$0xff]
      %v8294 = vld [vmem:[#allocation3 + $0x111] sm:$0xff]
      %v8295 = vld [vmem:[#allocation3 + $0x119] sm:$0xff]
      %v8296 = vld [vmem:[#allocation3 + $0x121] sm:$0xff]
      %v8297 = vld [vmem:[#allocation3 + $0x129] sm:$0xff]
      %v8298 = vld [vmem:[#allocation3 + $0x131] sm:$0xff]
      %v8299 = vld [vmem:[#allocation3 + $0x139] sm:$0xff]
      %v8300 = vld [vmem:[#allocation3 + $0x141] sm:$0xff]
      %v8301 = vld [vmem:[#allocation3 + $0x149] sm:$0xff]
      %v8302 = vld [vmem:[#allocation3 + $0x151] sm:$0xff]
      %v8303 = vld [vmem:[#allocation3 + $0x159] sm:$0xff]
      %v8304 = vld [vmem:[#allocation3 + $0x161] sm:$0xff]
      %v8305 = vld [vmem:[#allocation3 + $0x169] sm:$0xff]
      %v8306 = vld [vmem:[#allocation3 + $0x171] sm:$0xff]
      %v8307 = vld [vmem:[#allocation3 + $0x179] sm:$0xff]
      %v8308 = vld [vmem:[#allocation3 + $0x181] sm:$0xff]
      %v8309 = vld [vmem:[#allocation3 + $0x189] sm:$0xff]
      %v8310 = vld [vmem:[#allocation3 + $0x191] sm:$0xff]
      %v8311 = vld [vmem:[#allocation3 + $0x199] sm:$0xff]
      %v8312 = vld [vmem:[#allocation3 + $0x1a1] sm:$0xff]
      %v8313 = vld [vmem:[#allocation3 + $0x1a9] sm:$0xff]
      %v8314 = vpack.c.bf16 %v8267, %v8266
      %v8315 = vpack.c.bf16 %v8269, %v8268
      %v8316 = vpack.c.bf16 %v8271, %v8270
      %v8317 = vpack.c.bf16 %v8273, %v8272
      %v8318 = vpack.c.bf16 %v8275, %v8274
      %v8319 = vpack.c.bf16 %v8277, %v8276
      %v8320 = vpack.c.bf16 %v8279, %v8278
      %v8321 = vpack.c.bf16 %v8281, %v8280
      %v8322 = vpack.c.bf16 %v8283, %v8282
      %v8323 = vpack.c.bf16 %v8285, %v8284
      %v8324 = vpack.c.bf16 %v8287, %v8286
      %v8325 = vpack.c.bf16 %v8289, %v8288
      %v8326 = vpack.c.bf16 %v8291, %v8290
      %v8327 = vpack.c.bf16 %v8293, %v8292
      %v8328 = vpack.c.bf16 %v8295, %v8294
      %v8329 = vpack.c.bf16 %v8297, %v8296
      %v8330 = vpack.c.bf16 %v8299, %v8298
      %v8331 = vpack.c.bf16 %v8301, %v8300
      %v8332 = vpack.c.bf16 %v8303, %v8302
      %v8333 = vpack.c.bf16 %v8305, %v8304
      %v8334 = vpack.c.bf16 %v8307, %v8306
      %v8335 = vpack.c.bf16 %v8309, %v8308
      %v8336 = vpack.c.bf16 %v8311, %v8310
      %v8337 = vpack.c.bf16 %v8313, %v8312
      %s8338 = scalar_lea.vmem %s3, 448
      %v8339 = vld [vmem:[%s8338] sm:$0xf]
      %v8340 = vld [vmem:[%s8338 + $0x4] sm:$0xf]
      %v8341 = vld [vmem:[%s8338 + $0x8] sm:$0xf]
      %v8342 = vld [vmem:[%s8338 + $0xc] sm:$0xf]
      %v8343 = vld [vmem:[%s8338 + $0x10] sm:$0xf]
      %v8344 = vld [vmem:[%s8338 + $0x14] sm:$0xf]
      %v8345 = vld [vmem:[%s8338 + $0x18] sm:$0xf]
      %v8346 = vld [vmem:[%s8338 + $0x1c] sm:$0xf]
      %v8347 = vld [vmem:[%s8338 + $0x20] sm:$0xf]
      %v8348 = vld [vmem:[%s8338 + $0x24] sm:$0xf]
      %v8349 = vld [vmem:[%s8338 + $0x28] sm:$0xf]
      %v8350 = vld [vmem:[%s8338 + $0x2c] sm:$0xf]
      %v8351 = vld [vmem:[%s8338 + $0x30] sm:$0xf]
      %v8352 = vld [vmem:[%s8338 + $0x34] sm:$0xf]
      %v8353 = vld [vmem:[%s8338 + $0x38] sm:$0xf]
      %v8354 = vld [vmem:[%s8338 + $0x3c] sm:$0xf]
      %v8371 = vunpack.c.l.b16 %v8339
      %v8372 = vunpack.c.l.b16 %v8340
      %v8373 = vunpack.c.l.b16 %v8341
      %v8374 = vunpack.c.l.b16 %v8342
      %v8375 = vunpack.c.l.b16 %v8343
      %v8376 = vunpack.c.l.b16 %v8344
      %v8377 = vunpack.c.l.b16 %v8345
      %v8378 = vunpack.c.l.b16 %v8346
      %v8379 = vunpack.c.l.b16 %v8347
      %v8380 = vunpack.c.l.b16 %v8348
      %v8381 = vunpack.c.l.b16 %v8349
      %v8382 = vunpack.c.l.b16 %v8350
      %v8383 = vunpack.c.l.b16 %v8351
      %v8384 = vunpack.c.l.b16 %v8352
      %v8385 = vunpack.c.l.b16 %v8353
      %v8386 = vunpack.c.l.b16 %v8354
      %v8387 = vpack.c.b16 %v8372, %v8371
      %v8388 = vpack.c.b16 %v8374, %v8373
      %v8389 = vpack.c.b16 %v8376, %v8375
      %v8390 = vpack.c.b16 %v8378, %v8377
      %v8391 = vpack.c.b16 %v8380, %v8379
      %v8392 = vpack.c.b16 %v8382, %v8381
      %v8393 = vpack.c.b16 %v8384, %v8383
      %v8394 = vpack.c.b16 %v8386, %v8385
      %8403 = vmatprep.subr.bf16.mxu0 0
      %8404 = vmatpush1.bf16.msra.mxu0 %v8387
      %8405 = vmatprep.subr.bf16.mxu0 0
      %8406 = vmatpush1.bf16.msra.mxu0 %v8388
      %8407 = vmatprep.subr.bf16.mxu0 0
      %8408 = vmatpush1.bf16.msra.mxu0 %v8389
      %8409 = vmatprep.subr.bf16.mxu0 0
      %8410 = vmatpush1.bf16.msra.mxu0 %v8390
      %8411 = vmatprep.subr.bf16.mxu0 0
      %8412 = vmatpush1.bf16.msra.mxu0 %v8391
      %8413 = vmatprep.subr.bf16.mxu0 0
      %8414 = vmatpush1.bf16.msra.mxu0 %v8392
      %8415 = vmatprep.subr.bf16.mxu0 0
      %8416 = vmatpush1.bf16.msra.mxu0 %v8393
      %8417 = vmatprep.subr.bf16.mxu0 0
      %8418 = vmatpush1.bf16.msra.mxu0 %v8394
      %8419 = vmatprep.subr.bf16.mxu0 0
      %8420 = vmatpush1.bf16.msra.mxu0 0
      %8421 = vmatprep.subr.bf16.mxu0 0
      %8422 = vmatpush1.bf16.msra.mxu0 0
      %8423 = vmatprep.subr.bf16.mxu0 0
      %8424 = vmatpush1.bf16.msra.mxu0 0
      %8425 = vmatprep.subr.bf16.mxu0 0
      %8426 = vmatpush1.bf16.msra.mxu0 0
      %8427 = vmatprep.subr.bf16.mxu0 0
      %8428 = vmatpush1.bf16.msra.mxu0 0
      %8429 = vmatprep.subr.bf16.mxu0 0
      %8430 = vmatpush1.bf16.msra.mxu0 0
      %8431 = vmatprep.subr.bf16.mxu0 0
      %8432 = vmatpush1.bf16.msra.mxu0 0
      %8433 = vmatprep.subr.bf16.mxu0 0
      %8434 = vmatpush1.bf16.msra.mxu0 0
      %8435 = vmatprep.mubr.bf16.mxu0 0
      %8436 = vmatmul.mubr.bf16.gmra.mrb[0].mxu0 %v8314
      %v8437 = vpop.f32.mrb[0].mxu0
      %v8438 = vadd.f32 0.0, %v8437
      %v8439 = vpop.f32.mrb[0].mxu0
      %v8440 = vpop.f32.mrb[0].mxu0
      %v8441 = vadd.f32 0.0, %v8440
      %v8442 = vpop.f32.mrb[0].mxu0
      %8443 = vmatprep.mubr.bf16.mxu0 0
      %8444 = vmatmul.mubr.bf16.gmra.mrb[0].mxu0 %v8315
      %v8445 = vpop.f32.mrb[0].mxu0
      %v8446 = vadd.f32 0.0, %v8445
      %v8447 = vpop.f32.mrb[0].mxu0
      %v8448 = vpop.f32.mrb[0].mxu0
      %v8449 = vadd.f32 0.0, %v8448
      %v8450 = vpop.f32.mrb[0].mxu0
      %8451 = vmatprep.mubr.bf16.mxu0 0
      %8452 = vmatmul.mubr.bf16.gmra.mrb[0].mxu0 %v8316
      %v8453 = vpop.f32.mrb[0].mxu0
      %v8454 = vadd.f32 0.0, %v8453
      %v8455 = vpop.f32.mrb[0].mxu0
      %v8456 = vpop.f32.mrb[0].mxu0
      %v8457 = vadd.f32 0.0, %v8456
      %v8458 = vpop.f32.mrb[0].mxu0
      %8459 = vmatprep.mubr.bf16.mxu0 0
      %8460 = vmatmul.mubr.bf16.gmra.mrb[0].mxu0 %v8317
      %v8461 = vpop.f32.mrb[0].mxu0
      %v8462 = vadd.f32 0.0, %v8461
      %v8463 = vpop.f32.mrb[0].mxu0
      %v8464 = vpop.f32.mrb[0].mxu0
      %v8465 = vadd.f32 0.0, %v8464
      %v8466 = vpop.f32.mrb[0].mxu0
      %8467 = vmatprep.mubr.bf16.mxu0 0
      %8468 = vmatmul.mubr.bf16.gmra.mrb[0].mxu0 %v8318
      %v8469 = vpop.f32.mrb[0].mxu0
      %v8470 = vadd.f32 0.0, %v8469
      %v8471 = vpop.f32.mrb[0].mxu0
      %v8472 = vpop.f32.mrb[0].mxu0
      %v8473 = vadd.f32 0.0, %v8472
      %v8474 = vpop.f32.mrb[0].mxu0
      %8475 = vmatprep.mubr.bf16.mxu0 0
      %8476 = vmatmul.mubr.bf16.gmra.mrb[0].mxu0 %v8319
      %v8477 = vpop.f32.mrb[0].mxu0
      %v8478 = vadd.f32 0.0, %v8477
      %v8479 = vpop.f32.mrb[0].mxu0
      %v8480 = vpop.f32.mrb[0].mxu0
      %v8481 = vadd.f32 0.0, %v8480
      %v8482 = vpop.f32.mrb[0].mxu0
      %8483 = vmatprep.mubr.bf16.mxu0 0
      %8484 = vmatmul.mubr.bf16.gmra.mrb[0].mxu0 %v8320
      %v8485 = vpop.f32.mrb[0].mxu0
      %v8486 = vadd.f32 0.0, %v8485
      %v8487 = vpop.f32.mrb[0].mxu0
      %v8488 = vpop.f32.mrb[0].mxu0
      %v8489 = vadd.f32 0.0, %v8488
      %v8490 = vpop.f32.mrb[0].mxu0
      %8491 = vmatprep.mubr.bf16.mxu0 0
      %8492 = vmatmul.mubr.bf16.gmra.mrb[0].mxu0 %v8321
      %v8493 = vpop.f32.mrb[0].mxu0
      %v8494 = vadd.f32 0.0, %v8493
      %v8495 = vpop.f32.mrb[0].mxu0
      %v8496 = vpop.f32.mrb[0].mxu0
      %v8497 = vadd.f32 0.0, %v8496
      %v8498 = vpop.f32.mrb[0].mxu0
      %8499 = vmatprep.mubr.bf16.mxu0 0
      %8500 = vmatmul.mubr.bf16.gmra.mrb[0].mxu0 %v8322
      %v8501 = vpop.f32.mrb[0].mxu0
      %v8502 = vadd.f32 0.0, %v8501
      %v8503 = vpop.f32.mrb[0].mxu0
      %v8504 = vpop.f32.mrb[0].mxu0
      %v8505 = vadd.f32 0.0, %v8504
      %v8506 = vpop.f32.mrb[0].mxu0
      %8507 = vmatprep.mubr.bf16.mxu0 0
      %8508 = vmatmul.mubr.bf16.gmra.mrb[0].mxu0 %v8323
      %v8509 = vpop.f32.mrb[0].mxu0
      %v8510 = vadd.f32 0.0, %v8509
      %v8511 = vpop.f32.mrb[0].mxu0
      %v8512 = vpop.f32.mrb[0].mxu0
      %v8513 = vadd.f32 0.0, %v8512
      %v8514 = vpop.f32.mrb[0].mxu0
      %8515 = vmatprep.mubr.bf16.mxu0 0
      %8516 = vmatmul.mubr.bf16.gmra.mrb[0].mxu0 %v8324
      %v8517 = vpop.f32.mrb[0].mxu0
      %v8518 = vadd.f32 0.0, %v8517
      %v8519 = vpop.f32.mrb[0].mxu0
      %v8520 = vpop.f32.mrb[0].mxu0
      %v8521 = vadd.f32 0.0, %v8520
      %v8522 = vpop.f32.mrb[0].mxu0
      %8523 = vmatprep.mubr.bf16.mxu0 0
      %8524 = vmatmul.mubr.bf16.gmra.mrb[0].mxu0 %v8325
      %v8525 = vpop.f32.mrb[0].mxu0
      %v8526 = vadd.f32 0.0, %v8525
      %v8527 = vpop.f32.mrb[0].mxu0
      %v8528 = vpop.f32.mrb[0].mxu0
      %v8529 = vadd.f32 0.0, %v8528
      %v8530 = vpop.f32.mrb[0].mxu0
      %8531 = vmatprep.mubr.bf16.mxu0 0
      %8532 = vmatmul.mubr.bf16.gmra.mrb[0].mxu0 %v8326
      %v8533 = vpop.f32.mrb[0].mxu0
      %v8534 = vadd.f32 0.0, %v8533
      %v8535 = vpop.f32.mrb[0].mxu0
      %v8536 = vpop.f32.mrb[0].mxu0
      %v8537 = vadd.f32 0.0, %v8536
      %v8538 = vpop.f32.mrb[0].mxu0
      %8539 = vmatprep.mubr.bf16.mxu0 0
      %8540 = vmatmul.mubr.bf16.gmra.mrb[0].mxu0 %v8327
      %v8541 = vpop.f32.mrb[0].mxu0
      %v8542 = vadd.f32 0.0, %v8541
      %v8543 = vpop.f32.mrb[0].mxu0
      %v8544 = vpop.f32.mrb[0].mxu0
      %v8545 = vadd.f32 0.0, %v8544
      %v8546 = vpop.f32.mrb[0].mxu0
      %8547 = vmatprep.mubr.bf16.mxu0 0
      %8548 = vmatmul.mubr.bf16.gmra.mrb[0].mxu0 %v8328
      %v8549 = vpop.f32.mrb[0].mxu0
      %v8550 = vadd.f32 0.0, %v8549
      %v8551 = vpop.f32.mrb[0].mxu0
      %v8552 = vpop.f32.mrb[0].mxu0
      %v8553 = vadd.f32 0.0, %v8552
      %v8554 = vpop.f32.mrb[0].mxu0
      %8555 = vmatprep.mubr.bf16.mxu0 0
      %8556 = vmatmul.mubr.bf16.gmra.mrb[0].mxu0 %v8329
      %v8557 = vpop.f32.mrb[0].mxu0
      %v8558 = vadd.f32 0.0, %v8557
      %v8559 = vpop.f32.mrb[0].mxu0
      %v8560 = vpop.f32.mrb[0].mxu0
      %v8561 = vadd.f32 0.0, %v8560
      %v8562 = vpop.f32.mrb[0].mxu0
      %8563 = vmatprep.mubr.bf16.mxu0 0
      %8564 = vmatmul.mubr.bf16.gmra.mrb[0].mxu0 %v8330
      %v8565 = vpop.f32.mrb[0].mxu0
      %v8566 = vadd.f32 0.0, %v8565
      %v8567 = vpop.f32.mrb[0].mxu0
      %v8568 = vpop.f32.mrb[0].mxu0
      %v8569 = vadd.f32 0.0, %v8568
      %v8570 = vpop.f32.mrb[0].mxu0
      %8571 = vmatprep.mubr.bf16.mxu0 0
      %8572 = vmatmul.mubr.bf16.gmra.mrb[0].mxu0 %v8331
      %v8573 = vpop.f32.mrb[0].mxu0
      %v8574 = vadd.f32 0.0, %v8573
      %v8575 = vpop.f32.mrb[0].mxu0
      %v8576 = vpop.f32.mrb[0].mxu0
      %v8577 = vadd.f32 0.0, %v8576
      %v8578 = vpop.f32.mrb[0].mxu0
      %8579 = vmatprep.mubr.bf16.mxu0 0
      %8580 = vmatmul.mubr.bf16.gmra.mrb[0].mxu0 %v8332
      %v8581 = vpop.f32.mrb[0].mxu0
      %v8582 = vadd.f32 0.0, %v8581
      %v8583 = vpop.f32.mrb[0].mxu0
      %v8584 = vpop.f32.mrb[0].mxu0
      %v8585 = vadd.f32 0.0, %v8584
      %v8586 = vpop.f32.mrb[0].mxu0
      %8587 = vmatprep.mubr.bf16.mxu0 0
      %8588 = vmatmul.mubr.bf16.gmra.mrb[0].mxu0 %v8333
      %v8589 = vpop.f32.mrb[0].mxu0
      %v8590 = vadd.f32 0.0, %v8589
      %v8591 = vpop.f32.mrb[0].mxu0
      %v8592 = vpop.f32.mrb[0].mxu0
      %v8593 = vadd.f32 0.0, %v8592
      %v8594 = vpop.f32.mrb[0].mxu0
      %8595 = vmatprep.mubr.bf16.mxu0 0
      %8596 = vmatmul.mubr.bf16.gmra.mrb[0].mxu0 %v8334
      %v8597 = vpop.f32.mrb[0].mxu0
      %v8598 = vadd.f32 0.0, %v8597
      %v8599 = vpop.f32.mrb[0].mxu0
      %v8600 = vpop.f32.mrb[0].mxu0
      %v8601 = vadd.f32 0.0, %v8600
      %v8602 = vpop.f32.mrb[0].mxu0
      %8603 = vmatprep.mubr.bf16.mxu0 0
      %8604 = vmatmul.mubr.bf16.gmra.mrb[0].mxu0 %v8335
      %v8605 = vpop.f32.mrb[0].mxu0
      %v8606 = vadd.f32 0.0, %v8605
      %v8607 = vpop.f32.mrb[0].mxu0
      %v8608 = vpop.f32.mrb[0].mxu0
      %v8609 = vadd.f32 0.0, %v8608
      %v8610 = vpop.f32.mrb[0].mxu0
      %8611 = vmatprep.mubr.bf16.mxu0 0
      %8612 = vmatmul.mubr.bf16.gmra.mrb[0].mxu0 %v8336
      %v8613 = vpop.f32.mrb[0].mxu0
      %v8614 = vadd.f32 0.0, %v8613
      %v8615 = vpop.f32.mrb[0].mxu0
      %v8616 = vpop.f32.mrb[0].mxu0
      %v8617 = vadd.f32 0.0, %v8616
      %v8618 = vpop.f32.mrb[0].mxu0
      %8619 = vmatprep.mubr.bf16.mxu0 0
      %8620 = vmatmul.mubr.bf16.gmra.mrb[0].mxu0 %v8337
      %v8621 = vpop.f32.mrb[0].mxu0
      %v8622 = vadd.f32 0.0, %v8621
      %v8623 = vpop.f32.mrb[0].mxu0
      %v8624 = vpop.f32.mrb[0].mxu0
      %v8625 = vadd.f32 0.0, %v8624
      %v8626 = vpop.f32.mrb[0].mxu0
      %8627 = vdwg.mxu0
      %v8628 = vadd.f32 %v8218, %v8438
      %v8629 = vadd.f32 %v8219, %v8441
      %v8630 = vadd.f32 %v8220, %v8446
      %v8631 = vadd.f32 %v8221, %v8449
      %v8632 = vadd.f32 %v8222, %v8454
      %v8633 = vadd.f32 %v8223, %v8457
      %v8634 = vadd.f32 %v8224, %v8462
      %v8635 = vadd.f32 %v8225, %v8465
      %v8636 = vadd.f32 %v8226, %v8470
      %v8637 = vadd.f32 %v8227, %v8473
      %v8638 = vadd.f32 %v8228, %v8478
      %v8639 = vadd.f32 %v8229, %v8481
      %v8640 = vadd.f32 %v8230, %v8486
      %v8641 = vadd.f32 %v8231, %v8489
      %v8642 = vadd.f32 %v8232, %v8494
      %v8643 = vadd.f32 %v8233, %v8497
      %v8644 = vadd.f32 %v8234, %v8502
      %v8645 = vadd.f32 %v8235, %v8505
      %v8646 = vadd.f32 %v8236, %v8510
      %v8647 = vadd.f32 %v8237, %v8513
      %v8648 = vadd.f32 %v8238, %v8518
      %v8649 = vadd.f32 %v8239, %v8521
      %v8650 = vadd.f32 %v8240, %v8526
      %v8651 = vadd.f32 %v8241, %v8529
      %v8652 = vadd.f32 %v8242, %v8534
      %v8653 = vadd.f32 %v8243, %v8537
      %v8654 = vadd.f32 %v8244, %v8542
      %v8655 = vadd.f32 %v8245, %v8545
      %v8656 = vadd.f32 %v8246, %v8550
      %v8657 = vadd.f32 %v8247, %v8553
      %v8658 = vadd.f32 %v8248, %v8558
      %v8659 = vadd.f32 %v8249, %v8561
      %v8660 = vadd.f32 %v8250, %v8566
      %v8661 = vadd.f32 %v8251, %v8569
      %v8662 = vadd.f32 %v8252, %v8574
      %v8663 = vadd.f32 %v8253, %v8577
      %v8664 = vadd.f32 %v8254, %v8582
      %v8665 = vadd.f32 %v8255, %v8585
      %v8666 = vadd.f32 %v8256, %v8590
      %v8667 = vadd.f32 %v8257, %v8593
      %v8668 = vadd.f32 %v8258, %v8598
      %v8669 = vadd.f32 %v8259, %v8601
      %v8670 = vadd.f32 %v8260, %v8606
      %v8671 = vadd.f32 %v8261, %v8609
      %v8672 = vadd.f32 %v8262, %v8614
      %v8673 = vadd.f32 %v8263, %v8617
      %v8674 = vadd.f32 %v8264, %v8622
      %v8675 = vadd.f32 %v8265, %v8625
      %v8676 = vld [vmem:[#allocation3 + $0x32] sm:$0xff]
      %v8677 = vld [vmem:[#allocation3 + $0x3a] sm:$0xff]
      %v8678 = vld [vmem:[#allocation3 + $0x42] sm:$0xff]
      %v8679 = vld [vmem:[#allocation3 + $0x4a] sm:$0xff]
      %v8680 = vld [vmem:[#allocation3 + $0x52] sm:$0xff]
      %v8681 = vld [vmem:[#allocation3 + $0x5a] sm:$0xff]
      %v8682 = vld [vmem:[#allocation3 + $0x62] sm:$0xff]
      %v8683 = vld [vmem:[#allocation3 + $0x6a] sm:$0xff]
      %v8684 = vld [vmem:[#allocation3 + $0x72] sm:$0xff]
      %v8685 = vld [vmem:[#allocation3 + $0x7a] sm:$0xff]
      %v8686 = vld [vmem:[#allocation3 + $0x82] sm:$0xff]
      %v8687 = vld [vmem:[#allocation3 + $0x8a] sm:$0xff]
      %v8688 = vld [vmem:[#allocation3 + $0x92] sm:$0xff]
      %v8689 = vld [vmem:[#allocation3 + $0x9a] sm:$0xff]
      %v8690 = vld [vmem:[#allocation3 + $0xa2] sm:$0xff]
      %v8691 = vld [vmem:[#allocation3 + $0xaa] sm:$0xff]
      %v8692 = vld [vmem:[#allocation3 + $0xb2] sm:$0xff]
      %v8693 = vld [vmem:[#allocation3 + $0xba] sm:$0xff]
      %v8694 = vld [vmem:[#allocation3 + $0xc2] sm:$0xff]
      %v8695 = vld [vmem:[#allocation3 + $0xca] sm:$0xff]
      %v8696 = vld [vmem:[#allocation3 + $0xd2] sm:$0xff]
      %v8697 = vld [vmem:[#allocation3 + $0xda] sm:$0xff]
      %v8698 = vld [vmem:[#allocation3 + $0xe2] sm:$0xff]
      %v8699 = vld [vmem:[#allocation3 + $0xea] sm:$0xff]
      %v8700 = vld [vmem:[#allocation3 + $0xf2] sm:$0xff]
      %v8701 = vld [vmem:[#allocation3 + $0xfa] sm:$0xff]
      %v8702 = vld [vmem:[#allocation3 + $0x102] sm:$0xff]
      %v8703 = vld [vmem:[#allocation3 + $0x10a] sm:$0xff]
      %v8704 = vld [vmem:[#allocation3 + $0x112] sm:$0xff]
      %v8705 = vld [vmem:[#allocation3 + $0x11a] sm:$0xff]
      %v8706 = vld [vmem:[#allocation3 + $0x122] sm:$0xff]
      %v8707 = vld [vmem:[#allocation3 + $0x12a] sm:$0xff]
      %v8708 = vld [vmem:[#allocation3 + $0x132] sm:$0xff]
      %v8709 = vld [vmem:[#allocation3 + $0x13a] sm:$0xff]
      %v8710 = vld [vmem:[#allocation3 + $0x142] sm:$0xff]
      %v8711 = vld [vmem:[#allocation3 + $0x14a] sm:$0xff]
      %v8712 = vld [vmem:[#allocation3 + $0x152] sm:$0xff]
      %v8713 = vld [vmem:[#allocation3 + $0x15a] sm:$0xff]
      %v8714 = vld [vmem:[#allocation3 + $0x162] sm:$0xff]
      %v8715 = vld [vmem:[#allocation3 + $0x16a] sm:$0xff]
      %v8716 = vld [vmem:[#allocation3 + $0x172] sm:$0xff]
      %v8717 = vld [vmem:[#allocation3 + $0x17a] sm:$0xff]
      %v8718 = vld [vmem:[#allocation3 + $0x182] sm:$0xff]
      %v8719 = vld [vmem:[#allocation3 + $0x18a] sm:$0xff]
      %v8720 = vld [vmem:[#allocation3 + $0x192] sm:$0xff]
      %v8721 = vld [vmem:[#allocation3 + $0x19a] sm:$0xff]
      %v8722 = vld [vmem:[#allocation3 + $0x1a2] sm:$0xff]
      %v8723 = vld [vmem:[#allocation3 + $0x1aa] sm:$0xff]
      %v8724 = vpack.c.bf16 %v8677, %v8676
      %v8725 = vpack.c.bf16 %v8679, %v8678
      %v8726 = vpack.c.bf16 %v8681, %v8680
      %v8727 = vpack.c.bf16 %v8683, %v8682
      %v8728 = vpack.c.bf16 %v8685, %v8684
      %v8729 = vpack.c.bf16 %v8687, %v8686
      %v8730 = vpack.c.bf16 %v8689, %v8688
      %v8731 = vpack.c.bf16 %v8691, %v8690
      %v8732 = vpack.c.bf16 %v8693, %v8692
      %v8733 = vpack.c.bf16 %v8695, %v8694
      %v8734 = vpack.c.bf16 %v8697, %v8696
      %v8735 = vpack.c.bf16 %v8699, %v8698
      %v8736 = vpack.c.bf16 %v8701, %v8700
      %v8737 = vpack.c.bf16 %v8703, %v8702
      %v8738 = vpack.c.bf16 %v8705, %v8704
      %v8739 = vpack.c.bf16 %v8707, %v8706
      %v8740 = vpack.c.bf16 %v8709, %v8708
      %v8741 = vpack.c.bf16 %v8711, %v8710
      %v8742 = vpack.c.bf16 %v8713, %v8712
      %v8743 = vpack.c.bf16 %v8715, %v8714
      %v8744 = vpack.c.bf16 %v8717, %v8716
      %v8745 = vpack.c.bf16 %v8719, %v8718
      %v8746 = vpack.c.bf16 %v8721, %v8720
      %v8747 = vpack.c.bf16 %v8723, %v8722
      %s8748 = scalar_lea.vmem %s3, 512
      %v8749 = vld [vmem:[%s8748] sm:$0xf]
      %v8750 = vld [vmem:[%s8748 + $0x4] sm:$0xf]
      %v8751 = vld [vmem:[%s8748 + $0x8] sm:$0xf]
      %v8752 = vld [vmem:[%s8748 + $0xc] sm:$0xf]
      %v8753 = vld [vmem:[%s8748 + $0x10] sm:$0xf]
      %v8754 = vld [vmem:[%s8748 + $0x14] sm:$0xf]
      %v8755 = vld [vmem:[%s8748 + $0x18] sm:$0xf]
      %v8756 = vld [vmem:[%s8748 + $0x1c] sm:$0xf]
      %v8757 = vld [vmem:[%s8748 + $0x20] sm:$0xf]
      %v8758 = vld [vmem:[%s8748 + $0x24] sm:$0xf]
      %v8759 = vld [vmem:[%s8748 + $0x28] sm:$0xf]
      %v8760 = vld [vmem:[%s8748 + $0x2c] sm:$0xf]
      %v8761 = vld [vmem:[%s8748 + $0x30] sm:$0xf]
      %v8762 = vld [vmem:[%s8748 + $0x34] sm:$0xf]
      %v8763 = vld [vmem:[%s8748 + $0x38] sm:$0xf]
      %v8764 = vld [vmem:[%s8748 + $0x3c] sm:$0xf]
      %v8781 = vunpack.c.l.b16 %v8749
      %v8782 = vunpack.c.l.b16 %v8750
      %v8783 = vunpack.c.l.b16 %v8751
      %v8784 = vunpack.c.l.b16 %v8752
      %v8785 = vunpack.c.l.b16 %v8753
      %v8786 = vunpack.c.l.b16 %v8754
      %v8787 = vunpack.c.l.b16 %v8755
      %v8788 = vunpack.c.l.b16 %v8756
      %v8789 = vunpack.c.l.b16 %v8757
      %v8790 = vunpack.c.l.b16 %v8758
      %v8791 = vunpack.c.l.b16 %v8759
      %v8792 = vunpack.c.l.b16 %v8760
      %v8793 = vunpack.c.l.b16 %v8761
      %v8794 = vunpack.c.l.b16 %v8762
      %v8795 = vunpack.c.l.b16 %v8763
      %v8796 = vunpack.c.l.b16 %v8764
      %v8797 = vpack.c.b16 %v8782, %v8781
      %v8798 = vpack.c.b16 %v8784, %v8783
      %v8799 = vpack.c.b16 %v8786, %v8785
      %v8800 = vpack.c.b16 %v8788, %v8787
      %v8801 = vpack.c.b16 %v8790, %v8789
      %v8802 = vpack.c.b16 %v8792, %v8791
      %v8803 = vpack.c.b16 %v8794, %v8793
      %v8804 = vpack.c.b16 %v8796, %v8795
      %8813 = vmatprep.subr.bf16.mxu0 0
      %8814 = vmatpush1.bf16.msra.mxu0 %v8797
      %8815 = vmatprep.subr.bf16.mxu0 0
      %8816 = vmatpush1.bf16.msra.mxu0 %v8798
      %8817 = vmatprep.subr.bf16.mxu0 0
      %8818 = vmatpush1.bf16.msra.mxu0 %v8799
      %8819 = vmatprep.subr.bf16.mxu0 0
      %8820 = vmatpush1.bf16.msra.mxu0 %v8800
      %8821 = vmatprep.subr.bf16.mxu0 0
      %8822 = vmatpush1.bf16.msra.mxu0 %v8801
      %8823 = vmatprep.subr.bf16.mxu0 0
      %8824 = vmatpush1.bf16.msra.mxu0 %v8802
      %8825 = vmatprep.subr.bf16.mxu0 0
      %8826 = vmatpush1.bf16.msra.mxu0 %v8803
      %8827 = vmatprep.subr.bf16.mxu0 0
      %8828 = vmatpush1.bf16.msra.mxu0 %v8804
      %8829 = vmatprep.subr.bf16.mxu0 0
      %8830 = vmatpush1.bf16.msra.mxu0 0
      %8831 = vmatprep.subr.bf16.mxu0 0
      %8832 = vmatpush1.bf16.msra.mxu0 0
      %8833 = vmatprep.subr.bf16.mxu0 0
      %8834 = vmatpush1.bf16.msra.mxu0 0
      %8835 = vmatprep.subr.bf16.mxu0 0
      %8836 = vmatpush1.bf16.msra.mxu0 0
      %8837 = vmatprep.subr.bf16.mxu0 0
      %8838 = vmatpush1.bf16.msra.mxu0 0
      %8839 = vmatprep.subr.bf16.mxu0 0
      %8840 = vmatpush1.bf16.msra.mxu0 0
      %8841 = vmatprep.subr.bf16.mxu0 0
      %8842 = vmatpush1.bf16.msra.mxu0 0
      %8843 = vmatprep.subr.bf16.mxu0 0
      %8844 = vmatpush1.bf16.msra.mxu0 0
      %8845 = vmatprep.mubr.bf16.mxu0 0
      %8846 = vmatmul.mubr.bf16.gmra.mrb[0].mxu0 %v8724
      %v8847 = vpop.f32.mrb[0].mxu0
      %v8848 = vadd.f32 0.0, %v8847
      %v8849 = vpop.f32.mrb[0].mxu0
      %v8850 = vpop.f32.mrb[0].mxu0
      %v8851 = vadd.f32 0.0, %v8850
      %v8852 = vpop.f32.mrb[0].mxu0
      %8853 = vmatprep.mubr.bf16.mxu0 0
      %8854 = vmatmul.mubr.bf16.gmra.mrb[0].mxu0 %v8725
      %v8855 = vpop.f32.mrb[0].mxu0
      %v8856 = vadd.f32 0.0, %v8855
      %v8857 = vpop.f32.mrb[0].mxu0
      %v8858 = vpop.f32.mrb[0].mxu0
      %v8859 = vadd.f32 0.0, %v8858
      %v8860 = vpop.f32.mrb[0].mxu0
      %8861 = vmatprep.mubr.bf16.mxu0 0
      %8862 = vmatmul.mubr.bf16.gmra.mrb[0].mxu0 %v8726
      %v8863 = vpop.f32.mrb[0].mxu0
      %v8864 = vadd.f32 0.0, %v8863
      %v8865 = vpop.f32.mrb[0].mxu0
      %v8866 = vpop.f32.mrb[0].mxu0
      %v8867 = vadd.f32 0.0, %v8866
      %v8868 = vpop.f32.mrb[0].mxu0
      %8869 = vmatprep.mubr.bf16.mxu0 0
      %8870 = vmatmul.mubr.bf16.gmra.mrb[0].mxu0 %v8727
      %v8871 = vpop.f32.mrb[0].mxu0
      %v8872 = vadd.f32 0.0, %v8871
      %v8873 = vpop.f32.mrb[0].mxu0
      %v8874 = vpop.f32.mrb[0].mxu0
      %v8875 = vadd.f32 0.0, %v8874
      %v8876 = vpop.f32.mrb[0].mxu0
      %8877 = vmatprep.mubr.bf16.mxu0 0
      %8878 = vmatmul.mubr.bf16.gmra.mrb[0].mxu0 %v8728
      %v8879 = vpop.f32.mrb[0].mxu0
      %v8880 = vadd.f32 0.0, %v8879
      %v8881 = vpop.f32.mrb[0].mxu0
      %v8882 = vpop.f32.mrb[0].mxu0
      %v8883 = vadd.f32 0.0, %v8882
      %v8884 = vpop.f32.mrb[0].mxu0
      %8885 = vmatprep.mubr.bf16.mxu0 0
      %8886 = vmatmul.mubr.bf16.gmra.mrb[0].mxu0 %v8729
      %v8887 = vpop.f32.mrb[0].mxu0
      %v8888 = vadd.f32 0.0, %v8887
      %v8889 = vpop.f32.mrb[0].mxu0
      %v8890 = vpop.f32.mrb[0].mxu0
      %v8891 = vadd.f32 0.0, %v8890
      %v8892 = vpop.f32.mrb[0].mxu0
      %8893 = vmatprep.mubr.bf16.mxu0 0
      %8894 = vmatmul.mubr.bf16.gmra.mrb[0].mxu0 %v8730
      %v8895 = vpop.f32.mrb[0].mxu0
      %v8896 = vadd.f32 0.0, %v8895
      %v8897 = vpop.f32.mrb[0].mxu0
      %v8898 = vpop.f32.mrb[0].mxu0
      %v8899 = vadd.f32 0.0, %v8898
      %v8900 = vpop.f32.mrb[0].mxu0
      %8901 = vmatprep.mubr.bf16.mxu0 0
      %8902 = vmatmul.mubr.bf16.gmra.mrb[0].mxu0 %v8731
      %v8903 = vpop.f32.mrb[0].mxu0
      %v8904 = vadd.f32 0.0, %v8903
      %v8905 = vpop.f32.mrb[0].mxu0
      %v8906 = vpop.f32.mrb[0].mxu0
      %v8907 = vadd.f32 0.0, %v8906
      %v8908 = vpop.f32.mrb[0].mxu0
      %8909 = vmatprep.mubr.bf16.mxu0 0
      %8910 = vmatmul.mubr.bf16.gmra.mrb[0].mxu0 %v8732
      %v8911 = vpop.f32.mrb[0].mxu0
      %v8912 = vadd.f32 0.0, %v8911
      %v8913 = vpop.f32.mrb[0].mxu0
      %v8914 = vpop.f32.mrb[0].mxu0
      %v8915 = vadd.f32 0.0, %v8914
      %v8916 = vpop.f32.mrb[0].mxu0
      %8917 = vmatprep.mubr.bf16.mxu0 0
      %8918 = vmatmul.mubr.bf16.gmra.mrb[0].mxu0 %v8733
      %v8919 = vpop.f32.mrb[0].mxu0
      %v8920 = vadd.f32 0.0, %v8919
      %v8921 = vpop.f32.mrb[0].mxu0
      %v8922 = vpop.f32.mrb[0].mxu0
      %v8923 = vadd.f32 0.0, %v8922
      %v8924 = vpop.f32.mrb[0].mxu0
      %8925 = vmatprep.mubr.bf16.mxu0 0
      %8926 = vmatmul.mubr.bf16.gmra.mrb[0].mxu0 %v8734
      %v8927 = vpop.f32.mrb[0].mxu0
      %v8928 = vadd.f32 0.0, %v8927
      %v8929 = vpop.f32.mrb[0].mxu0
      %v8930 = vpop.f32.mrb[0].mxu0
      %v8931 = vadd.f32 0.0, %v8930
      %v8932 = vpop.f32.mrb[0].mxu0
      %8933 = vmatprep.mubr.bf16.mxu0 0
      %8934 = vmatmul.mubr.bf16.gmra.mrb[0].mxu0 %v8735
      %v8935 = vpop.f32.mrb[0].mxu0
      %v8936 = vadd.f32 0.0, %v8935
      %v8937 = vpop.f32.mrb[0].mxu0
      %v8938 = vpop.f32.mrb[0].mxu0
      %v8939 = vadd.f32 0.0, %v8938
      %v8940 = vpop.f32.mrb[0].mxu0
      %8941 = vmatprep.mubr.bf16.mxu0 0
      %8942 = vmatmul.mubr.bf16.gmra.mrb[0].mxu0 %v8736
      %v8943 = vpop.f32.mrb[0].mxu0
      %v8944 = vadd.f32 0.0, %v8943
      %v8945 = vpop.f32.mrb[0].mxu0
      %v8946 = vpop.f32.mrb[0].mxu0
      %v8947 = vadd.f32 0.0, %v8946
      %v8948 = vpop.f32.mrb[0].mxu0
      %8949 = vmatprep.mubr.bf16.mxu0 0
      %8950 = vmatmul.mubr.bf16.gmra.mrb[0].mxu0 %v8737
      %v8951 = vpop.f32.mrb[0].mxu0
      %v8952 = vadd.f32 0.0, %v8951
      %v8953 = vpop.f32.mrb[0].mxu0
      %v8954 = vpop.f32.mrb[0].mxu0
      %v8955 = vadd.f32 0.0, %v8954
      %v8956 = vpop.f32.mrb[0].mxu0
      %8957 = vmatprep.mubr.bf16.mxu0 0
      %8958 = vmatmul.mubr.bf16.gmra.mrb[0].mxu0 %v8738
      %v8959 = vpop.f32.mrb[0].mxu0
      %v8960 = vadd.f32 0.0, %v8959
      %v8961 = vpop.f32.mrb[0].mxu0
      %v8962 = vpop.f32.mrb[0].mxu0
      %v8963 = vadd.f32 0.0, %v8962
      %v8964 = vpop.f32.mrb[0].mxu0
      %8965 = vmatprep.mubr.bf16.mxu0 0
      %8966 = vmatmul.mubr.bf16.gmra.mrb[0].mxu0 %v8739
      %v8967 = vpop.f32.mrb[0].mxu0
      %v8968 = vadd.f32 0.0, %v8967
      %v8969 = vpop.f32.mrb[0].mxu0
      %v8970 = vpop.f32.mrb[0].mxu0
      %v8971 = vadd.f32 0.0, %v8970
      %v8972 = vpop.f32.mrb[0].mxu0
      %8973 = vmatprep.mubr.bf16.mxu0 0
      %8974 = vmatmul.mubr.bf16.gmra.mrb[0].mxu0 %v8740
      %v8975 = vpop.f32.mrb[0].mxu0
      %v8976 = vadd.f32 0.0, %v8975
      %v8977 = vpop.f32.mrb[0].mxu0
      %v8978 = vpop.f32.mrb[0].mxu0
      %v8979 = vadd.f32 0.0, %v8978
      %v8980 = vpop.f32.mrb[0].mxu0
      %8981 = vmatprep.mubr.bf16.mxu0 0
      %8982 = vmatmul.mubr.bf16.gmra.mrb[0].mxu0 %v8741
      %v8983 = vpop.f32.mrb[0].mxu0
      %v8984 = vadd.f32 0.0, %v8983
      %v8985 = vpop.f32.mrb[0].mxu0
      %v8986 = vpop.f32.mrb[0].mxu0
      %v8987 = vadd.f32 0.0, %v8986
      %v8988 = vpop.f32.mrb[0].mxu0
      %8989 = vmatprep.mubr.bf16.mxu0 0
      %8990 = vmatmul.mubr.bf16.gmra.mrb[0].mxu0 %v8742
      %v8991 = vpop.f32.mrb[0].mxu0
      %v8992 = vadd.f32 0.0, %v8991
      %v8993 = vpop.f32.mrb[0].mxu0
      %v8994 = vpop.f32.mrb[0].mxu0
      %v8995 = vadd.f32 0.0, %v8994
      %v8996 = vpop.f32.mrb[0].mxu0
      %8997 = vmatprep.mubr.bf16.mxu0 0
      %8998 = vmatmul.mubr.bf16.gmra.mrb[0].mxu0 %v8743
      %v8999 = vpop.f32.mrb[0].mxu0
      %v9000 = vadd.f32 0.0, %v8999
      %v9001 = vpop.f32.mrb[0].mxu0
      %v9002 = vpop.f32.mrb[0].mxu0
      %v9003 = vadd.f32 0.0, %v9002
      %v9004 = vpop.f32.mrb[0].mxu0
      %9005 = vmatprep.mubr.bf16.mxu0 0
      %9006 = vmatmul.mubr.bf16.gmra.mrb[0].mxu0 %v8744
      %v9007 = vpop.f32.mrb[0].mxu0
      %v9008 = vadd.f32 0.0, %v9007
      %v9009 = vpop.f32.mrb[0].mxu0
      %v9010 = vpop.f32.mrb[0].mxu0
      %v9011 = vadd.f32 0.0, %v9010
      %v9012 = vpop.f32.mrb[0].mxu0
      %9013 = vmatprep.mubr.bf16.mxu0 0
      %9014 = vmatmul.mubr.bf16.gmra.mrb[0].mxu0 %v8745
      %v9015 = vpop.f32.mrb[0].mxu0
      %v9016 = vadd.f32 0.0, %v9015
      %v9017 = vpop.f32.mrb[0].mxu0
      %v9018 = vpop.f32.mrb[0].mxu0
      %v9019 = vadd.f32 0.0, %v9018
      %v9020 = vpop.f32.mrb[0].mxu0
      %9021 = vmatprep.mubr.bf16.mxu0 0
      %9022 = vmatmul.mubr.bf16.gmra.mrb[0].mxu0 %v8746
      %v9023 = vpop.f32.mrb[0].mxu0
      %v9024 = vadd.f32 0.0, %v9023
      %v9025 = vpop.f32.mrb[0].mxu0
      %v9026 = vpop.f32.mrb[0].mxu0
      %v9027 = vadd.f32 0.0, %v9026
      %v9028 = vpop.f32.mrb[0].mxu0
      %9029 = vmatprep.mubr.bf16.mxu0 0
      %9030 = vmatmul.mubr.bf16.gmra.mrb[0].mxu0 %v8747
      %v9031 = vpop.f32.mrb[0].mxu0
      %v9032 = vadd.f32 0.0, %v9031
      %v9033 = vpop.f32.mrb[0].mxu0
      %v9034 = vpop.f32.mrb[0].mxu0
      %v9035 = vadd.f32 0.0, %v9034
      %v9036 = vpop.f32.mrb[0].mxu0
      %9037 = vdwg.mxu0
      %v9038 = vadd.f32 %v8628, %v8848
      %v9039 = vadd.f32 %v8629, %v8851
      %v9040 = vadd.f32 %v8630, %v8856
      %v9041 = vadd.f32 %v8631, %v8859
      %v9042 = vadd.f32 %v8632, %v8864
      %v9043 = vadd.f32 %v8633, %v8867
      %v9044 = vadd.f32 %v8634, %v8872
      %v9045 = vadd.f32 %v8635, %v8875
      %v9046 = vadd.f32 %v8636, %v8880
      %v9047 = vadd.f32 %v8637, %v8883
      %v9048 = vadd.f32 %v8638, %v8888
      %v9049 = vadd.f32 %v8639, %v8891
      %v9050 = vadd.f32 %v8640, %v8896
      %v9051 = vadd.f32 %v8641, %v8899
      %v9052 = vadd.f32 %v8642, %v8904
      %v9053 = vadd.f32 %v8643, %v8907
      %v9054 = vadd.f32 %v8644, %v8912
      %v9055 = vadd.f32 %v8645, %v8915
      %v9056 = vadd.f32 %v8646, %v8920
      %v9057 = vadd.f32 %v8647, %v8923
      %v9058 = vadd.f32 %v8648, %v8928
      %v9059 = vadd.f32 %v8649, %v8931
      %v9060 = vadd.f32 %v8650, %v8936
      %v9061 = vadd.f32 %v8651, %v8939
      %v9062 = vadd.f32 %v8652, %v8944
      %v9063 = vadd.f32 %v8653, %v8947
      %v9064 = vadd.f32 %v8654, %v8952
      %v9065 = vadd.f32 %v8655, %v8955
      %v9066 = vadd.f32 %v8656, %v8960
      %v9067 = vadd.f32 %v8657, %v8963
      %v9068 = vadd.f32 %v8658, %v8968
      %v9069 = vadd.f32 %v8659, %v8971
      %v9070 = vadd.f32 %v8660, %v8976
      %v9071 = vadd.f32 %v8661, %v8979
      %v9072 = vadd.f32 %v8662, %v8984
      %v9073 = vadd.f32 %v8663, %v8987
      %v9074 = vadd.f32 %v8664, %v8992
      %v9075 = vadd.f32 %v8665, %v8995
      %v9076 = vadd.f32 %v8666, %v9000
      %v9077 = vadd.f32 %v8667, %v9003
      %v9078 = vadd.f32 %v8668, %v9008
      %v9079 = vadd.f32 %v8669, %v9011
      %v9080 = vadd.f32 %v8670, %v9016
      %v9081 = vadd.f32 %v8671, %v9019
      %v9082 = vadd.f32 %v8672, %v9024
      %v9083 = vadd.f32 %v8673, %v9027
      %v9084 = vadd.f32 %v8674, %v9032
      %v9085 = vadd.f32 %v8675, %v9035
      %v9087 = vlaneseq
      %v9088 = vshrl.u32 %v9087, 7
      %v9089 = vsub.s32 0, %v9088
      %v9090 = vrot.slane %v548, %v9089
      %v9092 = vadd.f32 %v9038, %v9090
      %v9093 = vadd.f32 %v9039, %v9090
      %v9094 = vadd.f32 %v9040, %v9090
      %v9095 = vadd.f32 %v9041, %v9090
      %v9096 = vadd.f32 %v9042, %v9090
      %v9097 = vadd.f32 %v9043, %v9090
      %v9098 = vadd.f32 %v9044, %v9090
      %v9099 = vadd.f32 %v9045, %v9090
      %v9100 = vadd.f32 %v9046, %v9090
      %v9101 = vadd.f32 %v9047, %v9090
      %v9102 = vadd.f32 %v9048, %v9090
      %v9103 = vadd.f32 %v9049, %v9090
      %v9104 = vadd.f32 %v9050, %v9090
      %v9105 = vadd.f32 %v9051, %v9090
      %v9106 = vadd.f32 %v9052, %v9090
      %v9107 = vadd.f32 %v9053, %v9090
      %v9108 = vadd.f32 %v9054, %v9090
      %v9109 = vadd.f32 %v9055, %v9090
      %v9110 = vadd.f32 %v9056, %v9090
      %v9111 = vadd.f32 %v9057, %v9090
      %v9112 = vadd.f32 %v9058, %v9090
      %v9113 = vadd.f32 %v9059, %v9090
      %v9114 = vadd.f32 %v9060, %v9090
      %v9115 = vadd.f32 %v9061, %v9090
      %v9116 = vadd.f32 %v9062, %v9090
      %v9117 = vadd.f32 %v9063, %v9090
      %v9118 = vadd.f32 %v9064, %v9090
      %v9119 = vadd.f32 %v9065, %v9090
      %v9120 = vadd.f32 %v9066, %v9090
      %v9121 = vadd.f32 %v9067, %v9090
      %v9122 = vadd.f32 %v9068, %v9090
      %v9123 = vadd.f32 %v9069, %v9090
      %v9124 = vadd.f32 %v9070, %v9090
      %v9125 = vadd.f32 %v9071, %v9090
      %v9126 = vadd.f32 %v9072, %v9090
      %v9127 = vadd.f32 %v9073, %v9090
      %v9128 = vadd.f32 %v9074, %v9090
      %v9129 = vadd.f32 %v9075, %v9090
      %v9130 = vadd.f32 %v9076, %v9090
      %v9131 = vadd.f32 %v9077, %v9090
      %v9132 = vadd.f32 %v9078, %v9090
      %v9133 = vadd.f32 %v9079, %v9090
      %v9134 = vadd.f32 %v9080, %v9090
      %v9135 = vadd.f32 %v9081, %v9090
      %v9136 = vadd.f32 %v9082, %v9090
      %v9137 = vadd.f32 %v9083, %v9090
      %v9138 = vadd.f32 %v9084, %v9090
      %v9139 = vadd.f32 %v9085, %v9090
      %v9140 = vld [vmem:[%s246 + $0x1a] sm:$0xff]
      %v9141 = vld [vmem:[%s246 + $0x22] sm:$0xff]
      %v9142 = vld [vmem:[%s246 + $0x2a] sm:$0xff]
      %v9143 = vld [vmem:[%s246 + $0x32] sm:$0xff]
      %v9144 = vld [vmem:[%s246 + $0x3a] sm:$0xff]
      %v9145 = vld [vmem:[%s246 + $0x42] sm:$0xff]
      %v9146 = vld [vmem:[%s246 + $0x4a] sm:$0xff]
      %v9147 = vld [vmem:[%s246 + $0x52] sm:$0xff]
      %v9148 = vld [vmem:[%s246 + $0x5a] sm:$0xff]
      %v9149 = vld [vmem:[%s246 + $0x62] sm:$0xff]
      %v9150 = vld [vmem:[%s246 + $0x6a] sm:$0xff]
      %v9151 = vld [vmem:[%s246 + $0x72] sm:$0xff]
      %v9152 = vld [vmem:[%s246 + $0x7a] sm:$0xff]
      %v9153 = vld [vmem:[%s246 + $0x82] sm:$0xff]
      %v9154 = vld [vmem:[%s246 + $0x8a] sm:$0xff]
      %v9155 = vld [vmem:[%s246 + $0x92] sm:$0xff]
      %v9156 = vld [vmem:[%s246 + $0x9a] sm:$0xff]
      %v9157 = vld [vmem:[%s246 + $0xa2] sm:$0xff]
      %v9158 = vld [vmem:[%s246 + $0xaa] sm:$0xff]
      %v9159 = vld [vmem:[%s246 + $0xb2] sm:$0xff]
      %v9160 = vld [vmem:[%s246 + $0xba] sm:$0xff]
      %v9161 = vld [vmem:[%s246 + $0xc2] sm:$0xff]
      %v9162 = vld [vmem:[%s246 + $0xca] sm:$0xff]
      %v9163 = vld [vmem:[%s246 + $0xd2] sm:$0xff]
      %v9164 = vld [vmem:[%s246 + $0xda] sm:$0xff]
      %v9165 = vld [vmem:[%s246 + $0xe2] sm:$0xff]
      %v9166 = vld [vmem:[%s246 + $0xea] sm:$0xff]
      %v9167 = vld [vmem:[%s246 + $0xf2] sm:$0xff]
      %v9168 = vld [vmem:[%s246 + $0xfa] sm:$0xff]
      %v9169 = vld [vmem:[%s246 + $0x102] sm:$0xff]
      %v9170 = vld [vmem:[%s246 + $0x10a] sm:$0xff]
      %v9171 = vld [vmem:[%s246 + $0x112] sm:$0xff]
      %v9172 = vld [vmem:[%s246 + $0x11a] sm:$0xff]
      %v9173 = vld [vmem:[%s246 + $0x122] sm:$0xff]
      %v9174 = vld [vmem:[%s246 + $0x12a] sm:$0xff]
      %v9175 = vld [vmem:[%s246 + $0x132] sm:$0xff]
      %v9176 = vld [vmem:[%s246 + $0x13a] sm:$0xff]
      %v9177 = vld [vmem:[%s246 + $0x142] sm:$0xff]
      %v9178 = vld [vmem:[%s246 + $0x14a] sm:$0xff]
      %v9179 = vld [vmem:[%s246 + $0x152] sm:$0xff]
      %v9180 = vld [vmem:[%s246 + $0x15a] sm:$0xff]
      %v9181 = vld [vmem:[%s246 + $0x162] sm:$0xff]
      %v9182 = vld [vmem:[%s246 + $0x16a] sm:$0xff]
      %v9183 = vld [vmem:[%s246 + $0x172] sm:$0xff]
      %v9184 = vld [vmem:[%s246 + $0x17a] sm:$0xff]
      %v9185 = vld [vmem:[%s246 + $0x182] sm:$0xff]
      %v9186 = vld [vmem:[%s246 + $0x18a] sm:$0xff]
      %v9187 = vld [vmem:[%s246 + $0x192] sm:$0xff]
      %v9188 = vpack.c.bf16 %v9141, %v9140
      %v9189 = vpack.c.bf16 %v9143, %v9142
      %v9190 = vpack.c.bf16 %v9145, %v9144
      %v9191 = vpack.c.bf16 %v9147, %v9146
      %v9192 = vpack.c.bf16 %v9149, %v9148
      %v9193 = vpack.c.bf16 %v9151, %v9150
      %v9194 = vpack.c.bf16 %v9153, %v9152
      %v9195 = vpack.c.bf16 %v9155, %v9154
      %v9196 = vpack.c.bf16 %v9157, %v9156
      %v9197 = vpack.c.bf16 %v9159, %v9158
      %v9198 = vpack.c.bf16 %v9161, %v9160
      %v9199 = vpack.c.bf16 %v9163, %v9162
      %v9200 = vpack.c.bf16 %v9165, %v9164
      %v9201 = vpack.c.bf16 %v9167, %v9166
      %v9202 = vpack.c.bf16 %v9169, %v9168
      %v9203 = vpack.c.bf16 %v9171, %v9170
      %v9204 = vpack.c.bf16 %v9173, %v9172
      %v9205 = vpack.c.bf16 %v9175, %v9174
      %v9206 = vpack.c.bf16 %v9177, %v9176
      %v9207 = vpack.c.bf16 %v9179, %v9178
      %v9208 = vpack.c.bf16 %v9181, %v9180
      %v9209 = vpack.c.bf16 %v9183, %v9182
      %v9210 = vpack.c.bf16 %v9185, %v9184
      %v9211 = vpack.c.bf16 %v9187, %v9186
      %v9212 = vld [vmem:[%s5] sm:$0xf]
      %v9213 = vld [vmem:[%s5 + $0x4] sm:$0xf]
      %v9214 = vld [vmem:[%s5 + $0x8] sm:$0xf]
      %v9215 = vld [vmem:[%s5 + $0xc] sm:$0xf]
      %v9216 = vld [vmem:[%s5 + $0x10] sm:$0xf]
      %v9217 = vld [vmem:[%s5 + $0x14] sm:$0xf]
      %v9218 = vld [vmem:[%s5 + $0x18] sm:$0xf]
      %v9219 = vld [vmem:[%s5 + $0x1c] sm:$0xf]
      %v9220 = vld [vmem:[%s5 + $0x20] sm:$0xf]
      %v9221 = vld [vmem:[%s5 + $0x24] sm:$0xf]
      %v9222 = vld [vmem:[%s5 + $0x28] sm:$0xf]
      %v9223 = vld [vmem:[%s5 + $0x2c] sm:$0xf]
      %v9224 = vld [vmem:[%s5 + $0x30] sm:$0xf]
      %v9225 = vld [vmem:[%s5 + $0x34] sm:$0xf]
      %v9226 = vld [vmem:[%s5 + $0x38] sm:$0xf]
      %v9227 = vld [vmem:[%s5 + $0x3c] sm:$0xf]
      %v9244 = vunpack.c.l.b16 %v9212
      %v9245 = vunpack.c.l.b16 %v9213
      %v9246 = vunpack.c.l.b16 %v9214
      %v9247 = vunpack.c.l.b16 %v9215
      %v9248 = vunpack.c.l.b16 %v9216
      %v9249 = vunpack.c.l.b16 %v9217
      %v9250 = vunpack.c.l.b16 %v9218
      %v9251 = vunpack.c.l.b16 %v9219
      %v9252 = vunpack.c.l.b16 %v9220
      %v9253 = vunpack.c.l.b16 %v9221
      %v9254 = vunpack.c.l.b16 %v9222
      %v9255 = vunpack.c.l.b16 %v9223
      %v9256 = vunpack.c.l.b16 %v9224
      %v9257 = vunpack.c.l.b16 %v9225
      %v9258 = vunpack.c.l.b16 %v9226
      %v9259 = vunpack.c.l.b16 %v9227
      %v9260 = vpack.c.b16 %v9245, %v9244
      %v9261 = vpack.c.b16 %v9247, %v9246
      %v9262 = vpack.c.b16 %v9249, %v9248
      %v9263 = vpack.c.b16 %v9251, %v9250
      %v9264 = vpack.c.b16 %v9253, %v9252
      %v9265 = vpack.c.b16 %v9255, %v9254
      %v9266 = vpack.c.b16 %v9257, %v9256
      %v9267 = vpack.c.b16 %v9259, %v9258
      %9276 = vmatprep.subr.bf16.mxu0 0
      %9277 = vmatpush1.bf16.msra.mxu0 %v9260
      %9278 = vmatprep.subr.bf16.mxu0 0
      %9279 = vmatpush1.bf16.msra.mxu0 %v9261
      %9280 = vmatprep.subr.bf16.mxu0 0
      %9281 = vmatpush1.bf16.msra.mxu0 %v9262
      %9282 = vmatprep.subr.bf16.mxu0 0
      %9283 = vmatpush1.bf16.msra.mxu0 %v9263
      %9284 = vmatprep.subr.bf16.mxu0 0
      %9285 = vmatpush1.bf16.msra.mxu0 %v9264
      %9286 = vmatprep.subr.bf16.mxu0 0
      %9287 = vmatpush1.bf16.msra.mxu0 %v9265
      %9288 = vmatprep.subr.bf16.mxu0 0
      %9289 = vmatpush1.bf16.msra.mxu0 %v9266
      %9290 = vmatprep.subr.bf16.mxu0 0
      %9291 = vmatpush1.bf16.msra.mxu0 %v9267
      %9292 = vmatprep.subr.bf16.mxu0 0
      %9293 = vmatpush1.bf16.msra.mxu0 0
      %9294 = vmatprep.subr.bf16.mxu0 0
      %9295 = vmatpush1.bf16.msra.mxu0 0
      %9296 = vmatprep.subr.bf16.mxu0 0
      %9297 = vmatpush1.bf16.msra.mxu0 0
      %9298 = vmatprep.subr.bf16.mxu0 0
      %9299 = vmatpush1.bf16.msra.mxu0 0
      %9300 = vmatprep.subr.bf16.mxu0 0
      %9301 = vmatpush1.bf16.msra.mxu0 0
      %9302 = vmatprep.subr.bf16.mxu0 0
      %9303 = vmatpush1.bf16.msra.mxu0 0
      %9304 = vmatprep.subr.bf16.mxu0 0
      %9305 = vmatpush1.bf16.msra.mxu0 0
      %9306 = vmatprep.subr.bf16.mxu0 0
      %9307 = vmatpush1.bf16.msra.mxu0 0
      %9308 = vmatprep.mubr.bf16.mxu0 0
      %9309 = vmatmul.mubr.bf16.gmra.mrb[0].mxu0 %v9188
      %v9310 = vpop.f32.mrb[0].mxu0
      %v9311 = vadd.f32 %v9092, %v9310
      %v9312 = vpop.f32.mrb[0].mxu0
      %v9313 = vpop.f32.mrb[0].mxu0
      %v9314 = vadd.f32 %v9093, %v9313
      %v9315 = vpop.f32.mrb[0].mxu0
      %9316 = vmatprep.mubr.bf16.mxu0 0
      %9317 = vmatmul.mubr.bf16.gmra.mrb[0].mxu0 %v9189
      %v9318 = vpop.f32.mrb[0].mxu0
      %v9319 = vadd.f32 %v9094, %v9318
      %v9320 = vpop.f32.mrb[0].mxu0
      %v9321 = vpop.f32.mrb[0].mxu0
      %v9322 = vadd.f32 %v9095, %v9321
      %v9323 = vpop.f32.mrb[0].mxu0
      %9324 = vmatprep.mubr.bf16.mxu0 0
      %9325 = vmatmul.mubr.bf16.gmra.mrb[0].mxu0 %v9190
      %v9326 = vpop.f32.mrb[0].mxu0
      %v9327 = vadd.f32 %v9096, %v9326
      %v9328 = vpop.f32.mrb[0].mxu0
      %v9329 = vpop.f32.mrb[0].mxu0
      %v9330 = vadd.f32 %v9097, %v9329
      %v9331 = vpop.f32.mrb[0].mxu0
      %9332 = vmatprep.mubr.bf16.mxu0 0
      %9333 = vmatmul.mubr.bf16.gmra.mrb[0].mxu0 %v9191
      %v9334 = vpop.f32.mrb[0].mxu0
      %v9335 = vadd.f32 %v9098, %v9334
      %v9336 = vpop.f32.mrb[0].mxu0
      %v9337 = vpop.f32.mrb[0].mxu0
      %v9338 = vadd.f32 %v9099, %v9337
      %v9339 = vpop.f32.mrb[0].mxu0
      %9340 = vmatprep.mubr.bf16.mxu0 0
      %9341 = vmatmul.mubr.bf16.gmra.mrb[0].mxu0 %v9192
      %v9342 = vpop.f32.mrb[0].mxu0
      %v9343 = vadd.f32 %v9100, %v9342
      %v9344 = vpop.f32.mrb[0].mxu0
      %v9345 = vpop.f32.mrb[0].mxu0
      %v9346 = vadd.f32 %v9101, %v9345
      %v9347 = vpop.f32.mrb[0].mxu0
      %9348 = vmatprep.mubr.bf16.mxu0 0
      %9349 = vmatmul.mubr.bf16.gmra.mrb[0].mxu0 %v9193
      %v9350 = vpop.f32.mrb[0].mxu0
      %v9351 = vadd.f32 %v9102, %v9350
      %v9352 = vpop.f32.mrb[0].mxu0
      %v9353 = vpop.f32.mrb[0].mxu0
      %v9354 = vadd.f32 %v9103, %v9353
      %v9355 = vpop.f32.mrb[0].mxu0
      %9356 = vmatprep.mubr.bf16.mxu0 0
      %9357 = vmatmul.mubr.bf16.gmra.mrb[0].mxu0 %v9194
      %v9358 = vpop.f32.mrb[0].mxu0
      %v9359 = vadd.f32 %v9104, %v9358
      %v9360 = vpop.f32.mrb[0].mxu0
      %v9361 = vpop.f32.mrb[0].mxu0
      %v9362 = vadd.f32 %v9105, %v9361
      %v9363 = vpop.f32.mrb[0].mxu0
      %9364 = vmatprep.mubr.bf16.mxu0 0
      %9365 = vmatmul.mubr.bf16.gmra.mrb[0].mxu0 %v9195
      %v9366 = vpop.f32.mrb[0].mxu0
      %v9367 = vadd.f32 %v9106, %v9366
      %v9368 = vpop.f32.mrb[0].mxu0
      %v9369 = vpop.f32.mrb[0].mxu0
      %v9370 = vadd.f32 %v9107, %v9369
      %v9371 = vpop.f32.mrb[0].mxu0
      %9372 = vmatprep.mubr.bf16.mxu0 0
      %9373 = vmatmul.mubr.bf16.gmra.mrb[0].mxu0 %v9196
      %v9374 = vpop.f32.mrb[0].mxu0
      %v9375 = vadd.f32 %v9108, %v9374
      %v9376 = vpop.f32.mrb[0].mxu0
      %v9377 = vpop.f32.mrb[0].mxu0
      %v9378 = vadd.f32 %v9109, %v9377
      %v9379 = vpop.f32.mrb[0].mxu0
      %9380 = vmatprep.mubr.bf16.mxu0 0
      %9381 = vmatmul.mubr.bf16.gmra.mrb[0].mxu0 %v9197
      %v9382 = vpop.f32.mrb[0].mxu0
      %v9383 = vadd.f32 %v9110, %v9382
      %v9384 = vpop.f32.mrb[0].mxu0
      %v9385 = vpop.f32.mrb[0].mxu0
      %v9386 = vadd.f32 %v9111, %v9385
      %v9387 = vpop.f32.mrb[0].mxu0
      %9388 = vmatprep.mubr.bf16.mxu0 0
      %9389 = vmatmul.mubr.bf16.gmra.mrb[0].mxu0 %v9198
      %v9390 = vpop.f32.mrb[0].mxu0
      %v9391 = vadd.f32 %v9112, %v9390
      %v9392 = vpop.f32.mrb[0].mxu0
      %v9393 = vpop.f32.mrb[0].mxu0
      %v9394 = vadd.f32 %v9113, %v9393
      %v9395 = vpop.f32.mrb[0].mxu0
      %9396 = vmatprep.mubr.bf16.mxu0 0
      %9397 = vmatmul.mubr.bf16.gmra.mrb[0].mxu0 %v9199
      %v9398 = vpop.f32.mrb[0].mxu0
      %v9399 = vadd.f32 %v9114, %v9398
      %v9400 = vpop.f32.mrb[0].mxu0
      %v9401 = vpop.f32.mrb[0].mxu0
      %v9402 = vadd.f32 %v9115, %v9401
      %v9403 = vpop.f32.mrb[0].mxu0
      %9404 = vmatprep.mubr.bf16.mxu0 0
      %9405 = vmatmul.mubr.bf16.gmra.mrb[0].mxu0 %v9200
      %v9406 = vpop.f32.mrb[0].mxu0
      %v9407 = vadd.f32 %v9116, %v9406
      %v9408 = vpop.f32.mrb[0].mxu0
      %v9409 = vpop.f32.mrb[0].mxu0
      %v9410 = vadd.f32 %v9117, %v9409
      %v9411 = vpop.f32.mrb[0].mxu0
      %9412 = vmatprep.mubr.bf16.mxu0 0
      %9413 = vmatmul.mubr.bf16.gmra.mrb[0].mxu0 %v9201
      %v9414 = vpop.f32.mrb[0].mxu0
      %v9415 = vadd.f32 %v9118, %v9414
      %v9416 = vpop.f32.mrb[0].mxu0
      %v9417 = vpop.f32.mrb[0].mxu0
      %v9418 = vadd.f32 %v9119, %v9417
      %v9419 = vpop.f32.mrb[0].mxu0
      %9420 = vmatprep.mubr.bf16.mxu0 0
      %9421 = vmatmul.mubr.bf16.gmra.mrb[0].mxu0 %v9202
      %v9422 = vpop.f32.mrb[0].mxu0
      %v9423 = vadd.f32 %v9120, %v9422
      %v9424 = vpop.f32.mrb[0].mxu0
      %v9425 = vpop.f32.mrb[0].mxu0
      %v9426 = vadd.f32 %v9121, %v9425
      %v9427 = vpop.f32.mrb[0].mxu0
      %9428 = vmatprep.mubr.bf16.mxu0 0
      %9429 = vmatmul.mubr.bf16.gmra.mrb[0].mxu0 %v9203
      %v9430 = vpop.f32.mrb[0].mxu0
      %v9431 = vadd.f32 %v9122, %v9430
      %v9432 = vpop.f32.mrb[0].mxu0
      %v9433 = vpop.f32.mrb[0].mxu0
      %v9434 = vadd.f32 %v9123, %v9433
      %v9435 = vpop.f32.mrb[0].mxu0
      %9436 = vmatprep.mubr.bf16.mxu0 0
      %9437 = vmatmul.mubr.bf16.gmra.mrb[0].mxu0 %v9204
      %v9438 = vpop.f32.mrb[0].mxu0
      %v9439 = vadd.f32 %v9124, %v9438
      %v9440 = vpop.f32.mrb[0].mxu0
      %v9441 = vpop.f32.mrb[0].mxu0
      %v9442 = vadd.f32 %v9125, %v9441
      %v9443 = vpop.f32.mrb[0].mxu0
      %9444 = vmatprep.mubr.bf16.mxu0 0
      %9445 = vmatmul.mubr.bf16.gmra.mrb[0].mxu0 %v9205
      %v9446 = vpop.f32.mrb[0].mxu0
      %v9447 = vadd.f32 %v9126, %v9446
      %v9448 = vpop.f32.mrb[0].mxu0
      %v9449 = vpop.f32.mrb[0].mxu0
      %v9450 = vadd.f32 %v9127, %v9449
      %v9451 = vpop.f32.mrb[0].mxu0
      %9452 = vmatprep.mubr.bf16.mxu0 0
      %9453 = vmatmul.mubr.bf16.gmra.mrb[0].mxu0 %v9206
      %v9454 = vpop.f32.mrb[0].mxu0
      %v9455 = vadd.f32 %v9128, %v9454
      %v9456 = vpop.f32.mrb[0].mxu0
      %v9457 = vpop.f32.mrb[0].mxu0
      %v9458 = vadd.f32 %v9129, %v9457
      %v9459 = vpop.f32.mrb[0].mxu0
      %9460 = vmatprep.mubr.bf16.mxu0 0
      %9461 = vmatmul.mubr.bf16.gmra.mrb[0].mxu0 %v9207
      %v9462 = vpop.f32.mrb[0].mxu0
      %v9463 = vadd.f32 %v9130, %v9462
      %v9464 = vpop.f32.mrb[0].mxu0
      %v9465 = vpop.f32.mrb[0].mxu0
      %v9466 = vadd.f32 %v9131, %v9465
      %v9467 = vpop.f32.mrb[0].mxu0
      %9468 = vmatprep.mubr.bf16.mxu0 0
      %9469 = vmatmul.mubr.bf16.gmra.mrb[0].mxu0 %v9208
      %v9470 = vpop.f32.mrb[0].mxu0
      %v9471 = vadd.f32 %v9132, %v9470
      %v9472 = vpop.f32.mrb[0].mxu0
      %v9473 = vpop.f32.mrb[0].mxu0
      %v9474 = vadd.f32 %v9133, %v9473
      %v9475 = vpop.f32.mrb[0].mxu0
      %9476 = vmatprep.mubr.bf16.mxu0 0
      %9477 = vmatmul.mubr.bf16.gmra.mrb[0].mxu0 %v9209
      %v9478 = vpop.f32.mrb[0].mxu0
      %v9479 = vadd.f32 %v9134, %v9478
      %v9480 = vpop.f32.mrb[0].mxu0
      %v9481 = vpop.f32.mrb[0].mxu0
      %v9482 = vadd.f32 %v9135, %v9481
      %v9483 = vpop.f32.mrb[0].mxu0
      %9484 = vmatprep.mubr.bf16.mxu0 0
      %9485 = vmatmul.mubr.bf16.gmra.mrb[0].mxu0 %v9210
      %v9486 = vpop.f32.mrb[0].mxu0
      %v9487 = vadd.f32 %v9136, %v9486
      %v9488 = vpop.f32.mrb[0].mxu0
      %v9489 = vpop.f32.mrb[0].mxu0
      %v9490 = vadd.f32 %v9137, %v9489
      %v9491 = vpop.f32.mrb[0].mxu0
      %9492 = vmatprep.mubr.bf16.mxu0 0
      %9493 = vmatmul.mubr.bf16.gmra.mrb[0].mxu0 %v9211
      %v9494 = vpop.f32.mrb[0].mxu0
      %v9495 = vadd.f32 %v9138, %v9494
      %v9496 = vpop.f32.mrb[0].mxu0
      %v9497 = vpop.f32.mrb[0].mxu0
      %v9498 = vadd.f32 %v9139, %v9497
      %v9499 = vpop.f32.mrb[0].mxu0
      %9500 = vdwg.mxu0
      %v9501 = vmul.f32 %v9311, 0.70710677
      %v9502 = vmul.f32 %v9314, 0.70710677
      %v9503 = vmul.f32 %v9319, 0.70710677
      %v9504 = vmul.f32 %v9322, 0.70710677
      %v9505 = vmul.f32 %v9327, 0.70710677
      %v9506 = vmul.f32 %v9330, 0.70710677
      %v9507 = vmul.f32 %v9335, 0.70710677
      %v9508 = vmul.f32 %v9338, 0.70710677
      %v9509 = vmul.f32 %v9343, 0.70710677
      %v9510 = vmul.f32 %v9346, 0.70710677
      %v9511 = vmul.f32 %v9351, 0.70710677
      %v9512 = vmul.f32 %v9354, 0.70710677
      %v9513 = vmul.f32 %v9359, 0.70710677
      %v9514 = vmul.f32 %v9362, 0.70710677
      %v9515 = vmul.f32 %v9367, 0.70710677
      %v9516 = vmul.f32 %v9370, 0.70710677
      %v9517 = vmul.f32 %v9375, 0.70710677
      %v9518 = vmul.f32 %v9378, 0.70710677
      %v9519 = vmul.f32 %v9383, 0.70710677
      %v9520 = vmul.f32 %v9386, 0.70710677
      %v9521 = vmul.f32 %v9391, 0.70710677
      %v9522 = vmul.f32 %v9394, 0.70710677
      %v9523 = vmul.f32 %v9399, 0.70710677
      %v9524 = vmul.f32 %v9402, 0.70710677
      %v9525 = vmul.f32 %v9407, 0.70710677
      %v9526 = vmul.f32 %v9410, 0.70710677
      %v9527 = vmul.f32 %v9415, 0.70710677
      %v9528 = vmul.f32 %v9418, 0.70710677
      %v9529 = vmul.f32 %v9423, 0.70710677
      %v9530 = vmul.f32 %v9426, 0.70710677
      %v9531 = vmul.f32 %v9431, 0.70710677
      %v9532 = vmul.f32 %v9434, 0.70710677
      %v9533 = vmul.f32 %v9439, 0.70710677
      %v9534 = vmul.f32 %v9442, 0.70710677
      %v9535 = vmul.f32 %v9447, 0.70710677
      %v9536 = vmul.f32 %v9450, 0.70710677
      %v9537 = vmul.f32 %v9455, 0.70710677
      %v9538 = vmul.f32 %v9458, 0.70710677
      %v9539 = vmul.f32 %v9463, 0.70710677
      %v9540 = vmul.f32 %v9466, 0.70710677
      %v9541 = vmul.f32 %v9471, 0.70710677
      %v9542 = vmul.f32 %v9474, 0.70710677
      %v9543 = vmul.f32 %v9479, 0.70710677
      %v9544 = vmul.f32 %v9482, 0.70710677
      %v9545 = vmul.f32 %v9487, 0.70710677
      %v9546 = vmul.f32 %v9490, 0.70710677
      %v9547 = vmul.f32 %v9495, 0.70710677
      %v9548 = vmul.f32 %v9498, 0.70710677
      %9549 = vst [vmem:[%s251] sm:$0xff] %v9501
      %9550 = vst [vmem:[%s251 + $0x8] sm:$0xff] %v9502
      %9551 = vst [vmem:[%s251 + $0x10] sm:$0xff] %v9503
      %9552 = vst [vmem:[%s251 + $0x18] sm:$0xff] %v9504
      %9553 = vst [vmem:[%s251 + $0x20] sm:$0xff] %v9505
      %9554 = vst [vmem:[%s251 + $0x28] sm:$0xff] %v9506
      %9555 = vst [vmem:[%s251 + $0x30] sm:$0xff] %v9507
      %9556 = vst [vmem:[%s251 + $0x38] sm:$0xff] %v9508
      %9557 = vst [vmem:[%s251 + $0x40] sm:$0xff] %v9509
      %9558 = vst [vmem:[%s251 + $0x48] sm:$0xff] %v9510
      %9559 = vst [vmem:[%s251 + $0x50] sm:$0xff] %v9511
      %9560 = vst [vmem:[%s251 + $0x58] sm:$0xff] %v9512
      %9561 = vst [vmem:[%s251 + $0x60] sm:$0xff] %v9513
      %9562 = vst [vmem:[%s251 + $0x68] sm:$0xff] %v9514
      %9563 = vst [vmem:[%s251 + $0x70] sm:$0xff] %v9515
      %9564 = vst [vmem:[%s251 + $0x78] sm:$0xff] %v9516
      %9565 = vst [vmem:[%s251 + $0x80] sm:$0xff] %v9517
      %9566 = vst [vmem:[%s251 + $0x88] sm:$0xff] %v9518
      %9567 = vst [vmem:[%s251 + $0x90] sm:$0xff] %v9519
      %9568 = vst [vmem:[%s251 + $0x98] sm:$0xff] %v9520
      %9569 = vst [vmem:[%s251 + $0xa0] sm:$0xff] %v9521
      %9570 = vst [vmem:[%s251 + $0xa8] sm:$0xff] %v9522
      %9571 = vst [vmem:[%s251 + $0xb0] sm:$0xff] %v9523
      %9572 = vst [vmem:[%s251 + $0xb8] sm:$0xff] %v9524
      %9573 = vst [vmem:[%s251 + $0xc0] sm:$0xff] %v9525
      %9574 = vst [vmem:[%s251 + $0xc8] sm:$0xff] %v9526
      %9575 = vst [vmem:[%s251 + $0xd0] sm:$0xff] %v9527
      %9576 = vst [vmem:[%s251 + $0xd8] sm:$0xff] %v9528
      %9577 = vst [vmem:[%s251 + $0xe0] sm:$0xff] %v9529
      %9578 = vst [vmem:[%s251 + $0xe8] sm:$0xff] %v9530
      %9579 = vst [vmem:[%s251 + $0xf0] sm:$0xff] %v9531
      %9580 = vst [vmem:[%s251 + $0xf8] sm:$0xff] %v9532
      %9581 = vst [vmem:[%s251 + $0x100] sm:$0xff] %v9533
      %9582 = vst [vmem:[%s251 + $0x108] sm:$0xff] %v9534
      %9583 = vst [vmem:[%s251 + $0x110] sm:$0xff] %v9535
      %9584 = vst [vmem:[%s251 + $0x118] sm:$0xff] %v9536
      %9585 = vst [vmem:[%s251 + $0x120] sm:$0xff] %v9537
      %9586 = vst [vmem:[%s251 + $0x128] sm:$0xff] %v9538
      %9587 = vst [vmem:[%s251 + $0x130] sm:$0xff] %v9539
      %9588 = vst [vmem:[%s251 + $0x138] sm:$0xff] %v9540
      %9589 = vst [vmem:[%s251 + $0x140] sm:$0xff] %v9541
      %9590 = vst [vmem:[%s251 + $0x148] sm:$0xff] %v9542
      %9591 = vst [vmem:[%s251 + $0x150] sm:$0xff] %v9543
      %9592 = vst [vmem:[%s251 + $0x158] sm:$0xff] %v9544
      %9593 = vst [vmem:[%s251 + $0x160] sm:$0xff] %v9545
      %9594 = vst [vmem:[%s251 + $0x168] sm:$0xff] %v9546
      %9595 = vst [vmem:[%s251 + $0x170] sm:$0xff] %v9547
      %9596 = vst [vmem:[%s251 + $0x178] sm:$0xff] %v9548
      %p9597 = scmp.lt.s32.totalorder %s17, 1
      %s9598 = scalar_select %p9597, %s17, 1
      %s9599 = smul.addr %s9598, 48
      %s9600 = smul.addr %s9599, 8
      %s9601 = scalar_lea.vmem %s6, %s9600
      // Predicated region
      $region45: #{resblk_forward.1} parent=43 // pred_check
        %p9602 = pneg %p166
      $region46: #{resblk_forward.1} parent=43 // pred_check_branch
        %9604 = sbr.rel (%p9602) target = $region48
      $region47: #{resblk_forward.1} parent=43 // pred_region
        _
      $region48: #{resblk_forward.1} parent=43 // pred_fallthru
        _
    $region44: #{resblk_forward.1} parent=5 // pred_fallthru
      _
    %p9605 = scmp.le.s32.totalorder 2, %s12
    // Predicated region
    $region49: #{resblk_forward.1} parent=5 // pred_check
      %p9606 = pneg %p9605
    $region50: #{resblk_forward.1} parent=5 // pred_check_branch
      %9608 = sbr.rel (%p9606) target = $region52
    $region51: #{resblk_forward.1} parent=5 // pred_region
      %s9609 = ssub.s32 %s12, 2
      // Predicated region
      $region53: #{resblk_forward.1} parent=51 // pred_check
        %p9610 = pneg %p172
      $region54: #{resblk_forward.1} parent=51 // pred_check_branch
        %9612 = sbr.rel (%p9610) target = $region56
      $region55: #{resblk_forward.1} parent=51 // pred_region
        %p9613 = scmp.lt.s32.totalorder %s18, 1
        %s9614 = scalar_select %p9613, %s18, 1
        %s9615 = smul.addr %s9614, 48
        %s9616 = smul.addr %s9615, 8
        %s9617 = scalar_lea.vmem %s6, %s9616
      $region56: #{resblk_forward.1} parent=51 // pred_fallthru
        _
    $region52: #{resblk_forward.1} parent=5 // pred_fallthru
      _
  $region6: #{resblk_forward.1} parent=0 // loop_footer
    %s16 = sadd.s32 1, %s12
  $region7: #{resblk_forward.1} parent=0 // loop_footer_branch
    %11 = sbr.rel target = $region3
  $region8: #{resblk_forward.1} parent=0 // loop_exit
    _

</llo_original>
